<compile_context>
chip_gen: v5e
topology: v5e:2x2
jax: 0.10.0
libtpu: 0.0.40
codegen_flags: <defaults>
</compile_context>

<pallas_src>
import functools

import jax
import jax.numpy as jnp
from jax.experimental import pallas as pl
from jax.experimental.pallas import tpu as pltpu


# ----------------------------------------------------------------------------
# Fused kernel: fc1..fc4 (ReLU) + one output-feature tile of fc5 (Tanh).
# ----------------------------------------------------------------------------
def _decoder_kernel(x_ref,
                    w1_ref, b1_ref, w2_ref, b2_ref, w3_ref, b3_ref,
                    w4_ref, b4_ref, w5_ref, b5_ref,
                    o_ref):
    # x_ref : (Bp, K)        bf16, full (padded) batch, constant across grid
    # wN_ref: bf16 weights; fc1..fc4 full + VMEM-resident, fc5 one (1024, TN) tile
    # bN_ref: (1, feat) bf16 bias rows
    # o_ref : (Bp, TN) f32 output tile of fc5
    compute_dt = w1_ref.dtype  # bf16

    def dense(h, w_ref, b_ref):
        acc = jnp.dot(h, w_ref[...], preferred_element_type=jnp.float32)
        return acc + b_ref[...].astype(jnp.float32)  # (1, feat) broadcasts over batch

    h = x_ref[...]
    h = jnp.maximum(dense(h, w1_ref, b1_ref), 0.0).astype(compute_dt)
    h = jnp.maximum(dense(h, w2_ref, b2_ref), 0.0).astype(compute_dt)
    h = jnp.maximum(dense(h, w3_ref, b3_ref), 0.0).astype(compute_dt)
    h = jnp.maximum(dense(h, w4_ref, b4_ref), 0.0).astype(compute_dt)
    y = jnp.tanh(dense(h, w5_ref, b5_ref))
    o_ref[...] = y.astype(o_ref.dtype)


def _pick_out_tile(n):
    """Widest lane-dense tile that divides the fc5 output width."""
    for t in (512, 384, 256, 128):
        if n % t == 0:
            return t
    return n  # ragged width: single full-N tile (block dim == full array dim is legal)


# ----------------------------------------------------------------------------
# Decoder parameters + forward pass
# ----------------------------------------------------------------------------
def init_decoder_params(key, size_encoder, num_points, dtype=jnp.bfloat16):
    """nn.Linear-style init (uniform ±1/sqrt(fan_in)), stored in bf16 for streaming."""
    dims = [
        (size_encoder, 512),     # fc1
        (512, 512),              # fc2
        (512, 1024),             # fc3
        (1024, 1024),            # fc4
        (1024, num_points * 3),  # fc5
    ]
    params = []
    for fan_in, fan_out in dims:
        key, kw, kb = jax.random.split(key, 3)
        bound = 1.0 / (fan_in ** 0.5)
        w = jax.random.uniform(kw, (fan_in, fan_out), jnp.float32, -bound, bound)
        b = jax.random.uniform(kb, (fan_out,), jnp.float32, -bound, bound)
        params.append((w.astype(dtype), b.astype(dtype)))
    return params


def decoder_forward(params, x, num_points):
    """x: (B, size_encoder) float -> (B, num_points, 3) float32."""
    (w1, b1), (w2, b2), (w3, b3), (w4, b4), (w5, b5) = params
    B, K = x.shape
    N5 = w5.shape[1]
    assert N5 == num_points * 3

    # Pad batch to a sublane multiple (8): unmasked stores / full vregs.
    B_pad = max(8, -(-B // 8) * 8)
    x_p = jnp.zeros((B_pad, K), w1.dtype).at[:B].set(x.astype(w1.dtype))

    tn5 = _pick_out_tile(N5)
    grid = (N5 // tn5,)

    const = lambda j: (0, 0)      # VMEM-resident across all grid steps
    tiled = lambda j: (0, j)      # streamed per fc5 output tile

    in_specs = [
        pl.BlockSpec((B_pad, K), const),
        pl.BlockSpec(w1.shape, const), pl.BlockSpec((1, w1.shape[1]), const),
        pl.BlockSpec(w2.shape, const), pl.BlockSpec((1, w2.shape[1]), const),
        pl.BlockSpec(w3.shape, const), pl.BlockSpec((1, w3.shape[1]), const),
        pl.BlockSpec(w4.shape, const), pl.BlockSpec((1, w4.shape[1]), const),
        pl.BlockSpec((w5.shape[0], tn5), tiled),
        pl.BlockSpec((1, tn5), tiled),
    ]
    out_spec = pl.BlockSpec((B_pad, tn5), tiled)

    out = pl.pallas_call(
        _decoder_kernel,
        out_shape=jax.ShapeDtypeStruct((B_pad, N5), jnp.float32),
        grid_spec=pltpu.PrefetchScalarGridSpec(
            num_scalar_prefetch=0,
            grid=grid,
            in_specs=in_specs,
            out_specs=out_spec,
        ),
        compiler_params=pltpu.CompilerParams(
            dimension_semantics=("parallel",),      # megacore splits fc5 tiles (v7x)
            vmem_limit_bytes=32 * 1024 * 1024,
        ),
    )(x_p,
      w1, b1.reshape(1, -1), w2, b2.reshape(1, -1),
      w3, b3.reshape(1, -1), w4, b4.reshape(1, -1),
      w5, b5.reshape(1, -1))

    return out[:B].reshape(B, num_points, 3)


# ----------------------------------------------------------------------------
# Demo / smoke test
# ----------------------------------------------------------------------------
if __name__ == "__main__":
    SIZE_ENCODER = 32
    NUM_POINTS = 128          # num_points*3 = 384 (lane-dense, 3x128)
    BATCH = 2

    key = jax.random.PRNGKey(0)
    key, kx = jax.random.split(key)
    x = jax.random.normal(kx, (BATCH, SIZE_ENCODER), jnp.float32)

    params = init_decoder_params(key, SIZE_ENCODER, NUM_POINTS)

    fwd = jax.jit(functools.partial(decoder_forward, num_points=NUM_POINTS))
    out = jax.block_until_ready(fwd(params, x))

    # sanity: shape and tanh bound
    assert out.shape == (BATCH, NUM_POINTS, 3)
    assert bool(jnp.all(jnp.abs(out) <= 1.0 + 1e-6))

    # reference check: plain JAX with the same bf16 params / bf16 activations,
    # f32 accumulation — mirrors the kernel's numerics.
    def ref_forward(params, x):
        h = x.astype(jnp.bfloat16)
        for i, (w, b) in enumerate(params):
            z = jnp.dot(h, w, preferred_element_type=jnp.float32)
            z = z + b.astype(jnp.float32)
            if i == len(params) - 1:
                h = jnp.tanh(z)
            else:
                h = jnp.maximum(z, 0.0).astype(jnp.bfloat16)
        return h.reshape(x.shape[0], NUM_POINTS, 3)

    ref = ref_forward(params, x)
    assert bool(jnp.allclose(out, ref, atol=1e-2, rtol=1e-2)), (
        f"max abs err {float(jnp.max(jnp.abs(out - ref)))}")

    print("KERNEL_OK")
</pallas_src>

<mosaic_0001>
module attributes {stable_mosaic.version = 11 : i64} {
  func.func @_decoder_kernel(%arg0: i32, %arg1: memref<8x32xbf16, #tpu.memory_space<vmem>>, %arg2: memref<32x512xbf16, #tpu.memory_space<vmem>>, %arg3: memref<1x512xbf16, #tpu.memory_space<vmem>>, %arg4: memref<512x512xbf16, #tpu.memory_space<vmem>>, %arg5: memref<1x512xbf16, #tpu.memory_space<vmem>>, %arg6: memref<512x1024xbf16, #tpu.memory_space<vmem>>, %arg7: memref<1x1024xbf16, #tpu.memory_space<vmem>>, %arg8: memref<1024x1024xbf16, #tpu.memory_space<vmem>>, %arg9: memref<1x1024xbf16, #tpu.memory_space<vmem>>, %arg10: memref<1024x384xbf16, #tpu.memory_space<vmem>>, %arg11: memref<1x384xbf16, #tpu.memory_space<vmem>>, %arg12: memref<8x384xf32, #tpu.memory_space<vmem>>) attributes {dimension_semantics = [#tpu.dimension_semantics<parallel>], iteration_bounds = array<i64: 1>, scalar_prefetch = 0 : i64, scratch_operands = 0 : i64, tpu.core_type = #tpu.core_type<tc>, window_params = [{pipeline_mode = #tpu.pipeline_mode<synchronous>, transform_indices = @transform_0, window_bounds = array<i64: 8, 32>}, {pipeline_mode = #tpu.pipeline_mode<synchronous>, transform_indices = @transform_1, window_bounds = array<i64: 32, 512>}, {pipeline_mode = #tpu.pipeline_mode<synchronous>, transform_indices = @transform_2, window_bounds = array<i64: 1, 512>}, {pipeline_mode = #tpu.pipeline_mode<synchronous>, transform_indices = @transform_3, window_bounds = array<i64: 512, 512>}, {pipeline_mode = #tpu.pipeline_mode<synchronous>, transform_indices = @transform_4, window_bounds = array<i64: 1, 512>}, {pipeline_mode = #tpu.pipeline_mode<synchronous>, transform_indices = @transform_5, window_bounds = array<i64: 512, 1024>}, {pipeline_mode = #tpu.pipeline_mode<synchronous>, transform_indices = @transform_6, window_bounds = array<i64: 1, 1024>}, {pipeline_mode = #tpu.pipeline_mode<synchronous>, transform_indices = @transform_7, window_bounds = array<i64: 1024, 1024>}, {pipeline_mode = #tpu.pipeline_mode<synchronous>, transform_indices = @transform_8, window_bounds = array<i64: 1, 1024>}, {transform_indices = @transform_9, window_bounds = array<i64: 1024, 384>}, {transform_indices = @transform_10, window_bounds = array<i64: 1, 384>}, {transform_indices = @transform_11, window_bounds = array<i64: 8, 384>}]} {
    %c0 = arith.constant 0 : index
    %c0_0 = arith.constant 0 : index
    %0 = vector.load %arg1[%c0, %c0_0] : memref<8x32xbf16, #tpu.memory_space<vmem>>, vector<8x32xbf16>
    %c0_1 = arith.constant 0 : index
    %c0_2 = arith.constant 0 : index
    %1 = vector.load %arg2[%c0_1, %c0_2] : memref<32x512xbf16, #tpu.memory_space<vmem>>, vector<32x512xbf16>
    %cst = arith.constant dense<0.000000e+00> : vector<8x512xf32>
    %2 = tpu.matmul %0, %1, %cst {dimension_numbers = #tpu.dot_dimension_numbers<[1], [0], [0], [1], [0, 0, 1, 1], [], []>} : vector<8x32xbf16>, vector<32x512xbf16>, vector<8x512xf32> -> vector<8x512xf32>
    %c0_3 = arith.constant 0 : index
    %c0_4 = arith.constant 0 : index
    %3 = vector.load %arg3[%c0_3, %c0_4] : memref<1x512xbf16, #tpu.memory_space<vmem>>, vector<1x512xbf16>
    %4 = arith.extf %3 : vector<1x512xbf16> to vector<1x512xf32>
    %5 = vector.broadcast %4 : vector<1x512xf32> to vector<8x512xf32>
    %6 = arith.addf %2, %5 : vector<8x512xf32>
    %cst_5 = arith.constant 0.000000e+00 : f32
    %7 = vector.broadcast %cst_5 : f32 to vector<8x512xf32>
    %8 = arith.maximumf %6, %7 : vector<8x512xf32>
    %9 = arith.truncf %8 : vector<8x512xf32> to vector<8x512xbf16>
    %c0_6 = arith.constant 0 : index
    %c0_7 = arith.constant 0 : index
    %10 = vector.load %arg4[%c0_6, %c0_7] : memref<512x512xbf16, #tpu.memory_space<vmem>>, vector<512x512xbf16>
    %cst_8 = arith.constant dense<0.000000e+00> : vector<8x512xf32>
    %11 = tpu.matmul %9, %10, %cst_8 {dimension_numbers = #tpu.dot_dimension_numbers<[1], [0], [0], [1], [0, 0, 1, 1], [], []>} : vector<8x512xbf16>, vector<512x512xbf16>, vector<8x512xf32> -> vector<8x512xf32>
    %c0_9 = arith.constant 0 : index
    %c0_10 = arith.constant 0 : index
    %12 = vector.load %arg5[%c0_9, %c0_10] : memref<1x512xbf16, #tpu.memory_space<vmem>>, vector<1x512xbf16>
    %13 = arith.extf %12 : vector<1x512xbf16> to vector<1x512xf32>
    %14 = vector.broadcast %13 : vector<1x512xf32> to vector<8x512xf32>
    %15 = arith.addf %11, %14 : vector<8x512xf32>
    %cst_11 = arith.constant 0.000000e+00 : f32
    %16 = vector.broadcast %cst_11 : f32 to vector<8x512xf32>
    %17 = arith.maximumf %15, %16 : vector<8x512xf32>
    %18 = arith.truncf %17 : vector<8x512xf32> to vector<8x512xbf16>
    %c0_12 = arith.constant 0 : index
    %c0_13 = arith.constant 0 : index
    %19 = vector.load %arg6[%c0_12, %c0_13] : memref<512x1024xbf16, #tpu.memory_space<vmem>>, vector<512x1024xbf16>
    %cst_14 = arith.constant dense<0.000000e+00> : vector<8x1024xf32>
    %20 = tpu.matmul %18, %19, %cst_14 {dimension_numbers = #tpu.dot_dimension_numbers<[1], [0], [0], [1], [0, 0, 1, 1], [], []>} : vector<8x512xbf16>, vector<512x1024xbf16>, vector<8x1024xf32> -> vector<8x1024xf32>
    %c0_15 = arith.constant 0 : index
    %c0_16 = arith.constant 0 : index
    %21 = vector.load %arg7[%c0_15, %c0_16] : memref<1x1024xbf16, #tpu.memory_space<vmem>>, vector<1x1024xbf16>
    %22 = arith.extf %21 : vector<1x1024xbf16> to vector<1x1024xf32>
    %23 = vector.broadcast %22 : vector<1x1024xf32> to vector<8x1024xf32>
    %24 = arith.addf %20, %23 : vector<8x1024xf32>
    %cst_17 = arith.constant 0.000000e+00 : f32
    %25 = vector.broadcast %cst_17 : f32 to vector<8x1024xf32>
    %26 = arith.maximumf %24, %25 : vector<8x1024xf32>
    %27 = arith.truncf %26 : vector<8x1024xf32> to vector<8x1024xbf16>
    %c0_18 = arith.constant 0 : index
    %c0_19 = arith.constant 0 : index
    %28 = vector.load %arg8[%c0_18, %c0_19] : memref<1024x1024xbf16, #tpu.memory_space<vmem>>, vector<1024x1024xbf16>
    %cst_20 = arith.constant dense<0.000000e+00> : vector<8x1024xf32>
    %29 = tpu.matmul %27, %28, %cst_20 {dimension_numbers = #tpu.dot_dimension_numbers<[1], [0], [0], [1], [0, 0, 1, 1], [], []>} : vector<8x1024xbf16>, vector<1024x1024xbf16>, vector<8x1024xf32> -> vector<8x1024xf32>
    %c0_21 = arith.constant 0 : index
    %c0_22 = arith.constant 0 : index
    %30 = vector.load %arg9[%c0_21, %c0_22] : memref<1x1024xbf16, #tpu.memory_space<vmem>>, vector<1x1024xbf16>
    %31 = arith.extf %30 : vector<1x1024xbf16> to vector<1x1024xf32>
    %32 = vector.broadcast %31 : vector<1x1024xf32> to vector<8x1024xf32>
    %33 = arith.addf %29, %32 : vector<8x1024xf32>
    %cst_23 = arith.constant 0.000000e+00 : f32
    %34 = vector.broadcast %cst_23 : f32 to vector<8x1024xf32>
    %35 = arith.maximumf %33, %34 : vector<8x1024xf32>
    %36 = arith.truncf %35 : vector<8x1024xf32> to vector<8x1024xbf16>
    %c0_24 = arith.constant 0 : index
    %c0_25 = arith.constant 0 : index
    %37 = vector.load %arg10[%c0_24, %c0_25] : memref<1024x384xbf16, #tpu.memory_space<vmem>>, vector<1024x384xbf16>
    %cst_26 = arith.constant dense<0.000000e+00> : vector<8x384xf32>
    %38 = tpu.matmul %36, %37, %cst_26 {dimension_numbers = #tpu.dot_dimension_numbers<[1], [0], [0], [1], [0, 0, 1, 1], [], []>} : vector<8x1024xbf16>, vector<1024x384xbf16>, vector<8x384xf32> -> vector<8x384xf32>
    %c0_27 = arith.constant 0 : index
    %c0_28 = arith.constant 0 : index
    %39 = vector.load %arg11[%c0_27, %c0_28] : memref<1x384xbf16, #tpu.memory_space<vmem>>, vector<1x384xbf16>
    %40 = arith.extf %39 : vector<1x384xbf16> to vector<1x384xf32>
    %41 = vector.broadcast %40 : vector<1x384xf32> to vector<8x384xf32>
    %42 = arith.addf %38, %41 : vector<8x384xf32>
    %43 = math.tanh %42 : vector<8x384xf32>
    %c0_29 = arith.constant 0 : index
    %c0_30 = arith.constant 0 : index
    %44 = vector.load %arg12[%c0_29, %c0_30] : memref<8x384xf32, #tpu.memory_space<vmem>>, vector<8x384xf32>
    tpu.vector_store %arg12[%c0_29, %c0_30], %43 {strides = array<i32>} : memref<8x384xf32, #tpu.memory_space<vmem>>, vector<8x384xf32>,
    return
  }
  func.func @transform_0(%arg0: i32) -> (i32, i32) {
    %c0_i32 = arith.constant 0 : i32
    %c0_i32_0 = arith.constant 0 : i32
    %c0_i32_1 = arith.constant 0 : i32
    return %c0_i32, %c0_i32_0 : i32, i32
  }
  func.func @transform_1(%arg0: i32) -> (i32, i32) {
    %c0_i32 = arith.constant 0 : i32
    %c0_i32_0 = arith.constant 0 : i32
    %c0_i32_1 = arith.constant 0 : i32
    return %c0_i32, %c0_i32_0 : i32, i32
  }
  func.func @transform_2(%arg0: i32) -> (i32, i32) {
    %c0_i32 = arith.constant 0 : i32
    %c0_i32_0 = arith.constant 0 : i32
    %c0_i32_1 = arith.constant 0 : i32
    return %c0_i32, %c0_i32_0 : i32, i32
  }
  func.func @transform_3(%arg0: i32) -> (i32, i32) {
    %c0_i32 = arith.constant 0 : i32
    %c0_i32_0 = arith.constant 0 : i32
    %c0_i32_1 = arith.constant 0 : i32
    return %c0_i32, %c0_i32_0 : i32, i32
  }
  func.func @transform_4(%arg0: i32) -> (i32, i32) {
    %c0_i32 = arith.constant 0 : i32
    %c0_i32_0 = arith.constant 0 : i32
    %c0_i32_1 = arith.constant 0 : i32
    return %c0_i32, %c0_i32_0 : i32, i32
  }
  func.func @transform_5(%arg0: i32) -> (i32, i32) {
    %c0_i32 = arith.constant 0 : i32
    %c0_i32_0 = arith.constant 0 : i32
    %c0_i32_1 = arith.constant 0 : i32
    return %c0_i32, %c0_i32_0 : i32, i32
  }
  func.func @transform_6(%arg0: i32) -> (i32, i32) {
    %c0_i32 = arith.constant 0 : i32
    %c0_i32_0 = arith.constant 0 : i32
    %c0_i32_1 = arith.constant 0 : i32
    return %c0_i32, %c0_i32_0 : i32, i32
  }
  func.func @transform_7(%arg0: i32) -> (i32, i32) {
    %c0_i32 = arith.constant 0 : i32
    %c0_i32_0 = arith.constant 0 : i32
    %c0_i32_1 = arith.constant 0 : i32
    return %c0_i32, %c0_i32_0 : i32, i32
  }
  func.func @transform_8(%arg0: i32) -> (i32, i32) {
    %c0_i32 = arith.constant 0 : i32
    %c0_i32_0 = arith.constant 0 : i32
    %c0_i32_1 = arith.constant 0 : i32
    return %c0_i32, %c0_i32_0 : i32, i32
  }
  func.func @transform_9(%arg0: i32) -> (i32, i32) {
    %c0_i32 = arith.constant 0 : i32
    %c0_i32_0 = arith.constant 0 : i32
    return %c0_i32, %arg0 : i32, i32
  }
  func.func @transform_10(%arg0: i32) -> (i32, i32) {
    %c0_i32 = arith.constant 0 : i32
    %c0_i32_0 = arith.constant 0 : i32
    return %c0_i32, %arg0 : i32, i32
  }
  func.func @transform_11(%arg0: i32) -> (i32, i32) {
    %c0_i32 = arith.constant 0 : i32
    %c0_i32_0 = arith.constant 0 : i32
    return %c0_i32, %arg0 : i32, i32
  }
}

</mosaic_0001>

<llo_original>
// kernel: decoder_forward.1
$region0: #{decoder_forward.1}
  #allocation0 [shape = 'u32[]', space=smem, size = 0x4, offset = 0x4, fixed_abs, tag = 'smem constant byte address 0x4 - core index']
  #allocation1 [shape = 'u32[72,128]{1,0:T(1,128)}', space=vmem, size = 0x9000, scoped, tag = 'internal scratch']
  %s0 = inlined_call_operand.vmem [shape: bf16[8,32], index: 0, kind: input, shape index: {}]
  %s1 = inlined_call_operand.hbm [shape: bf16[32,512], index: 1, kind: input, shape index: {}]
  %s2 = inlined_call_operand.vmem [shape: bf16[1,512], index: 2, kind: input, shape index: {}]
  %s3 = inlined_call_operand.hbm [shape: bf16[512,512], index: 3, kind: input, shape index: {}]
  %s4 = inlined_call_operand.vmem [shape: bf16[1,512], index: 4, kind: input, shape index: {}]
  %s5 = inlined_call_operand.hbm [shape: bf16[512,1024], index: 5, kind: input, shape index: {}]
  %s6 = inlined_call_operand.vmem [shape: bf16[1,1024], index: 6, kind: input, shape index: {}]
  %s7 = inlined_call_operand.hbm [shape: bf16[1024,1024], index: 7, kind: input, shape index: {}]
  %s8 = inlined_call_operand.vmem [shape: bf16[1,1024], index: 8, kind: input, shape index: {}]
  %s9 = inlined_call_operand.hbm [shape: bf16[1024,384], index: 9, kind: input, shape index: {}]
  %s10 = inlined_call_operand.vmem [shape: bf16[1,384], index: 10, kind: input, shape index: {}]
  %s11 = inlined_call_operand.vmem [shape: f32[8,384], index: 11, kind: output, shape index: {}]
  %s12 = sld [smem:[#allocation0]]
  $region74: #{decoder_forward.1} parent=0
    _
  %s14 = ssub.s32 1, %s12
  %s15 = scalar_select 0, %s14, %s12
  $region1: #{decoder_forward.1} parent=0
    #allocation2 [shape = 'u8[32768]{0}', space=vmem, size = 0x8000, scoped, tag = 'input window, operand 1, single buffered']
    #allocation3 [shape = 's32[1]{0}', space=sflag, size = 0x4, scoped, tag = 'scoped memory for decoder_forward.1']
    #allocation4 [shape = 'u8[524288]{0}', space=vmem, size = 0x80000, scoped, tag = 'input window, operand 3, single buffered']
    #allocation5 [shape = 's32[1]{0}', space=sflag, size = 0x4, scoped, tag = 'scoped memory for decoder_forward.1']
    #allocation6 [shape = 'u8[1048576]{0}', space=vmem, size = 0x100000, scoped, tag = 'input window, operand 5, single buffered']
    #allocation7 [shape = 'u8[2097152]{0}', space=vmem, size = 0x200000, scoped, tag = 'input window, operand 7, single buffered']
    #allocation8 [shape = 's32[1]{0}', space=sflag, size = 0x4, scoped, tag = 'scoped memory for decoder_forward.1']
    #allocation9 [shape = 'u8[786432]{0}', space=vmem, size = 0xc0000, scoped, tag = 'input window, operand 9, single buffered']
    %16 = vsyncpa [#allocation3], 0
    %17 = vsyncpa [#allocation5], 0
    %18 = vsyncpa [#allocation8], 0
    // Predicated region
    $region2: #{decoder_forward.1} parent=1 // pred_check
      _
    $region3: #{decoder_forward.1} parent=1 // pred_check_branch
      %20 = sbr.rel (0) target = $region5
    $region4: #{decoder_forward.1} parent=1 // pred_region
      _
    $region5: #{decoder_forward.1} parent=1 // pred_fallthru
      _
    // Predicated region
    $region6: #{decoder_forward.1} parent=1 // pred_check
      _
    $region7: #{decoder_forward.1} parent=1 // pred_check_branch
      %22 = sbr.rel (0) target = $region9
    $region8: #{decoder_forward.1} parent=1 // pred_region
      %24 = vsyncadd [#allocation3], 0
      %s25 = sshll.u32 %s1, 4
      %s26 = int_to_ptr.hbm [resolvable:$true] %s25
      %s27 = sshll.u32 [#allocation2], 4
      %s28 = int_to_ptr.vmem [resolvable:$true] %s27
      %33 = dma.hbm_to_vmem [thread:$0]  %s26, 1024, %s28, [#allocation3], 256, 256, 16
    $region9: #{decoder_forward.1} parent=1 // pred_fallthru
      _
    // Predicated region
    $region10: #{decoder_forward.1} parent=1 // pred_check
      _
    $region11: #{decoder_forward.1} parent=1 // pred_check_branch
      %35 = sbr.rel (0) target = $region13
    $region12: #{decoder_forward.1} parent=1 // pred_region
      _
    $region13: #{decoder_forward.1} parent=1 // pred_fallthru
      _
    // Predicated region
    $region14: #{decoder_forward.1} parent=1 // pred_check
      _
    $region15: #{decoder_forward.1} parent=1 // pred_check_branch
      %37 = sbr.rel (0) target = $region17
    $region16: #{decoder_forward.1} parent=1 // pred_region
      %39 = vsyncadd [#allocation5], 0
      %s40 = sshll.u32 %s3, 4
      %s41 = int_to_ptr.hbm [resolvable:$true] %s40
      %s42 = sshll.u32 [#allocation4], 4
      %s43 = int_to_ptr.vmem [resolvable:$true] %s42
      %48 = dma.hbm_to_vmem [thread:$0]  %s41, 16384, %s43, [#allocation5], 256, 256, 16
    $region17: #{decoder_forward.1} parent=1 // pred_fallthru
      _
    // Predicated region
    $region18: #{decoder_forward.1} parent=1 // pred_check
      _
    $region19: #{decoder_forward.1} parent=1 // pred_check_branch
      %50 = sbr.rel (0) target = $region21
    $region20: #{decoder_forward.1} parent=1 // pred_region
      _
    $region21: #{decoder_forward.1} parent=1 // pred_fallthru
      _
    // Predicated region
    $region22: #{decoder_forward.1} parent=1 // pred_check
      _
    $region23: #{decoder_forward.1} parent=1 // pred_check_branch
      %52 = sbr.rel (0) target = $region25
    $region24: #{decoder_forward.1} parent=1 // pred_region
      %54 = vsyncadd [#allocation5], 0
      %s55 = sshll.u32 %s5, 4
      %s56 = int_to_ptr.hbm [resolvable:$true] %s55
      %s57 = sshll.u32 [#allocation6], 4
      %s58 = int_to_ptr.vmem [resolvable:$true] %s57
      %63 = dma.hbm_to_vmem [thread:$0]  %s56, 32768, %s58, [#allocation5], 512, 512, 32
    $region25: #{decoder_forward.1} parent=1 // pred_fallthru
      _
    // Predicated region
    $region26: #{decoder_forward.1} parent=1 // pred_check
      _
    $region27: #{decoder_forward.1} parent=1 // pred_check_branch
      %65 = sbr.rel (0) target = $region29
    $region28: #{decoder_forward.1} parent=1 // pred_region
      _
    $region29: #{decoder_forward.1} parent=1 // pred_fallthru
      _
    // Predicated region
    $region30: #{decoder_forward.1} parent=1 // pred_check
      _
    $region31: #{decoder_forward.1} parent=1 // pred_check_branch
      %67 = sbr.rel (0) target = $region33
    $region32: #{decoder_forward.1} parent=1 // pred_region
      %69 = vsyncadd [#allocation8], 0
      %s70 = sshll.u32 %s7, 4
      %s71 = int_to_ptr.hbm [resolvable:$true] %s70
      %s72 = sshll.u32 [#allocation7], 4
      %s73 = int_to_ptr.vmem [resolvable:$true] %s72
      %78 = dma.hbm_to_vmem [thread:$0]  %s71, 65536, %s73, [#allocation8], 512, 512, 32
    $region33: #{decoder_forward.1} parent=1 // pred_fallthru
      _
    // Predicated region
    $region34: #{decoder_forward.1} parent=1 // pred_check
      _
    $region35: #{decoder_forward.1} parent=1 // pred_check_branch
      %80 = sbr.rel (0) target = $region37
    $region36: #{decoder_forward.1} parent=1 // pred_region
      _
    $region37: #{decoder_forward.1} parent=1 // pred_fallthru
      _
    // Predicated region
    $region38: #{decoder_forward.1} parent=1 // pred_check
      _
    $region39: #{decoder_forward.1} parent=1 // pred_check_branch
      %82 = sbr.rel (0) target = $region41
    $region40: #{decoder_forward.1} parent=1 // pred_region
      %84 = vsyncadd [#allocation8], 0
      %s85 = sshll.u32 %s9, 4
      %s86 = int_to_ptr.hbm [resolvable:$true] %s85
      %s87 = sshll.u32 [#allocation9], 4
      %s88 = int_to_ptr.vmem [resolvable:$true] %s87
      %93 = dma.hbm_to_vmem [thread:$0]  %s86, 24576, %s88, [#allocation8], 192, 192, 12
    $region41: #{decoder_forward.1} parent=1 // pred_fallthru
      _
    // Predicated region
    $region42: #{decoder_forward.1} parent=1 // pred_check
      _
    $region43: #{decoder_forward.1} parent=1 // pred_check_branch
      %95 = sbr.rel (0) target = $region45
    $region44: #{decoder_forward.1} parent=1 // pred_region
      _
    $region45: #{decoder_forward.1} parent=1 // pred_fallthru
      _
    // Predicated region
    $region46: #{decoder_forward.1} parent=1 // pred_check
      _
    $region47: #{decoder_forward.1} parent=1 // pred_check_branch
      %97 = sbr.rel (0) target = $region49
    $region48: #{decoder_forward.1} parent=1 // pred_region
      %99 = dma.done [#allocation3], 1024
    $region49: #{decoder_forward.1} parent=1 // pred_fallthru
      _
    // Predicated region
    $region50: #{decoder_forward.1} parent=1 // pred_check
      _
    $region51: #{decoder_forward.1} parent=1 // pred_check_branch
      %101 = sbr.rel (0) target = $region53
    $region52: #{decoder_forward.1} parent=1 // pred_region
      %103 = dma.done [#allocation5], 16384
    $region53: #{decoder_forward.1} parent=1 // pred_fallthru
      _
    // Predicated region
    $region54: #{decoder_forward.1} parent=1 // pred_check
      _
    $region55: #{decoder_forward.1} parent=1 // pred_check_branch
      %105 = sbr.rel (0) target = $region57
    $region56: #{decoder_forward.1} parent=1 // pred_region
      %107 = dma.done [#allocation5], 32768
    $region57: #{decoder_forward.1} parent=1 // pred_fallthru
      _
    // Predicated region
    $region58: #{decoder_forward.1} parent=1 // pred_check
      _
    $region59: #{decoder_forward.1} parent=1 // pred_check_branch
      %109 = sbr.rel (0) target = $region61
    $region60: #{decoder_forward.1} parent=1 // pred_region
      %111 = dma.done [#allocation8], 65536
    $region61: #{decoder_forward.1} parent=1 // pred_fallthru
      _
    // Predicated region
    $region62: #{decoder_forward.1} parent=1 // pred_check
      _
    $region63: #{decoder_forward.1} parent=1 // pred_check_branch
      %113 = sbr.rel (0) target = $region65
    $region64: #{decoder_forward.1} parent=1 // pred_region
      %115 = dma.done [#allocation8], 24576
    $region65: #{decoder_forward.1} parent=1 // pred_fallthru
      _
    %v117 = vld [vmem:[%s0] sm:$0xf]
    %v118 = vld [vmem:[#allocation2] sm:$0xff]
    %v119 = vld [vmem:[#allocation2 + $0x8] sm:$0xff]
    %v120 = vld [vmem:[#allocation2 + $0x10] sm:$0xff]
    %v121 = vld [vmem:[#allocation2 + $0x18] sm:$0xff]
    %v122 = vld [vmem:[#allocation2 + $0x20] sm:$0xff]
    %v123 = vld [vmem:[#allocation2 + $0x28] sm:$0xff]
    %v124 = vld [vmem:[#allocation2 + $0x30] sm:$0xff]
    %v125 = vld [vmem:[#allocation2 + $0x38] sm:$0xff]
    %v126 = vld [vmem:[%s2] sm:$0xf]
    %v127 = vunpack.c.l.bf16 %v126
    %v129 = vperm.slane %v127, 0
    %v130 = vperm.slane %v127, 2
    %v131 = vperm.slane %v127, 4
    %v132 = vperm.slane %v127, 6
    %v137 = vperm.slane %v129, 0
    %v138 = vperm.slane %v130, 0
    %v139 = vperm.slane %v131, 0
    %v140 = vperm.slane %v132, 0
    %v149 = vunpack.c.l.b16 %v118
    %v150 = vunpack.c.h.b16 %v118
    %v151 = vunpack.c.l.b16 %v119
    %v152 = vunpack.c.h.b16 %v119
    %v153 = vunpack.c.l.b16 %v120
    %v154 = vunpack.c.h.b16 %v120
    %v155 = vunpack.c.l.b16 %v121
    %v156 = vunpack.c.h.b16 %v121
    %v157 = vunpack.c.l.b16 %v122
    %v158 = vunpack.c.h.b16 %v122
    %v159 = vunpack.c.l.b16 %v123
    %v160 = vunpack.c.h.b16 %v123
    %v161 = vunpack.c.l.b16 %v124
    %v162 = vunpack.c.h.b16 %v124
    %v163 = vunpack.c.l.b16 %v125
    %v164 = vunpack.c.h.b16 %v125
    %v165 = vpack.c.b16 %v153, %v149
    %v166 = vpack.c.b16 %v154, %v150
    %v167 = vpack.c.b16 %v155, %v151
    %v168 = vpack.c.b16 %v156, %v152
    %v169 = vpack.c.b16 %v161, %v157
    %v170 = vpack.c.b16 %v162, %v158
    %v171 = vpack.c.b16 %v163, %v159
    %v172 = vpack.c.b16 %v164, %v160
    %vm181 = vcmask 261120
    %v183 = vsel %vm181, %v117, 0
    %185 = vmatpush.bf16.msra.mxu0 0
    %186 = vmatpush.bf16.msra.mxu0 0
    %187 = vmatpush.bf16.msra.mxu0 0
    %188 = vmatpush.bf16.msra.mxu0 0
    %189 = vmatpush.bf16.msra.mxu0 0
    %190 = vmatpush.bf16.msra.mxu0 0
    %191 = vmatpush.bf16.msra.mxu0 %v169
    %192 = vmatpush.bf16.msra.mxu0 %v165
    %193 = vmatmul.bf16.gmra.mxu0 %v183
    %v194 = vpop.f32.mrf.mxu0
    %v195 = vadd.f32 %v137, %v194
    %v196 = vpop.f32.mrf.mxu0
    %197 = vdwg.mxu0
    %198 = vmatpush.bf16.msra.mxu0 0
    %199 = vmatpush.bf16.msra.mxu0 0
    %200 = vmatpush.bf16.msra.mxu0 0
    %201 = vmatpush.bf16.msra.mxu0 0
    %202 = vmatpush.bf16.msra.mxu0 0
    %203 = vmatpush.bf16.msra.mxu0 0
    %204 = vmatpush.bf16.msra.mxu0 %v170
    %205 = vmatpush.bf16.msra.mxu0 %v166
    %206 = vmatmul.bf16.gmra.mxu0 %v183
    %v207 = vpop.f32.mrf.mxu0
    %v208 = vadd.f32 %v138, %v207
    %v209 = vpop.f32.mrf.mxu0
    %210 = vdwg.mxu0
    %211 = vmatpush.bf16.msra.mxu0 0
    %212 = vmatpush.bf16.msra.mxu0 0
    %213 = vmatpush.bf16.msra.mxu0 0
    %214 = vmatpush.bf16.msra.mxu0 0
    %215 = vmatpush.bf16.msra.mxu0 0
    %216 = vmatpush.bf16.msra.mxu0 0
    %217 = vmatpush.bf16.msra.mxu0 %v171
    %218 = vmatpush.bf16.msra.mxu0 %v167
    %219 = vmatmul.bf16.gmra.mxu0 %v183
    %v220 = vpop.f32.mrf.mxu0
    %v221 = vadd.f32 %v139, %v220
    %v222 = vpop.f32.mrf.mxu0
    %223 = vdwg.mxu0
    %224 = vmatpush.bf16.msra.mxu0 0
    %225 = vmatpush.bf16.msra.mxu0 0
    %226 = vmatpush.bf16.msra.mxu0 0
    %227 = vmatpush.bf16.msra.mxu0 0
    %228 = vmatpush.bf16.msra.mxu0 0
    %229 = vmatpush.bf16.msra.mxu0 0
    %230 = vmatpush.bf16.msra.mxu0 %v172
    %231 = vmatpush.bf16.msra.mxu0 %v168
    %232 = vmatmul.bf16.gmra.mxu0 %v183
    %v233 = vpop.f32.mrf.mxu0
    %v234 = vadd.f32 %v140, %v233
    %v235 = vpop.f32.mrf.mxu0
    %236 = vdwg.mxu0
    %v237 = vmax.f32 %v195, 0.0
    %v238 = vmax.f32 %v208, 0.0
    %v239 = vmax.f32 %v221, 0.0
    %v240 = vmax.f32 %v234, 0.0
    %v241 = vpack.c.bf16 %v237, %v237
    %v242 = vpack.c.bf16 %v238, %v238
    %v243 = vpack.c.bf16 %v239, %v239
    %v244 = vpack.c.bf16 %v240, %v240
    %v245 = vld [vmem:[#allocation4] sm:$0xff]
    %v246 = vld [vmem:[#allocation4 + $0x8] sm:$0xff]
    %v247 = vld [vmem:[#allocation4 + $0x10] sm:$0xff]
    %v248 = vld [vmem:[#allocation4 + $0x18] sm:$0xff]
    %v249 = vld [vmem:[#allocation4 + $0x20] sm:$0xff]
    %v250 = vld [vmem:[#allocation4 + $0x28] sm:$0xff]
    %v251 = vld [vmem:[#allocation4 + $0x30] sm:$0xff]
    %v252 = vld [vmem:[#allocation4 + $0x38] sm:$0xff]
    %v253 = vld [vmem:[#allocation4 + $0x40] sm:$0xff]
    %v254 = vld [vmem:[#allocation4 + $0x48] sm:$0xff]
    %v255 = vld [vmem:[#allocation4 + $0x50] sm:$0xff]
    %v256 = vld [vmem:[#allocation4 + $0x58] sm:$0xff]
    %v257 = vld [vmem:[#allocation4 + $0x60] sm:$0xff]
    %v258 = vld [vmem:[#allocation4 + $0x68] sm:$0xff]
    %v259 = vld [vmem:[#allocation4 + $0x70] sm:$0xff]
    %v260 = vld [vmem:[#allocation4 + $0x78] sm:$0xff]
    %v261 = vld [vmem:[#allocation4 + $0x80] sm:$0xff]
    %v262 = vld [vmem:[#allocation4 + $0x88] sm:$0xff]
    %v263 = vld [vmem:[#allocation4 + $0x90] sm:$0xff]
    %v264 = vld [vmem:[#allocation4 + $0x98] sm:$0xff]
    %v265 = vld [vmem:[#allocation4 + $0xa0] sm:$0xff]
    %v266 = vld [vmem:[#allocation4 + $0xa8] sm:$0xff]
    %v267 = vld [vmem:[#allocation4 + $0xb0] sm:$0xff]
    %v268 = vld [vmem:[#allocation4 + $0xb8] sm:$0xff]
    %v269 = vld [vmem:[#allocation4 + $0xc0] sm:$0xff]
    %v270 = vld [vmem:[#allocation4 + $0xc8] sm:$0xff]
    %v271 = vld [vmem:[#allocation4 + $0xd0] sm:$0xff]
    %v272 = vld [vmem:[#allocation4 + $0xd8] sm:$0xff]
    %v273 = vld [vmem:[#allocation4 + $0xe0] sm:$0xff]
    %v274 = vld [vmem:[#allocation4 + $0xe8] sm:$0xff]
    %v275 = vld [vmem:[#allocation4 + $0xf0] sm:$0xff]
    %v276 = vld [vmem:[#allocation4 + $0xf8] sm:$0xff]
    %v277 = vld [vmem:[#allocation4 + $0x100] sm:$0xff]
    %v278 = vld [vmem:[#allocation4 + $0x108] sm:$0xff]
    %v279 = vld [vmem:[#allocation4 + $0x110] sm:$0xff]
    %v280 = vld [vmem:[#allocation4 + $0x118] sm:$0xff]
    %v281 = vld [vmem:[#allocation4 + $0x120] sm:$0xff]
    %v282 = vld [vmem:[#allocation4 + $0x128] sm:$0xff]
    %v283 = vld [vmem:[#allocation4 + $0x130] sm:$0xff]
    %v284 = vld [vmem:[#allocation4 + $0x138] sm:$0xff]
    %v285 = vld [vmem:[#allocation4 + $0x140] sm:$0xff]
    %v286 = vld [vmem:[#allocation4 + $0x148] sm:$0xff]
    %v287 = vld [vmem:[#allocation4 + $0x150] sm:$0xff]
    %v288 = vld [vmem:[#allocation4 + $0x158] sm:$0xff]
    %v289 = vld [vmem:[#allocation4 + $0x160] sm:$0xff]
    %v290 = vld [vmem:[#allocation4 + $0x168] sm:$0xff]
    %v291 = vld [vmem:[#allocation4 + $0x170] sm:$0xff]
    %v292 = vld [vmem:[#allocation4 + $0x178] sm:$0xff]
    %v293 = vld [vmem:[#allocation4 + $0x180] sm:$0xff]
    %v294 = vld [vmem:[#allocation4 + $0x188] sm:$0xff]
    %v295 = vld [vmem:[#allocation4 + $0x190] sm:$0xff]
    %v296 = vld [vmem:[#allocation4 + $0x198] sm:$0xff]
    %v297 = vld [vmem:[#allocation4 + $0x1a0] sm:$0xff]
    %v298 = vld [vmem:[#allocation4 + $0x1a8] sm:$0xff]
    %v299 = vld [vmem:[#allocation4 + $0x1b0] sm:$0xff]
    %v300 = vld [vmem:[#allocation4 + $0x1b8] sm:$0xff]
    %v301 = vld [vmem:[#allocation4 + $0x1c0] sm:$0xff]
    %v302 = vld [vmem:[#allocation4 + $0x1c8] sm:$0xff]
    %v303 = vld [vmem:[#allocation4 + $0x1d0] sm:$0xff]
    %v304 = vld [vmem:[#allocation4 + $0x1d8] sm:$0xff]
    %v305 = vld [vmem:[#allocation4 + $0x1e0] sm:$0xff]
    %v306 = vld [vmem:[#allocation4 + $0x1e8] sm:$0xff]
    %v307 = vld [vmem:[#allocation4 + $0x1f0] sm:$0xff]
    %v308 = vld [vmem:[#allocation4 + $0x1f8] sm:$0xff]
    %v309 = vld [vmem:[#allocation4 + $0x200] sm:$0xff]
    %v310 = vld [vmem:[#allocation4 + $0x208] sm:$0xff]
    %v311 = vld [vmem:[#allocation4 + $0x210] sm:$0xff]
    %v312 = vld [vmem:[#allocation4 + $0x218] sm:$0xff]
    %v313 = vld [vmem:[#allocation4 + $0x220] sm:$0xff]
    %v314 = vld [vmem:[#allocation4 + $0x228] sm:$0xff]
    %v315 = vld [vmem:[#allocation4 + $0x230] sm:$0xff]
    %v316 = vld [vmem:[#allocation4 + $0x238] sm:$0xff]
    %v317 = vld [vmem:[#allocation4 + $0x240] sm:$0xff]
    %v318 = vld [vmem:[#allocation4 + $0x248] sm:$0xff]
    %v319 = vld [vmem:[#allocation4 + $0x250] sm:$0xff]
    %v320 = vld [vmem:[#allocation4 + $0x258] sm:$0xff]
    %v321 = vld [vmem:[#allocation4 + $0x260] sm:$0xff]
    %v322 = vld [vmem:[#allocation4 + $0x268] sm:$0xff]
    %v323 = vld [vmem:[#allocation4 + $0x270] sm:$0xff]
    %v324 = vld [vmem:[#allocation4 + $0x278] sm:$0xff]
    %v325 = vld [vmem:[#allocation4 + $0x280] sm:$0xff]
    %v326 = vld [vmem:[#allocation4 + $0x288] sm:$0xff]
    %v327 = vld [vmem:[#allocation4 + $0x290] sm:$0xff]
    %v328 = vld [vmem:[#allocation4 + $0x298] sm:$0xff]
    %v329 = vld [vmem:[#allocation4 + $0x2a0] sm:$0xff]
    %v330 = vld [vmem:[#allocation4 + $0x2a8] sm:$0xff]
    %v331 = vld [vmem:[#allocation4 + $0x2b0] sm:$0xff]
    %v332 = vld [vmem:[#allocation4 + $0x2b8] sm:$0xff]
    %v333 = vld [vmem:[#allocation4 + $0x2c0] sm:$0xff]
    %v334 = vld [vmem:[#allocation4 + $0x2c8] sm:$0xff]
    %v335 = vld [vmem:[#allocation4 + $0x2d0] sm:$0xff]
    %v336 = vld [vmem:[#allocation4 + $0x2d8] sm:$0xff]
    %v337 = vld [vmem:[#allocation4 + $0x2e0] sm:$0xff]
    %v338 = vld [vmem:[#allocation4 + $0x2e8] sm:$0xff]
    %v339 = vld [vmem:[#allocation4 + $0x2f0] sm:$0xff]
    %v340 = vld [vmem:[#allocation4 + $0x2f8] sm:$0xff]
    %v341 = vld [vmem:[#allocation4 + $0x300] sm:$0xff]
    %v342 = vld [vmem:[#allocation4 + $0x308] sm:$0xff]
    %v343 = vld [vmem:[#allocation4 + $0x310] sm:$0xff]
    %v344 = vld [vmem:[#allocation4 + $0x318] sm:$0xff]
    %v345 = vld [vmem:[#allocation4 + $0x320] sm:$0xff]
    %v346 = vld [vmem:[#allocation4 + $0x328] sm:$0xff]
    %v347 = vld [vmem:[#allocation4 + $0x330] sm:$0xff]
    %v348 = vld [vmem:[#allocation4 + $0x338] sm:$0xff]
    %v349 = vld [vmem:[#allocation4 + $0x340] sm:$0xff]
    %v350 = vld [vmem:[#allocation4 + $0x348] sm:$0xff]
    %v351 = vld [vmem:[#allocation4 + $0x350] sm:$0xff]
    %v352 = vld [vmem:[#allocation4 + $0x358] sm:$0xff]
    %v353 = vld [vmem:[#allocation4 + $0x360] sm:$0xff]
    %v354 = vld [vmem:[#allocation4 + $0x368] sm:$0xff]
    %v355 = vld [vmem:[#allocation4 + $0x370] sm:$0xff]
    %v356 = vld [vmem:[#allocation4 + $0x378] sm:$0xff]
    %v357 = vld [vmem:[#allocation4 + $0x380] sm:$0xff]
    %v358 = vld [vmem:[#allocation4 + $0x388] sm:$0xff]
    %v359 = vld [vmem:[#allocation4 + $0x390] sm:$0xff]
    %v360 = vld [vmem:[#allocation4 + $0x398] sm:$0xff]
    %v361 = vld [vmem:[#allocation4 + $0x3a0] sm:$0xff]
    %v362 = vld [vmem:[#allocation4 + $0x3a8] sm:$0xff]
    %v363 = vld [vmem:[#allocation4 + $0x3b0] sm:$0xff]
    %v364 = vld [vmem:[#allocation4 + $0x3b8] sm:$0xff]
    %v365 = vld [vmem:[#allocation4 + $0x3c0] sm:$0xff]
    %v366 = vld [vmem:[#allocation4 + $0x3c8] sm:$0xff]
    %v367 = vld [vmem:[#allocation4 + $0x3d0] sm:$0xff]
    %v368 = vld [vmem:[#allocation4 + $0x3d8] sm:$0xff]
    %v369 = vld [vmem:[#allocation4 + $0x3e0] sm:$0xff]
    %v370 = vld [vmem:[#allocation4 + $0x3e8] sm:$0xff]
    %v371 = vld [vmem:[#allocation4 + $0x3f0] sm:$0xff]
    %v372 = vld [vmem:[#allocation4 + $0x3f8] sm:$0xff]
    %v373 = vld [vmem:[%s4] sm:$0xf]
    %v374 = vunpack.c.l.bf16 %v373
    %v376 = vperm.slane %v374, 0
    %v377 = vperm.slane %v374, 2
    %v378 = vperm.slane %v374, 4
    %v379 = vperm.slane %v374, 6
    %v384 = vperm.slane %v376, 0
    %v385 = vperm.slane %v377, 0
    %v386 = vperm.slane %v378, 0
    %v387 = vperm.slane %v379, 0
    %v516 = vunpack.c.l.b16 %v245
    %v517 = vunpack.c.h.b16 %v245
    %v518 = vunpack.c.l.b16 %v246
    %v519 = vunpack.c.h.b16 %v246
    %v520 = vunpack.c.l.b16 %v247
    %v521 = vunpack.c.h.b16 %v247
    %v522 = vunpack.c.l.b16 %v248
    %v523 = vunpack.c.h.b16 %v248
    %v524 = vunpack.c.l.b16 %v249
    %v525 = vunpack.c.h.b16 %v249
    %v526 = vunpack.c.l.b16 %v250
    %v527 = vunpack.c.h.b16 %v250
    %v528 = vunpack.c.l.b16 %v251
    %v529 = vunpack.c.h.b16 %v251
    %v530 = vunpack.c.l.b16 %v252
    %v531 = vunpack.c.h.b16 %v252
    %v532 = vunpack.c.l.b16 %v253
    %v533 = vunpack.c.h.b16 %v253
    %v534 = vunpack.c.l.b16 %v254
    %v535 = vunpack.c.h.b16 %v254
    %v536 = vunpack.c.l.b16 %v255
    %v537 = vunpack.c.h.b16 %v255
    %v538 = vunpack.c.l.b16 %v256
    %v539 = vunpack.c.h.b16 %v256
    %v540 = vunpack.c.l.b16 %v257
    %v541 = vunpack.c.h.b16 %v257
    %v542 = vunpack.c.l.b16 %v258
    %v543 = vunpack.c.h.b16 %v258
    %v544 = vunpack.c.l.b16 %v259
    %v545 = vunpack.c.h.b16 %v259
    %v546 = vunpack.c.l.b16 %v260
    %v547 = vunpack.c.h.b16 %v260
    %v548 = vunpack.c.l.b16 %v261
    %v549 = vunpack.c.h.b16 %v261
    %v550 = vunpack.c.l.b16 %v262
    %v551 = vunpack.c.h.b16 %v262
    %v552 = vunpack.c.l.b16 %v263
    %v553 = vunpack.c.h.b16 %v263
    %v554 = vunpack.c.l.b16 %v264
    %v555 = vunpack.c.h.b16 %v264
    %v556 = vunpack.c.l.b16 %v265
    %v557 = vunpack.c.h.b16 %v265
    %v558 = vunpack.c.l.b16 %v266
    %v559 = vunpack.c.h.b16 %v266
    %v560 = vunpack.c.l.b16 %v267
    %v561 = vunpack.c.h.b16 %v267
    %v562 = vunpack.c.l.b16 %v268
    %v563 = vunpack.c.h.b16 %v268
    %v564 = vunpack.c.l.b16 %v269
    %v565 = vunpack.c.h.b16 %v269
    %v566 = vunpack.c.l.b16 %v270
    %v567 = vunpack.c.h.b16 %v270
    %v568 = vunpack.c.l.b16 %v271
    %v569 = vunpack.c.h.b16 %v271
    %v570 = vunpack.c.l.b16 %v272
    %v571 = vunpack.c.h.b16 %v272
    %v572 = vunpack.c.l.b16 %v273
    %v573 = vunpack.c.h.b16 %v273
    %v574 = vunpack.c.l.b16 %v274
    %v575 = vunpack.c.h.b16 %v274
    %v576 = vunpack.c.l.b16 %v275
    %v577 = vunpack.c.h.b16 %v275
    %v578 = vunpack.c.l.b16 %v276
    %v579 = vunpack.c.h.b16 %v276
    %v580 = vunpack.c.l.b16 %v277
    %v581 = vunpack.c.h.b16 %v277
    %v582 = vunpack.c.l.b16 %v278
    %v583 = vunpack.c.h.b16 %v278
    %v584 = vunpack.c.l.b16 %v279
    %v585 = vunpack.c.h.b16 %v279
    %v586 = vunpack.c.l.b16 %v280
    %v587 = vunpack.c.h.b16 %v280
    %v588 = vunpack.c.l.b16 %v281
    %v589 = vunpack.c.h.b16 %v281
    %v590 = vunpack.c.l.b16 %v282
    %v591 = vunpack.c.h.b16 %v282
    %v592 = vunpack.c.l.b16 %v283
    %v593 = vunpack.c.h.b16 %v283
    %v594 = vunpack.c.l.b16 %v284
    %v595 = vunpack.c.h.b16 %v284
    %v596 = vunpack.c.l.b16 %v285
    %v597 = vunpack.c.h.b16 %v285
    %v598 = vunpack.c.l.b16 %v286
    %v599 = vunpack.c.h.b16 %v286
    %v600 = vunpack.c.l.b16 %v287
    %v601 = vunpack.c.h.b16 %v287
    %v602 = vunpack.c.l.b16 %v288
    %v603 = vunpack.c.h.b16 %v288
    %v604 = vunpack.c.l.b16 %v289
    %v605 = vunpack.c.h.b16 %v289
    %v606 = vunpack.c.l.b16 %v290
    %v607 = vunpack.c.h.b16 %v290
    %v608 = vunpack.c.l.b16 %v291
    %v609 = vunpack.c.h.b16 %v291
    %v610 = vunpack.c.l.b16 %v292
    %v611 = vunpack.c.h.b16 %v292
    %v612 = vunpack.c.l.b16 %v293
    %v613 = vunpack.c.h.b16 %v293
    %v614 = vunpack.c.l.b16 %v294
    %v615 = vunpack.c.h.b16 %v294
    %v616 = vunpack.c.l.b16 %v295
    %v617 = vunpack.c.h.b16 %v295
    %v618 = vunpack.c.l.b16 %v296
    %v619 = vunpack.c.h.b16 %v296
    %v620 = vunpack.c.l.b16 %v297
    %v621 = vunpack.c.h.b16 %v297
    %v622 = vunpack.c.l.b16 %v298
    %v623 = vunpack.c.h.b16 %v298
    %v624 = vunpack.c.l.b16 %v299
    %v625 = vunpack.c.h.b16 %v299
    %v626 = vunpack.c.l.b16 %v300
    %v627 = vunpack.c.h.b16 %v300
    %v628 = vunpack.c.l.b16 %v301
    %v629 = vunpack.c.h.b16 %v301
    %v630 = vunpack.c.l.b16 %v302
    %v631 = vunpack.c.h.b16 %v302
    %v632 = vunpack.c.l.b16 %v303
    %v633 = vunpack.c.h.b16 %v303
    %v634 = vunpack.c.l.b16 %v304
    %v635 = vunpack.c.h.b16 %v304
    %v636 = vunpack.c.l.b16 %v305
    %v637 = vunpack.c.h.b16 %v305
    %v638 = vunpack.c.l.b16 %v306
    %v639 = vunpack.c.h.b16 %v306
    %v640 = vunpack.c.l.b16 %v307
    %v641 = vunpack.c.h.b16 %v307
    %v642 = vunpack.c.l.b16 %v308
    %v643 = vunpack.c.h.b16 %v308
    %v644 = vunpack.c.l.b16 %v309
    %v645 = vunpack.c.h.b16 %v309
    %v646 = vunpack.c.l.b16 %v310
    %v647 = vunpack.c.h.b16 %v310
    %v648 = vunpack.c.l.b16 %v311
    %v649 = vunpack.c.h.b16 %v311
    %v650 = vunpack.c.l.b16 %v312
    %v651 = vunpack.c.h.b16 %v312
    %v652 = vunpack.c.l.b16 %v313
    %v653 = vunpack.c.h.b16 %v313
    %v654 = vunpack.c.l.b16 %v314
    %v655 = vunpack.c.h.b16 %v314
    %v656 = vunpack.c.l.b16 %v315
    %v657 = vunpack.c.h.b16 %v315
    %v658 = vunpack.c.l.b16 %v316
    %v659 = vunpack.c.h.b16 %v316
    %v660 = vunpack.c.l.b16 %v317
    %v661 = vunpack.c.h.b16 %v317
    %v662 = vunpack.c.l.b16 %v318
    %v663 = vunpack.c.h.b16 %v318
    %v664 = vunpack.c.l.b16 %v319
    %v665 = vunpack.c.h.b16 %v319
    %v666 = vunpack.c.l.b16 %v320
    %v667 = vunpack.c.h.b16 %v320
    %v668 = vunpack.c.l.b16 %v321
    %v669 = vunpack.c.h.b16 %v321
    %v670 = vunpack.c.l.b16 %v322
    %v671 = vunpack.c.h.b16 %v322
    %v672 = vunpack.c.l.b16 %v323
    %v673 = vunpack.c.h.b16 %v323
    %v674 = vunpack.c.l.b16 %v324
    %v675 = vunpack.c.h.b16 %v324
    %v676 = vunpack.c.l.b16 %v325
    %v677 = vunpack.c.h.b16 %v325
    %v678 = vunpack.c.l.b16 %v326
    %v679 = vunpack.c.h.b16 %v326
    %v680 = vunpack.c.l.b16 %v327
    %v681 = vunpack.c.h.b16 %v327
    %v682 = vunpack.c.l.b16 %v328
    %v683 = vunpack.c.h.b16 %v328
    %v684 = vunpack.c.l.b16 %v329
    %v685 = vunpack.c.h.b16 %v329
    %v686 = vunpack.c.l.b16 %v330
    %v687 = vunpack.c.h.b16 %v330
    %v688 = vunpack.c.l.b16 %v331
    %v689 = vunpack.c.h.b16 %v331
    %v690 = vunpack.c.l.b16 %v332
    %v691 = vunpack.c.h.b16 %v332
    %v692 = vunpack.c.l.b16 %v333
    %v693 = vunpack.c.h.b16 %v333
    %v694 = vunpack.c.l.b16 %v334
    %v695 = vunpack.c.h.b16 %v334
    %v696 = vunpack.c.l.b16 %v335
    %v697 = vunpack.c.h.b16 %v335
    %v698 = vunpack.c.l.b16 %v336
    %v699 = vunpack.c.h.b16 %v336
    %v700 = vunpack.c.l.b16 %v337
    %v701 = vunpack.c.h.b16 %v337
    %v702 = vunpack.c.l.b16 %v338
    %v703 = vunpack.c.h.b16 %v338
    %v704 = vunpack.c.l.b16 %v339
    %v705 = vunpack.c.h.b16 %v339
    %v706 = vunpack.c.l.b16 %v340
    %v707 = vunpack.c.h.b16 %v340
    %v708 = vunpack.c.l.b16 %v341
    %v709 = vunpack.c.h.b16 %v341
    %v710 = vunpack.c.l.b16 %v342
    %v711 = vunpack.c.h.b16 %v342
    %v712 = vunpack.c.l.b16 %v343
    %v713 = vunpack.c.h.b16 %v343
    %v714 = vunpack.c.l.b16 %v344
    %v715 = vunpack.c.h.b16 %v344
    %v716 = vunpack.c.l.b16 %v345
    %v717 = vunpack.c.h.b16 %v345
    %v718 = vunpack.c.l.b16 %v346
    %v719 = vunpack.c.h.b16 %v346
    %v720 = vunpack.c.l.b16 %v347
    %v721 = vunpack.c.h.b16 %v347
    %v722 = vunpack.c.l.b16 %v348
    %v723 = vunpack.c.h.b16 %v348
    %v724 = vunpack.c.l.b16 %v349
    %v725 = vunpack.c.h.b16 %v349
    %v726 = vunpack.c.l.b16 %v350
    %v727 = vunpack.c.h.b16 %v350
    %v728 = vunpack.c.l.b16 %v351
    %v729 = vunpack.c.h.b16 %v351
    %v730 = vunpack.c.l.b16 %v352
    %v731 = vunpack.c.h.b16 %v352
    %v732 = vunpack.c.l.b16 %v353
    %v733 = vunpack.c.h.b16 %v353
    %v734 = vunpack.c.l.b16 %v354
    %v735 = vunpack.c.h.b16 %v354
    %v736 = vunpack.c.l.b16 %v355
    %v737 = vunpack.c.h.b16 %v355
    %v738 = vunpack.c.l.b16 %v356
    %v739 = vunpack.c.h.b16 %v356
    %v740 = vunpack.c.l.b16 %v357
    %v741 = vunpack.c.h.b16 %v357
    %v742 = vunpack.c.l.b16 %v358
    %v743 = vunpack.c.h.b16 %v358
    %v744 = vunpack.c.l.b16 %v359
    %v745 = vunpack.c.h.b16 %v359
    %v746 = vunpack.c.l.b16 %v360
    %v747 = vunpack.c.h.b16 %v360
    %v748 = vunpack.c.l.b16 %v361
    %v749 = vunpack.c.h.b16 %v361
    %v750 = vunpack.c.l.b16 %v362
    %v751 = vunpack.c.h.b16 %v362
    %v752 = vunpack.c.l.b16 %v363
    %v753 = vunpack.c.h.b16 %v363
    %v754 = vunpack.c.l.b16 %v364
    %v755 = vunpack.c.h.b16 %v364
    %v756 = vunpack.c.l.b16 %v365
    %v757 = vunpack.c.h.b16 %v365
    %v758 = vunpack.c.l.b16 %v366
    %v759 = vunpack.c.h.b16 %v366
    %v760 = vunpack.c.l.b16 %v367
    %v761 = vunpack.c.h.b16 %v367
    %v762 = vunpack.c.l.b16 %v368
    %v763 = vunpack.c.h.b16 %v368
    %v764 = vunpack.c.l.b16 %v369
    %v765 = vunpack.c.h.b16 %v369
    %v766 = vunpack.c.l.b16 %v370
    %v767 = vunpack.c.h.b16 %v370
    %v768 = vunpack.c.l.b16 %v371
    %v769 = vunpack.c.h.b16 %v371
    %v770 = vunpack.c.l.b16 %v372
    %v771 = vunpack.c.h.b16 %v372
    %v772 = vpack.c.b16 %v520, %v516
    %v773 = vpack.c.b16 %v521, %v517
    %v774 = vpack.c.b16 %v522, %v518
    %v775 = vpack.c.b16 %v523, %v519
    %v776 = vpack.c.b16 %v528, %v524
    %v777 = vpack.c.b16 %v529, %v525
    %v778 = vpack.c.b16 %v530, %v526
    %v779 = vpack.c.b16 %v531, %v527
    %v780 = vpack.c.b16 %v536, %v532
    %v781 = vpack.c.b16 %v537, %v533
    %v782 = vpack.c.b16 %v538, %v534
    %v783 = vpack.c.b16 %v539, %v535
    %v784 = vpack.c.b16 %v544, %v540
    %v785 = vpack.c.b16 %v545, %v541
    %v786 = vpack.c.b16 %v546, %v542
    %v787 = vpack.c.b16 %v547, %v543
    %v788 = vpack.c.b16 %v552, %v548
    %v789 = vpack.c.b16 %v553, %v549
    %v790 = vpack.c.b16 %v554, %v550
    %v791 = vpack.c.b16 %v555, %v551
    %v792 = vpack.c.b16 %v560, %v556
    %v793 = vpack.c.b16 %v561, %v557
    %v794 = vpack.c.b16 %v562, %v558
    %v795 = vpack.c.b16 %v563, %v559
    %v796 = vpack.c.b16 %v568, %v564
    %v797 = vpack.c.b16 %v569, %v565
    %v798 = vpack.c.b16 %v570, %v566
    %v799 = vpack.c.b16 %v571, %v567
    %v800 = vpack.c.b16 %v576, %v572
    %v801 = vpack.c.b16 %v577, %v573
    %v802 = vpack.c.b16 %v578, %v574
    %v803 = vpack.c.b16 %v579, %v575
    %v804 = vpack.c.b16 %v584, %v580
    %v805 = vpack.c.b16 %v585, %v581
    %v806 = vpack.c.b16 %v586, %v582
    %v807 = vpack.c.b16 %v587, %v583
    %v808 = vpack.c.b16 %v592, %v588
    %v809 = vpack.c.b16 %v593, %v589
    %v810 = vpack.c.b16 %v594, %v590
    %v811 = vpack.c.b16 %v595, %v591
    %v812 = vpack.c.b16 %v600, %v596
    %v813 = vpack.c.b16 %v601, %v597
    %v814 = vpack.c.b16 %v602, %v598
    %v815 = vpack.c.b16 %v603, %v599
    %v816 = vpack.c.b16 %v608, %v604
    %v817 = vpack.c.b16 %v609, %v605
    %v818 = vpack.c.b16 %v610, %v606
    %v819 = vpack.c.b16 %v611, %v607
    %v820 = vpack.c.b16 %v616, %v612
    %v821 = vpack.c.b16 %v617, %v613
    %v822 = vpack.c.b16 %v618, %v614
    %v823 = vpack.c.b16 %v619, %v615
    %v824 = vpack.c.b16 %v624, %v620
    %v825 = vpack.c.b16 %v625, %v621
    %v826 = vpack.c.b16 %v626, %v622
    %v827 = vpack.c.b16 %v627, %v623
    %v828 = vpack.c.b16 %v632, %v628
    %v829 = vpack.c.b16 %v633, %v629
    %v830 = vpack.c.b16 %v634, %v630
    %v831 = vpack.c.b16 %v635, %v631
    %v832 = vpack.c.b16 %v640, %v636
    %v833 = vpack.c.b16 %v641, %v637
    %v834 = vpack.c.b16 %v642, %v638
    %v835 = vpack.c.b16 %v643, %v639
    %v836 = vpack.c.b16 %v648, %v644
    %v837 = vpack.c.b16 %v649, %v645
    %v838 = vpack.c.b16 %v650, %v646
    %v839 = vpack.c.b16 %v651, %v647
    %v840 = vpack.c.b16 %v656, %v652
    %v841 = vpack.c.b16 %v657, %v653
    %v842 = vpack.c.b16 %v658, %v654
    %v843 = vpack.c.b16 %v659, %v655
    %v844 = vpack.c.b16 %v664, %v660
    %v845 = vpack.c.b16 %v665, %v661
    %v846 = vpack.c.b16 %v666, %v662
    %v847 = vpack.c.b16 %v667, %v663
    %v848 = vpack.c.b16 %v672, %v668
    %v849 = vpack.c.b16 %v673, %v669
    %v850 = vpack.c.b16 %v674, %v670
    %v851 = vpack.c.b16 %v675, %v671
    %v852 = vpack.c.b16 %v680, %v676
    %v853 = vpack.c.b16 %v681, %v677
    %v854 = vpack.c.b16 %v682, %v678
    %v855 = vpack.c.b16 %v683, %v679
    %v856 = vpack.c.b16 %v688, %v684
    %v857 = vpack.c.b16 %v689, %v685
    %v858 = vpack.c.b16 %v690, %v686
    %v859 = vpack.c.b16 %v691, %v687
    %v860 = vpack.c.b16 %v696, %v692
    %v861 = vpack.c.b16 %v697, %v693
    %v862 = vpack.c.b16 %v698, %v694
    %v863 = vpack.c.b16 %v699, %v695
    %v864 = vpack.c.b16 %v704, %v700
    %v865 = vpack.c.b16 %v705, %v701
    %v866 = vpack.c.b16 %v706, %v702
    %v867 = vpack.c.b16 %v707, %v703
    %v868 = vpack.c.b16 %v712, %v708
    %v869 = vpack.c.b16 %v713, %v709
    %v870 = vpack.c.b16 %v714, %v710
    %v871 = vpack.c.b16 %v715, %v711
    %v872 = vpack.c.b16 %v720, %v716
    %v873 = vpack.c.b16 %v721, %v717
    %v874 = vpack.c.b16 %v722, %v718
    %v875 = vpack.c.b16 %v723, %v719
    %v876 = vpack.c.b16 %v728, %v724
    %v877 = vpack.c.b16 %v729, %v725
    %v878 = vpack.c.b16 %v730, %v726
    %v879 = vpack.c.b16 %v731, %v727
    %v880 = vpack.c.b16 %v736, %v732
    %v881 = vpack.c.b16 %v737, %v733
    %v882 = vpack.c.b16 %v738, %v734
    %v883 = vpack.c.b16 %v739, %v735
    %v884 = vpack.c.b16 %v744, %v740
    %v885 = vpack.c.b16 %v745, %v741
    %v886 = vpack.c.b16 %v746, %v742
    %v887 = vpack.c.b16 %v747, %v743
    %v888 = vpack.c.b16 %v752, %v748
    %v889 = vpack.c.b16 %v753, %v749
    %v890 = vpack.c.b16 %v754, %v750
    %v891 = vpack.c.b16 %v755, %v751
    %v892 = vpack.c.b16 %v760, %v756
    %v893 = vpack.c.b16 %v761, %v757
    %v894 = vpack.c.b16 %v762, %v758
    %v895 = vpack.c.b16 %v763, %v759
    %v896 = vpack.c.b16 %v768, %v764
    %v897 = vpack.c.b16 %v769, %v765
    %v898 = vpack.c.b16 %v770, %v766
    %v899 = vpack.c.b16 %v771, %v767
    %1028 = vmatpush.bf16.msra.mxu0 %v800
    %1029 = vmatpush.bf16.msra.mxu0 %v796
    %1030 = vmatpush.bf16.msra.mxu0 %v792
    %1031 = vmatpush.bf16.msra.mxu0 %v788
    %1032 = vmatpush.bf16.msra.mxu0 %v784
    %1033 = vmatpush.bf16.msra.mxu0 %v780
    %1034 = vmatpush.bf16.msra.mxu0 %v776
    %1035 = vmatpush.bf16.msra.mxu0 %v772
    %1036 = vmatmul.bf16.gmra.mxu0 %v241
    %v1037 = vpop.f32.mrf.mxu0
    %v1038 = vadd.f32 %v384, %v1037
    %v1039 = vpop.f32.mrf.mxu0
    %1040 = vdwg.mxu0
    %1041 = vmatpush.bf16.msra.mxu0 %v832
    %1042 = vmatpush.bf16.msra.mxu0 %v828
    %1043 = vmatpush.bf16.msra.mxu0 %v824
    %1044 = vmatpush.bf16.msra.mxu0 %v820
    %1045 = vmatpush.bf16.msra.mxu0 %v816
    %1046 = vmatpush.bf16.msra.mxu0 %v812
    %1047 = vmatpush.bf16.msra.mxu0 %v808
    %1048 = vmatpush.bf16.msra.mxu0 %v804
    %1049 = vmatmul.bf16.gmra.mxu0 %v242
    %v1050 = vpop.f32.mrf.mxu0
    %v1051 = vadd.f32 %v1038, %v1050
    %v1052 = vpop.f32.mrf.mxu0
    %1053 = vdwg.mxu0
    %1054 = vmatpush.bf16.msra.mxu0 %v864
    %1055 = vmatpush.bf16.msra.mxu0 %v860
    %1056 = vmatpush.bf16.msra.mxu0 %v856
    %1057 = vmatpush.bf16.msra.mxu0 %v852
    %1058 = vmatpush.bf16.msra.mxu0 %v848
    %1059 = vmatpush.bf16.msra.mxu0 %v844
    %1060 = vmatpush.bf16.msra.mxu0 %v840
    %1061 = vmatpush.bf16.msra.mxu0 %v836
    %1062 = vmatmul.bf16.gmra.mxu0 %v243
    %v1063 = vpop.f32.mrf.mxu0
    %v1064 = vadd.f32 %v1051, %v1063
    %v1065 = vpop.f32.mrf.mxu0
    %1066 = vdwg.mxu0
    %1067 = vmatpush.bf16.msra.mxu0 %v896
    %1068 = vmatpush.bf16.msra.mxu0 %v892
    %1069 = vmatpush.bf16.msra.mxu0 %v888
    %1070 = vmatpush.bf16.msra.mxu0 %v884
    %1071 = vmatpush.bf16.msra.mxu0 %v880
    %1072 = vmatpush.bf16.msra.mxu0 %v876
    %1073 = vmatpush.bf16.msra.mxu0 %v872
    %1074 = vmatpush.bf16.msra.mxu0 %v868
    %1075 = vmatmul.bf16.gmra.mxu0 %v244
    %v1076 = vpop.f32.mrf.mxu0
    %v1077 = vadd.f32 %v1064, %v1076
    %v1078 = vpop.f32.mrf.mxu0
    %1079 = vdwg.mxu0
    %1080 = vmatpush.bf16.msra.mxu0 %v801
    %1081 = vmatpush.bf16.msra.mxu0 %v797
    %1082 = vmatpush.bf16.msra.mxu0 %v793
    %1083 = vmatpush.bf16.msra.mxu0 %v789
    %1084 = vmatpush.bf16.msra.mxu0 %v785
    %1085 = vmatpush.bf16.msra.mxu0 %v781
    %1086 = vmatpush.bf16.msra.mxu0 %v777
    %1087 = vmatpush.bf16.msra.mxu0 %v773
    %1088 = vmatmul.bf16.gmra.mxu0 %v241
    %v1089 = vpop.f32.mrf.mxu0
    %v1090 = vadd.f32 %v385, %v1089
    %v1091 = vpop.f32.mrf.mxu0
    %1092 = vdwg.mxu0
    %1093 = vmatpush.bf16.msra.mxu0 %v833
    %1094 = vmatpush.bf16.msra.mxu0 %v829
    %1095 = vmatpush.bf16.msra.mxu0 %v825
    %1096 = vmatpush.bf16.msra.mxu0 %v821
    %1097 = vmatpush.bf16.msra.mxu0 %v817
    %1098 = vmatpush.bf16.msra.mxu0 %v813
    %1099 = vmatpush.bf16.msra.mxu0 %v809
    %1100 = vmatpush.bf16.msra.mxu0 %v805
    %1101 = vmatmul.bf16.gmra.mxu0 %v242
    %v1102 = vpop.f32.mrf.mxu0
    %v1103 = vadd.f32 %v1090, %v1102
    %v1104 = vpop.f32.mrf.mxu0
    %1105 = vdwg.mxu0
    %1106 = vmatpush.bf16.msra.mxu0 %v865
    %1107 = vmatpush.bf16.msra.mxu0 %v861
    %1108 = vmatpush.bf16.msra.mxu0 %v857
    %1109 = vmatpush.bf16.msra.mxu0 %v853
    %1110 = vmatpush.bf16.msra.mxu0 %v849
    %1111 = vmatpush.bf16.msra.mxu0 %v845
    %1112 = vmatpush.bf16.msra.mxu0 %v841
    %1113 = vmatpush.bf16.msra.mxu0 %v837
    %1114 = vmatmul.bf16.gmra.mxu0 %v243
    %v1115 = vpop.f32.mrf.mxu0
    %v1116 = vadd.f32 %v1103, %v1115
    %v1117 = vpop.f32.mrf.mxu0
    %1118 = vdwg.mxu0
    %1119 = vmatpush.bf16.msra.mxu0 %v897
    %1120 = vmatpush.bf16.msra.mxu0 %v893
    %1121 = vmatpush.bf16.msra.mxu0 %v889
    %1122 = vmatpush.bf16.msra.mxu0 %v885
    %1123 = vmatpush.bf16.msra.mxu0 %v881
    %1124 = vmatpush.bf16.msra.mxu0 %v877
    %1125 = vmatpush.bf16.msra.mxu0 %v873
    %1126 = vmatpush.bf16.msra.mxu0 %v869
    %1127 = vmatmul.bf16.gmra.mxu0 %v244
    %v1128 = vpop.f32.mrf.mxu0
    %v1129 = vadd.f32 %v1116, %v1128
    %v1130 = vpop.f32.mrf.mxu0
    %1131 = vdwg.mxu0
    %1132 = vmatpush.bf16.msra.mxu0 %v802
    %1133 = vmatpush.bf16.msra.mxu0 %v798
    %1134 = vmatpush.bf16.msra.mxu0 %v794
    %1135 = vmatpush.bf16.msra.mxu0 %v790
    %1136 = vmatpush.bf16.msra.mxu0 %v786
    %1137 = vmatpush.bf16.msra.mxu0 %v782
    %1138 = vmatpush.bf16.msra.mxu0 %v778
    %1139 = vmatpush.bf16.msra.mxu0 %v774
    %1140 = vmatmul.bf16.gmra.mxu0 %v241
    %v1141 = vpop.f32.mrf.mxu0
    %v1142 = vadd.f32 %v386, %v1141
    %v1143 = vpop.f32.mrf.mxu0
    %1144 = vdwg.mxu0
    %1145 = vmatpush.bf16.msra.mxu0 %v834
    %1146 = vmatpush.bf16.msra.mxu0 %v830
    %1147 = vmatpush.bf16.msra.mxu0 %v826
    %1148 = vmatpush.bf16.msra.mxu0 %v822
    %1149 = vmatpush.bf16.msra.mxu0 %v818
    %1150 = vmatpush.bf16.msra.mxu0 %v814
    %1151 = vmatpush.bf16.msra.mxu0 %v810
    %1152 = vmatpush.bf16.msra.mxu0 %v806
    %1153 = vmatmul.bf16.gmra.mxu0 %v242
    %v1154 = vpop.f32.mrf.mxu0
    %v1155 = vadd.f32 %v1142, %v1154
    %v1156 = vpop.f32.mrf.mxu0
    %1157 = vdwg.mxu0
    %1158 = vmatpush.bf16.msra.mxu0 %v866
    %1159 = vmatpush.bf16.msra.mxu0 %v862
    %1160 = vmatpush.bf16.msra.mxu0 %v858
    %1161 = vmatpush.bf16.msra.mxu0 %v854
    %1162 = vmatpush.bf16.msra.mxu0 %v850
    %1163 = vmatpush.bf16.msra.mxu0 %v846
    %1164 = vmatpush.bf16.msra.mxu0 %v842
    %1165 = vmatpush.bf16.msra.mxu0 %v838
    %1166 = vmatmul.bf16.gmra.mxu0 %v243
    %v1167 = vpop.f32.mrf.mxu0
    %v1168 = vadd.f32 %v1155, %v1167
    %v1169 = vpop.f32.mrf.mxu0
    %1170 = vdwg.mxu0
    %1171 = vmatpush.bf16.msra.mxu0 %v898
    %1172 = vmatpush.bf16.msra.mxu0 %v894
    %1173 = vmatpush.bf16.msra.mxu0 %v890
    %1174 = vmatpush.bf16.msra.mxu0 %v886
    %1175 = vmatpush.bf16.msra.mxu0 %v882
    %1176 = vmatpush.bf16.msra.mxu0 %v878
    %1177 = vmatpush.bf16.msra.mxu0 %v874
    %1178 = vmatpush.bf16.msra.mxu0 %v870
    %1179 = vmatmul.bf16.gmra.mxu0 %v244
    %v1180 = vpop.f32.mrf.mxu0
    %v1181 = vadd.f32 %v1168, %v1180
    %v1182 = vpop.f32.mrf.mxu0
    %1183 = vdwg.mxu0
    %1184 = vmatpush.bf16.msra.mxu0 %v803
    %1185 = vmatpush.bf16.msra.mxu0 %v799
    %1186 = vmatpush.bf16.msra.mxu0 %v795
    %1187 = vmatpush.bf16.msra.mxu0 %v791
    %1188 = vmatpush.bf16.msra.mxu0 %v787
    %1189 = vmatpush.bf16.msra.mxu0 %v783
    %1190 = vmatpush.bf16.msra.mxu0 %v779
    %1191 = vmatpush.bf16.msra.mxu0 %v775
    %1192 = vmatmul.bf16.gmra.mxu0 %v241
    %v1193 = vpop.f32.mrf.mxu0
    %v1194 = vadd.f32 %v387, %v1193
    %v1195 = vpop.f32.mrf.mxu0
    %1196 = vdwg.mxu0
    %1197 = vmatpush.bf16.msra.mxu0 %v835
    %1198 = vmatpush.bf16.msra.mxu0 %v831
    %1199 = vmatpush.bf16.msra.mxu0 %v827
    %1200 = vmatpush.bf16.msra.mxu0 %v823
    %1201 = vmatpush.bf16.msra.mxu0 %v819
    %1202 = vmatpush.bf16.msra.mxu0 %v815
    %1203 = vmatpush.bf16.msra.mxu0 %v811
    %1204 = vmatpush.bf16.msra.mxu0 %v807
    %1205 = vmatmul.bf16.gmra.mxu0 %v242
    %v1206 = vpop.f32.mrf.mxu0
    %v1207 = vadd.f32 %v1194, %v1206
    %v1208 = vpop.f32.mrf.mxu0
    %1209 = vdwg.mxu0
    %1210 = vmatpush.bf16.msra.mxu0 %v867
    %1211 = vmatpush.bf16.msra.mxu0 %v863
    %1212 = vmatpush.bf16.msra.mxu0 %v859
    %1213 = vmatpush.bf16.msra.mxu0 %v855
    %1214 = vmatpush.bf16.msra.mxu0 %v851
    %1215 = vmatpush.bf16.msra.mxu0 %v847
    %1216 = vmatpush.bf16.msra.mxu0 %v843
    %1217 = vmatpush.bf16.msra.mxu0 %v839
    %1218 = vmatmul.bf16.gmra.mxu0 %v243
    %v1219 = vpop.f32.mrf.mxu0
    %v1220 = vadd.f32 %v1207, %v1219
    %v1221 = vpop.f32.mrf.mxu0
    %1222 = vdwg.mxu0
    %1223 = vmatpush.bf16.msra.mxu0 %v899
    %1224 = vmatpush.bf16.msra.mxu0 %v895
    %1225 = vmatpush.bf16.msra.mxu0 %v891
    %1226 = vmatpush.bf16.msra.mxu0 %v887
    %1227 = vmatpush.bf16.msra.mxu0 %v883
    %1228 = vmatpush.bf16.msra.mxu0 %v879
    %1229 = vmatpush.bf16.msra.mxu0 %v875
    %1230 = vmatpush.bf16.msra.mxu0 %v871
    %1231 = vmatmul.bf16.gmra.mxu0 %v244
    %v1232 = vpop.f32.mrf.mxu0
    %v1233 = vadd.f32 %v1220, %v1232
    %v1234 = vpop.f32.mrf.mxu0
    %1235 = vdwg.mxu0
    %v1236 = vmax.f32 %v1077, 0.0
    %v1237 = vmax.f32 %v1129, 0.0
    %v1238 = vmax.f32 %v1181, 0.0
    %v1239 = vmax.f32 %v1233, 0.0
    %v1240 = vpack.c.bf16 %v1236, %v1236
    %v1241 = vpack.c.bf16 %v1237, %v1237
    %v1242 = vpack.c.bf16 %v1238, %v1238
    %v1243 = vpack.c.bf16 %v1239, %v1239
    %v1244 = vld [vmem:[#allocation6] sm:$0xff]
    %v1245 = vld [vmem:[#allocation6 + $0x8] sm:$0xff]
    %v1246 = vld [vmem:[#allocation6 + $0x10] sm:$0xff]
    %v1247 = vld [vmem:[#allocation6 + $0x18] sm:$0xff]
    %v1248 = vld [vmem:[#allocation6 + $0x20] sm:$0xff]
    %v1249 = vld [vmem:[#allocation6 + $0x28] sm:$0xff]
    %v1250 = vld [vmem:[#allocation6 + $0x30] sm:$0xff]
    %v1251 = vld [vmem:[#allocation6 + $0x38] sm:$0xff]
    %v1252 = vld [vmem:[#allocation6 + $0x40] sm:$0xff]
    %v1253 = vld [vmem:[#allocation6 + $0x48] sm:$0xff]
    %v1254 = vld [vmem:[#allocation6 + $0x50] sm:$0xff]
    %v1255 = vld [vmem:[#allocation6 + $0x58] sm:$0xff]
    %v1256 = vld [vmem:[#allocation6 + $0x60] sm:$0xff]
    %v1257 = vld [vmem:[#allocation6 + $0x68] sm:$0xff]
    %v1258 = vld [vmem:[#allocation6 + $0x70] sm:$0xff]
    %v1259 = vld [vmem:[#allocation6 + $0x78] sm:$0xff]
    %v1260 = vld [vmem:[#allocation6 + $0x80] sm:$0xff]
    %v1261 = vld [vmem:[#allocation6 + $0x88] sm:$0xff]
    %v1262 = vld [vmem:[#allocation6 + $0x90] sm:$0xff]
    %v1263 = vld [vmem:[#allocation6 + $0x98] sm:$0xff]
    %v1264 = vld [vmem:[#allocation6 + $0xa0] sm:$0xff]
    %v1265 = vld [vmem:[#allocation6 + $0xa8] sm:$0xff]
    %v1266 = vld [vmem:[#allocation6 + $0xb0] sm:$0xff]
    %v1267 = vld [vmem:[#allocation6 + $0xb8] sm:$0xff]
    %v1268 = vld [vmem:[#allocation6 + $0xc0] sm:$0xff]
    %v1269 = vld [vmem:[#allocation6 + $0xc8] sm:$0xff]
    %v1270 = vld [vmem:[#allocation6 + $0xd0] sm:$0xff]
    %v1271 = vld [vmem:[#allocation6 + $0xd8] sm:$0xff]
    %v1272 = vld [vmem:[#allocation6 + $0xe0] sm:$0xff]
    %v1273 = vld [vmem:[#allocation6 + $0xe8] sm:$0xff]
    %v1274 = vld [vmem:[#allocation6 + $0xf0] sm:$0xff]
    %v1275 = vld [vmem:[#allocation6 + $0xf8] sm:$0xff]
    %v1276 = vld [vmem:[#allocation6 + $0x100] sm:$0xff]
    %v1277 = vld [vmem:[#allocation6 + $0x108] sm:$0xff]
    %v1278 = vld [vmem:[#allocation6 + $0x110] sm:$0xff]
    %v1279 = vld [vmem:[#allocation6 + $0x118] sm:$0xff]
    %v1280 = vld [vmem:[#allocation6 + $0x120] sm:$0xff]
    %v1281 = vld [vmem:[#allocation6 + $0x128] sm:$0xff]
    %v1282 = vld [vmem:[#allocation6 + $0x130] sm:$0xff]
    %v1283 = vld [vmem:[#allocation6 + $0x138] sm:$0xff]
    %v1284 = vld [vmem:[#allocation6 + $0x140] sm:$0xff]
    %v1285 = vld [vmem:[#allocation6 + $0x148] sm:$0xff]
    %v1286 = vld [vmem:[#allocation6 + $0x150] sm:$0xff]
    %v1287 = vld [vmem:[#allocation6 + $0x158] sm:$0xff]
    %v1288 = vld [vmem:[#allocation6 + $0x160] sm:$0xff]
    %v1289 = vld [vmem:[#allocation6 + $0x168] sm:$0xff]
    %v1290 = vld [vmem:[#allocation6 + $0x170] sm:$0xff]
    %v1291 = vld [vmem:[#allocation6 + $0x178] sm:$0xff]
    %v1292 = vld [vmem:[#allocation6 + $0x180] sm:$0xff]
    %v1293 = vld [vmem:[#allocation6 + $0x188] sm:$0xff]
    %v1294 = vld [vmem:[#allocation6 + $0x190] sm:$0xff]
    %v1295 = vld [vmem:[#allocation6 + $0x198] sm:$0xff]
    %v1296 = vld [vmem:[#allocation6 + $0x1a0] sm:$0xff]
    %v1297 = vld [vmem:[#allocation6 + $0x1a8] sm:$0xff]
    %v1298 = vld [vmem:[#allocation6 + $0x1b0] sm:$0xff]
    %v1299 = vld [vmem:[#allocation6 + $0x1b8] sm:$0xff]
    %v1300 = vld [vmem:[#allocation6 + $0x1c0] sm:$0xff]
    %v1301 = vld [vmem:[#allocation6 + $0x1c8] sm:$0xff]
    %v1302 = vld [vmem:[#allocation6 + $0x1d0] sm:$0xff]
    %v1303 = vld [vmem:[#allocation6 + $0x1d8] sm:$0xff]
    %v1304 = vld [vmem:[#allocation6 + $0x1e0] sm:$0xff]
    %v1305 = vld [vmem:[#allocation6 + $0x1e8] sm:$0xff]
    %v1306 = vld [vmem:[#allocation6 + $0x1f0] sm:$0xff]
    %v1307 = vld [vmem:[#allocation6 + $0x1f8] sm:$0xff]
    %v1308 = vld [vmem:[#allocation6 + $0x200] sm:$0xff]
    %v1309 = vld [vmem:[#allocation6 + $0x208] sm:$0xff]
    %v1310 = vld [vmem:[#allocation6 + $0x210] sm:$0xff]
    %v1311 = vld [vmem:[#allocation6 + $0x218] sm:$0xff]
    %v1312 = vld [vmem:[#allocation6 + $0x220] sm:$0xff]
    %v1313 = vld [vmem:[#allocation6 + $0x228] sm:$0xff]
    %v1314 = vld [vmem:[#allocation6 + $0x230] sm:$0xff]
    %v1315 = vld [vmem:[#allocation6 + $0x238] sm:$0xff]
    %v1316 = vld [vmem:[#allocation6 + $0x240] sm:$0xff]
    %v1317 = vld [vmem:[#allocation6 + $0x248] sm:$0xff]
    %v1318 = vld [vmem:[#allocation6 + $0x250] sm:$0xff]
    %v1319 = vld [vmem:[#allocation6 + $0x258] sm:$0xff]
    %v1320 = vld [vmem:[#allocation6 + $0x260] sm:$0xff]
    %v1321 = vld [vmem:[#allocation6 + $0x268] sm:$0xff]
    %v1322 = vld [vmem:[#allocation6 + $0x270] sm:$0xff]
    %v1323 = vld [vmem:[#allocation6 + $0x278] sm:$0xff]
    %v1324 = vld [vmem:[#allocation6 + $0x280] sm:$0xff]
    %v1325 = vld [vmem:[#allocation6 + $0x288] sm:$0xff]
    %v1326 = vld [vmem:[#allocation6 + $0x290] sm:$0xff]
    %v1327 = vld [vmem:[#allocation6 + $0x298] sm:$0xff]
    %v1328 = vld [vmem:[#allocation6 + $0x2a0] sm:$0xff]
    %v1329 = vld [vmem:[#allocation6 + $0x2a8] sm:$0xff]
    %v1330 = vld [vmem:[#allocation6 + $0x2b0] sm:$0xff]
    %v1331 = vld [vmem:[#allocation6 + $0x2b8] sm:$0xff]
    %v1332 = vld [vmem:[#allocation6 + $0x2c0] sm:$0xff]
    %v1333 = vld [vmem:[#allocation6 + $0x2c8] sm:$0xff]
    %v1334 = vld [vmem:[#allocation6 + $0x2d0] sm:$0xff]
    %v1335 = vld [vmem:[#allocation6 + $0x2d8] sm:$0xff]
    %v1336 = vld [vmem:[#allocation6 + $0x2e0] sm:$0xff]
    %v1337 = vld [vmem:[#allocation6 + $0x2e8] sm:$0xff]
    %v1338 = vld [vmem:[#allocation6 + $0x2f0] sm:$0xff]
    %v1339 = vld [vmem:[#allocation6 + $0x2f8] sm:$0xff]
    %v1340 = vld [vmem:[#allocation6 + $0x300] sm:$0xff]
    %v1341 = vld [vmem:[#allocation6 + $0x308] sm:$0xff]
    %v1342 = vld [vmem:[#allocation6 + $0x310] sm:$0xff]
    %v1343 = vld [vmem:[#allocation6 + $0x318] sm:$0xff]
    %v1344 = vld [vmem:[#allocation6 + $0x320] sm:$0xff]
    %v1345 = vld [vmem:[#allocation6 + $0x328] sm:$0xff]
    %v1346 = vld [vmem:[#allocation6 + $0x330] sm:$0xff]
    %v1347 = vld [vmem:[#allocation6 + $0x338] sm:$0xff]
    %v1348 = vld [vmem:[#allocation6 + $0x340] sm:$0xff]
    %v1349 = vld [vmem:[#allocation6 + $0x348] sm:$0xff]
    %v1350 = vld [vmem:[#allocation6 + $0x350] sm:$0xff]
    %v1351 = vld [vmem:[#allocation6 + $0x358] sm:$0xff]
    %v1352 = vld [vmem:[#allocation6 + $0x360] sm:$0xff]
    %v1353 = vld [vmem:[#allocation6 + $0x368] sm:$0xff]
    %v1354 = vld [vmem:[#allocation6 + $0x370] sm:$0xff]
    %v1355 = vld [vmem:[#allocation6 + $0x378] sm:$0xff]
    %v1356 = vld [vmem:[#allocation6 + $0x380] sm:$0xff]
    %v1357 = vld [vmem:[#allocation6 + $0x388] sm:$0xff]
    %v1358 = vld [vmem:[#allocation6 + $0x390] sm:$0xff]
    %v1359 = vld [vmem:[#allocation6 + $0x398] sm:$0xff]
    %v1360 = vld [vmem:[#allocation6 + $0x3a0] sm:$0xff]
    %v1361 = vld [vmem:[#allocation6 + $0x3a8] sm:$0xff]
    %v1362 = vld [vmem:[#allocation6 + $0x3b0] sm:$0xff]
    %v1363 = vld [vmem:[#allocation6 + $0x3b8] sm:$0xff]
    %v1364 = vld [vmem:[#allocation6 + $0x3c0] sm:$0xff]
    %v1365 = vld [vmem:[#allocation6 + $0x3c8] sm:$0xff]
    %v1366 = vld [vmem:[#allocation6 + $0x3d0] sm:$0xff]
    %v1367 = vld [vmem:[#allocation6 + $0x3d8] sm:$0xff]
    %v1368 = vld [vmem:[#allocation6 + $0x3e0] sm:$0xff]
    %v1369 = vld [vmem:[#allocation6 + $0x3e8] sm:$0xff]
    %v1370 = vld [vmem:[#allocation6 + $0x3f0] sm:$0xff]
    %v1371 = vld [vmem:[#allocation6 + $0x3f8] sm:$0xff]
    %v1372 = vld [vmem:[#allocation6 + $0x400] sm:$0xff]
    %v1373 = vld [vmem:[#allocation6 + $0x408] sm:$0xff]
    %v1374 = vld [vmem:[#allocation6 + $0x410] sm:$0xff]
    %v1375 = vld [vmem:[#allocation6 + $0x418] sm:$0xff]
    %v1376 = vld [vmem:[#allocation6 + $0x420] sm:$0xff]
    %v1377 = vld [vmem:[#allocation6 + $0x428] sm:$0xff]
    %v1378 = vld [vmem:[#allocation6 + $0x430] sm:$0xff]
    %v1379 = vld [vmem:[#allocation6 + $0x438] sm:$0xff]
    %v1380 = vld [vmem:[#allocation6 + $0x440] sm:$0xff]
    %v1381 = vld [vmem:[#allocation6 + $0x448] sm:$0xff]
    %v1382 = vld [vmem:[#allocation6 + $0x450] sm:$0xff]
    %v1383 = vld [vmem:[#allocation6 + $0x458] sm:$0xff]
    %v1384 = vld [vmem:[#allocation6 + $0x460] sm:$0xff]
    %v1385 = vld [vmem:[#allocation6 + $0x468] sm:$0xff]
    %v1386 = vld [vmem:[#allocation6 + $0x470] sm:$0xff]
    %v1387 = vld [vmem:[#allocation6 + $0x478] sm:$0xff]
    %v1388 = vld [vmem:[#allocation6 + $0x480] sm:$0xff]
    %v1389 = vld [vmem:[#allocation6 + $0x488] sm:$0xff]
    %v1390 = vld [vmem:[#allocation6 + $0x490] sm:$0xff]
    %v1391 = vld [vmem:[#allocation6 + $0x498] sm:$0xff]
    %v1392 = vld [vmem:[#allocation6 + $0x4a0] sm:$0xff]
    %v1393 = vld [vmem:[#allocation6 + $0x4a8] sm:$0xff]
    %v1394 = vld [vmem:[#allocation6 + $0x4b0] sm:$0xff]
    %v1395 = vld [vmem:[#allocation6 + $0x4b8] sm:$0xff]
    %v1396 = vld [vmem:[#allocation6 + $0x4c0] sm:$0xff]
    %v1397 = vld [vmem:[#allocation6 + $0x4c8] sm:$0xff]
    %v1398 = vld [vmem:[#allocation6 + $0x4d0] sm:$0xff]
    %v1399 = vld [vmem:[#allocation6 + $0x4d8] sm:$0xff]
    %v1400 = vld [vmem:[#allocation6 + $0x4e0] sm:$0xff]
    %v1401 = vld [vmem:[#allocation6 + $0x4e8] sm:$0xff]
    %v1402 = vld [vmem:[#allocation6 + $0x4f0] sm:$0xff]
    %v1403 = vld [vmem:[#allocation6 + $0x4f8] sm:$0xff]
    %v1404 = vld [vmem:[#allocation6 + $0x500] sm:$0xff]
    %v1405 = vld [vmem:[#allocation6 + $0x508] sm:$0xff]
    %v1406 = vld [vmem:[#allocation6 + $0x510] sm:$0xff]
    %v1407 = vld [vmem:[#allocation6 + $0x518] sm:$0xff]
    %v1408 = vld [vmem:[#allocation6 + $0x520] sm:$0xff]
    %v1409 = vld [vmem:[#allocation6 + $0x528] sm:$0xff]
    %v1410 = vld [vmem:[#allocation6 + $0x530] sm:$0xff]
    %v1411 = vld [vmem:[#allocation6 + $0x538] sm:$0xff]
    %v1412 = vld [vmem:[#allocation6 + $0x540] sm:$0xff]
    %v1413 = vld [vmem:[#allocation6 + $0x548] sm:$0xff]
    %v1414 = vld [vmem:[#allocation6 + $0x550] sm:$0xff]
    %v1415 = vld [vmem:[#allocation6 + $0x558] sm:$0xff]
    %v1416 = vld [vmem:[#allocation6 + $0x560] sm:$0xff]
    %v1417 = vld [vmem:[#allocation6 + $0x568] sm:$0xff]
    %v1418 = vld [vmem:[#allocation6 + $0x570] sm:$0xff]
    %v1419 = vld [vmem:[#allocation6 + $0x578] sm:$0xff]
    %v1420 = vld [vmem:[#allocation6 + $0x580] sm:$0xff]
    %v1421 = vld [vmem:[#allocation6 + $0x588] sm:$0xff]
    %v1422 = vld [vmem:[#allocation6 + $0x590] sm:$0xff]
    %v1423 = vld [vmem:[#allocation6 + $0x598] sm:$0xff]
    %v1424 = vld [vmem:[#allocation6 + $0x5a0] sm:$0xff]
    %v1425 = vld [vmem:[#allocation6 + $0x5a8] sm:$0xff]
    %v1426 = vld [vmem:[#allocation6 + $0x5b0] sm:$0xff]
    %v1427 = vld [vmem:[#allocation6 + $0x5b8] sm:$0xff]
    %v1428 = vld [vmem:[#allocation6 + $0x5c0] sm:$0xff]
    %v1429 = vld [vmem:[#allocation6 + $0x5c8] sm:$0xff]
    %v1430 = vld [vmem:[#allocation6 + $0x5d0] sm:$0xff]
    %v1431 = vld [vmem:[#allocation6 + $0x5d8] sm:$0xff]
    %v1432 = vld [vmem:[#allocation6 + $0x5e0] sm:$0xff]
    %v1433 = vld [vmem:[#allocation6 + $0x5e8] sm:$0xff]
    %v1434 = vld [vmem:[#allocation6 + $0x5f0] sm:$0xff]
    %v1435 = vld [vmem:[#allocation6 + $0x5f8] sm:$0xff]
    %v1436 = vld [vmem:[#allocation6 + $0x600] sm:$0xff]
    %v1437 = vld [vmem:[#allocation6 + $0x608] sm:$0xff]
    %v1438 = vld [vmem:[#allocation6 + $0x610] sm:$0xff]
    %v1439 = vld [vmem:[#allocation6 + $0x618] sm:$0xff]
    %v1440 = vld [vmem:[#allocation6 + $0x620] sm:$0xff]
    %v1441 = vld [vmem:[#allocation6 + $0x628] sm:$0xff]
    %v1442 = vld [vmem:[#allocation6 + $0x630] sm:$0xff]
    %v1443 = vld [vmem:[#allocation6 + $0x638] sm:$0xff]
    %v1444 = vld [vmem:[#allocation6 + $0x640] sm:$0xff]
    %v1445 = vld [vmem:[#allocation6 + $0x648] sm:$0xff]
    %v1446 = vld [vmem:[#allocation6 + $0x650] sm:$0xff]
    %v1447 = vld [vmem:[#allocation6 + $0x658] sm:$0xff]
    %v1448 = vld [vmem:[#allocation6 + $0x660] sm:$0xff]
    %v1449 = vld [vmem:[#allocation6 + $0x668] sm:$0xff]
    %v1450 = vld [vmem:[#allocation6 + $0x670] sm:$0xff]
    %v1451 = vld [vmem:[#allocation6 + $0x678] sm:$0xff]
    %v1452 = vld [vmem:[#allocation6 + $0x680] sm:$0xff]
    %v1453 = vld [vmem:[#allocation6 + $0x688] sm:$0xff]
    %v1454 = vld [vmem:[#allocation6 + $0x690] sm:$0xff]
    %v1455 = vld [vmem:[#allocation6 + $0x698] sm:$0xff]
    %v1456 = vld [vmem:[#allocation6 + $0x6a0] sm:$0xff]
    %v1457 = vld [vmem:[#allocation6 + $0x6a8] sm:$0xff]
    %v1458 = vld [vmem:[#allocation6 + $0x6b0] sm:$0xff]
    %v1459 = vld [vmem:[#allocation6 + $0x6b8] sm:$0xff]
    %v1460 = vld [vmem:[#allocation6 + $0x6c0] sm:$0xff]
    %v1461 = vld [vmem:[#allocation6 + $0x6c8] sm:$0xff]
    %v1462 = vld [vmem:[#allocation6 + $0x6d0] sm:$0xff]
    %v1463 = vld [vmem:[#allocation6 + $0x6d8] sm:$0xff]
    %v1464 = vld [vmem:[#allocation6 + $0x6e0] sm:$0xff]
    %v1465 = vld [vmem:[#allocation6 + $0x6e8] sm:$0xff]
    %v1466 = vld [vmem:[#allocation6 + $0x6f0] sm:$0xff]
    %v1467 = vld [vmem:[#allocation6 + $0x6f8] sm:$0xff]
    %v1468 = vld [vmem:[#allocation6 + $0x700] sm:$0xff]
    %v1469 = vld [vmem:[#allocation6 + $0x708] sm:$0xff]
    %v1470 = vld [vmem:[#allocation6 + $0x710] sm:$0xff]
    %v1471 = vld [vmem:[#allocation6 + $0x718] sm:$0xff]
    %v1472 = vld [vmem:[#allocation6 + $0x720] sm:$0xff]
    %v1473 = vld [vmem:[#allocation6 + $0x728] sm:$0xff]
    %v1474 = vld [vmem:[#allocation6 + $0x730] sm:$0xff]
    %v1475 = vld [vmem:[#allocation6 + $0x738] sm:$0xff]
    %v1476 = vld [vmem:[#allocation6 + $0x740] sm:$0xff]
    %v1477 = vld [vmem:[#allocation6 + $0x748] sm:$0xff]
    %v1478 = vld [vmem:[#allocation6 + $0x750] sm:$0xff]
    %v1479 = vld [vmem:[#allocation6 + $0x758] sm:$0xff]
    %v1480 = vld [vmem:[#allocation6 + $0x760] sm:$0xff]
    %v1481 = vld [vmem:[#allocation6 + $0x768] sm:$0xff]
    %v1482 = vld [vmem:[#allocation6 + $0x770] sm:$0xff]
    %v1483 = vld [vmem:[#allocation6 + $0x778] sm:$0xff]
    %v1484 = vld [vmem:[#allocation6 + $0x780] sm:$0xff]
    %v1485 = vld [vmem:[#allocation6 + $0x788] sm:$0xff]
    %v1486 = vld [vmem:[#allocation6 + $0x790] sm:$0xff]
    %v1487 = vld [vmem:[#allocation6 + $0x798] sm:$0xff]
    %v1488 = vld [vmem:[#allocation6 + $0x7a0] sm:$0xff]
    %v1489 = vld [vmem:[#allocation6 + $0x7a8] sm:$0xff]
    %v1490 = vld [vmem:[#allocation6 + $0x7b0] sm:$0xff]
    %v1491 = vld [vmem:[#allocation6 + $0x7b8] sm:$0xff]
    %v1492 = vld [vmem:[#allocation6 + $0x7c0] sm:$0xff]
    %v1493 = vld [vmem:[#allocation6 + $0x7c8] sm:$0xff]
    %v1494 = vld [vmem:[#allocation6 + $0x7d0] sm:$0xff]
    %v1495 = vld [vmem:[#allocation6 + $0x7d8] sm:$0xff]
    %v1496 = vld [vmem:[#allocation6 + $0x7e0] sm:$0xff]
    %v1497 = vld [vmem:[#allocation6 + $0x7e8] sm:$0xff]
    %v1498 = vld [vmem:[#allocation6 + $0x7f0] sm:$0xff]
    %v1499 = vld [vmem:[#allocation6 + $0x7f8] sm:$0xff]
    %v1500 = vld [vmem:[%s6] sm:$0xff]
    %v1501 = vunpack.c.l.bf16 %v1500
    %v1502 = vunpack.c.h.bf16 %v1500
    %v1505 = vperm.slane %v1501, 0
    %v1506 = vperm.slane %v1501, 2
    %v1507 = vperm.slane %v1501, 4
    %v1508 = vperm.slane %v1501, 6
    %v1509 = vperm.slane %v1502, 0
    %v1510 = vperm.slane %v1502, 2
    %v1511 = vperm.slane %v1502, 4
    %v1512 = vperm.slane %v1502, 6
    %v1521 = vperm.slane %v1505, 0
    %v1522 = vperm.slane %v1506, 0
    %v1523 = vperm.slane %v1507, 0
    %v1524 = vperm.slane %v1508, 0
    %v1525 = vperm.slane %v1509, 0
    %v1526 = vperm.slane %v1510, 0
    %v1527 = vperm.slane %v1511, 0
    %v1528 = vperm.slane %v1512, 0
    %v1785 = vunpack.c.l.b16 %v1244
    %v1786 = vunpack.c.h.b16 %v1244
    %v1787 = vunpack.c.l.b16 %v1245
    %v1788 = vunpack.c.h.b16 %v1245
    %v1789 = vunpack.c.l.b16 %v1246
    %v1790 = vunpack.c.h.b16 %v1246
    %v1791 = vunpack.c.l.b16 %v1247
    %v1792 = vunpack.c.h.b16 %v1247
    %v1793 = vunpack.c.l.b16 %v1248
    %v1794 = vunpack.c.h.b16 %v1248
    %v1795 = vunpack.c.l.b16 %v1249
    %v1796 = vunpack.c.h.b16 %v1249
    %v1797 = vunpack.c.l.b16 %v1250
    %v1798 = vunpack.c.h.b16 %v1250
    %v1799 = vunpack.c.l.b16 %v1251
    %v1800 = vunpack.c.h.b16 %v1251
    %v1801 = vunpack.c.l.b16 %v1252
    %v1802 = vunpack.c.h.b16 %v1252
    %v1803 = vunpack.c.l.b16 %v1253
    %v1804 = vunpack.c.h.b16 %v1253
    %v1805 = vunpack.c.l.b16 %v1254
    %v1806 = vunpack.c.h.b16 %v1254
    %v1807 = vunpack.c.l.b16 %v1255
    %v1808 = vunpack.c.h.b16 %v1255
    %v1809 = vunpack.c.l.b16 %v1256
    %v1810 = vunpack.c.h.b16 %v1256
    %v1811 = vunpack.c.l.b16 %v1257
    %v1812 = vunpack.c.h.b16 %v1257
    %v1813 = vunpack.c.l.b16 %v1258
    %v1814 = vunpack.c.h.b16 %v1258
    %v1815 = vunpack.c.l.b16 %v1259
    %v1816 = vunpack.c.h.b16 %v1259
    %v1817 = vunpack.c.l.b16 %v1260
    %v1818 = vunpack.c.h.b16 %v1260
    %v1819 = vunpack.c.l.b16 %v1261
    %v1820 = vunpack.c.h.b16 %v1261
    %v1821 = vunpack.c.l.b16 %v1262
    %v1822 = vunpack.c.h.b16 %v1262
    %v1823 = vunpack.c.l.b16 %v1263
    %v1824 = vunpack.c.h.b16 %v1263
    %v1825 = vunpack.c.l.b16 %v1264
    %v1826 = vunpack.c.h.b16 %v1264
    %v1827 = vunpack.c.l.b16 %v1265
    %v1828 = vunpack.c.h.b16 %v1265
    %v1829 = vunpack.c.l.b16 %v1266
    %v1830 = vunpack.c.h.b16 %v1266
    %v1831 = vunpack.c.l.b16 %v1267
    %v1832 = vunpack.c.h.b16 %v1267
    %v1833 = vunpack.c.l.b16 %v1268
    %v1834 = vunpack.c.h.b16 %v1268
    %v1835 = vunpack.c.l.b16 %v1269
    %v1836 = vunpack.c.h.b16 %v1269
    %v1837 = vunpack.c.l.b16 %v1270
    %v1838 = vunpack.c.h.b16 %v1270
    %v1839 = vunpack.c.l.b16 %v1271
    %v1840 = vunpack.c.h.b16 %v1271
    %v1841 = vunpack.c.l.b16 %v1272
    %v1842 = vunpack.c.h.b16 %v1272
    %v1843 = vunpack.c.l.b16 %v1273
    %v1844 = vunpack.c.h.b16 %v1273
    %v1845 = vunpack.c.l.b16 %v1274
    %v1846 = vunpack.c.h.b16 %v1274
    %v1847 = vunpack.c.l.b16 %v1275
    %v1848 = vunpack.c.h.b16 %v1275
    %v1849 = vunpack.c.l.b16 %v1276
    %v1850 = vunpack.c.h.b16 %v1276
    %v1851 = vunpack.c.l.b16 %v1277
    %v1852 = vunpack.c.h.b16 %v1277
    %v1853 = vunpack.c.l.b16 %v1278
    %v1854 = vunpack.c.h.b16 %v1278
    %v1855 = vunpack.c.l.b16 %v1279
    %v1856 = vunpack.c.h.b16 %v1279
    %v1857 = vunpack.c.l.b16 %v1280
    %v1858 = vunpack.c.h.b16 %v1280
    %v1859 = vunpack.c.l.b16 %v1281
    %v1860 = vunpack.c.h.b16 %v1281
    %v1861 = vunpack.c.l.b16 %v1282
    %v1862 = vunpack.c.h.b16 %v1282
    %v1863 = vunpack.c.l.b16 %v1283
    %v1864 = vunpack.c.h.b16 %v1283
    %v1865 = vunpack.c.l.b16 %v1284
    %v1866 = vunpack.c.h.b16 %v1284
    %v1867 = vunpack.c.l.b16 %v1285
    %v1868 = vunpack.c.h.b16 %v1285
    %v1869 = vunpack.c.l.b16 %v1286
    %v1870 = vunpack.c.h.b16 %v1286
    %v1871 = vunpack.c.l.b16 %v1287
    %v1872 = vunpack.c.h.b16 %v1287
    %v1873 = vunpack.c.l.b16 %v1288
    %v1874 = vunpack.c.h.b16 %v1288
    %v1875 = vunpack.c.l.b16 %v1289
    %v1876 = vunpack.c.h.b16 %v1289
    %v1877 = vunpack.c.l.b16 %v1290
    %v1878 = vunpack.c.h.b16 %v1290
    %v1879 = vunpack.c.l.b16 %v1291
    %v1880 = vunpack.c.h.b16 %v1291
    %v1881 = vunpack.c.l.b16 %v1292
    %v1882 = vunpack.c.h.b16 %v1292
    %v1883 = vunpack.c.l.b16 %v1293
    %v1884 = vunpack.c.h.b16 %v1293
    %v1885 = vunpack.c.l.b16 %v1294
    %v1886 = vunpack.c.h.b16 %v1294
    %v1887 = vunpack.c.l.b16 %v1295
    %v1888 = vunpack.c.h.b16 %v1295
    %v1889 = vunpack.c.l.b16 %v1296
    %v1890 = vunpack.c.h.b16 %v1296
    %v1891 = vunpack.c.l.b16 %v1297
    %v1892 = vunpack.c.h.b16 %v1297
    %v1893 = vunpack.c.l.b16 %v1298
    %v1894 = vunpack.c.h.b16 %v1298
    %v1895 = vunpack.c.l.b16 %v1299
    %v1896 = vunpack.c.h.b16 %v1299
    %v1897 = vunpack.c.l.b16 %v1300
    %v1898 = vunpack.c.h.b16 %v1300
    %v1899 = vunpack.c.l.b16 %v1301
    %v1900 = vunpack.c.h.b16 %v1301
    %v1901 = vunpack.c.l.b16 %v1302
    %v1902 = vunpack.c.h.b16 %v1302
    %v1903 = vunpack.c.l.b16 %v1303
    %v1904 = vunpack.c.h.b16 %v1303
    %v1905 = vunpack.c.l.b16 %v1304
    %v1906 = vunpack.c.h.b16 %v1304
    %v1907 = vunpack.c.l.b16 %v1305
    %v1908 = vunpack.c.h.b16 %v1305
    %v1909 = vunpack.c.l.b16 %v1306
    %v1910 = vunpack.c.h.b16 %v1306
    %v1911 = vunpack.c.l.b16 %v1307
    %v1912 = vunpack.c.h.b16 %v1307
    %v1913 = vunpack.c.l.b16 %v1308
    %v1914 = vunpack.c.h.b16 %v1308
    %v1915 = vunpack.c.l.b16 %v1309
    %v1916 = vunpack.c.h.b16 %v1309
    %v1917 = vunpack.c.l.b16 %v1310
    %v1918 = vunpack.c.h.b16 %v1310
    %v1919 = vunpack.c.l.b16 %v1311
    %v1920 = vunpack.c.h.b16 %v1311
    %v1921 = vunpack.c.l.b16 %v1312
    %v1922 = vunpack.c.h.b16 %v1312
    %v1923 = vunpack.c.l.b16 %v1313
    %v1924 = vunpack.c.h.b16 %v1313
    %v1925 = vunpack.c.l.b16 %v1314
    %v1926 = vunpack.c.h.b16 %v1314
    %v1927 = vunpack.c.l.b16 %v1315
    %v1928 = vunpack.c.h.b16 %v1315
    %v1929 = vunpack.c.l.b16 %v1316
    %v1930 = vunpack.c.h.b16 %v1316
    %v1931 = vunpack.c.l.b16 %v1317
    %v1932 = vunpack.c.h.b16 %v1317
    %v1933 = vunpack.c.l.b16 %v1318
    %v1934 = vunpack.c.h.b16 %v1318
    %v1935 = vunpack.c.l.b16 %v1319
    %v1936 = vunpack.c.h.b16 %v1319
    %v1937 = vunpack.c.l.b16 %v1320
    %v1938 = vunpack.c.h.b16 %v1320
    %v1939 = vunpack.c.l.b16 %v1321
    %v1940 = vunpack.c.h.b16 %v1321
    %v1941 = vunpack.c.l.b16 %v1322
    %v1942 = vunpack.c.h.b16 %v1322
    %v1943 = vunpack.c.l.b16 %v1323
    %v1944 = vunpack.c.h.b16 %v1323
    %v1945 = vunpack.c.l.b16 %v1324
    %v1946 = vunpack.c.h.b16 %v1324
    %v1947 = vunpack.c.l.b16 %v1325
    %v1948 = vunpack.c.h.b16 %v1325
    %v1949 = vunpack.c.l.b16 %v1326
    %v1950 = vunpack.c.h.b16 %v1326
    %v1951 = vunpack.c.l.b16 %v1327
    %v1952 = vunpack.c.h.b16 %v1327
    %v1953 = vunpack.c.l.b16 %v1328
    %v1954 = vunpack.c.h.b16 %v1328
    %v1955 = vunpack.c.l.b16 %v1329
    %v1956 = vunpack.c.h.b16 %v1329
    %v1957 = vunpack.c.l.b16 %v1330
    %v1958 = vunpack.c.h.b16 %v1330
    %v1959 = vunpack.c.l.b16 %v1331
    %v1960 = vunpack.c.h.b16 %v1331
    %v1961 = vunpack.c.l.b16 %v1332
    %v1962 = vunpack.c.h.b16 %v1332
    %v1963 = vunpack.c.l.b16 %v1333
    %v1964 = vunpack.c.h.b16 %v1333
    %v1965 = vunpack.c.l.b16 %v1334
    %v1966 = vunpack.c.h.b16 %v1334
    %v1967 = vunpack.c.l.b16 %v1335
    %v1968 = vunpack.c.h.b16 %v1335
    %v1969 = vunpack.c.l.b16 %v1336
    %v1970 = vunpack.c.h.b16 %v1336
    %v1971 = vunpack.c.l.b16 %v1337
    %v1972 = vunpack.c.h.b16 %v1337
    %v1973 = vunpack.c.l.b16 %v1338
    %v1974 = vunpack.c.h.b16 %v1338
    %v1975 = vunpack.c.l.b16 %v1339
    %v1976 = vunpack.c.h.b16 %v1339
    %v1977 = vunpack.c.l.b16 %v1340
    %v1978 = vunpack.c.h.b16 %v1340
    %v1979 = vunpack.c.l.b16 %v1341
    %v1980 = vunpack.c.h.b16 %v1341
    %v1981 = vunpack.c.l.b16 %v1342
    %v1982 = vunpack.c.h.b16 %v1342
    %v1983 = vunpack.c.l.b16 %v1343
    %v1984 = vunpack.c.h.b16 %v1343
    %v1985 = vunpack.c.l.b16 %v1344
    %v1986 = vunpack.c.h.b16 %v1344
    %v1987 = vunpack.c.l.b16 %v1345
    %v1988 = vunpack.c.h.b16 %v1345
    %v1989 = vunpack.c.l.b16 %v1346
    %v1990 = vunpack.c.h.b16 %v1346
    %v1991 = vunpack.c.l.b16 %v1347
    %v1992 = vunpack.c.h.b16 %v1347
    %v1993 = vunpack.c.l.b16 %v1348
    %v1994 = vunpack.c.h.b16 %v1348
    %v1995 = vunpack.c.l.b16 %v1349
    %v1996 = vunpack.c.h.b16 %v1349
    %v1997 = vunpack.c.l.b16 %v1350
    %v1998 = vunpack.c.h.b16 %v1350
    %v1999 = vunpack.c.l.b16 %v1351
    %v2000 = vunpack.c.h.b16 %v1351
    %v2001 = vunpack.c.l.b16 %v1352
    %v2002 = vunpack.c.h.b16 %v1352
    %v2003 = vunpack.c.l.b16 %v1353
    %v2004 = vunpack.c.h.b16 %v1353
    %v2005 = vunpack.c.l.b16 %v1354
    %v2006 = vunpack.c.h.b16 %v1354
    %v2007 = vunpack.c.l.b16 %v1355
    %v2008 = vunpack.c.h.b16 %v1355
    %v2009 = vunpack.c.l.b16 %v1356
    %v2010 = vunpack.c.h.b16 %v1356
    %v2011 = vunpack.c.l.b16 %v1357
    %v2012 = vunpack.c.h.b16 %v1357
    %v2013 = vunpack.c.l.b16 %v1358
    %v2014 = vunpack.c.h.b16 %v1358
    %v2015 = vunpack.c.l.b16 %v1359
    %v2016 = vunpack.c.h.b16 %v1359
    %v2017 = vunpack.c.l.b16 %v1360
    %v2018 = vunpack.c.h.b16 %v1360
    %v2019 = vunpack.c.l.b16 %v1361
    %v2020 = vunpack.c.h.b16 %v1361
    %v2021 = vunpack.c.l.b16 %v1362
    %v2022 = vunpack.c.h.b16 %v1362
    %v2023 = vunpack.c.l.b16 %v1363
    %v2024 = vunpack.c.h.b16 %v1363
    %v2025 = vunpack.c.l.b16 %v1364
    %v2026 = vunpack.c.h.b16 %v1364
    %v2027 = vunpack.c.l.b16 %v1365
    %v2028 = vunpack.c.h.b16 %v1365
    %v2029 = vunpack.c.l.b16 %v1366
    %v2030 = vunpack.c.h.b16 %v1366
    %v2031 = vunpack.c.l.b16 %v1367
    %v2032 = vunpack.c.h.b16 %v1367
    %v2033 = vunpack.c.l.b16 %v1368
    %v2034 = vunpack.c.h.b16 %v1368
    %v2035 = vunpack.c.l.b16 %v1369
    %v2036 = vunpack.c.h.b16 %v1369
    %v2037 = vunpack.c.l.b16 %v1370
    %v2038 = vunpack.c.h.b16 %v1370
    %v2039 = vunpack.c.l.b16 %v1371
    %v2040 = vunpack.c.h.b16 %v1371
    %v2041 = vunpack.c.l.b16 %v1372
    %v2042 = vunpack.c.h.b16 %v1372
    %v2043 = vunpack.c.l.b16 %v1373
    %v2044 = vunpack.c.h.b16 %v1373
    %v2045 = vunpack.c.l.b16 %v1374
    %v2046 = vunpack.c.h.b16 %v1374
    %v2047 = vunpack.c.l.b16 %v1375
    %v2048 = vunpack.c.h.b16 %v1375
    %v2049 = vunpack.c.l.b16 %v1376
    %v2050 = vunpack.c.h.b16 %v1376
    %v2051 = vunpack.c.l.b16 %v1377
    %v2052 = vunpack.c.h.b16 %v1377
    %v2053 = vunpack.c.l.b16 %v1378
    %v2054 = vunpack.c.h.b16 %v1378
    %v2055 = vunpack.c.l.b16 %v1379
    %v2056 = vunpack.c.h.b16 %v1379
    %v2057 = vunpack.c.l.b16 %v1380
    %v2058 = vunpack.c.h.b16 %v1380
    %v2059 = vunpack.c.l.b16 %v1381
    %v2060 = vunpack.c.h.b16 %v1381
    %v2061 = vunpack.c.l.b16 %v1382
    %v2062 = vunpack.c.h.b16 %v1382
    %v2063 = vunpack.c.l.b16 %v1383
    %v2064 = vunpack.c.h.b16 %v1383
    %v2065 = vunpack.c.l.b16 %v1384
    %v2066 = vunpack.c.h.b16 %v1384
    %v2067 = vunpack.c.l.b16 %v1385
    %v2068 = vunpack.c.h.b16 %v1385
    %v2069 = vunpack.c.l.b16 %v1386
    %v2070 = vunpack.c.h.b16 %v1386
    %v2071 = vunpack.c.l.b16 %v1387
    %v2072 = vunpack.c.h.b16 %v1387
    %v2073 = vunpack.c.l.b16 %v1388
    %v2074 = vunpack.c.h.b16 %v1388
    %v2075 = vunpack.c.l.b16 %v1389
    %v2076 = vunpack.c.h.b16 %v1389
    %v2077 = vunpack.c.l.b16 %v1390
    %v2078 = vunpack.c.h.b16 %v1390
    %v2079 = vunpack.c.l.b16 %v1391
    %v2080 = vunpack.c.h.b16 %v1391
    %v2081 = vunpack.c.l.b16 %v1392
    %v2082 = vunpack.c.h.b16 %v1392
    %v2083 = vunpack.c.l.b16 %v1393
    %v2084 = vunpack.c.h.b16 %v1393
    %v2085 = vunpack.c.l.b16 %v1394
    %v2086 = vunpack.c.h.b16 %v1394
    %v2087 = vunpack.c.l.b16 %v1395
    %v2088 = vunpack.c.h.b16 %v1395
    %v2089 = vunpack.c.l.b16 %v1396
    %v2090 = vunpack.c.h.b16 %v1396
    %v2091 = vunpack.c.l.b16 %v1397
    %v2092 = vunpack.c.h.b16 %v1397
    %v2093 = vunpack.c.l.b16 %v1398
    %v2094 = vunpack.c.h.b16 %v1398
    %v2095 = vunpack.c.l.b16 %v1399
    %v2096 = vunpack.c.h.b16 %v1399
    %v2097 = vunpack.c.l.b16 %v1400
    %v2098 = vunpack.c.h.b16 %v1400
    %v2099 = vunpack.c.l.b16 %v1401
    %v2100 = vunpack.c.h.b16 %v1401
    %v2101 = vunpack.c.l.b16 %v1402
    %v2102 = vunpack.c.h.b16 %v1402
    %v2103 = vunpack.c.l.b16 %v1403
    %v2104 = vunpack.c.h.b16 %v1403
    %v2105 = vunpack.c.l.b16 %v1404
    %v2106 = vunpack.c.h.b16 %v1404
    %v2107 = vunpack.c.l.b16 %v1405
    %v2108 = vunpack.c.h.b16 %v1405
    %v2109 = vunpack.c.l.b16 %v1406
    %v2110 = vunpack.c.h.b16 %v1406
    %v2111 = vunpack.c.l.b16 %v1407
    %v2112 = vunpack.c.h.b16 %v1407
    %v2113 = vunpack.c.l.b16 %v1408
    %v2114 = vunpack.c.h.b16 %v1408
    %v2115 = vunpack.c.l.b16 %v1409
    %v2116 = vunpack.c.h.b16 %v1409
    %v2117 = vunpack.c.l.b16 %v1410
    %v2118 = vunpack.c.h.b16 %v1410
    %v2119 = vunpack.c.l.b16 %v1411
    %v2120 = vunpack.c.h.b16 %v1411
    %v2121 = vunpack.c.l.b16 %v1412
    %v2122 = vunpack.c.h.b16 %v1412
    %v2123 = vunpack.c.l.b16 %v1413
    %v2124 = vunpack.c.h.b16 %v1413
    %v2125 = vunpack.c.l.b16 %v1414
    %v2126 = vunpack.c.h.b16 %v1414
    %v2127 = vunpack.c.l.b16 %v1415
    %v2128 = vunpack.c.h.b16 %v1415
    %v2129 = vunpack.c.l.b16 %v1416
    %v2130 = vunpack.c.h.b16 %v1416
    %v2131 = vunpack.c.l.b16 %v1417
    %v2132 = vunpack.c.h.b16 %v1417
    %v2133 = vunpack.c.l.b16 %v1418
    %v2134 = vunpack.c.h.b16 %v1418
    %v2135 = vunpack.c.l.b16 %v1419
    %v2136 = vunpack.c.h.b16 %v1419
    %v2137 = vunpack.c.l.b16 %v1420
    %v2138 = vunpack.c.h.b16 %v1420
    %v2139 = vunpack.c.l.b16 %v1421
    %v2140 = vunpack.c.h.b16 %v1421
    %v2141 = vunpack.c.l.b16 %v1422
    %v2142 = vunpack.c.h.b16 %v1422
    %v2143 = vunpack.c.l.b16 %v1423
    %v2144 = vunpack.c.h.b16 %v1423
    %v2145 = vunpack.c.l.b16 %v1424
    %v2146 = vunpack.c.h.b16 %v1424
    %v2147 = vunpack.c.l.b16 %v1425
    %v2148 = vunpack.c.h.b16 %v1425
    %v2149 = vunpack.c.l.b16 %v1426
    %v2150 = vunpack.c.h.b16 %v1426
    %v2151 = vunpack.c.l.b16 %v1427
    %v2152 = vunpack.c.h.b16 %v1427
    %v2153 = vunpack.c.l.b16 %v1428
    %v2154 = vunpack.c.h.b16 %v1428
    %v2155 = vunpack.c.l.b16 %v1429
    %v2156 = vunpack.c.h.b16 %v1429
    %v2157 = vunpack.c.l.b16 %v1430
    %v2158 = vunpack.c.h.b16 %v1430
    %v2159 = vunpack.c.l.b16 %v1431
    %v2160 = vunpack.c.h.b16 %v1431
    %v2161 = vunpack.c.l.b16 %v1432
    %v2162 = vunpack.c.h.b16 %v1432
    %v2163 = vunpack.c.l.b16 %v1433
    %v2164 = vunpack.c.h.b16 %v1433
    %v2165 = vunpack.c.l.b16 %v1434
    %v2166 = vunpack.c.h.b16 %v1434
    %v2167 = vunpack.c.l.b16 %v1435
    %v2168 = vunpack.c.h.b16 %v1435
    %v2169 = vunpack.c.l.b16 %v1436
    %v2170 = vunpack.c.h.b16 %v1436
    %v2171 = vunpack.c.l.b16 %v1437
    %v2172 = vunpack.c.h.b16 %v1437
    %v2173 = vunpack.c.l.b16 %v1438
    %v2174 = vunpack.c.h.b16 %v1438
    %v2175 = vunpack.c.l.b16 %v1439
    %v2176 = vunpack.c.h.b16 %v1439
    %v2177 = vunpack.c.l.b16 %v1440
    %v2178 = vunpack.c.h.b16 %v1440
    %v2179 = vunpack.c.l.b16 %v1441
    %v2180 = vunpack.c.h.b16 %v1441
    %v2181 = vunpack.c.l.b16 %v1442
    %v2182 = vunpack.c.h.b16 %v1442
    %v2183 = vunpack.c.l.b16 %v1443
    %v2184 = vunpack.c.h.b16 %v1443
    %v2185 = vunpack.c.l.b16 %v1444
    %v2186 = vunpack.c.h.b16 %v1444
    %v2187 = vunpack.c.l.b16 %v1445
    %v2188 = vunpack.c.h.b16 %v1445
    %v2189 = vunpack.c.l.b16 %v1446
    %v2190 = vunpack.c.h.b16 %v1446
    %v2191 = vunpack.c.l.b16 %v1447
    %v2192 = vunpack.c.h.b16 %v1447
    %v2193 = vunpack.c.l.b16 %v1448
    %v2194 = vunpack.c.h.b16 %v1448
    %v2195 = vunpack.c.l.b16 %v1449
    %v2196 = vunpack.c.h.b16 %v1449
    %v2197 = vunpack.c.l.b16 %v1450
    %v2198 = vunpack.c.h.b16 %v1450
    %v2199 = vunpack.c.l.b16 %v1451
    %v2200 = vunpack.c.h.b16 %v1451
    %v2201 = vunpack.c.l.b16 %v1452
    %v2202 = vunpack.c.h.b16 %v1452
    %v2203 = vunpack.c.l.b16 %v1453
    %v2204 = vunpack.c.h.b16 %v1453
    %v2205 = vunpack.c.l.b16 %v1454
    %v2206 = vunpack.c.h.b16 %v1454
    %v2207 = vunpack.c.l.b16 %v1455
    %v2208 = vunpack.c.h.b16 %v1455
    %v2209 = vunpack.c.l.b16 %v1456
    %v2210 = vunpack.c.h.b16 %v1456
    %v2211 = vunpack.c.l.b16 %v1457
    %v2212 = vunpack.c.h.b16 %v1457
    %v2213 = vunpack.c.l.b16 %v1458
    %v2214 = vunpack.c.h.b16 %v1458
    %v2215 = vunpack.c.l.b16 %v1459
    %v2216 = vunpack.c.h.b16 %v1459
    %v2217 = vunpack.c.l.b16 %v1460
    %v2218 = vunpack.c.h.b16 %v1460
    %v2219 = vunpack.c.l.b16 %v1461
    %v2220 = vunpack.c.h.b16 %v1461
    %v2221 = vunpack.c.l.b16 %v1462
    %v2222 = vunpack.c.h.b16 %v1462
    %v2223 = vunpack.c.l.b16 %v1463
    %v2224 = vunpack.c.h.b16 %v1463
    %v2225 = vunpack.c.l.b16 %v1464
    %v2226 = vunpack.c.h.b16 %v1464
    %v2227 = vunpack.c.l.b16 %v1465
    %v2228 = vunpack.c.h.b16 %v1465
    %v2229 = vunpack.c.l.b16 %v1466
    %v2230 = vunpack.c.h.b16 %v1466
    %v2231 = vunpack.c.l.b16 %v1467
    %v2232 = vunpack.c.h.b16 %v1467
    %v2233 = vunpack.c.l.b16 %v1468
    %v2234 = vunpack.c.h.b16 %v1468
    %v2235 = vunpack.c.l.b16 %v1469
    %v2236 = vunpack.c.h.b16 %v1469
    %v2237 = vunpack.c.l.b16 %v1470
    %v2238 = vunpack.c.h.b16 %v1470
    %v2239 = vunpack.c.l.b16 %v1471
    %v2240 = vunpack.c.h.b16 %v1471
    %v2241 = vunpack.c.l.b16 %v1472
    %v2242 = vunpack.c.h.b16 %v1472
    %v2243 = vunpack.c.l.b16 %v1473
    %v2244 = vunpack.c.h.b16 %v1473
    %v2245 = vunpack.c.l.b16 %v1474
    %v2246 = vunpack.c.h.b16 %v1474
    %v2247 = vunpack.c.l.b16 %v1475
    %v2248 = vunpack.c.h.b16 %v1475
    %v2249 = vunpack.c.l.b16 %v1476
    %v2250 = vunpack.c.h.b16 %v1476
    %v2251 = vunpack.c.l.b16 %v1477
    %v2252 = vunpack.c.h.b16 %v1477
    %v2253 = vunpack.c.l.b16 %v1478
    %v2254 = vunpack.c.h.b16 %v1478
    %v2255 = vunpack.c.l.b16 %v1479
    %v2256 = vunpack.c.h.b16 %v1479
    %v2257 = vunpack.c.l.b16 %v1480
    %v2258 = vunpack.c.h.b16 %v1480
    %v2259 = vunpack.c.l.b16 %v1481
    %v2260 = vunpack.c.h.b16 %v1481
    %v2261 = vunpack.c.l.b16 %v1482
    %v2262 = vunpack.c.h.b16 %v1482
    %v2263 = vunpack.c.l.b16 %v1483
    %v2264 = vunpack.c.h.b16 %v1483
    %v2265 = vunpack.c.l.b16 %v1484
    %v2266 = vunpack.c.h.b16 %v1484
    %v2267 = vunpack.c.l.b16 %v1485
    %v2268 = vunpack.c.h.b16 %v1485
    %v2269 = vunpack.c.l.b16 %v1486
    %v2270 = vunpack.c.h.b16 %v1486
    %v2271 = vunpack.c.l.b16 %v1487
    %v2272 = vunpack.c.h.b16 %v1487
    %v2273 = vunpack.c.l.b16 %v1488
    %v2274 = vunpack.c.h.b16 %v1488
    %v2275 = vunpack.c.l.b16 %v1489
    %v2276 = vunpack.c.h.b16 %v1489
    %v2277 = vunpack.c.l.b16 %v1490
    %v2278 = vunpack.c.h.b16 %v1490
    %v2279 = vunpack.c.l.b16 %v1491
    %v2280 = vunpack.c.h.b16 %v1491
    %v2281 = vunpack.c.l.b16 %v1492
    %v2282 = vunpack.c.h.b16 %v1492
    %v2283 = vunpack.c.l.b16 %v1493
    %v2284 = vunpack.c.h.b16 %v1493
    %v2285 = vunpack.c.l.b16 %v1494
    %v2286 = vunpack.c.h.b16 %v1494
    %v2287 = vunpack.c.l.b16 %v1495
    %v2288 = vunpack.c.h.b16 %v1495
    %v2289 = vunpack.c.l.b16 %v1496
    %v2290 = vunpack.c.h.b16 %v1496
    %v2291 = vunpack.c.l.b16 %v1497
    %v2292 = vunpack.c.h.b16 %v1497
    %v2293 = vunpack.c.l.b16 %v1498
    %v2294 = vunpack.c.h.b16 %v1498
    %v2295 = vunpack.c.l.b16 %v1499
    %v2296 = vunpack.c.h.b16 %v1499
    %v2297 = vpack.c.b16 %v1793, %v1785
    %v2298 = vpack.c.b16 %v1794, %v1786
    %v2299 = vpack.c.b16 %v1795, %v1787
    %v2300 = vpack.c.b16 %v1796, %v1788
    %v2301 = vpack.c.b16 %v1797, %v1789
    %v2302 = vpack.c.b16 %v1798, %v1790
    %v2303 = vpack.c.b16 %v1799, %v1791
    %v2304 = vpack.c.b16 %v1800, %v1792
    %v2305 = vpack.c.b16 %v1809, %v1801
    %v2306 = vpack.c.b16 %v1810, %v1802
    %v2307 = vpack.c.b16 %v1811, %v1803
    %v2308 = vpack.c.b16 %v1812, %v1804
    %v2309 = vpack.c.b16 %v1813, %v1805
    %v2310 = vpack.c.b16 %v1814, %v1806
    %v2311 = vpack.c.b16 %v1815, %v1807
    %v2312 = vpack.c.b16 %v1816, %v1808
    %v2313 = vpack.c.b16 %v1825, %v1817
    %v2314 = vpack.c.b16 %v1826, %v1818
    %v2315 = vpack.c.b16 %v1827, %v1819
    %v2316 = vpack.c.b16 %v1828, %v1820
    %v2317 = vpack.c.b16 %v1829, %v1821
    %v2318 = vpack.c.b16 %v1830, %v1822
    %v2319 = vpack.c.b16 %v1831, %v1823
    %v2320 = vpack.c.b16 %v1832, %v1824
    %v2321 = vpack.c.b16 %v1841, %v1833
    %v2322 = vpack.c.b16 %v1842, %v1834
    %v2323 = vpack.c.b16 %v1843, %v1835
    %v2324 = vpack.c.b16 %v1844, %v1836
    %v2325 = vpack.c.b16 %v1845, %v1837
    %v2326 = vpack.c.b16 %v1846, %v1838
    %v2327 = vpack.c.b16 %v1847, %v1839
    %v2328 = vpack.c.b16 %v1848, %v1840
    %v2329 = vpack.c.b16 %v1857, %v1849
    %v2330 = vpack.c.b16 %v1858, %v1850
    %v2331 = vpack.c.b16 %v1859, %v1851
    %v2332 = vpack.c.b16 %v1860, %v1852
    %v2333 = vpack.c.b16 %v1861, %v1853
    %v2334 = vpack.c.b16 %v1862, %v1854
    %v2335 = vpack.c.b16 %v1863, %v1855
    %v2336 = vpack.c.b16 %v1864, %v1856
    %v2337 = vpack.c.b16 %v1873, %v1865
    %v2338 = vpack.c.b16 %v1874, %v1866
    %v2339 = vpack.c.b16 %v1875, %v1867
    %v2340 = vpack.c.b16 %v1876, %v1868
    %v2341 = vpack.c.b16 %v1877, %v1869
    %v2342 = vpack.c.b16 %v1878, %v1870
    %v2343 = vpack.c.b16 %v1879, %v1871
    %v2344 = vpack.c.b16 %v1880, %v1872
    %v2345 = vpack.c.b16 %v1889, %v1881
    %v2346 = vpack.c.b16 %v1890, %v1882
    %v2347 = vpack.c.b16 %v1891, %v1883
    %v2348 = vpack.c.b16 %v1892, %v1884
    %v2349 = vpack.c.b16 %v1893, %v1885
    %v2350 = vpack.c.b16 %v1894, %v1886
    %v2351 = vpack.c.b16 %v1895, %v1887
    %v2352 = vpack.c.b16 %v1896, %v1888
    %v2353 = vpack.c.b16 %v1905, %v1897
    %v2354 = vpack.c.b16 %v1906, %v1898
    %v2355 = vpack.c.b16 %v1907, %v1899
    %v2356 = vpack.c.b16 %v1908, %v1900
    %v2357 = vpack.c.b16 %v1909, %v1901
    %v2358 = vpack.c.b16 %v1910, %v1902
    %v2359 = vpack.c.b16 %v1911, %v1903
    %v2360 = vpack.c.b16 %v1912, %v1904
    %v2361 = vpack.c.b16 %v1921, %v1913
    %v2362 = vpack.c.b16 %v1922, %v1914
    %v2363 = vpack.c.b16 %v1923, %v1915
    %v2364 = vpack.c.b16 %v1924, %v1916
    %v2365 = vpack.c.b16 %v1925, %v1917
    %v2366 = vpack.c.b16 %v1926, %v1918
    %v2367 = vpack.c.b16 %v1927, %v1919
    %v2368 = vpack.c.b16 %v1928, %v1920
    %v2369 = vpack.c.b16 %v1937, %v1929
    %v2370 = vpack.c.b16 %v1938, %v1930
    %v2371 = vpack.c.b16 %v1939, %v1931
    %v2372 = vpack.c.b16 %v1940, %v1932
    %v2373 = vpack.c.b16 %v1941, %v1933
    %v2374 = vpack.c.b16 %v1942, %v1934
    %v2375 = vpack.c.b16 %v1943, %v1935
    %v2376 = vpack.c.b16 %v1944, %v1936
    %v2377 = vpack.c.b16 %v1953, %v1945
    %v2378 = vpack.c.b16 %v1954, %v1946
    %v2379 = vpack.c.b16 %v1955, %v1947
    %v2380 = vpack.c.b16 %v1956, %v1948
    %v2381 = vpack.c.b16 %v1957, %v1949
    %v2382 = vpack.c.b16 %v1958, %v1950
    %v2383 = vpack.c.b16 %v1959, %v1951
    %v2384 = vpack.c.b16 %v1960, %v1952
    %v2385 = vpack.c.b16 %v1969, %v1961
    %v2386 = vpack.c.b16 %v1970, %v1962
    %v2387 = vpack.c.b16 %v1971, %v1963
    %v2388 = vpack.c.b16 %v1972, %v1964
    %v2389 = vpack.c.b16 %v1973, %v1965
    %v2390 = vpack.c.b16 %v1974, %v1966
    %v2391 = vpack.c.b16 %v1975, %v1967
    %v2392 = vpack.c.b16 %v1976, %v1968
    %v2393 = vpack.c.b16 %v1985, %v1977
    %v2394 = vpack.c.b16 %v1986, %v1978
    %v2395 = vpack.c.b16 %v1987, %v1979
    %v2396 = vpack.c.b16 %v1988, %v1980
    %v2397 = vpack.c.b16 %v1989, %v1981
    %v2398 = vpack.c.b16 %v1990, %v1982
    %v2399 = vpack.c.b16 %v1991, %v1983
    %v2400 = vpack.c.b16 %v1992, %v1984
    %v2401 = vpack.c.b16 %v2001, %v1993
    %v2402 = vpack.c.b16 %v2002, %v1994
    %v2403 = vpack.c.b16 %v2003, %v1995
    %v2404 = vpack.c.b16 %v2004, %v1996
    %v2405 = vpack.c.b16 %v2005, %v1997
    %v2406 = vpack.c.b16 %v2006, %v1998
    %v2407 = vpack.c.b16 %v2007, %v1999
    %v2408 = vpack.c.b16 %v2008, %v2000
    %v2409 = vpack.c.b16 %v2017, %v2009
    %v2410 = vpack.c.b16 %v2018, %v2010
    %v2411 = vpack.c.b16 %v2019, %v2011
    %v2412 = vpack.c.b16 %v2020, %v2012
    %v2413 = vpack.c.b16 %v2021, %v2013
    %v2414 = vpack.c.b16 %v2022, %v2014
    %v2415 = vpack.c.b16 %v2023, %v2015
    %v2416 = vpack.c.b16 %v2024, %v2016
    %v2417 = vpack.c.b16 %v2033, %v2025
    %v2418 = vpack.c.b16 %v2034, %v2026
    %v2419 = vpack.c.b16 %v2035, %v2027
    %v2420 = vpack.c.b16 %v2036, %v2028
    %v2421 = vpack.c.b16 %v2037, %v2029
    %v2422 = vpack.c.b16 %v2038, %v2030
    %v2423 = vpack.c.b16 %v2039, %v2031
    %v2424 = vpack.c.b16 %v2040, %v2032
    %v2425 = vpack.c.b16 %v2049, %v2041
    %v2426 = vpack.c.b16 %v2050, %v2042
    %v2427 = vpack.c.b16 %v2051, %v2043
    %v2428 = vpack.c.b16 %v2052, %v2044
    %v2429 = vpack.c.b16 %v2053, %v2045
    %v2430 = vpack.c.b16 %v2054, %v2046
    %v2431 = vpack.c.b16 %v2055, %v2047
    %v2432 = vpack.c.b16 %v2056, %v2048
    %v2433 = vpack.c.b16 %v2065, %v2057
    %v2434 = vpack.c.b16 %v2066, %v2058
    %v2435 = vpack.c.b16 %v2067, %v2059
    %v2436 = vpack.c.b16 %v2068, %v2060
    %v2437 = vpack.c.b16 %v2069, %v2061
    %v2438 = vpack.c.b16 %v2070, %v2062
    %v2439 = vpack.c.b16 %v2071, %v2063
    %v2440 = vpack.c.b16 %v2072, %v2064
    %v2441 = vpack.c.b16 %v2081, %v2073
    %v2442 = vpack.c.b16 %v2082, %v2074
    %v2443 = vpack.c.b16 %v2083, %v2075
    %v2444 = vpack.c.b16 %v2084, %v2076
    %v2445 = vpack.c.b16 %v2085, %v2077
    %v2446 = vpack.c.b16 %v2086, %v2078
    %v2447 = vpack.c.b16 %v2087, %v2079
    %v2448 = vpack.c.b16 %v2088, %v2080
    %v2449 = vpack.c.b16 %v2097, %v2089
    %v2450 = vpack.c.b16 %v2098, %v2090
    %v2451 = vpack.c.b16 %v2099, %v2091
    %v2452 = vpack.c.b16 %v2100, %v2092
    %v2453 = vpack.c.b16 %v2101, %v2093
    %v2454 = vpack.c.b16 %v2102, %v2094
    %v2455 = vpack.c.b16 %v2103, %v2095
    %v2456 = vpack.c.b16 %v2104, %v2096
    %v2457 = vpack.c.b16 %v2113, %v2105
    %v2458 = vpack.c.b16 %v2114, %v2106
    %v2459 = vpack.c.b16 %v2115, %v2107
    %v2460 = vpack.c.b16 %v2116, %v2108
    %v2461 = vpack.c.b16 %v2117, %v2109
    %v2462 = vpack.c.b16 %v2118, %v2110
    %v2463 = vpack.c.b16 %v2119, %v2111
    %v2464 = vpack.c.b16 %v2120, %v2112
    %v2465 = vpack.c.b16 %v2129, %v2121
    %v2466 = vpack.c.b16 %v2130, %v2122
    %v2467 = vpack.c.b16 %v2131, %v2123
    %v2468 = vpack.c.b16 %v2132, %v2124
    %v2469 = vpack.c.b16 %v2133, %v2125
    %v2470 = vpack.c.b16 %v2134, %v2126
    %v2471 = vpack.c.b16 %v2135, %v2127
    %v2472 = vpack.c.b16 %v2136, %v2128
    %v2473 = vpack.c.b16 %v2145, %v2137
    %v2474 = vpack.c.b16 %v2146, %v2138
    %v2475 = vpack.c.b16 %v2147, %v2139
    %v2476 = vpack.c.b16 %v2148, %v2140
    %v2477 = vpack.c.b16 %v2149, %v2141
    %v2478 = vpack.c.b16 %v2150, %v2142
    %v2479 = vpack.c.b16 %v2151, %v2143
    %v2480 = vpack.c.b16 %v2152, %v2144
    %v2481 = vpack.c.b16 %v2161, %v2153
    %v2482 = vpack.c.b16 %v2162, %v2154
    %v2483 = vpack.c.b16 %v2163, %v2155
    %v2484 = vpack.c.b16 %v2164, %v2156
    %v2485 = vpack.c.b16 %v2165, %v2157
    %v2486 = vpack.c.b16 %v2166, %v2158
    %v2487 = vpack.c.b16 %v2167, %v2159
    %v2488 = vpack.c.b16 %v2168, %v2160
    %v2489 = vpack.c.b16 %v2177, %v2169
    %v2490 = vpack.c.b16 %v2178, %v2170
    %v2491 = vpack.c.b16 %v2179, %v2171
    %v2492 = vpack.c.b16 %v2180, %v2172
    %v2493 = vpack.c.b16 %v2181, %v2173
    %v2494 = vpack.c.b16 %v2182, %v2174
    %v2495 = vpack.c.b16 %v2183, %v2175
    %v2496 = vpack.c.b16 %v2184, %v2176
    %v2497 = vpack.c.b16 %v2193, %v2185
    %v2498 = vpack.c.b16 %v2194, %v2186
    %v2499 = vpack.c.b16 %v2195, %v2187
    %v2500 = vpack.c.b16 %v2196, %v2188
    %v2501 = vpack.c.b16 %v2197, %v2189
    %v2502 = vpack.c.b16 %v2198, %v2190
    %v2503 = vpack.c.b16 %v2199, %v2191
    %v2504 = vpack.c.b16 %v2200, %v2192
    %v2505 = vpack.c.b16 %v2209, %v2201
    %v2506 = vpack.c.b16 %v2210, %v2202
    %v2507 = vpack.c.b16 %v2211, %v2203
    %v2508 = vpack.c.b16 %v2212, %v2204
    %v2509 = vpack.c.b16 %v2213, %v2205
    %v2510 = vpack.c.b16 %v2214, %v2206
    %v2511 = vpack.c.b16 %v2215, %v2207
    %v2512 = vpack.c.b16 %v2216, %v2208
    %v2513 = vpack.c.b16 %v2225, %v2217
    %v2514 = vpack.c.b16 %v2226, %v2218
    %v2515 = vpack.c.b16 %v2227, %v2219
    %v2516 = vpack.c.b16 %v2228, %v2220
    %v2517 = vpack.c.b16 %v2229, %v2221
    %v2518 = vpack.c.b16 %v2230, %v2222
    %v2519 = vpack.c.b16 %v2231, %v2223
    %v2520 = vpack.c.b16 %v2232, %v2224
    %v2521 = vpack.c.b16 %v2241, %v2233
    %v2522 = vpack.c.b16 %v2242, %v2234
    %v2523 = vpack.c.b16 %v2243, %v2235
    %v2524 = vpack.c.b16 %v2244, %v2236
    %v2525 = vpack.c.b16 %v2245, %v2237
    %v2526 = vpack.c.b16 %v2246, %v2238
    %v2527 = vpack.c.b16 %v2247, %v2239
    %v2528 = vpack.c.b16 %v2248, %v2240
    %v2529 = vpack.c.b16 %v2257, %v2249
    %v2530 = vpack.c.b16 %v2258, %v2250
    %v2531 = vpack.c.b16 %v2259, %v2251
    %v2532 = vpack.c.b16 %v2260, %v2252
    %v2533 = vpack.c.b16 %v2261, %v2253
    %v2534 = vpack.c.b16 %v2262, %v2254
    %v2535 = vpack.c.b16 %v2263, %v2255
    %v2536 = vpack.c.b16 %v2264, %v2256
    %v2537 = vpack.c.b16 %v2273, %v2265
    %v2538 = vpack.c.b16 %v2274, %v2266
    %v2539 = vpack.c.b16 %v2275, %v2267
    %v2540 = vpack.c.b16 %v2276, %v2268
    %v2541 = vpack.c.b16 %v2277, %v2269
    %v2542 = vpack.c.b16 %v2278, %v2270
    %v2543 = vpack.c.b16 %v2279, %v2271
    %v2544 = vpack.c.b16 %v2280, %v2272
    %v2545 = vpack.c.b16 %v2289, %v2281
    %v2546 = vpack.c.b16 %v2290, %v2282
    %v2547 = vpack.c.b16 %v2291, %v2283
    %v2548 = vpack.c.b16 %v2292, %v2284
    %v2549 = vpack.c.b16 %v2293, %v2285
    %v2550 = vpack.c.b16 %v2294, %v2286
    %v2551 = vpack.c.b16 %v2295, %v2287
    %v2552 = vpack.c.b16 %v2296, %v2288
    %2809 = vmatpush.bf16.msra.mxu0 %v2353
    %2810 = vmatpush.bf16.msra.mxu0 %v2345
    %2811 = vmatpush.bf16.msra.mxu0 %v2337
    %2812 = vmatpush.bf16.msra.mxu0 %v2329
    %2813 = vmatpush.bf16.msra.mxu0 %v2321
    %2814 = vmatpush.bf16.msra.mxu0 %v2313
    %2815 = vmatpush.bf16.msra.mxu0 %v2305
    %2816 = vmatpush.bf16.msra.mxu0 %v2297
    %2817 = vmatmul.bf16.gmra.mxu0 %v1240
    %v2818 = vpop.f32.mrf.mxu0
    %v2819 = vadd.f32 %v1521, %v2818
    %v2820 = vpop.f32.mrf.mxu0
    %2821 = vdwg.mxu0
    %2822 = vmatpush.bf16.msra.mxu0 %v2417
    %2823 = vmatpush.bf16.msra.mxu0 %v2409
    %2824 = vmatpush.bf16.msra.mxu0 %v2401
    %2825 = vmatpush.bf16.msra.mxu0 %v2393
    %2826 = vmatpush.bf16.msra.mxu0 %v2385
    %2827 = vmatpush.bf16.msra.mxu0 %v2377
    %2828 = vmatpush.bf16.msra.mxu0 %v2369
    %2829 = vmatpush.bf16.msra.mxu0 %v2361
    %2830 = vmatmul.bf16.gmra.mxu0 %v1241
    %v2831 = vpop.f32.mrf.mxu0
    %v2832 = vadd.f32 %v2819, %v2831
    %v2833 = vpop.f32.mrf.mxu0
    %2834 = vdwg.mxu0
    %2835 = vmatpush.bf16.msra.mxu0 %v2481
    %2836 = vmatpush.bf16.msra.mxu0 %v2473
    %2837 = vmatpush.bf16.msra.mxu0 %v2465
    %2838 = vmatpush.bf16.msra.mxu0 %v2457
    %2839 = vmatpush.bf16.msra.mxu0 %v2449
    %2840 = vmatpush.bf16.msra.mxu0 %v2441
    %2841 = vmatpush.bf16.msra.mxu0 %v2433
    %2842 = vmatpush.bf16.msra.mxu0 %v2425
    %2843 = vmatmul.bf16.gmra.mxu0 %v1242
    %v2844 = vpop.f32.mrf.mxu0
    %v2845 = vadd.f32 %v2832, %v2844
    %v2846 = vpop.f32.mrf.mxu0
    %2847 = vdwg.mxu0
    %2848 = vmatpush.bf16.msra.mxu0 %v2545
    %2849 = vmatpush.bf16.msra.mxu0 %v2537
    %2850 = vmatpush.bf16.msra.mxu0 %v2529
    %2851 = vmatpush.bf16.msra.mxu0 %v2521
    %2852 = vmatpush.bf16.msra.mxu0 %v2513
    %2853 = vmatpush.bf16.msra.mxu0 %v2505
    %2854 = vmatpush.bf16.msra.mxu0 %v2497
    %2855 = vmatpush.bf16.msra.mxu0 %v2489
    %2856 = vmatmul.bf16.gmra.mxu0 %v1243
    %v2857 = vpop.f32.mrf.mxu0
    %v2858 = vadd.f32 %v2845, %v2857
    %v2859 = vpop.f32.mrf.mxu0
    %2860 = vdwg.mxu0
    %2861 = vmatpush.bf16.msra.mxu0 %v2354
    %2862 = vmatpush.bf16.msra.mxu0 %v2346
    %2863 = vmatpush.bf16.msra.mxu0 %v2338
    %2864 = vmatpush.bf16.msra.mxu0 %v2330
    %2865 = vmatpush.bf16.msra.mxu0 %v2322
    %2866 = vmatpush.bf16.msra.mxu0 %v2314
    %2867 = vmatpush.bf16.msra.mxu0 %v2306
    %2868 = vmatpush.bf16.msra.mxu0 %v2298
    %2869 = vmatmul.bf16.gmra.mxu0 %v1240
    %v2870 = vpop.f32.mrf.mxu0
    %v2871 = vadd.f32 %v1522, %v2870
    %v2872 = vpop.f32.mrf.mxu0
    %2873 = vdwg.mxu0
    %2874 = vmatpush.bf16.msra.mxu0 %v2418
    %2875 = vmatpush.bf16.msra.mxu0 %v2410
    %2876 = vmatpush.bf16.msra.mxu0 %v2402
    %2877 = vmatpush.bf16.msra.mxu0 %v2394
    %2878 = vmatpush.bf16.msra.mxu0 %v2386
    %2879 = vmatpush.bf16.msra.mxu0 %v2378
    %2880 = vmatpush.bf16.msra.mxu0 %v2370
    %2881 = vmatpush.bf16.msra.mxu0 %v2362
    %2882 = vmatmul.bf16.gmra.mxu0 %v1241
    %v2883 = vpop.f32.mrf.mxu0
    %v2884 = vadd.f32 %v2871, %v2883
    %v2885 = vpop.f32.mrf.mxu0
    %2886 = vdwg.mxu0
    %2887 = vmatpush.bf16.msra.mxu0 %v2482
    %2888 = vmatpush.bf16.msra.mxu0 %v2474
    %2889 = vmatpush.bf16.msra.mxu0 %v2466
    %2890 = vmatpush.bf16.msra.mxu0 %v2458
    %2891 = vmatpush.bf16.msra.mxu0 %v2450
    %2892 = vmatpush.bf16.msra.mxu0 %v2442
    %2893 = vmatpush.bf16.msra.mxu0 %v2434
    %2894 = vmatpush.bf16.msra.mxu0 %v2426
    %2895 = vmatmul.bf16.gmra.mxu0 %v1242
    %v2896 = vpop.f32.mrf.mxu0
    %v2897 = vadd.f32 %v2884, %v2896
    %v2898 = vpop.f32.mrf.mxu0
    %2899 = vdwg.mxu0
    %2900 = vmatpush.bf16.msra.mxu0 %v2546
    %2901 = vmatpush.bf16.msra.mxu0 %v2538
    %2902 = vmatpush.bf16.msra.mxu0 %v2530
    %2903 = vmatpush.bf16.msra.mxu0 %v2522
    %2904 = vmatpush.bf16.msra.mxu0 %v2514
    %2905 = vmatpush.bf16.msra.mxu0 %v2506
    %2906 = vmatpush.bf16.msra.mxu0 %v2498
    %2907 = vmatpush.bf16.msra.mxu0 %v2490
    %2908 = vmatmul.bf16.gmra.mxu0 %v1243
    %v2909 = vpop.f32.mrf.mxu0
    %v2910 = vadd.f32 %v2897, %v2909
    %v2911 = vpop.f32.mrf.mxu0
    %2912 = vdwg.mxu0
    %2913 = vmatpush.bf16.msra.mxu0 %v2355
    %2914 = vmatpush.bf16.msra.mxu0 %v2347
    %2915 = vmatpush.bf16.msra.mxu0 %v2339
    %2916 = vmatpush.bf16.msra.mxu0 %v2331
    %2917 = vmatpush.bf16.msra.mxu0 %v2323
    %2918 = vmatpush.bf16.msra.mxu0 %v2315
    %2919 = vmatpush.bf16.msra.mxu0 %v2307
    %2920 = vmatpush.bf16.msra.mxu0 %v2299
    %2921 = vmatmul.bf16.gmra.mxu0 %v1240
    %v2922 = vpop.f32.mrf.mxu0
    %v2923 = vadd.f32 %v1523, %v2922
    %v2924 = vpop.f32.mrf.mxu0
    %2925 = vdwg.mxu0
    %2926 = vmatpush.bf16.msra.mxu0 %v2419
    %2927 = vmatpush.bf16.msra.mxu0 %v2411
    %2928 = vmatpush.bf16.msra.mxu0 %v2403
    %2929 = vmatpush.bf16.msra.mxu0 %v2395
    %2930 = vmatpush.bf16.msra.mxu0 %v2387
    %2931 = vmatpush.bf16.msra.mxu0 %v2379
    %2932 = vmatpush.bf16.msra.mxu0 %v2371
    %2933 = vmatpush.bf16.msra.mxu0 %v2363
    %2934 = vmatmul.bf16.gmra.mxu0 %v1241
    %v2935 = vpop.f32.mrf.mxu0
    %v2936 = vadd.f32 %v2923, %v2935
    %v2937 = vpop.f32.mrf.mxu0
    %2938 = vdwg.mxu0
    %2939 = vmatpush.bf16.msra.mxu0 %v2483
    %2940 = vmatpush.bf16.msra.mxu0 %v2475
    %2941 = vmatpush.bf16.msra.mxu0 %v2467
    %2942 = vmatpush.bf16.msra.mxu0 %v2459
    %2943 = vmatpush.bf16.msra.mxu0 %v2451
    %2944 = vmatpush.bf16.msra.mxu0 %v2443
    %2945 = vmatpush.bf16.msra.mxu0 %v2435
    %2946 = vmatpush.bf16.msra.mxu0 %v2427
    %2947 = vmatmul.bf16.gmra.mxu0 %v1242
    %v2948 = vpop.f32.mrf.mxu0
    %v2949 = vadd.f32 %v2936, %v2948
    %v2950 = vpop.f32.mrf.mxu0
    %2951 = vdwg.mxu0
    %2952 = vmatpush.bf16.msra.mxu0 %v2547
    %2953 = vmatpush.bf16.msra.mxu0 %v2539
    %2954 = vmatpush.bf16.msra.mxu0 %v2531
    %2955 = vmatpush.bf16.msra.mxu0 %v2523
    %2956 = vmatpush.bf16.msra.mxu0 %v2515
    %2957 = vmatpush.bf16.msra.mxu0 %v2507
    %2958 = vmatpush.bf16.msra.mxu0 %v2499
    %2959 = vmatpush.bf16.msra.mxu0 %v2491
    %2960 = vmatmul.bf16.gmra.mxu0 %v1243
    %v2961 = vpop.f32.mrf.mxu0
    %v2962 = vadd.f32 %v2949, %v2961
    %v2963 = vpop.f32.mrf.mxu0
    %2964 = vdwg.mxu0
    %2965 = vmatpush.bf16.msra.mxu0 %v2356
    %2966 = vmatpush.bf16.msra.mxu0 %v2348
    %2967 = vmatpush.bf16.msra.mxu0 %v2340
    %2968 = vmatpush.bf16.msra.mxu0 %v2332
    %2969 = vmatpush.bf16.msra.mxu0 %v2324
    %2970 = vmatpush.bf16.msra.mxu0 %v2316
    %2971 = vmatpush.bf16.msra.mxu0 %v2308
    %2972 = vmatpush.bf16.msra.mxu0 %v2300
    %2973 = vmatmul.bf16.gmra.mxu0 %v1240
    %v2974 = vpop.f32.mrf.mxu0
    %v2975 = vadd.f32 %v1524, %v2974
    %v2976 = vpop.f32.mrf.mxu0
    %2977 = vdwg.mxu0
    %2978 = vmatpush.bf16.msra.mxu0 %v2420
    %2979 = vmatpush.bf16.msra.mxu0 %v2412
    %2980 = vmatpush.bf16.msra.mxu0 %v2404
    %2981 = vmatpush.bf16.msra.mxu0 %v2396
    %2982 = vmatpush.bf16.msra.mxu0 %v2388
    %2983 = vmatpush.bf16.msra.mxu0 %v2380
    %2984 = vmatpush.bf16.msra.mxu0 %v2372
    %2985 = vmatpush.bf16.msra.mxu0 %v2364
    %2986 = vmatmul.bf16.gmra.mxu0 %v1241
    %v2987 = vpop.f32.mrf.mxu0
    %v2988 = vadd.f32 %v2975, %v2987
    %v2989 = vpop.f32.mrf.mxu0
    %2990 = vdwg.mxu0
    %2991 = vmatpush.bf16.msra.mxu0 %v2484
    %2992 = vmatpush.bf16.msra.mxu0 %v2476
    %2993 = vmatpush.bf16.msra.mxu0 %v2468
    %2994 = vmatpush.bf16.msra.mxu0 %v2460
    %2995 = vmatpush.bf16.msra.mxu0 %v2452
    %2996 = vmatpush.bf16.msra.mxu0 %v2444
    %2997 = vmatpush.bf16.msra.mxu0 %v2436
    %2998 = vmatpush.bf16.msra.mxu0 %v2428
    %2999 = vmatmul.bf16.gmra.mxu0 %v1242
    %v3000 = vpop.f32.mrf.mxu0
    %v3001 = vadd.f32 %v2988, %v3000
    %v3002 = vpop.f32.mrf.mxu0
    %3003 = vdwg.mxu0
    %3004 = vmatpush.bf16.msra.mxu0 %v2548
    %3005 = vmatpush.bf16.msra.mxu0 %v2540
    %3006 = vmatpush.bf16.msra.mxu0 %v2532
    %3007 = vmatpush.bf16.msra.mxu0 %v2524
    %3008 = vmatpush.bf16.msra.mxu0 %v2516
    %3009 = vmatpush.bf16.msra.mxu0 %v2508
    %3010 = vmatpush.bf16.msra.mxu0 %v2500
    %3011 = vmatpush.bf16.msra.mxu0 %v2492
    %3012 = vmatmul.bf16.gmra.mxu0 %v1243
    %v3013 = vpop.f32.mrf.mxu0
    %v3014 = vadd.f32 %v3001, %v3013
    %v3015 = vpop.f32.mrf.mxu0
    %3016 = vdwg.mxu0
    %3017 = vmatpush.bf16.msra.mxu0 %v2357
    %3018 = vmatpush.bf16.msra.mxu0 %v2349
    %3019 = vmatpush.bf16.msra.mxu0 %v2341
    %3020 = vmatpush.bf16.msra.mxu0 %v2333
    %3021 = vmatpush.bf16.msra.mxu0 %v2325
    %3022 = vmatpush.bf16.msra.mxu0 %v2317
    %3023 = vmatpush.bf16.msra.mxu0 %v2309
    %3024 = vmatpush.bf16.msra.mxu0 %v2301
    %3025 = vmatmul.bf16.gmra.mxu0 %v1240
    %v3026 = vpop.f32.mrf.mxu0
    %v3027 = vadd.f32 %v1525, %v3026
    %v3028 = vpop.f32.mrf.mxu0
    %3029 = vdwg.mxu0
    %3030 = vmatpush.bf16.msra.mxu0 %v2421
    %3031 = vmatpush.bf16.msra.mxu0 %v2413
    %3032 = vmatpush.bf16.msra.mxu0 %v2405
    %3033 = vmatpush.bf16.msra.mxu0 %v2397
    %3034 = vmatpush.bf16.msra.mxu0 %v2389
    %3035 = vmatpush.bf16.msra.mxu0 %v2381
    %3036 = vmatpush.bf16.msra.mxu0 %v2373
    %3037 = vmatpush.bf16.msra.mxu0 %v2365
    %3038 = vmatmul.bf16.gmra.mxu0 %v1241
    %v3039 = vpop.f32.mrf.mxu0
    %v3040 = vadd.f32 %v3027, %v3039
    %v3041 = vpop.f32.mrf.mxu0
    %3042 = vdwg.mxu0
    %3043 = vmatpush.bf16.msra.mxu0 %v2485
    %3044 = vmatpush.bf16.msra.mxu0 %v2477
    %3045 = vmatpush.bf16.msra.mxu0 %v2469
    %3046 = vmatpush.bf16.msra.mxu0 %v2461
    %3047 = vmatpush.bf16.msra.mxu0 %v2453
    %3048 = vmatpush.bf16.msra.mxu0 %v2445
    %3049 = vmatpush.bf16.msra.mxu0 %v2437
    %3050 = vmatpush.bf16.msra.mxu0 %v2429
    %3051 = vmatmul.bf16.gmra.mxu0 %v1242
    %v3052 = vpop.f32.mrf.mxu0
    %v3053 = vadd.f32 %v3040, %v3052
    %v3054 = vpop.f32.mrf.mxu0
    %3055 = vdwg.mxu0
    %3056 = vmatpush.bf16.msra.mxu0 %v2549
    %3057 = vmatpush.bf16.msra.mxu0 %v2541
    %3058 = vmatpush.bf16.msra.mxu0 %v2533
    %3059 = vmatpush.bf16.msra.mxu0 %v2525
    %3060 = vmatpush.bf16.msra.mxu0 %v2517
    %3061 = vmatpush.bf16.msra.mxu0 %v2509
    %3062 = vmatpush.bf16.msra.mxu0 %v2501
    %3063 = vmatpush.bf16.msra.mxu0 %v2493
    %3064 = vmatmul.bf16.gmra.mxu0 %v1243
    %v3065 = vpop.f32.mrf.mxu0
    %v3066 = vadd.f32 %v3053, %v3065
    %v3067 = vpop.f32.mrf.mxu0
    %3068 = vdwg.mxu0
    %3069 = vmatpush.bf16.msra.mxu0 %v2358
    %3070 = vmatpush.bf16.msra.mxu0 %v2350
    %3071 = vmatpush.bf16.msra.mxu0 %v2342
    %3072 = vmatpush.bf16.msra.mxu0 %v2334
    %3073 = vmatpush.bf16.msra.mxu0 %v2326
    %3074 = vmatpush.bf16.msra.mxu0 %v2318
    %3075 = vmatpush.bf16.msra.mxu0 %v2310
    %3076 = vmatpush.bf16.msra.mxu0 %v2302
    %3077 = vmatmul.bf16.gmra.mxu0 %v1240
    %v3078 = vpop.f32.mrf.mxu0
    %v3079 = vadd.f32 %v1526, %v3078
    %v3080 = vpop.f32.mrf.mxu0
    %3081 = vdwg.mxu0
    %3082 = vmatpush.bf16.msra.mxu0 %v2422
    %3083 = vmatpush.bf16.msra.mxu0 %v2414
    %3084 = vmatpush.bf16.msra.mxu0 %v2406
    %3085 = vmatpush.bf16.msra.mxu0 %v2398
    %3086 = vmatpush.bf16.msra.mxu0 %v2390
    %3087 = vmatpush.bf16.msra.mxu0 %v2382
    %3088 = vmatpush.bf16.msra.mxu0 %v2374
    %3089 = vmatpush.bf16.msra.mxu0 %v2366
    %3090 = vmatmul.bf16.gmra.mxu0 %v1241
    %v3091 = vpop.f32.mrf.mxu0
    %v3092 = vadd.f32 %v3079, %v3091
    %v3093 = vpop.f32.mrf.mxu0
    %3094 = vdwg.mxu0
    %3095 = vmatpush.bf16.msra.mxu0 %v2486
    %3096 = vmatpush.bf16.msra.mxu0 %v2478
    %3097 = vmatpush.bf16.msra.mxu0 %v2470
    %3098 = vmatpush.bf16.msra.mxu0 %v2462
    %3099 = vmatpush.bf16.msra.mxu0 %v2454
    %3100 = vmatpush.bf16.msra.mxu0 %v2446
    %3101 = vmatpush.bf16.msra.mxu0 %v2438
    %3102 = vmatpush.bf16.msra.mxu0 %v2430
    %3103 = vmatmul.bf16.gmra.mxu0 %v1242
    %v3104 = vpop.f32.mrf.mxu0
    %v3105 = vadd.f32 %v3092, %v3104
    %v3106 = vpop.f32.mrf.mxu0
    %3107 = vdwg.mxu0
    %3108 = vmatpush.bf16.msra.mxu0 %v2550
    %3109 = vmatpush.bf16.msra.mxu0 %v2542
    %3110 = vmatpush.bf16.msra.mxu0 %v2534
    %3111 = vmatpush.bf16.msra.mxu0 %v2526
    %3112 = vmatpush.bf16.msra.mxu0 %v2518
    %3113 = vmatpush.bf16.msra.mxu0 %v2510
    %3114 = vmatpush.bf16.msra.mxu0 %v2502
    %3115 = vmatpush.bf16.msra.mxu0 %v2494
    %3116 = vmatmul.bf16.gmra.mxu0 %v1243
    %v3117 = vpop.f32.mrf.mxu0
    %v3118 = vadd.f32 %v3105, %v3117
    %v3119 = vpop.f32.mrf.mxu0
    %3120 = vdwg.mxu0
    %3121 = vmatpush.bf16.msra.mxu0 %v2359
    %3122 = vmatpush.bf16.msra.mxu0 %v2351
    %3123 = vmatpush.bf16.msra.mxu0 %v2343
    %3124 = vmatpush.bf16.msra.mxu0 %v2335
    %3125 = vmatpush.bf16.msra.mxu0 %v2327
    %3126 = vmatpush.bf16.msra.mxu0 %v2319
    %3127 = vmatpush.bf16.msra.mxu0 %v2311
    %3128 = vmatpush.bf16.msra.mxu0 %v2303
    %3129 = vmatmul.bf16.gmra.mxu0 %v1240
    %v3130 = vpop.f32.mrf.mxu0
    %v3131 = vadd.f32 %v1527, %v3130
    %v3132 = vpop.f32.mrf.mxu0
    %3133 = vdwg.mxu0
    %3134 = vmatpush.bf16.msra.mxu0 %v2423
    %3135 = vmatpush.bf16.msra.mxu0 %v2415
    %3136 = vmatpush.bf16.msra.mxu0 %v2407
    %3137 = vmatpush.bf16.msra.mxu0 %v2399
    %3138 = vmatpush.bf16.msra.mxu0 %v2391
    %3139 = vmatpush.bf16.msra.mxu0 %v2383
    %3140 = vmatpush.bf16.msra.mxu0 %v2375
    %3141 = vmatpush.bf16.msra.mxu0 %v2367
    %3142 = vmatmul.bf16.gmra.mxu0 %v1241
    %v3143 = vpop.f32.mrf.mxu0
    %v3144 = vadd.f32 %v3131, %v3143
    %v3145 = vpop.f32.mrf.mxu0
    %3146 = vdwg.mxu0
    %3147 = vmatpush.bf16.msra.mxu0 %v2487
    %3148 = vmatpush.bf16.msra.mxu0 %v2479
    %3149 = vmatpush.bf16.msra.mxu0 %v2471
    %3150 = vmatpush.bf16.msra.mxu0 %v2463
    %3151 = vmatpush.bf16.msra.mxu0 %v2455
    %3152 = vmatpush.bf16.msra.mxu0 %v2447
    %3153 = vmatpush.bf16.msra.mxu0 %v2439
    %3154 = vmatpush.bf16.msra.mxu0 %v2431
    %3155 = vmatmul.bf16.gmra.mxu0 %v1242
    %v3156 = vpop.f32.mrf.mxu0
    %v3157 = vadd.f32 %v3144, %v3156
    %v3158 = vpop.f32.mrf.mxu0
    %3159 = vdwg.mxu0
    %3160 = vmatpush.bf16.msra.mxu0 %v2551
    %3161 = vmatpush.bf16.msra.mxu0 %v2543
    %3162 = vmatpush.bf16.msra.mxu0 %v2535
    %3163 = vmatpush.bf16.msra.mxu0 %v2527
    %3164 = vmatpush.bf16.msra.mxu0 %v2519
    %3165 = vmatpush.bf16.msra.mxu0 %v2511
    %3166 = vmatpush.bf16.msra.mxu0 %v2503
    %3167 = vmatpush.bf16.msra.mxu0 %v2495
    %3168 = vmatmul.bf16.gmra.mxu0 %v1243
    %v3169 = vpop.f32.mrf.mxu0
    %v3170 = vadd.f32 %v3157, %v3169
    %v3171 = vpop.f32.mrf.mxu0
    %3172 = vdwg.mxu0
    %3173 = vmatpush.bf16.msra.mxu0 %v2360
    %3174 = vmatpush.bf16.msra.mxu0 %v2352
    %3175 = vmatpush.bf16.msra.mxu0 %v2344
    %3176 = vmatpush.bf16.msra.mxu0 %v2336
    %3177 = vmatpush.bf16.msra.mxu0 %v2328
    %3178 = vmatpush.bf16.msra.mxu0 %v2320
    %3179 = vmatpush.bf16.msra.mxu0 %v2312
    %3180 = vmatpush.bf16.msra.mxu0 %v2304
    %3181 = vmatmul.bf16.gmra.mxu0 %v1240
    %v3182 = vpop.f32.mrf.mxu0
    %v3183 = vadd.f32 %v1528, %v3182
    %v3184 = vpop.f32.mrf.mxu0
    %3185 = vdwg.mxu0
    %3186 = vmatpush.bf16.msra.mxu0 %v2424
    %3187 = vmatpush.bf16.msra.mxu0 %v2416
    %3188 = vmatpush.bf16.msra.mxu0 %v2408
    %3189 = vmatpush.bf16.msra.mxu0 %v2400
    %3190 = vmatpush.bf16.msra.mxu0 %v2392
    %3191 = vmatpush.bf16.msra.mxu0 %v2384
    %3192 = vmatpush.bf16.msra.mxu0 %v2376
    %3193 = vmatpush.bf16.msra.mxu0 %v2368
    %3194 = vmatmul.bf16.gmra.mxu0 %v1241
    %v3195 = vpop.f32.mrf.mxu0
    %v3196 = vadd.f32 %v3183, %v3195
    %v3197 = vpop.f32.mrf.mxu0
    %3198 = vdwg.mxu0
    %3199 = vmatpush.bf16.msra.mxu0 %v2488
    %3200 = vmatpush.bf16.msra.mxu0 %v2480
    %3201 = vmatpush.bf16.msra.mxu0 %v2472
    %3202 = vmatpush.bf16.msra.mxu0 %v2464
    %3203 = vmatpush.bf16.msra.mxu0 %v2456
    %3204 = vmatpush.bf16.msra.mxu0 %v2448
    %3205 = vmatpush.bf16.msra.mxu0 %v2440
    %3206 = vmatpush.bf16.msra.mxu0 %v2432
    %3207 = vmatmul.bf16.gmra.mxu0 %v1242
    %v3208 = vpop.f32.mrf.mxu0
    %v3209 = vadd.f32 %v3196, %v3208
    %v3210 = vpop.f32.mrf.mxu0
    %3211 = vdwg.mxu0
    %3212 = vmatpush.bf16.msra.mxu0 %v2552
    %3213 = vmatpush.bf16.msra.mxu0 %v2544
    %3214 = vmatpush.bf16.msra.mxu0 %v2536
    %3215 = vmatpush.bf16.msra.mxu0 %v2528
    %3216 = vmatpush.bf16.msra.mxu0 %v2520
    %3217 = vmatpush.bf16.msra.mxu0 %v2512
    %3218 = vmatpush.bf16.msra.mxu0 %v2504
    %3219 = vmatpush.bf16.msra.mxu0 %v2496
    %3220 = vmatmul.bf16.gmra.mxu0 %v1243
    %v3221 = vpop.f32.mrf.mxu0
    %v3222 = vadd.f32 %v3209, %v3221
    %v3223 = vpop.f32.mrf.mxu0
    %3224 = vdwg.mxu0
    %v3225 = vmax.f32 %v2858, 0.0
    %v3226 = vmax.f32 %v2910, 0.0
    %v3227 = vmax.f32 %v2962, 0.0
    %v3228 = vmax.f32 %v3014, 0.0
    %v3229 = vmax.f32 %v3066, 0.0
    %v3230 = vmax.f32 %v3118, 0.0
    %v3231 = vmax.f32 %v3170, 0.0
    %v3232 = vmax.f32 %v3222, 0.0
    %v3233 = vpack.c.bf16 %v3225, %v3225
    %v3234 = vpack.c.bf16 %v3226, %v3226
    %v3235 = vpack.c.bf16 %v3227, %v3227
    %v3236 = vpack.c.bf16 %v3228, %v3228
    %v3237 = vpack.c.bf16 %v3229, %v3229
    %v3238 = vpack.c.bf16 %v3230, %v3230
    %v3239 = vpack.c.bf16 %v3231, %v3231
    %v3240 = vpack.c.bf16 %v3232, %v3232
    %v3241 = vld [vmem:[#allocation7] sm:$0xff]
    %v3242 = vld [vmem:[#allocation7 + $0x8] sm:$0xff]
    %v3243 = vld [vmem:[#allocation7 + $0x10] sm:$0xff]
    %v3244 = vld [vmem:[#allocation7 + $0x18] sm:$0xff]
    %v3245 = vld [vmem:[#allocation7 + $0x20] sm:$0xff]
    %v3246 = vld [vmem:[#allocation7 + $0x28] sm:$0xff]
    %v3247 = vld [vmem:[#allocation7 + $0x30] sm:$0xff]
    %v3248 = vld [vmem:[#allocation7 + $0x38] sm:$0xff]
    %v3249 = vld [vmem:[#allocation7 + $0x40] sm:$0xff]
    %v3250 = vld [vmem:[#allocation7 + $0x48] sm:$0xff]
    %v3251 = vld [vmem:[#allocation7 + $0x50] sm:$0xff]
    %v3252 = vld [vmem:[#allocation7 + $0x58] sm:$0xff]
    %v3253 = vld [vmem:[#allocation7 + $0x60] sm:$0xff]
    %v3254 = vld [vmem:[#allocation7 + $0x68] sm:$0xff]
    %v3255 = vld [vmem:[#allocation7 + $0x70] sm:$0xff]
    %v3256 = vld [vmem:[#allocation7 + $0x78] sm:$0xff]
    %v3257 = vld [vmem:[#allocation7 + $0x80] sm:$0xff]
    %v3258 = vld [vmem:[#allocation7 + $0x88] sm:$0xff]
    %v3259 = vld [vmem:[#allocation7 + $0x90] sm:$0xff]
    %v3260 = vld [vmem:[#allocation7 + $0x98] sm:$0xff]
    %v3261 = vld [vmem:[#allocation7 + $0xa0] sm:$0xff]
    %v3262 = vld [vmem:[#allocation7 + $0xa8] sm:$0xff]
    %v3263 = vld [vmem:[#allocation7 + $0xb0] sm:$0xff]
    %v3264 = vld [vmem:[#allocation7 + $0xb8] sm:$0xff]
    %v3265 = vld [vmem:[#allocation7 + $0xc0] sm:$0xff]
    %v3266 = vld [vmem:[#allocation7 + $0xc8] sm:$0xff]
    %v3267 = vld [vmem:[#allocation7 + $0xd0] sm:$0xff]
    %v3268 = vld [vmem:[#allocation7 + $0xd8] sm:$0xff]
    %v3269 = vld [vmem:[#allocation7 + $0xe0] sm:$0xff]
    %v3270 = vld [vmem:[#allocation7 + $0xe8] sm:$0xff]
    %v3271 = vld [vmem:[#allocation7 + $0xf0] sm:$0xff]
    %v3272 = vld [vmem:[#allocation7 + $0xf8] sm:$0xff]
    %v3273 = vld [vmem:[#allocation7 + $0x100] sm:$0xff]
    %v3274 = vld [vmem:[#allocation7 + $0x108] sm:$0xff]
    %v3275 = vld [vmem:[#allocation7 + $0x110] sm:$0xff]
    %v3276 = vld [vmem:[#allocation7 + $0x118] sm:$0xff]
    %v3277 = vld [vmem:[#allocation7 + $0x120] sm:$0xff]
    %v3278 = vld [vmem:[#allocation7 + $0x128] sm:$0xff]
    %v3279 = vld [vmem:[#allocation7 + $0x130] sm:$0xff]
    %v3280 = vld [vmem:[#allocation7 + $0x138] sm:$0xff]
    %v3281 = vld [vmem:[#allocation7 + $0x140] sm:$0xff]
    %v3282 = vld [vmem:[#allocation7 + $0x148] sm:$0xff]
    %v3283 = vld [vmem:[#allocation7 + $0x150] sm:$0xff]
    %v3284 = vld [vmem:[#allocation7 + $0x158] sm:$0xff]
    %v3285 = vld [vmem:[#allocation7 + $0x160] sm:$0xff]
    %v3286 = vld [vmem:[#allocation7 + $0x168] sm:$0xff]
    %v3287 = vld [vmem:[#allocation7 + $0x170] sm:$0xff]
    %v3288 = vld [vmem:[#allocation7 + $0x178] sm:$0xff]
    %v3289 = vld [vmem:[#allocation7 + $0x180] sm:$0xff]
    %v3290 = vld [vmem:[#allocation7 + $0x188] sm:$0xff]
    %v3291 = vld [vmem:[#allocation7 + $0x190] sm:$0xff]
    %v3292 = vld [vmem:[#allocation7 + $0x198] sm:$0xff]
    %v3293 = vld [vmem:[#allocation7 + $0x1a0] sm:$0xff]
    %v3294 = vld [vmem:[#allocation7 + $0x1a8] sm:$0xff]
    %v3295 = vld [vmem:[#allocation7 + $0x1b0] sm:$0xff]
    %v3296 = vld [vmem:[#allocation7 + $0x1b8] sm:$0xff]
    %v3297 = vld [vmem:[#allocation7 + $0x1c0] sm:$0xff]
    %v3298 = vld [vmem:[#allocation7 + $0x1c8] sm:$0xff]
    %v3299 = vld [vmem:[#allocation7 + $0x1d0] sm:$0xff]
    %v3300 = vld [vmem:[#allocation7 + $0x1d8] sm:$0xff]
    %v3301 = vld [vmem:[#allocation7 + $0x1e0] sm:$0xff]
    %v3302 = vld [vmem:[#allocation7 + $0x1e8] sm:$0xff]
    %v3303 = vld [vmem:[#allocation7 + $0x1f0] sm:$0xff]
    %v3304 = vld [vmem:[#allocation7 + $0x1f8] sm:$0xff]
    %v3305 = vld [vmem:[#allocation7 + $0x200] sm:$0xff]
    %v3306 = vld [vmem:[#allocation7 + $0x208] sm:$0xff]
    %v3307 = vld [vmem:[#allocation7 + $0x210] sm:$0xff]
    %v3308 = vld [vmem:[#allocation7 + $0x218] sm:$0xff]
    %v3309 = vld [vmem:[#allocation7 + $0x220] sm:$0xff]
    %v3310 = vld [vmem:[#allocation7 + $0x228] sm:$0xff]
    %v3311 = vld [vmem:[#allocation7 + $0x230] sm:$0xff]
    %v3312 = vld [vmem:[#allocation7 + $0x238] sm:$0xff]
    %v3313 = vld [vmem:[#allocation7 + $0x240] sm:$0xff]
    %v3314 = vld [vmem:[#allocation7 + $0x248] sm:$0xff]
    %v3315 = vld [vmem:[#allocation7 + $0x250] sm:$0xff]
    %v3316 = vld [vmem:[#allocation7 + $0x258] sm:$0xff]
    %v3317 = vld [vmem:[#allocation7 + $0x260] sm:$0xff]
    %v3318 = vld [vmem:[#allocation7 + $0x268] sm:$0xff]
    %v3319 = vld [vmem:[#allocation7 + $0x270] sm:$0xff]
    %v3320 = vld [vmem:[#allocation7 + $0x278] sm:$0xff]
    %v3321 = vld [vmem:[#allocation7 + $0x280] sm:$0xff]
    %v3322 = vld [vmem:[#allocation7 + $0x288] sm:$0xff]
    %v3323 = vld [vmem:[#allocation7 + $0x290] sm:$0xff]
    %v3324 = vld [vmem:[#allocation7 + $0x298] sm:$0xff]
    %v3325 = vld [vmem:[#allocation7 + $0x2a0] sm:$0xff]
    %v3326 = vld [vmem:[#allocation7 + $0x2a8] sm:$0xff]
    %v3327 = vld [vmem:[#allocation7 + $0x2b0] sm:$0xff]
    %v3328 = vld [vmem:[#allocation7 + $0x2b8] sm:$0xff]
    %v3329 = vld [vmem:[#allocation7 + $0x2c0] sm:$0xff]
    %v3330 = vld [vmem:[#allocation7 + $0x2c8] sm:$0xff]
    %v3331 = vld [vmem:[#allocation7 + $0x2d0] sm:$0xff]
    %v3332 = vld [vmem:[#allocation7 + $0x2d8] sm:$0xff]
    %v3333 = vld [vmem:[#allocation7 + $0x2e0] sm:$0xff]
    %v3334 = vld [vmem:[#allocation7 + $0x2e8] sm:$0xff]
    %v3335 = vld [vmem:[#allocation7 + $0x2f0] sm:$0xff]
    %v3336 = vld [vmem:[#allocation7 + $0x2f8] sm:$0xff]
    %v3337 = vld [vmem:[#allocation7 + $0x300] sm:$0xff]
    %v3338 = vld [vmem:[#allocation7 + $0x308] sm:$0xff]
    %v3339 = vld [vmem:[#allocation7 + $0x310] sm:$0xff]
    %v3340 = vld [vmem:[#allocation7 + $0x318] sm:$0xff]
    %v3341 = vld [vmem:[#allocation7 + $0x320] sm:$0xff]
    %v3342 = vld [vmem:[#allocation7 + $0x328] sm:$0xff]
    %v3343 = vld [vmem:[#allocation7 + $0x330] sm:$0xff]
    %v3344 = vld [vmem:[#allocation7 + $0x338] sm:$0xff]
    %v3345 = vld [vmem:[#allocation7 + $0x340] sm:$0xff]
    %v3346 = vld [vmem:[#allocation7 + $0x348] sm:$0xff]
    %v3347 = vld [vmem:[#allocation7 + $0x350] sm:$0xff]
    %v3348 = vld [vmem:[#allocation7 + $0x358] sm:$0xff]
    %v3349 = vld [vmem:[#allocation7 + $0x360] sm:$0xff]
    %v3350 = vld [vmem:[#allocation7 + $0x368] sm:$0xff]
    %v3351 = vld [vmem:[#allocation7 + $0x370] sm:$0xff]
    %v3352 = vld [vmem:[#allocation7 + $0x378] sm:$0xff]
    %v3353 = vld [vmem:[#allocation7 + $0x380] sm:$0xff]
    %v3354 = vld [vmem:[#allocation7 + $0x388] sm:$0xff]
    %v3355 = vld [vmem:[#allocation7 + $0x390] sm:$0xff]
    %v3356 = vld [vmem:[#allocation7 + $0x398] sm:$0xff]
    %v3357 = vld [vmem:[#allocation7 + $0x3a0] sm:$0xff]
    %v3358 = vld [vmem:[#allocation7 + $0x3a8] sm:$0xff]
    %v3359 = vld [vmem:[#allocation7 + $0x3b0] sm:$0xff]
    %v3360 = vld [vmem:[#allocation7 + $0x3b8] sm:$0xff]
    %v3361 = vld [vmem:[#allocation7 + $0x3c0] sm:$0xff]
    %v3362 = vld [vmem:[#allocation7 + $0x3c8] sm:$0xff]
    %v3363 = vld [vmem:[#allocation7 + $0x3d0] sm:$0xff]
    %v3364 = vld [vmem:[#allocation7 + $0x3d8] sm:$0xff]
    %v3365 = vld [vmem:[#allocation7 + $0x3e0] sm:$0xff]
    %v3366 = vld [vmem:[#allocation7 + $0x3e8] sm:$0xff]
    %v3367 = vld [vmem:[#allocation7 + $0x3f0] sm:$0xff]
    %v3368 = vld [vmem:[#allocation7 + $0x3f8] sm:$0xff]
    %v3369 = vld [vmem:[#allocation7 + $0x400] sm:$0xff]
    %v3370 = vld [vmem:[#allocation7 + $0x408] sm:$0xff]
    %v3371 = vld [vmem:[#allocation7 + $0x410] sm:$0xff]
    %v3372 = vld [vmem:[#allocation7 + $0x418] sm:$0xff]
    %v3373 = vld [vmem:[#allocation7 + $0x420] sm:$0xff]
    %v3374 = vld [vmem:[#allocation7 + $0x428] sm:$0xff]
    %v3375 = vld [vmem:[#allocation7 + $0x430] sm:$0xff]
    %v3376 = vld [vmem:[#allocation7 + $0x438] sm:$0xff]
    %v3377 = vld [vmem:[#allocation7 + $0x440] sm:$0xff]
    %v3378 = vld [vmem:[#allocation7 + $0x448] sm:$0xff]
    %v3379 = vld [vmem:[#allocation7 + $0x450] sm:$0xff]
    %v3380 = vld [vmem:[#allocation7 + $0x458] sm:$0xff]
    %v3381 = vld [vmem:[#allocation7 + $0x460] sm:$0xff]
    %v3382 = vld [vmem:[#allocation7 + $0x468] sm:$0xff]
    %v3383 = vld [vmem:[#allocation7 + $0x470] sm:$0xff]
    %v3384 = vld [vmem:[#allocation7 + $0x478] sm:$0xff]
    %v3385 = vld [vmem:[#allocation7 + $0x480] sm:$0xff]
    %v3386 = vld [vmem:[#allocation7 + $0x488] sm:$0xff]
    %v3387 = vld [vmem:[#allocation7 + $0x490] sm:$0xff]
    %v3388 = vld [vmem:[#allocation7 + $0x498] sm:$0xff]
    %v3389 = vld [vmem:[#allocation7 + $0x4a0] sm:$0xff]
    %v3390 = vld [vmem:[#allocation7 + $0x4a8] sm:$0xff]
    %v3391 = vld [vmem:[#allocation7 + $0x4b0] sm:$0xff]
    %v3392 = vld [vmem:[#allocation7 + $0x4b8] sm:$0xff]
    %v3393 = vld [vmem:[#allocation7 + $0x4c0] sm:$0xff]
    %v3394 = vld [vmem:[#allocation7 + $0x4c8] sm:$0xff]
    %v3395 = vld [vmem:[#allocation7 + $0x4d0] sm:$0xff]
    %v3396 = vld [vmem:[#allocation7 + $0x4d8] sm:$0xff]
    %v3397 = vld [vmem:[#allocation7 + $0x4e0] sm:$0xff]
    %v3398 = vld [vmem:[#allocation7 + $0x4e8] sm:$0xff]
    %v3399 = vld [vmem:[#allocation7 + $0x4f0] sm:$0xff]
    %v3400 = vld [vmem:[#allocation7 + $0x4f8] sm:$0xff]
    %v3401 = vld [vmem:[#allocation7 + $0x500] sm:$0xff]
    %v3402 = vld [vmem:[#allocation7 + $0x508] sm:$0xff]
    %v3403 = vld [vmem:[#allocation7 + $0x510] sm:$0xff]
    %v3404 = vld [vmem:[#allocation7 + $0x518] sm:$0xff]
    %v3405 = vld [vmem:[#allocation7 + $0x520] sm:$0xff]
    %v3406 = vld [vmem:[#allocation7 + $0x528] sm:$0xff]
    %v3407 = vld [vmem:[#allocation7 + $0x530] sm:$0xff]
    %v3408 = vld [vmem:[#allocation7 + $0x538] sm:$0xff]
    %v3409 = vld [vmem:[#allocation7 + $0x540] sm:$0xff]
    %v3410 = vld [vmem:[#allocation7 + $0x548] sm:$0xff]
    %v3411 = vld [vmem:[#allocation7 + $0x550] sm:$0xff]
    %v3412 = vld [vmem:[#allocation7 + $0x558] sm:$0xff]
    %v3413 = vld [vmem:[#allocation7 + $0x560] sm:$0xff]
    %v3414 = vld [vmem:[#allocation7 + $0x568] sm:$0xff]
    %v3415 = vld [vmem:[#allocation7 + $0x570] sm:$0xff]
    %v3416 = vld [vmem:[#allocation7 + $0x578] sm:$0xff]
    %v3417 = vld [vmem:[#allocation7 + $0x580] sm:$0xff]
    %v3418 = vld [vmem:[#allocation7 + $0x588] sm:$0xff]
    %v3419 = vld [vmem:[#allocation7 + $0x590] sm:$0xff]
    %v3420 = vld [vmem:[#allocation7 + $0x598] sm:$0xff]
    %v3421 = vld [vmem:[#allocation7 + $0x5a0] sm:$0xff]
    %v3422 = vld [vmem:[#allocation7 + $0x5a8] sm:$0xff]
    %v3423 = vld [vmem:[#allocation7 + $0x5b0] sm:$0xff]
    %v3424 = vld [vmem:[#allocation7 + $0x5b8] sm:$0xff]
    %v3425 = vld [vmem:[#allocation7 + $0x5c0] sm:$0xff]
    %v3426 = vld [vmem:[#allocation7 + $0x5c8] sm:$0xff]
    %v3427 = vld [vmem:[#allocation7 + $0x5d0] sm:$0xff]
    %v3428 = vld [vmem:[#allocation7 + $0x5d8] sm:$0xff]
    %v3429 = vld [vmem:[#allocation7 + $0x5e0] sm:$0xff]
    %v3430 = vld [vmem:[#allocation7 + $0x5e8] sm:$0xff]
    %v3431 = vld [vmem:[#allocation7 + $0x5f0] sm:$0xff]
    %v3432 = vld [vmem:[#allocation7 + $0x5f8] sm:$0xff]
    %v3433 = vld [vmem:[#allocation7 + $0x600] sm:$0xff]
    %v3434 = vld [vmem:[#allocation7 + $0x608] sm:$0xff]
    %v3435 = vld [vmem:[#allocation7 + $0x610] sm:$0xff]
    %v3436 = vld [vmem:[#allocation7 + $0x618] sm:$0xff]
    %v3437 = vld [vmem:[#allocation7 + $0x620] sm:$0xff]
    %v3438 = vld [vmem:[#allocation7 + $0x628] sm:$0xff]
    %v3439 = vld [vmem:[#allocation7 + $0x630] sm:$0xff]
    %v3440 = vld [vmem:[#allocation7 + $0x638] sm:$0xff]
    %v3441 = vld [vmem:[#allocation7 + $0x640] sm:$0xff]
    %v3442 = vld [vmem:[#allocation7 + $0x648] sm:$0xff]
    %v3443 = vld [vmem:[#allocation7 + $0x650] sm:$0xff]
    %v3444 = vld [vmem:[#allocation7 + $0x658] sm:$0xff]
    %v3445 = vld [vmem:[#allocation7 + $0x660] sm:$0xff]
    %v3446 = vld [vmem:[#allocation7 + $0x668] sm:$0xff]
    %v3447 = vld [vmem:[#allocation7 + $0x670] sm:$0xff]
    %v3448 = vld [vmem:[#allocation7 + $0x678] sm:$0xff]
    %v3449 = vld [vmem:[#allocation7 + $0x680] sm:$0xff]
    %v3450 = vld [vmem:[#allocation7 + $0x688] sm:$0xff]
    %v3451 = vld [vmem:[#allocation7 + $0x690] sm:$0xff]
    %v3452 = vld [vmem:[#allocation7 + $0x698] sm:$0xff]
    %v3453 = vld [vmem:[#allocation7 + $0x6a0] sm:$0xff]
    %v3454 = vld [vmem:[#allocation7 + $0x6a8] sm:$0xff]
    %v3455 = vld [vmem:[#allocation7 + $0x6b0] sm:$0xff]
    %v3456 = vld [vmem:[#allocation7 + $0x6b8] sm:$0xff]
    %v3457 = vld [vmem:[#allocation7 + $0x6c0] sm:$0xff]
    %v3458 = vld [vmem:[#allocation7 + $0x6c8] sm:$0xff]
    %v3459 = vld [vmem:[#allocation7 + $0x6d0] sm:$0xff]
    %v3460 = vld [vmem:[#allocation7 + $0x6d8] sm:$0xff]
    %v3461 = vld [vmem:[#allocation7 + $0x6e0] sm:$0xff]
    %v3462 = vld [vmem:[#allocation7 + $0x6e8] sm:$0xff]
    %v3463 = vld [vmem:[#allocation7 + $0x6f0] sm:$0xff]
    %v3464 = vld [vmem:[#allocation7 + $0x6f8] sm:$0xff]
    %v3465 = vld [vmem:[#allocation7 + $0x700] sm:$0xff]
    %v3466 = vld [vmem:[#allocation7 + $0x708] sm:$0xff]
    %v3467 = vld [vmem:[#allocation7 + $0x710] sm:$0xff]
    %v3468 = vld [vmem:[#allocation7 + $0x718] sm:$0xff]
    %v3469 = vld [vmem:[#allocation7 + $0x720] sm:$0xff]
    %v3470 = vld [vmem:[#allocation7 + $0x728] sm:$0xff]
    %v3471 = vld [vmem:[#allocation7 + $0x730] sm:$0xff]
    %v3472 = vld [vmem:[#allocation7 + $0x738] sm:$0xff]
    %v3473 = vld [vmem:[#allocation7 + $0x740] sm:$0xff]
    %v3474 = vld [vmem:[#allocation7 + $0x748] sm:$0xff]
    %v3475 = vld [vmem:[#allocation7 + $0x750] sm:$0xff]
    %v3476 = vld [vmem:[#allocation7 + $0x758] sm:$0xff]
    %v3477 = vld [vmem:[#allocation7 + $0x760] sm:$0xff]
    %v3478 = vld [vmem:[#allocation7 + $0x768] sm:$0xff]
    %v3479 = vld [vmem:[#allocation7 + $0x770] sm:$0xff]
    %v3480 = vld [vmem:[#allocation7 + $0x778] sm:$0xff]
    %v3481 = vld [vmem:[#allocation7 + $0x780] sm:$0xff]
    %v3482 = vld [vmem:[#allocation7 + $0x788] sm:$0xff]
    %v3483 = vld [vmem:[#allocation7 + $0x790] sm:$0xff]
    %v3484 = vld [vmem:[#allocation7 + $0x798] sm:$0xff]
    %v3485 = vld [vmem:[#allocation7 + $0x7a0] sm:$0xff]
    %v3486 = vld [vmem:[#allocation7 + $0x7a8] sm:$0xff]
    %v3487 = vld [vmem:[#allocation7 + $0x7b0] sm:$0xff]
    %v3488 = vld [vmem:[#allocation7 + $0x7b8] sm:$0xff]
    %v3489 = vld [vmem:[#allocation7 + $0x7c0] sm:$0xff]
    %v3490 = vld [vmem:[#allocation7 + $0x7c8] sm:$0xff]
    %v3491 = vld [vmem:[#allocation7 + $0x7d0] sm:$0xff]
    %v3492 = vld [vmem:[#allocation7 + $0x7d8] sm:$0xff]
    %v3493 = vld [vmem:[#allocation7 + $0x7e0] sm:$0xff]
    %v3494 = vld [vmem:[#allocation7 + $0x7e8] sm:$0xff]
    %v3495 = vld [vmem:[#allocation7 + $0x7f0] sm:$0xff]
    %v3496 = vld [vmem:[#allocation7 + $0x7f8] sm:$0xff]
    %v3497 = vld [vmem:[#allocation7 + $0x800] sm:$0xff]
    %v3498 = vld [vmem:[#allocation7 + $0x808] sm:$0xff]
    %v3499 = vld [vmem:[#allocation7 + $0x810] sm:$0xff]
    %v3500 = vld [vmem:[#allocation7 + $0x818] sm:$0xff]
    %v3501 = vld [vmem:[#allocation7 + $0x820] sm:$0xff]
    %v3502 = vld [vmem:[#allocation7 + $0x828] sm:$0xff]
    %v3503 = vld [vmem:[#allocation7 + $0x830] sm:$0xff]
    %v3504 = vld [vmem:[#allocation7 + $0x838] sm:$0xff]
    %v3505 = vld [vmem:[#allocation7 + $0x840] sm:$0xff]
    %v3506 = vld [vmem:[#allocation7 + $0x848] sm:$0xff]
    %v3507 = vld [vmem:[#allocation7 + $0x850] sm:$0xff]
    %v3508 = vld [vmem:[#allocation7 + $0x858] sm:$0xff]
    %v3509 = vld [vmem:[#allocation7 + $0x860] sm:$0xff]
    %v3510 = vld [vmem:[#allocation7 + $0x868] sm:$0xff]
    %v3511 = vld [vmem:[#allocation7 + $0x870] sm:$0xff]
    %v3512 = vld [vmem:[#allocation7 + $0x878] sm:$0xff]
    %v3513 = vld [vmem:[#allocation7 + $0x880] sm:$0xff]
    %v3514 = vld [vmem:[#allocation7 + $0x888] sm:$0xff]
    %v3515 = vld [vmem:[#allocation7 + $0x890] sm:$0xff]
    %v3516 = vld [vmem:[#allocation7 + $0x898] sm:$0xff]
    %v3517 = vld [vmem:[#allocation7 + $0x8a0] sm:$0xff]
    %v3518 = vld [vmem:[#allocation7 + $0x8a8] sm:$0xff]
    %v3519 = vld [vmem:[#allocation7 + $0x8b0] sm:$0xff]
    %v3520 = vld [vmem:[#allocation7 + $0x8b8] sm:$0xff]
    %v3521 = vld [vmem:[#allocation7 + $0x8c0] sm:$0xff]
    %v3522 = vld [vmem:[#allocation7 + $0x8c8] sm:$0xff]
    %v3523 = vld [vmem:[#allocation7 + $0x8d0] sm:$0xff]
    %v3524 = vld [vmem:[#allocation7 + $0x8d8] sm:$0xff]
    %v3525 = vld [vmem:[#allocation7 + $0x8e0] sm:$0xff]
    %v3526 = vld [vmem:[#allocation7 + $0x8e8] sm:$0xff]
    %v3527 = vld [vmem:[#allocation7 + $0x8f0] sm:$0xff]
    %v3528 = vld [vmem:[#allocation7 + $0x8f8] sm:$0xff]
    %v3529 = vld [vmem:[#allocation7 + $0x900] sm:$0xff]
    %v3530 = vld [vmem:[#allocation7 + $0x908] sm:$0xff]
    %v3531 = vld [vmem:[#allocation7 + $0x910] sm:$0xff]
    %v3532 = vld [vmem:[#allocation7 + $0x918] sm:$0xff]
    %v3533 = vld [vmem:[#allocation7 + $0x920] sm:$0xff]
    %v3534 = vld [vmem:[#allocation7 + $0x928] sm:$0xff]
    %v3535 = vld [vmem:[#allocation7 + $0x930] sm:$0xff]
    %v3536 = vld [vmem:[#allocation7 + $0x938] sm:$0xff]
    %v3537 = vld [vmem:[#allocation7 + $0x940] sm:$0xff]
    %v3538 = vld [vmem:[#allocation7 + $0x948] sm:$0xff]
    %v3539 = vld [vmem:[#allocation7 + $0x950] sm:$0xff]
    %v3540 = vld [vmem:[#allocation7 + $0x958] sm:$0xff]
    %v3541 = vld [vmem:[#allocation7 + $0x960] sm:$0xff]
    %v3542 = vld [vmem:[#allocation7 + $0x968] sm:$0xff]
    %v3543 = vld [vmem:[#allocation7 + $0x970] sm:$0xff]
    %v3544 = vld [vmem:[#allocation7 + $0x978] sm:$0xff]
    %v3545 = vld [vmem:[#allocation7 + $0x980] sm:$0xff]
    %v3546 = vld [vmem:[#allocation7 + $0x988] sm:$0xff]
    %v3547 = vld [vmem:[#allocation7 + $0x990] sm:$0xff]
    %v3548 = vld [vmem:[#allocation7 + $0x998] sm:$0xff]
    %v3549 = vld [vmem:[#allocation7 + $0x9a0] sm:$0xff]
    %v3550 = vld [vmem:[#allocation7 + $0x9a8] sm:$0xff]
    %v3551 = vld [vmem:[#allocation7 + $0x9b0] sm:$0xff]
    %v3552 = vld [vmem:[#allocation7 + $0x9b8] sm:$0xff]
    %v3553 = vld [vmem:[#allocation7 + $0x9c0] sm:$0xff]
    %v3554 = vld [vmem:[#allocation7 + $0x9c8] sm:$0xff]
    %v3555 = vld [vmem:[#allocation7 + $0x9d0] sm:$0xff]
    %v3556 = vld [vmem:[#allocation7 + $0x9d8] sm:$0xff]
    %v3557 = vld [vmem:[#allocation7 + $0x9e0] sm:$0xff]
    %v3558 = vld [vmem:[#allocation7 + $0x9e8] sm:$0xff]
    %v3559 = vld [vmem:[#allocation7 + $0x9f0] sm:$0xff]
    %v3560 = vld [vmem:[#allocation7 + $0x9f8] sm:$0xff]
    %v3561 = vld [vmem:[#allocation7 + $0xa00] sm:$0xff]
    %v3562 = vld [vmem:[#allocation7 + $0xa08] sm:$0xff]
    %v3563 = vld [vmem:[#allocation7 + $0xa10] sm:$0xff]
    %v3564 = vld [vmem:[#allocation7 + $0xa18] sm:$0xff]
    %v3565 = vld [vmem:[#allocation7 + $0xa20] sm:$0xff]
    %v3566 = vld [vmem:[#allocation7 + $0xa28] sm:$0xff]
    %v3567 = vld [vmem:[#allocation7 + $0xa30] sm:$0xff]
    %v3568 = vld [vmem:[#allocation7 + $0xa38] sm:$0xff]
    %v3569 = vld [vmem:[#allocation7 + $0xa40] sm:$0xff]
    %v3570 = vld [vmem:[#allocation7 + $0xa48] sm:$0xff]
    %v3571 = vld [vmem:[#allocation7 + $0xa50] sm:$0xff]
    %v3572 = vld [vmem:[#allocation7 + $0xa58] sm:$0xff]
    %v3573 = vld [vmem:[#allocation7 + $0xa60] sm:$0xff]
    %v3574 = vld [vmem:[#allocation7 + $0xa68] sm:$0xff]
    %v3575 = vld [vmem:[#allocation7 + $0xa70] sm:$0xff]
    %v3576 = vld [vmem:[#allocation7 + $0xa78] sm:$0xff]
    %v3577 = vld [vmem:[#allocation7 + $0xa80] sm:$0xff]
    %v3578 = vld [vmem:[#allocation7 + $0xa88] sm:$0xff]
    %v3579 = vld [vmem:[#allocation7 + $0xa90] sm:$0xff]
    %v3580 = vld [vmem:[#allocation7 + $0xa98] sm:$0xff]
    %v3581 = vld [vmem:[#allocation7 + $0xaa0] sm:$0xff]
    %v3582 = vld [vmem:[#allocation7 + $0xaa8] sm:$0xff]
    %v3583 = vld [vmem:[#allocation7 + $0xab0] sm:$0xff]
    %v3584 = vld [vmem:[#allocation7 + $0xab8] sm:$0xff]
    %v3585 = vld [vmem:[#allocation7 + $0xac0] sm:$0xff]
    %v3586 = vld [vmem:[#allocation7 + $0xac8] sm:$0xff]
    %v3587 = vld [vmem:[#allocation7 + $0xad0] sm:$0xff]
    %v3588 = vld [vmem:[#allocation7 + $0xad8] sm:$0xff]
    %v3589 = vld [vmem:[#allocation7 + $0xae0] sm:$0xff]
    %v3590 = vld [vmem:[#allocation7 + $0xae8] sm:$0xff]
    %v3591 = vld [vmem:[#allocation7 + $0xaf0] sm:$0xff]
    %v3592 = vld [vmem:[#allocation7 + $0xaf8] sm:$0xff]
    %v3593 = vld [vmem:[#allocation7 + $0xb00] sm:$0xff]
    %v3594 = vld [vmem:[#allocation7 + $0xb08] sm:$0xff]
    %v3595 = vld [vmem:[#allocation7 + $0xb10] sm:$0xff]
    %v3596 = vld [vmem:[#allocation7 + $0xb18] sm:$0xff]
    %v3597 = vld [vmem:[#allocation7 + $0xb20] sm:$0xff]
    %v3598 = vld [vmem:[#allocation7 + $0xb28] sm:$0xff]
    %v3599 = vld [vmem:[#allocation7 + $0xb30] sm:$0xff]
    %v3600 = vld [vmem:[#allocation7 + $0xb38] sm:$0xff]
    %v3601 = vld [vmem:[#allocation7 + $0xb40] sm:$0xff]
    %v3602 = vld [vmem:[#allocation7 + $0xb48] sm:$0xff]
    %v3603 = vld [vmem:[#allocation7 + $0xb50] sm:$0xff]
    %v3604 = vld [vmem:[#allocation7 + $0xb58] sm:$0xff]
    %v3605 = vld [vmem:[#allocation7 + $0xb60] sm:$0xff]
    %v3606 = vld [vmem:[#allocation7 + $0xb68] sm:$0xff]
    %v3607 = vld [vmem:[#allocation7 + $0xb70] sm:$0xff]
    %v3608 = vld [vmem:[#allocation7 + $0xb78] sm:$0xff]
    %v3609 = vld [vmem:[#allocation7 + $0xb80] sm:$0xff]
    %v3610 = vld [vmem:[#allocation7 + $0xb88] sm:$0xff]
    %v3611 = vld [vmem:[#allocation7 + $0xb90] sm:$0xff]
    %v3612 = vld [vmem:[#allocation7 + $0xb98] sm:$0xff]
    %v3613 = vld [vmem:[#allocation7 + $0xba0] sm:$0xff]
    %v3614 = vld [vmem:[#allocation7 + $0xba8] sm:$0xff]
    %v3615 = vld [vmem:[#allocation7 + $0xbb0] sm:$0xff]
    %v3616 = vld [vmem:[#allocation7 + $0xbb8] sm:$0xff]
    %v3617 = vld [vmem:[#allocation7 + $0xbc0] sm:$0xff]
    %v3618 = vld [vmem:[#allocation7 + $0xbc8] sm:$0xff]
    %v3619 = vld [vmem:[#allocation7 + $0xbd0] sm:$0xff]
    %v3620 = vld [vmem:[#allocation7 + $0xbd8] sm:$0xff]
    %v3621 = vld [vmem:[#allocation7 + $0xbe0] sm:$0xff]
    %v3622 = vld [vmem:[#allocation7 + $0xbe8] sm:$0xff]
    %v3623 = vld [vmem:[#allocation7 + $0xbf0] sm:$0xff]
    %v3624 = vld [vmem:[#allocation7 + $0xbf8] sm:$0xff]
    %v3625 = vld [vmem:[#allocation7 + $0xc00] sm:$0xff]
    %v3626 = vld [vmem:[#allocation7 + $0xc08] sm:$0xff]
    %v3627 = vld [vmem:[#allocation7 + $0xc10] sm:$0xff]
    %v3628 = vld [vmem:[#allocation7 + $0xc18] sm:$0xff]
    %v3629 = vld [vmem:[#allocation7 + $0xc20] sm:$0xff]
    %v3630 = vld [vmem:[#allocation7 + $0xc28] sm:$0xff]
    %v3631 = vld [vmem:[#allocation7 + $0xc30] sm:$0xff]
    %v3632 = vld [vmem:[#allocation7 + $0xc38] sm:$0xff]
    %v3633 = vld [vmem:[#allocation7 + $0xc40] sm:$0xff]
    %v3634 = vld [vmem:[#allocation7 + $0xc48] sm:$0xff]
    %v3635 = vld [vmem:[#allocation7 + $0xc50] sm:$0xff]
    %v3636 = vld [vmem:[#allocation7 + $0xc58] sm:$0xff]
    %v3637 = vld [vmem:[#allocation7 + $0xc60] sm:$0xff]
    %v3638 = vld [vmem:[#allocation7 + $0xc68] sm:$0xff]
    %v3639 = vld [vmem:[#allocation7 + $0xc70] sm:$0xff]
    %v3640 = vld [vmem:[#allocation7 + $0xc78] sm:$0xff]
    %v3641 = vld [vmem:[#allocation7 + $0xc80] sm:$0xff]
    %v3642 = vld [vmem:[#allocation7 + $0xc88] sm:$0xff]
    %v3643 = vld [vmem:[#allocation7 + $0xc90] sm:$0xff]
    %v3644 = vld [vmem:[#allocation7 + $0xc98] sm:$0xff]
    %v3645 = vld [vmem:[#allocation7 + $0xca0] sm:$0xff]
    %v3646 = vld [vmem:[#allocation7 + $0xca8] sm:$0xff]
    %v3647 = vld [vmem:[#allocation7 + $0xcb0] sm:$0xff]
    %v3648 = vld [vmem:[#allocation7 + $0xcb8] sm:$0xff]
    %v3649 = vld [vmem:[#allocation7 + $0xcc0] sm:$0xff]
    %v3650 = vld [vmem:[#allocation7 + $0xcc8] sm:$0xff]
    %v3651 = vld [vmem:[#allocation7 + $0xcd0] sm:$0xff]
    %v3652 = vld [vmem:[#allocation7 + $0xcd8] sm:$0xff]
    %v3653 = vld [vmem:[#allocation7 + $0xce0] sm:$0xff]
    %v3654 = vld [vmem:[#allocation7 + $0xce8] sm:$0xff]
    %v3655 = vld [vmem:[#allocation7 + $0xcf0] sm:$0xff]
    %v3656 = vld [vmem:[#allocation7 + $0xcf8] sm:$0xff]
    %v3657 = vld [vmem:[#allocation7 + $0xd00] sm:$0xff]
    %v3658 = vld [vmem:[#allocation7 + $0xd08] sm:$0xff]
    %v3659 = vld [vmem:[#allocation7 + $0xd10] sm:$0xff]
    %v3660 = vld [vmem:[#allocation7 + $0xd18] sm:$0xff]
    %v3661 = vld [vmem:[#allocation7 + $0xd20] sm:$0xff]
    %v3662 = vld [vmem:[#allocation7 + $0xd28] sm:$0xff]
    %v3663 = vld [vmem:[#allocation7 + $0xd30] sm:$0xff]
    %v3664 = vld [vmem:[#allocation7 + $0xd38] sm:$0xff]
    %v3665 = vld [vmem:[#allocation7 + $0xd40] sm:$0xff]
    %v3666 = vld [vmem:[#allocation7 + $0xd48] sm:$0xff]
    %v3667 = vld [vmem:[#allocation7 + $0xd50] sm:$0xff]
    %v3668 = vld [vmem:[#allocation7 + $0xd58] sm:$0xff]
    %v3669 = vld [vmem:[#allocation7 + $0xd60] sm:$0xff]
    %v3670 = vld [vmem:[#allocation7 + $0xd68] sm:$0xff]
    %v3671 = vld [vmem:[#allocation7 + $0xd70] sm:$0xff]
    %v3672 = vld [vmem:[#allocation7 + $0xd78] sm:$0xff]
    %v3673 = vld [vmem:[#allocation7 + $0xd80] sm:$0xff]
    %v3674 = vld [vmem:[#allocation7 + $0xd88] sm:$0xff]
    %v3675 = vld [vmem:[#allocation7 + $0xd90] sm:$0xff]
    %v3676 = vld [vmem:[#allocation7 + $0xd98] sm:$0xff]
    %v3677 = vld [vmem:[#allocation7 + $0xda0] sm:$0xff]
    %v3678 = vld [vmem:[#allocation7 + $0xda8] sm:$0xff]
    %v3679 = vld [vmem:[#allocation7 + $0xdb0] sm:$0xff]
    %v3680 = vld [vmem:[#allocation7 + $0xdb8] sm:$0xff]
    %v3681 = vld [vmem:[#allocation7 + $0xdc0] sm:$0xff]
    %v3682 = vld [vmem:[#allocation7 + $0xdc8] sm:$0xff]
    %v3683 = vld [vmem:[#allocation7 + $0xdd0] sm:$0xff]
    %v3684 = vld [vmem:[#allocation7 + $0xdd8] sm:$0xff]
    %v3685 = vld [vmem:[#allocation7 + $0xde0] sm:$0xff]
    %v3686 = vld [vmem:[#allocation7 + $0xde8] sm:$0xff]
    %v3687 = vld [vmem:[#allocation7 + $0xdf0] sm:$0xff]
    %v3688 = vld [vmem:[#allocation7 + $0xdf8] sm:$0xff]
    %v3689 = vld [vmem:[#allocation7 + $0xe00] sm:$0xff]
    %v3690 = vld [vmem:[#allocation7 + $0xe08] sm:$0xff]
    %v3691 = vld [vmem:[#allocation7 + $0xe10] sm:$0xff]
    %v3692 = vld [vmem:[#allocation7 + $0xe18] sm:$0xff]
    %v3693 = vld [vmem:[#allocation7 + $0xe20] sm:$0xff]
    %v3694 = vld [vmem:[#allocation7 + $0xe28] sm:$0xff]
    %v3695 = vld [vmem:[#allocation7 + $0xe30] sm:$0xff]
    %v3696 = vld [vmem:[#allocation7 + $0xe38] sm:$0xff]
    %v3697 = vld [vmem:[#allocation7 + $0xe40] sm:$0xff]
    %v3698 = vld [vmem:[#allocation7 + $0xe48] sm:$0xff]
    %v3699 = vld [vmem:[#allocation7 + $0xe50] sm:$0xff]
    %v3700 = vld [vmem:[#allocation7 + $0xe58] sm:$0xff]
    %v3701 = vld [vmem:[#allocation7 + $0xe60] sm:$0xff]
    %v3702 = vld [vmem:[#allocation7 + $0xe68] sm:$0xff]
    %v3703 = vld [vmem:[#allocation7 + $0xe70] sm:$0xff]
    %v3704 = vld [vmem:[#allocation7 + $0xe78] sm:$0xff]
    %v3705 = vld [vmem:[#allocation7 + $0xe80] sm:$0xff]
    %v3706 = vld [vmem:[#allocation7 + $0xe88] sm:$0xff]
    %v3707 = vld [vmem:[#allocation7 + $0xe90] sm:$0xff]
    %v3708 = vld [vmem:[#allocation7 + $0xe98] sm:$0xff]
    %v3709 = vld [vmem:[#allocation7 + $0xea0] sm:$0xff]
    %v3710 = vld [vmem:[#allocation7 + $0xea8] sm:$0xff]
    %v3711 = vld [vmem:[#allocation7 + $0xeb0] sm:$0xff]
    %v3712 = vld [vmem:[#allocation7 + $0xeb8] sm:$0xff]
    %v3713 = vld [vmem:[#allocation7 + $0xec0] sm:$0xff]
    %v3714 = vld [vmem:[#allocation7 + $0xec8] sm:$0xff]
    %v3715 = vld [vmem:[#allocation7 + $0xed0] sm:$0xff]
    %v3716 = vld [vmem:[#allocation7 + $0xed8] sm:$0xff]
    %v3717 = vld [vmem:[#allocation7 + $0xee0] sm:$0xff]
    %v3718 = vld [vmem:[#allocation7 + $0xee8] sm:$0xff]
    %v3719 = vld [vmem:[#allocation7 + $0xef0] sm:$0xff]
    %v3720 = vld [vmem:[#allocation7 + $0xef8] sm:$0xff]
    %v3721 = vld [vmem:[#allocation7 + $0xf00] sm:$0xff]
    %v3722 = vld [vmem:[#allocation7 + $0xf08] sm:$0xff]
    %v3723 = vld [vmem:[#allocation7 + $0xf10] sm:$0xff]
    %v3724 = vld [vmem:[#allocation7 + $0xf18] sm:$0xff]
    %v3725 = vld [vmem:[#allocation7 + $0xf20] sm:$0xff]
    %v3726 = vld [vmem:[#allocation7 + $0xf28] sm:$0xff]
    %v3727 = vld [vmem:[#allocation7 + $0xf30] sm:$0xff]
    %v3728 = vld [vmem:[#allocation7 + $0xf38] sm:$0xff]
    %v3729 = vld [vmem:[#allocation7 + $0xf40] sm:$0xff]
    %v3730 = vld [vmem:[#allocation7 + $0xf48] sm:$0xff]
    %v3731 = vld [vmem:[#allocation7 + $0xf50] sm:$0xff]
    %v3732 = vld [vmem:[#allocation7 + $0xf58] sm:$0xff]
    %v3733 = vld [vmem:[#allocation7 + $0xf60] sm:$0xff]
    %v3734 = vld [vmem:[#allocation7 + $0xf68] sm:$0xff]
    %v3735 = vld [vmem:[#allocation7 + $0xf70] sm:$0xff]
    %v3736 = vld [vmem:[#allocation7 + $0xf78] sm:$0xff]
    %v3737 = vld [vmem:[#allocation7 + $0xf80] sm:$0xff]
    %v3738 = vld [vmem:[#allocation7 + $0xf88] sm:$0xff]
    %v3739 = vld [vmem:[#allocation7 + $0xf90] sm:$0xff]
    %v3740 = vld [vmem:[#allocation7 + $0xf98] sm:$0xff]
    %v3741 = vld [vmem:[#allocation7 + $0xfa0] sm:$0xff]
    %v3742 = vld [vmem:[#allocation7 + $0xfa8] sm:$0xff]
    %v3743 = vld [vmem:[#allocation7 + $0xfb0] sm:$0xff]
    %v3744 = vld [vmem:[#allocation7 + $0xfb8] sm:$0xff]
    %v3745 = vld [vmem:[#allocation7 + $0xfc0] sm:$0xff]
    %v3746 = vld [vmem:[#allocation7 + $0xfc8] sm:$0xff]
    %v3747 = vld [vmem:[#allocation7 + $0xfd0] sm:$0xff]
    %v3748 = vld [vmem:[#allocation7 + $0xfd8] sm:$0xff]
    %v3749 = vld [vmem:[#allocation7 + $0xfe0] sm:$0xff]
    %v3750 = vld [vmem:[#allocation7 + $0xfe8] sm:$0xff]
    %v3751 = vld [vmem:[#allocation7 + $0xff0] sm:$0xff]
    %v3752 = vld [vmem:[#allocation7 + $0xff8] sm:$0xff]
    %v3753 = vld [vmem:[%s8] sm:$0xff]
    %v3754 = vunpack.c.l.bf16 %v3753
    %v3755 = vunpack.c.h.bf16 %v3753
    %v3758 = vperm.slane %v3754, 0
    %v3759 = vperm.slane %v3754, 2
    %v3760 = vperm.slane %v3754, 4
    %v3761 = vperm.slane %v3754, 6
    %v3762 = vperm.slane %v3755, 0
    %v3763 = vperm.slane %v3755, 2
    %v3764 = vperm.slane %v3755, 4
    %v3765 = vperm.slane %v3755, 6
    %v3774 = vperm.slane %v3758, 0
    %v3775 = vperm.slane %v3759, 0
    %v3776 = vperm.slane %v3760, 0
    %v3777 = vperm.slane %v3761, 0
    %v3778 = vperm.slane %v3762, 0
    %v3779 = vperm.slane %v3763, 0
    %v3780 = vperm.slane %v3764, 0
    %v3781 = vperm.slane %v3765, 0
    %v4294 = vunpack.c.l.b16 %v3241
    %v4295 = vunpack.c.h.b16 %v3241
    %v4296 = vunpack.c.l.b16 %v3242
    %v4297 = vunpack.c.h.b16 %v3242
    %v4298 = vunpack.c.l.b16 %v3243
    %v4299 = vunpack.c.h.b16 %v3243
    %v4300 = vunpack.c.l.b16 %v3244
    %v4301 = vunpack.c.h.b16 %v3244
    %v4302 = vunpack.c.l.b16 %v3245
    %v4303 = vunpack.c.h.b16 %v3245
    %v4304 = vunpack.c.l.b16 %v3246
    %v4305 = vunpack.c.h.b16 %v3246
    %v4306 = vunpack.c.l.b16 %v3247
    %v4307 = vunpack.c.h.b16 %v3247
    %v4308 = vunpack.c.l.b16 %v3248
    %v4309 = vunpack.c.h.b16 %v3248
    %v4310 = vunpack.c.l.b16 %v3249
    %v4311 = vunpack.c.h.b16 %v3249
    %v4312 = vunpack.c.l.b16 %v3250
    %v4313 = vunpack.c.h.b16 %v3250
    %v4314 = vunpack.c.l.b16 %v3251
    %v4315 = vunpack.c.h.b16 %v3251
    %v4316 = vunpack.c.l.b16 %v3252
    %v4317 = vunpack.c.h.b16 %v3252
    %v4318 = vunpack.c.l.b16 %v3253
    %v4319 = vunpack.c.h.b16 %v3253
    %v4320 = vunpack.c.l.b16 %v3254
    %v4321 = vunpack.c.h.b16 %v3254
    %v4322 = vunpack.c.l.b16 %v3255
    %v4323 = vunpack.c.h.b16 %v3255
    %v4324 = vunpack.c.l.b16 %v3256
    %v4325 = vunpack.c.h.b16 %v3256
    %v4326 = vunpack.c.l.b16 %v3257
    %v4327 = vunpack.c.h.b16 %v3257
    %v4328 = vunpack.c.l.b16 %v3258
    %v4329 = vunpack.c.h.b16 %v3258
    %v4330 = vunpack.c.l.b16 %v3259
    %v4331 = vunpack.c.h.b16 %v3259
    %v4332 = vunpack.c.l.b16 %v3260
    %v4333 = vunpack.c.h.b16 %v3260
    %v4334 = vunpack.c.l.b16 %v3261
    %v4335 = vunpack.c.h.b16 %v3261
    %v4336 = vunpack.c.l.b16 %v3262
    %v4337 = vunpack.c.h.b16 %v3262
    %v4338 = vunpack.c.l.b16 %v3263
    %v4339 = vunpack.c.h.b16 %v3263
    %v4340 = vunpack.c.l.b16 %v3264
    %v4341 = vunpack.c.h.b16 %v3264
    %v4342 = vunpack.c.l.b16 %v3265
    %v4343 = vunpack.c.h.b16 %v3265
    %v4344 = vunpack.c.l.b16 %v3266
    %v4345 = vunpack.c.h.b16 %v3266
    %v4346 = vunpack.c.l.b16 %v3267
    %v4347 = vunpack.c.h.b16 %v3267
    %v4348 = vunpack.c.l.b16 %v3268
    %v4349 = vunpack.c.h.b16 %v3268
    %v4350 = vunpack.c.l.b16 %v3269
    %v4351 = vunpack.c.h.b16 %v3269
    %v4352 = vunpack.c.l.b16 %v3270
    %v4353 = vunpack.c.h.b16 %v3270
    %v4354 = vunpack.c.l.b16 %v3271
    %v4355 = vunpack.c.h.b16 %v3271
    %v4356 = vunpack.c.l.b16 %v3272
    %v4357 = vunpack.c.h.b16 %v3272
    %v4358 = vunpack.c.l.b16 %v3273
    %v4359 = vunpack.c.h.b16 %v3273
    %v4360 = vunpack.c.l.b16 %v3274
    %v4361 = vunpack.c.h.b16 %v3274
    %v4362 = vunpack.c.l.b16 %v3275
    %v4363 = vunpack.c.h.b16 %v3275
    %v4364 = vunpack.c.l.b16 %v3276
    %v4365 = vunpack.c.h.b16 %v3276
    %v4366 = vunpack.c.l.b16 %v3277
    %v4367 = vunpack.c.h.b16 %v3277
    %v4368 = vunpack.c.l.b16 %v3278
    %v4369 = vunpack.c.h.b16 %v3278
    %v4370 = vunpack.c.l.b16 %v3279
    %v4371 = vunpack.c.h.b16 %v3279
    %v4372 = vunpack.c.l.b16 %v3280
    %v4373 = vunpack.c.h.b16 %v3280
    %v4374 = vunpack.c.l.b16 %v3281
    %v4375 = vunpack.c.h.b16 %v3281
    %v4376 = vunpack.c.l.b16 %v3282
    %v4377 = vunpack.c.h.b16 %v3282
    %v4378 = vunpack.c.l.b16 %v3283
    %v4379 = vunpack.c.h.b16 %v3283
    %v4380 = vunpack.c.l.b16 %v3284
    %v4381 = vunpack.c.h.b16 %v3284
    %v4382 = vunpack.c.l.b16 %v3285
    %v4383 = vunpack.c.h.b16 %v3285
    %v4384 = vunpack.c.l.b16 %v3286
    %v4385 = vunpack.c.h.b16 %v3286
    %v4386 = vunpack.c.l.b16 %v3287
    %v4387 = vunpack.c.h.b16 %v3287
    %v4388 = vunpack.c.l.b16 %v3288
    %v4389 = vunpack.c.h.b16 %v3288
    %v4390 = vunpack.c.l.b16 %v3289
    %v4391 = vunpack.c.h.b16 %v3289
    %v4392 = vunpack.c.l.b16 %v3290
    %v4393 = vunpack.c.h.b16 %v3290
    %v4394 = vunpack.c.l.b16 %v3291
    %v4395 = vunpack.c.h.b16 %v3291
    %v4396 = vunpack.c.l.b16 %v3292
    %v4397 = vunpack.c.h.b16 %v3292
    %v4398 = vunpack.c.l.b16 %v3293
    %v4399 = vunpack.c.h.b16 %v3293
    %v4400 = vunpack.c.l.b16 %v3294
    %v4401 = vunpack.c.h.b16 %v3294
    %v4402 = vunpack.c.l.b16 %v3295
    %v4403 = vunpack.c.h.b16 %v3295
    %v4404 = vunpack.c.l.b16 %v3296
    %v4405 = vunpack.c.h.b16 %v3296
    %v4406 = vunpack.c.l.b16 %v3297
    %v4407 = vunpack.c.h.b16 %v3297
    %v4408 = vunpack.c.l.b16 %v3298
    %v4409 = vunpack.c.h.b16 %v3298
    %v4410 = vunpack.c.l.b16 %v3299
    %v4411 = vunpack.c.h.b16 %v3299
    %v4412 = vunpack.c.l.b16 %v3300
    %v4413 = vunpack.c.h.b16 %v3300
    %v4414 = vunpack.c.l.b16 %v3301
    %v4415 = vunpack.c.h.b16 %v3301
    %v4416 = vunpack.c.l.b16 %v3302
    %v4417 = vunpack.c.h.b16 %v3302
    %v4418 = vunpack.c.l.b16 %v3303
    %v4419 = vunpack.c.h.b16 %v3303
    %v4420 = vunpack.c.l.b16 %v3304
    %v4421 = vunpack.c.h.b16 %v3304
    %v4422 = vunpack.c.l.b16 %v3305
    %v4423 = vunpack.c.h.b16 %v3305
    %v4424 = vunpack.c.l.b16 %v3306
    %v4425 = vunpack.c.h.b16 %v3306
    %v4426 = vunpack.c.l.b16 %v3307
    %v4427 = vunpack.c.h.b16 %v3307
    %v4428 = vunpack.c.l.b16 %v3308
    %v4429 = vunpack.c.h.b16 %v3308
    %v4430 = vunpack.c.l.b16 %v3309
    %v4431 = vunpack.c.h.b16 %v3309
    %v4432 = vunpack.c.l.b16 %v3310
    %v4433 = vunpack.c.h.b16 %v3310
    %v4434 = vunpack.c.l.b16 %v3311
    %v4435 = vunpack.c.h.b16 %v3311
    %v4436 = vunpack.c.l.b16 %v3312
    %v4437 = vunpack.c.h.b16 %v3312
    %v4438 = vunpack.c.l.b16 %v3313
    %v4439 = vunpack.c.h.b16 %v3313
    %v4440 = vunpack.c.l.b16 %v3314
    %v4441 = vunpack.c.h.b16 %v3314
    %v4442 = vunpack.c.l.b16 %v3315
    %v4443 = vunpack.c.h.b16 %v3315
    %v4444 = vunpack.c.l.b16 %v3316
    %v4445 = vunpack.c.h.b16 %v3316
    %v4446 = vunpack.c.l.b16 %v3317
    %v4447 = vunpack.c.h.b16 %v3317
    %v4448 = vunpack.c.l.b16 %v3318
    %v4449 = vunpack.c.h.b16 %v3318
    %v4450 = vunpack.c.l.b16 %v3319
    %v4451 = vunpack.c.h.b16 %v3319
    %v4452 = vunpack.c.l.b16 %v3320
    %v4453 = vunpack.c.h.b16 %v3320
    %v4454 = vunpack.c.l.b16 %v3321
    %v4455 = vunpack.c.h.b16 %v3321
    %v4456 = vunpack.c.l.b16 %v3322
    %v4457 = vunpack.c.h.b16 %v3322
    %v4458 = vunpack.c.l.b16 %v3323
    %v4459 = vunpack.c.h.b16 %v3323
    %v4460 = vunpack.c.l.b16 %v3324
    %v4461 = vunpack.c.h.b16 %v3324
    %v4462 = vunpack.c.l.b16 %v3325
    %v4463 = vunpack.c.h.b16 %v3325
    %v4464 = vunpack.c.l.b16 %v3326
    %v4465 = vunpack.c.h.b16 %v3326
    %v4466 = vunpack.c.l.b16 %v3327
    %v4467 = vunpack.c.h.b16 %v3327
    %v4468 = vunpack.c.l.b16 %v3328
    %v4469 = vunpack.c.h.b16 %v3328
    %v4470 = vunpack.c.l.b16 %v3329
    %v4471 = vunpack.c.h.b16 %v3329
    %v4472 = vunpack.c.l.b16 %v3330
    %v4473 = vunpack.c.h.b16 %v3330
    %v4474 = vunpack.c.l.b16 %v3331
    %v4475 = vunpack.c.h.b16 %v3331
    %v4476 = vunpack.c.l.b16 %v3332
    %v4477 = vunpack.c.h.b16 %v3332
    %v4478 = vunpack.c.l.b16 %v3333
    %v4479 = vunpack.c.h.b16 %v3333
    %v4480 = vunpack.c.l.b16 %v3334
    %v4481 = vunpack.c.h.b16 %v3334
    %v4482 = vunpack.c.l.b16 %v3335
    %v4483 = vunpack.c.h.b16 %v3335
    %v4484 = vunpack.c.l.b16 %v3336
    %v4485 = vunpack.c.h.b16 %v3336
    %v4486 = vunpack.c.l.b16 %v3337
    %v4487 = vunpack.c.h.b16 %v3337
    %v4488 = vunpack.c.l.b16 %v3338
    %v4489 = vunpack.c.h.b16 %v3338
    %v4490 = vunpack.c.l.b16 %v3339
    %v4491 = vunpack.c.h.b16 %v3339
    %v4492 = vunpack.c.l.b16 %v3340
    %v4493 = vunpack.c.h.b16 %v3340
    %v4494 = vunpack.c.l.b16 %v3341
    %v4495 = vunpack.c.h.b16 %v3341
    %v4496 = vunpack.c.l.b16 %v3342
    %v4497 = vunpack.c.h.b16 %v3342
    %v4498 = vunpack.c.l.b16 %v3343
    %v4499 = vunpack.c.h.b16 %v3343
    %v4500 = vunpack.c.l.b16 %v3344
    %v4501 = vunpack.c.h.b16 %v3344
    %v4502 = vunpack.c.l.b16 %v3345
    %v4503 = vunpack.c.h.b16 %v3345
    %v4504 = vunpack.c.l.b16 %v3346
    %v4505 = vunpack.c.h.b16 %v3346
    %v4506 = vunpack.c.l.b16 %v3347
    %v4507 = vunpack.c.h.b16 %v3347
    %v4508 = vunpack.c.l.b16 %v3348
    %v4509 = vunpack.c.h.b16 %v3348
    %v4510 = vunpack.c.l.b16 %v3349
    %v4511 = vunpack.c.h.b16 %v3349
    %v4512 = vunpack.c.l.b16 %v3350
    %v4513 = vunpack.c.h.b16 %v3350
    %v4514 = vunpack.c.l.b16 %v3351
    %v4515 = vunpack.c.h.b16 %v3351
    %v4516 = vunpack.c.l.b16 %v3352
    %v4517 = vunpack.c.h.b16 %v3352
    %v4518 = vunpack.c.l.b16 %v3353
    %v4519 = vunpack.c.h.b16 %v3353
    %v4520 = vunpack.c.l.b16 %v3354
    %v4521 = vunpack.c.h.b16 %v3354
    %v4522 = vunpack.c.l.b16 %v3355
    %v4523 = vunpack.c.h.b16 %v3355
    %v4524 = vunpack.c.l.b16 %v3356
    %v4525 = vunpack.c.h.b16 %v3356
    %v4526 = vunpack.c.l.b16 %v3357
    %v4527 = vunpack.c.h.b16 %v3357
    %v4528 = vunpack.c.l.b16 %v3358
    %v4529 = vunpack.c.h.b16 %v3358
    %v4530 = vunpack.c.l.b16 %v3359
    %v4531 = vunpack.c.h.b16 %v3359
    %v4532 = vunpack.c.l.b16 %v3360
    %v4533 = vunpack.c.h.b16 %v3360
    %v4534 = vunpack.c.l.b16 %v3361
    %v4535 = vunpack.c.h.b16 %v3361
    %v4536 = vunpack.c.l.b16 %v3362
    %v4537 = vunpack.c.h.b16 %v3362
    %v4538 = vunpack.c.l.b16 %v3363
    %v4539 = vunpack.c.h.b16 %v3363
    %v4540 = vunpack.c.l.b16 %v3364
    %v4541 = vunpack.c.h.b16 %v3364
    %v4542 = vunpack.c.l.b16 %v3365
    %v4543 = vunpack.c.h.b16 %v3365
    %v4544 = vunpack.c.l.b16 %v3366
    %v4545 = vunpack.c.h.b16 %v3366
    %v4546 = vunpack.c.l.b16 %v3367
    %v4547 = vunpack.c.h.b16 %v3367
    %v4548 = vunpack.c.l.b16 %v3368
    %v4549 = vunpack.c.h.b16 %v3368
    %v4550 = vunpack.c.l.b16 %v3369
    %v4551 = vunpack.c.h.b16 %v3369
    %v4552 = vunpack.c.l.b16 %v3370
    %v4553 = vunpack.c.h.b16 %v3370
    %v4554 = vunpack.c.l.b16 %v3371
    %v4555 = vunpack.c.h.b16 %v3371
    %v4556 = vunpack.c.l.b16 %v3372
    %v4557 = vunpack.c.h.b16 %v3372
    %v4558 = vunpack.c.l.b16 %v3373
    %v4559 = vunpack.c.h.b16 %v3373
    %v4560 = vunpack.c.l.b16 %v3374
    %v4561 = vunpack.c.h.b16 %v3374
    %v4562 = vunpack.c.l.b16 %v3375
    %v4563 = vunpack.c.h.b16 %v3375
    %v4564 = vunpack.c.l.b16 %v3376
    %v4565 = vunpack.c.h.b16 %v3376
    %v4566 = vunpack.c.l.b16 %v3377
    %v4567 = vunpack.c.h.b16 %v3377
    %v4568 = vunpack.c.l.b16 %v3378
    %v4569 = vunpack.c.h.b16 %v3378
    %v4570 = vunpack.c.l.b16 %v3379
    %v4571 = vunpack.c.h.b16 %v3379
    %v4572 = vunpack.c.l.b16 %v3380
    %v4573 = vunpack.c.h.b16 %v3380
    %v4574 = vunpack.c.l.b16 %v3381
    %v4575 = vunpack.c.h.b16 %v3381
    %v4576 = vunpack.c.l.b16 %v3382
    %v4577 = vunpack.c.h.b16 %v3382
    %v4578 = vunpack.c.l.b16 %v3383
    %v4579 = vunpack.c.h.b16 %v3383
    %v4580 = vunpack.c.l.b16 %v3384
    %v4581 = vunpack.c.h.b16 %v3384
    %v4582 = vunpack.c.l.b16 %v3385
    %v4583 = vunpack.c.h.b16 %v3385
    %v4584 = vunpack.c.l.b16 %v3386
    %v4585 = vunpack.c.h.b16 %v3386
    %v4586 = vunpack.c.l.b16 %v3387
    %v4587 = vunpack.c.h.b16 %v3387
    %v4588 = vunpack.c.l.b16 %v3388
    %v4589 = vunpack.c.h.b16 %v3388
    %v4590 = vunpack.c.l.b16 %v3389
    %v4591 = vunpack.c.h.b16 %v3389
    %v4592 = vunpack.c.l.b16 %v3390
    %v4593 = vunpack.c.h.b16 %v3390
    %v4594 = vunpack.c.l.b16 %v3391
    %v4595 = vunpack.c.h.b16 %v3391
    %v4596 = vunpack.c.l.b16 %v3392
    %v4597 = vunpack.c.h.b16 %v3392
    %v4598 = vunpack.c.l.b16 %v3393
    %v4599 = vunpack.c.h.b16 %v3393
    %v4600 = vunpack.c.l.b16 %v3394
    %v4601 = vunpack.c.h.b16 %v3394
    %v4602 = vunpack.c.l.b16 %v3395
    %v4603 = vunpack.c.h.b16 %v3395
    %v4604 = vunpack.c.l.b16 %v3396
    %v4605 = vunpack.c.h.b16 %v3396
    %v4606 = vunpack.c.l.b16 %v3397
    %v4607 = vunpack.c.h.b16 %v3397
    %v4608 = vunpack.c.l.b16 %v3398
    %v4609 = vunpack.c.h.b16 %v3398
    %v4610 = vunpack.c.l.b16 %v3399
    %v4611 = vunpack.c.h.b16 %v3399
    %v4612 = vunpack.c.l.b16 %v3400
    %v4613 = vunpack.c.h.b16 %v3400
    %v4614 = vunpack.c.l.b16 %v3401
    %v4615 = vunpack.c.h.b16 %v3401
    %v4616 = vunpack.c.l.b16 %v3402
    %v4617 = vunpack.c.h.b16 %v3402
    %v4618 = vunpack.c.l.b16 %v3403
    %v4619 = vunpack.c.h.b16 %v3403
    %v4620 = vunpack.c.l.b16 %v3404
    %v4621 = vunpack.c.h.b16 %v3404
    %v4622 = vunpack.c.l.b16 %v3405
    %v4623 = vunpack.c.h.b16 %v3405
    %v4624 = vunpack.c.l.b16 %v3406
    %v4625 = vunpack.c.h.b16 %v3406
    %v4626 = vunpack.c.l.b16 %v3407
    %v4627 = vunpack.c.h.b16 %v3407
    %v4628 = vunpack.c.l.b16 %v3408
    %v4629 = vunpack.c.h.b16 %v3408
    %v4630 = vunpack.c.l.b16 %v3409
    %v4631 = vunpack.c.h.b16 %v3409
    %v4632 = vunpack.c.l.b16 %v3410
    %v4633 = vunpack.c.h.b16 %v3410
    %v4634 = vunpack.c.l.b16 %v3411
    %v4635 = vunpack.c.h.b16 %v3411
    %v4636 = vunpack.c.l.b16 %v3412
    %v4637 = vunpack.c.h.b16 %v3412
    %v4638 = vunpack.c.l.b16 %v3413
    %v4639 = vunpack.c.h.b16 %v3413
    %v4640 = vunpack.c.l.b16 %v3414
    %v4641 = vunpack.c.h.b16 %v3414
    %v4642 = vunpack.c.l.b16 %v3415
    %v4643 = vunpack.c.h.b16 %v3415
    %v4644 = vunpack.c.l.b16 %v3416
    %v4645 = vunpack.c.h.b16 %v3416
    %v4646 = vunpack.c.l.b16 %v3417
    %v4647 = vunpack.c.h.b16 %v3417
    %v4648 = vunpack.c.l.b16 %v3418
    %v4649 = vunpack.c.h.b16 %v3418
    %v4650 = vunpack.c.l.b16 %v3419
    %v4651 = vunpack.c.h.b16 %v3419
    %v4652 = vunpack.c.l.b16 %v3420
    %v4653 = vunpack.c.h.b16 %v3420
    %v4654 = vunpack.c.l.b16 %v3421
    %v4655 = vunpack.c.h.b16 %v3421
    %v4656 = vunpack.c.l.b16 %v3422
    %v4657 = vunpack.c.h.b16 %v3422
    %v4658 = vunpack.c.l.b16 %v3423
    %v4659 = vunpack.c.h.b16 %v3423
    %v4660 = vunpack.c.l.b16 %v3424
    %v4661 = vunpack.c.h.b16 %v3424
    %v4662 = vunpack.c.l.b16 %v3425
    %v4663 = vunpack.c.h.b16 %v3425
    %v4664 = vunpack.c.l.b16 %v3426
    %v4665 = vunpack.c.h.b16 %v3426
    %v4666 = vunpack.c.l.b16 %v3427
    %v4667 = vunpack.c.h.b16 %v3427
    %v4668 = vunpack.c.l.b16 %v3428
    %v4669 = vunpack.c.h.b16 %v3428
    %v4670 = vunpack.c.l.b16 %v3429
    %v4671 = vunpack.c.h.b16 %v3429
    %v4672 = vunpack.c.l.b16 %v3430
    %v4673 = vunpack.c.h.b16 %v3430
    %v4674 = vunpack.c.l.b16 %v3431
    %v4675 = vunpack.c.h.b16 %v3431
    %v4676 = vunpack.c.l.b16 %v3432
    %v4677 = vunpack.c.h.b16 %v3432
    %v4678 = vunpack.c.l.b16 %v3433
    %v4679 = vunpack.c.h.b16 %v3433
    %v4680 = vunpack.c.l.b16 %v3434
    %v4681 = vunpack.c.h.b16 %v3434
    %v4682 = vunpack.c.l.b16 %v3435
    %v4683 = vunpack.c.h.b16 %v3435
    %v4684 = vunpack.c.l.b16 %v3436
    %v4685 = vunpack.c.h.b16 %v3436
    %v4686 = vunpack.c.l.b16 %v3437
    %v4687 = vunpack.c.h.b16 %v3437
    %v4688 = vunpack.c.l.b16 %v3438
    %v4689 = vunpack.c.h.b16 %v3438
    %v4690 = vunpack.c.l.b16 %v3439
    %v4691 = vunpack.c.h.b16 %v3439
    %v4692 = vunpack.c.l.b16 %v3440
    %v4693 = vunpack.c.h.b16 %v3440
    %v4694 = vunpack.c.l.b16 %v3441
    %v4695 = vunpack.c.h.b16 %v3441
    %v4696 = vunpack.c.l.b16 %v3442
    %v4697 = vunpack.c.h.b16 %v3442
    %v4698 = vunpack.c.l.b16 %v3443
    %v4699 = vunpack.c.h.b16 %v3443
    %v4700 = vunpack.c.l.b16 %v3444
    %v4701 = vunpack.c.h.b16 %v3444
    %v4702 = vunpack.c.l.b16 %v3445
    %v4703 = vunpack.c.h.b16 %v3445
    %v4704 = vunpack.c.l.b16 %v3446
    %v4705 = vunpack.c.h.b16 %v3446
    %v4706 = vunpack.c.l.b16 %v3447
    %v4707 = vunpack.c.h.b16 %v3447
    %v4708 = vunpack.c.l.b16 %v3448
    %v4709 = vunpack.c.h.b16 %v3448
    %v4710 = vunpack.c.l.b16 %v3449
    %v4711 = vunpack.c.h.b16 %v3449
    %v4712 = vunpack.c.l.b16 %v3450
    %v4713 = vunpack.c.h.b16 %v3450
    %v4714 = vunpack.c.l.b16 %v3451
    %v4715 = vunpack.c.h.b16 %v3451
    %v4716 = vunpack.c.l.b16 %v3452
    %v4717 = vunpack.c.h.b16 %v3452
    %v4718 = vunpack.c.l.b16 %v3453
    %v4719 = vunpack.c.h.b16 %v3453
    %v4720 = vunpack.c.l.b16 %v3454
    %v4721 = vunpack.c.h.b16 %v3454
    %v4722 = vunpack.c.l.b16 %v3455
    %v4723 = vunpack.c.h.b16 %v3455
    %v4724 = vunpack.c.l.b16 %v3456
    %v4725 = vunpack.c.h.b16 %v3456
    %v4726 = vunpack.c.l.b16 %v3457
    %v4727 = vunpack.c.h.b16 %v3457
    %v4728 = vunpack.c.l.b16 %v3458
    %v4729 = vunpack.c.h.b16 %v3458
    %v4730 = vunpack.c.l.b16 %v3459
    %v4731 = vunpack.c.h.b16 %v3459
    %v4732 = vunpack.c.l.b16 %v3460
    %v4733 = vunpack.c.h.b16 %v3460
    %v4734 = vunpack.c.l.b16 %v3461
    %v4735 = vunpack.c.h.b16 %v3461
    %v4736 = vunpack.c.l.b16 %v3462
    %v4737 = vunpack.c.h.b16 %v3462
    %v4738 = vunpack.c.l.b16 %v3463
    %v4739 = vunpack.c.h.b16 %v3463
    %v4740 = vunpack.c.l.b16 %v3464
    %v4741 = vunpack.c.h.b16 %v3464
    %v4742 = vunpack.c.l.b16 %v3465
    %v4743 = vunpack.c.h.b16 %v3465
    %v4744 = vunpack.c.l.b16 %v3466
    %v4745 = vunpack.c.h.b16 %v3466
    %v4746 = vunpack.c.l.b16 %v3467
    %v4747 = vunpack.c.h.b16 %v3467
    %v4748 = vunpack.c.l.b16 %v3468
    %v4749 = vunpack.c.h.b16 %v3468
    %v4750 = vunpack.c.l.b16 %v3469
    %v4751 = vunpack.c.h.b16 %v3469
    %v4752 = vunpack.c.l.b16 %v3470
    %v4753 = vunpack.c.h.b16 %v3470
    %v4754 = vunpack.c.l.b16 %v3471
    %v4755 = vunpack.c.h.b16 %v3471
    %v4756 = vunpack.c.l.b16 %v3472
    %v4757 = vunpack.c.h.b16 %v3472
    %v4758 = vunpack.c.l.b16 %v3473
    %v4759 = vunpack.c.h.b16 %v3473
    %v4760 = vunpack.c.l.b16 %v3474
    %v4761 = vunpack.c.h.b16 %v3474
    %v4762 = vunpack.c.l.b16 %v3475
    %v4763 = vunpack.c.h.b16 %v3475
    %v4764 = vunpack.c.l.b16 %v3476
    %v4765 = vunpack.c.h.b16 %v3476
    %v4766 = vunpack.c.l.b16 %v3477
    %v4767 = vunpack.c.h.b16 %v3477
    %v4768 = vunpack.c.l.b16 %v3478
    %v4769 = vunpack.c.h.b16 %v3478
    %v4770 = vunpack.c.l.b16 %v3479
    %v4771 = vunpack.c.h.b16 %v3479
    %v4772 = vunpack.c.l.b16 %v3480
    %v4773 = vunpack.c.h.b16 %v3480
    %v4774 = vunpack.c.l.b16 %v3481
    %v4775 = vunpack.c.h.b16 %v3481
    %v4776 = vunpack.c.l.b16 %v3482
    %v4777 = vunpack.c.h.b16 %v3482
    %v4778 = vunpack.c.l.b16 %v3483
    %v4779 = vunpack.c.h.b16 %v3483
    %v4780 = vunpack.c.l.b16 %v3484
    %v4781 = vunpack.c.h.b16 %v3484
    %v4782 = vunpack.c.l.b16 %v3485
    %v4783 = vunpack.c.h.b16 %v3485
    %v4784 = vunpack.c.l.b16 %v3486
    %v4785 = vunpack.c.h.b16 %v3486
    %v4786 = vunpack.c.l.b16 %v3487
    %v4787 = vunpack.c.h.b16 %v3487
    %v4788 = vunpack.c.l.b16 %v3488
    %v4789 = vunpack.c.h.b16 %v3488
    %v4790 = vunpack.c.l.b16 %v3489
    %v4791 = vunpack.c.h.b16 %v3489
    %v4792 = vunpack.c.l.b16 %v3490
    %v4793 = vunpack.c.h.b16 %v3490
    %v4794 = vunpack.c.l.b16 %v3491
    %v4795 = vunpack.c.h.b16 %v3491
    %v4796 = vunpack.c.l.b16 %v3492
    %v4797 = vunpack.c.h.b16 %v3492
    %v4798 = vunpack.c.l.b16 %v3493
    %v4799 = vunpack.c.h.b16 %v3493
    %v4800 = vunpack.c.l.b16 %v3494
    %v4801 = vunpack.c.h.b16 %v3494
    %v4802 = vunpack.c.l.b16 %v3495
    %v4803 = vunpack.c.h.b16 %v3495
    %v4804 = vunpack.c.l.b16 %v3496
    %v4805 = vunpack.c.h.b16 %v3496
    %v4806 = vunpack.c.l.b16 %v3497
    %v4807 = vunpack.c.h.b16 %v3497
    %v4808 = vunpack.c.l.b16 %v3498
    %v4809 = vunpack.c.h.b16 %v3498
    %v4810 = vunpack.c.l.b16 %v3499
    %v4811 = vunpack.c.h.b16 %v3499
    %v4812 = vunpack.c.l.b16 %v3500
    %v4813 = vunpack.c.h.b16 %v3500
    %v4814 = vunpack.c.l.b16 %v3501
    %v4815 = vunpack.c.h.b16 %v3501
    %v4816 = vunpack.c.l.b16 %v3502
    %v4817 = vunpack.c.h.b16 %v3502
    %v4818 = vunpack.c.l.b16 %v3503
    %v4819 = vunpack.c.h.b16 %v3503
    %v4820 = vunpack.c.l.b16 %v3504
    %v4821 = vunpack.c.h.b16 %v3504
    %v4822 = vunpack.c.l.b16 %v3505
    %v4823 = vunpack.c.h.b16 %v3505
    %v4824 = vunpack.c.l.b16 %v3506
    %v4825 = vunpack.c.h.b16 %v3506
    %v4826 = vunpack.c.l.b16 %v3507
    %v4827 = vunpack.c.h.b16 %v3507
    %v4828 = vunpack.c.l.b16 %v3508
    %v4829 = vunpack.c.h.b16 %v3508
    %v4830 = vunpack.c.l.b16 %v3509
    %v4831 = vunpack.c.h.b16 %v3509
    %v4832 = vunpack.c.l.b16 %v3510
    %v4833 = vunpack.c.h.b16 %v3510
    %v4834 = vunpack.c.l.b16 %v3511
    %v4835 = vunpack.c.h.b16 %v3511
    %v4836 = vunpack.c.l.b16 %v3512
    %v4837 = vunpack.c.h.b16 %v3512
    %v4838 = vunpack.c.l.b16 %v3513
    %v4839 = vunpack.c.h.b16 %v3513
    %v4840 = vunpack.c.l.b16 %v3514
    %v4841 = vunpack.c.h.b16 %v3514
    %v4842 = vunpack.c.l.b16 %v3515
    %v4843 = vunpack.c.h.b16 %v3515
    %v4844 = vunpack.c.l.b16 %v3516
    %v4845 = vunpack.c.h.b16 %v3516
    %v4846 = vunpack.c.l.b16 %v3517
    %v4847 = vunpack.c.h.b16 %v3517
    %v4848 = vunpack.c.l.b16 %v3518
    %v4849 = vunpack.c.h.b16 %v3518
    %v4850 = vunpack.c.l.b16 %v3519
    %v4851 = vunpack.c.h.b16 %v3519
    %v4852 = vunpack.c.l.b16 %v3520
    %v4853 = vunpack.c.h.b16 %v3520
    %v4854 = vunpack.c.l.b16 %v3521
    %v4855 = vunpack.c.h.b16 %v3521
    %v4856 = vunpack.c.l.b16 %v3522
    %v4857 = vunpack.c.h.b16 %v3522
    %v4858 = vunpack.c.l.b16 %v3523
    %v4859 = vunpack.c.h.b16 %v3523
    %v4860 = vunpack.c.l.b16 %v3524
    %v4861 = vunpack.c.h.b16 %v3524
    %v4862 = vunpack.c.l.b16 %v3525
    %v4863 = vunpack.c.h.b16 %v3525
    %v4864 = vunpack.c.l.b16 %v3526
    %v4865 = vunpack.c.h.b16 %v3526
    %v4866 = vunpack.c.l.b16 %v3527
    %v4867 = vunpack.c.h.b16 %v3527
    %v4868 = vunpack.c.l.b16 %v3528
    %v4869 = vunpack.c.h.b16 %v3528
    %v4870 = vunpack.c.l.b16 %v3529
    %v4871 = vunpack.c.h.b16 %v3529
    %v4872 = vunpack.c.l.b16 %v3530
    %v4873 = vunpack.c.h.b16 %v3530
    %v4874 = vunpack.c.l.b16 %v3531
    %v4875 = vunpack.c.h.b16 %v3531
    %v4876 = vunpack.c.l.b16 %v3532
    %v4877 = vunpack.c.h.b16 %v3532
    %v4878 = vunpack.c.l.b16 %v3533
    %v4879 = vunpack.c.h.b16 %v3533
    %v4880 = vunpack.c.l.b16 %v3534
    %v4881 = vunpack.c.h.b16 %v3534
    %v4882 = vunpack.c.l.b16 %v3535
    %v4883 = vunpack.c.h.b16 %v3535
    %v4884 = vunpack.c.l.b16 %v3536
    %v4885 = vunpack.c.h.b16 %v3536
    %v4886 = vunpack.c.l.b16 %v3537
    %v4887 = vunpack.c.h.b16 %v3537
    %v4888 = vunpack.c.l.b16 %v3538
    %v4889 = vunpack.c.h.b16 %v3538
    %v4890 = vunpack.c.l.b16 %v3539
    %v4891 = vunpack.c.h.b16 %v3539
    %v4892 = vunpack.c.l.b16 %v3540
    %v4893 = vunpack.c.h.b16 %v3540
    %v4894 = vunpack.c.l.b16 %v3541
    %v4895 = vunpack.c.h.b16 %v3541
    %v4896 = vunpack.c.l.b16 %v3542
    %v4897 = vunpack.c.h.b16 %v3542
    %v4898 = vunpack.c.l.b16 %v3543
    %v4899 = vunpack.c.h.b16 %v3543
    %v4900 = vunpack.c.l.b16 %v3544
    %v4901 = vunpack.c.h.b16 %v3544
    %v4902 = vunpack.c.l.b16 %v3545
    %v4903 = vunpack.c.h.b16 %v3545
    %v4904 = vunpack.c.l.b16 %v3546
    %v4905 = vunpack.c.h.b16 %v3546
    %v4906 = vunpack.c.l.b16 %v3547
    %v4907 = vunpack.c.h.b16 %v3547
    %v4908 = vunpack.c.l.b16 %v3548
    %v4909 = vunpack.c.h.b16 %v3548
    %v4910 = vunpack.c.l.b16 %v3549
    %v4911 = vunpack.c.h.b16 %v3549
    %v4912 = vunpack.c.l.b16 %v3550
    %v4913 = vunpack.c.h.b16 %v3550
    %v4914 = vunpack.c.l.b16 %v3551
    %v4915 = vunpack.c.h.b16 %v3551
    %v4916 = vunpack.c.l.b16 %v3552
    %v4917 = vunpack.c.h.b16 %v3552
    %v4918 = vunpack.c.l.b16 %v3553
    %v4919 = vunpack.c.h.b16 %v3553
    %v4920 = vunpack.c.l.b16 %v3554
    %v4921 = vunpack.c.h.b16 %v3554
    %v4922 = vunpack.c.l.b16 %v3555
    %v4923 = vunpack.c.h.b16 %v3555
    %v4924 = vunpack.c.l.b16 %v3556
    %v4925 = vunpack.c.h.b16 %v3556
    %v4926 = vunpack.c.l.b16 %v3557
    %v4927 = vunpack.c.h.b16 %v3557
    %v4928 = vunpack.c.l.b16 %v3558
    %v4929 = vunpack.c.h.b16 %v3558
    %v4930 = vunpack.c.l.b16 %v3559
    %v4931 = vunpack.c.h.b16 %v3559
    %v4932 = vunpack.c.l.b16 %v3560
    %v4933 = vunpack.c.h.b16 %v3560
    %v4934 = vunpack.c.l.b16 %v3561
    %v4935 = vunpack.c.h.b16 %v3561
    %v4936 = vunpack.c.l.b16 %v3562
    %v4937 = vunpack.c.h.b16 %v3562
    %v4938 = vunpack.c.l.b16 %v3563
    %v4939 = vunpack.c.h.b16 %v3563
    %v4940 = vunpack.c.l.b16 %v3564
    %v4941 = vunpack.c.h.b16 %v3564
    %v4942 = vunpack.c.l.b16 %v3565
    %v4943 = vunpack.c.h.b16 %v3565
    %v4944 = vunpack.c.l.b16 %v3566
    %v4945 = vunpack.c.h.b16 %v3566
    %v4946 = vunpack.c.l.b16 %v3567
    %v4947 = vunpack.c.h.b16 %v3567
    %v4948 = vunpack.c.l.b16 %v3568
    %v4949 = vunpack.c.h.b16 %v3568
    %v4950 = vunpack.c.l.b16 %v3569
    %v4951 = vunpack.c.h.b16 %v3569
    %v4952 = vunpack.c.l.b16 %v3570
    %v4953 = vunpack.c.h.b16 %v3570
    %v4954 = vunpack.c.l.b16 %v3571
    %v4955 = vunpack.c.h.b16 %v3571
    %v4956 = vunpack.c.l.b16 %v3572
    %v4957 = vunpack.c.h.b16 %v3572
    %v4958 = vunpack.c.l.b16 %v3573
    %v4959 = vunpack.c.h.b16 %v3573
    %v4960 = vunpack.c.l.b16 %v3574
    %v4961 = vunpack.c.h.b16 %v3574
    %v4962 = vunpack.c.l.b16 %v3575
    %v4963 = vunpack.c.h.b16 %v3575
    %v4964 = vunpack.c.l.b16 %v3576
    %v4965 = vunpack.c.h.b16 %v3576
    %v4966 = vunpack.c.l.b16 %v3577
    %v4967 = vunpack.c.h.b16 %v3577
    %v4968 = vunpack.c.l.b16 %v3578
    %v4969 = vunpack.c.h.b16 %v3578
    %v4970 = vunpack.c.l.b16 %v3579
    %v4971 = vunpack.c.h.b16 %v3579
    %v4972 = vunpack.c.l.b16 %v3580
    %v4973 = vunpack.c.h.b16 %v3580
    %v4974 = vunpack.c.l.b16 %v3581
    %v4975 = vunpack.c.h.b16 %v3581
    %v4976 = vunpack.c.l.b16 %v3582
    %v4977 = vunpack.c.h.b16 %v3582
    %v4978 = vunpack.c.l.b16 %v3583
    %v4979 = vunpack.c.h.b16 %v3583
    %v4980 = vunpack.c.l.b16 %v3584
    %v4981 = vunpack.c.h.b16 %v3584
    %v4982 = vunpack.c.l.b16 %v3585
    %v4983 = vunpack.c.h.b16 %v3585
    %v4984 = vunpack.c.l.b16 %v3586
    %v4985 = vunpack.c.h.b16 %v3586
    %v4986 = vunpack.c.l.b16 %v3587
    %v4987 = vunpack.c.h.b16 %v3587
    %v4988 = vunpack.c.l.b16 %v3588
    %v4989 = vunpack.c.h.b16 %v3588
    %v4990 = vunpack.c.l.b16 %v3589
    %v4991 = vunpack.c.h.b16 %v3589
    %v4992 = vunpack.c.l.b16 %v3590
    %v4993 = vunpack.c.h.b16 %v3590
    %v4994 = vunpack.c.l.b16 %v3591
    %v4995 = vunpack.c.h.b16 %v3591
    %v4996 = vunpack.c.l.b16 %v3592
    %v4997 = vunpack.c.h.b16 %v3592
    %v4998 = vunpack.c.l.b16 %v3593
    %v4999 = vunpack.c.h.b16 %v3593
    %v5000 = vunpack.c.l.b16 %v3594
    %v5001 = vunpack.c.h.b16 %v3594
    %v5002 = vunpack.c.l.b16 %v3595
    %v5003 = vunpack.c.h.b16 %v3595
    %v5004 = vunpack.c.l.b16 %v3596
    %v5005 = vunpack.c.h.b16 %v3596
    %v5006 = vunpack.c.l.b16 %v3597
    %v5007 = vunpack.c.h.b16 %v3597
    %v5008 = vunpack.c.l.b16 %v3598
    %v5009 = vunpack.c.h.b16 %v3598
    %v5010 = vunpack.c.l.b16 %v3599
    %v5011 = vunpack.c.h.b16 %v3599
    %v5012 = vunpack.c.l.b16 %v3600
    %v5013 = vunpack.c.h.b16 %v3600
    %v5014 = vunpack.c.l.b16 %v3601
    %v5015 = vunpack.c.h.b16 %v3601
    %v5016 = vunpack.c.l.b16 %v3602
    %v5017 = vunpack.c.h.b16 %v3602
    %v5018 = vunpack.c.l.b16 %v3603
    %v5019 = vunpack.c.h.b16 %v3603
    %v5020 = vunpack.c.l.b16 %v3604
    %v5021 = vunpack.c.h.b16 %v3604
    %v5022 = vunpack.c.l.b16 %v3605
    %v5023 = vunpack.c.h.b16 %v3605
    %v5024 = vunpack.c.l.b16 %v3606
    %v5025 = vunpack.c.h.b16 %v3606
    %v5026 = vunpack.c.l.b16 %v3607
    %v5027 = vunpack.c.h.b16 %v3607
    %v5028 = vunpack.c.l.b16 %v3608
    %v5029 = vunpack.c.h.b16 %v3608
    %v5030 = vunpack.c.l.b16 %v3609
    %v5031 = vunpack.c.h.b16 %v3609
    %v5032 = vunpack.c.l.b16 %v3610
    %v5033 = vunpack.c.h.b16 %v3610
    %v5034 = vunpack.c.l.b16 %v3611
    %v5035 = vunpack.c.h.b16 %v3611
    %v5036 = vunpack.c.l.b16 %v3612
    %v5037 = vunpack.c.h.b16 %v3612
    %v5038 = vunpack.c.l.b16 %v3613
    %v5039 = vunpack.c.h.b16 %v3613
    %v5040 = vunpack.c.l.b16 %v3614
    %v5041 = vunpack.c.h.b16 %v3614
    %v5042 = vunpack.c.l.b16 %v3615
    %v5043 = vunpack.c.h.b16 %v3615
    %v5044 = vunpack.c.l.b16 %v3616
    %v5045 = vunpack.c.h.b16 %v3616
    %v5046 = vunpack.c.l.b16 %v3617
    %v5047 = vunpack.c.h.b16 %v3617
    %v5048 = vunpack.c.l.b16 %v3618
    %v5049 = vunpack.c.h.b16 %v3618
    %v5050 = vunpack.c.l.b16 %v3619
    %v5051 = vunpack.c.h.b16 %v3619
    %v5052 = vunpack.c.l.b16 %v3620
    %v5053 = vunpack.c.h.b16 %v3620
    %v5054 = vunpack.c.l.b16 %v3621
    %v5055 = vunpack.c.h.b16 %v3621
    %v5056 = vunpack.c.l.b16 %v3622
    %v5057 = vunpack.c.h.b16 %v3622
    %v5058 = vunpack.c.l.b16 %v3623
    %v5059 = vunpack.c.h.b16 %v3623
    %v5060 = vunpack.c.l.b16 %v3624
    %v5061 = vunpack.c.h.b16 %v3624
    %v5062 = vunpack.c.l.b16 %v3625
    %v5063 = vunpack.c.h.b16 %v3625
    %v5064 = vunpack.c.l.b16 %v3626
    %v5065 = vunpack.c.h.b16 %v3626
    %v5066 = vunpack.c.l.b16 %v3627
    %v5067 = vunpack.c.h.b16 %v3627
    %v5068 = vunpack.c.l.b16 %v3628
    %v5069 = vunpack.c.h.b16 %v3628
    %v5070 = vunpack.c.l.b16 %v3629
    %v5071 = vunpack.c.h.b16 %v3629
    %v5072 = vunpack.c.l.b16 %v3630
    %v5073 = vunpack.c.h.b16 %v3630
    %v5074 = vunpack.c.l.b16 %v3631
    %v5075 = vunpack.c.h.b16 %v3631
    %v5076 = vunpack.c.l.b16 %v3632
    %v5077 = vunpack.c.h.b16 %v3632
    %v5078 = vunpack.c.l.b16 %v3633
    %v5079 = vunpack.c.h.b16 %v3633
    %v5080 = vunpack.c.l.b16 %v3634
    %v5081 = vunpack.c.h.b16 %v3634
    %v5082 = vunpack.c.l.b16 %v3635
    %v5083 = vunpack.c.h.b16 %v3635
    %v5084 = vunpack.c.l.b16 %v3636
    %v5085 = vunpack.c.h.b16 %v3636
    %v5086 = vunpack.c.l.b16 %v3637
    %v5087 = vunpack.c.h.b16 %v3637
    %v5088 = vunpack.c.l.b16 %v3638
    %v5089 = vunpack.c.h.b16 %v3638
    %v5090 = vunpack.c.l.b16 %v3639
    %v5091 = vunpack.c.h.b16 %v3639
    %v5092 = vunpack.c.l.b16 %v3640
    %v5093 = vunpack.c.h.b16 %v3640
    %v5094 = vunpack.c.l.b16 %v3641
    %v5095 = vunpack.c.h.b16 %v3641
    %v5096 = vunpack.c.l.b16 %v3642
    %v5097 = vunpack.c.h.b16 %v3642
    %v5098 = vunpack.c.l.b16 %v3643
    %v5099 = vunpack.c.h.b16 %v3643
    %v5100 = vunpack.c.l.b16 %v3644
    %v5101 = vunpack.c.h.b16 %v3644
    %v5102 = vunpack.c.l.b16 %v3645
    %v5103 = vunpack.c.h.b16 %v3645
    %v5104 = vunpack.c.l.b16 %v3646
    %v5105 = vunpack.c.h.b16 %v3646
    %v5106 = vunpack.c.l.b16 %v3647
    %v5107 = vunpack.c.h.b16 %v3647
    %v5108 = vunpack.c.l.b16 %v3648
    %v5109 = vunpack.c.h.b16 %v3648
    %v5110 = vunpack.c.l.b16 %v3649
    %v5111 = vunpack.c.h.b16 %v3649
    %v5112 = vunpack.c.l.b16 %v3650
    %v5113 = vunpack.c.h.b16 %v3650
    %v5114 = vunpack.c.l.b16 %v3651
    %v5115 = vunpack.c.h.b16 %v3651
    %v5116 = vunpack.c.l.b16 %v3652
    %v5117 = vunpack.c.h.b16 %v3652
    %v5118 = vunpack.c.l.b16 %v3653
    %v5119 = vunpack.c.h.b16 %v3653
    %v5120 = vunpack.c.l.b16 %v3654
    %v5121 = vunpack.c.h.b16 %v3654
    %v5122 = vunpack.c.l.b16 %v3655
    %v5123 = vunpack.c.h.b16 %v3655
    %v5124 = vunpack.c.l.b16 %v3656
    %v5125 = vunpack.c.h.b16 %v3656
    %v5126 = vunpack.c.l.b16 %v3657
    %v5127 = vunpack.c.h.b16 %v3657
    %v5128 = vunpack.c.l.b16 %v3658
    %v5129 = vunpack.c.h.b16 %v3658
    %v5130 = vunpack.c.l.b16 %v3659
    %v5131 = vunpack.c.h.b16 %v3659
    %v5132 = vunpack.c.l.b16 %v3660
    %v5133 = vunpack.c.h.b16 %v3660
    %v5134 = vunpack.c.l.b16 %v3661
    %v5135 = vunpack.c.h.b16 %v3661
    %v5136 = vunpack.c.l.b16 %v3662
    %v5137 = vunpack.c.h.b16 %v3662
    %v5138 = vunpack.c.l.b16 %v3663
    %v5139 = vunpack.c.h.b16 %v3663
    %v5140 = vunpack.c.l.b16 %v3664
    %v5141 = vunpack.c.h.b16 %v3664
    %v5142 = vunpack.c.l.b16 %v3665
    %v5143 = vunpack.c.h.b16 %v3665
    %v5144 = vunpack.c.l.b16 %v3666
    %v5145 = vunpack.c.h.b16 %v3666
    %v5146 = vunpack.c.l.b16 %v3667
    %v5147 = vunpack.c.h.b16 %v3667
    %v5148 = vunpack.c.l.b16 %v3668
    %v5149 = vunpack.c.h.b16 %v3668
    %v5150 = vunpack.c.l.b16 %v3669
    %v5151 = vunpack.c.h.b16 %v3669
    %v5152 = vunpack.c.l.b16 %v3670
    %v5153 = vunpack.c.h.b16 %v3670
    %v5154 = vunpack.c.l.b16 %v3671
    %v5155 = vunpack.c.h.b16 %v3671
    %v5156 = vunpack.c.l.b16 %v3672
    %v5157 = vunpack.c.h.b16 %v3672
    %v5158 = vunpack.c.l.b16 %v3673
    %v5159 = vunpack.c.h.b16 %v3673
    %v5160 = vunpack.c.l.b16 %v3674
    %v5161 = vunpack.c.h.b16 %v3674
    %v5162 = vunpack.c.l.b16 %v3675
    %v5163 = vunpack.c.h.b16 %v3675
    %v5164 = vunpack.c.l.b16 %v3676
    %v5165 = vunpack.c.h.b16 %v3676
    %v5166 = vunpack.c.l.b16 %v3677
    %v5167 = vunpack.c.h.b16 %v3677
    %v5168 = vunpack.c.l.b16 %v3678
    %v5169 = vunpack.c.h.b16 %v3678
    %v5170 = vunpack.c.l.b16 %v3679
    %v5171 = vunpack.c.h.b16 %v3679
    %v5172 = vunpack.c.l.b16 %v3680
    %v5173 = vunpack.c.h.b16 %v3680
    %v5174 = vunpack.c.l.b16 %v3681
    %v5175 = vunpack.c.h.b16 %v3681
    %v5176 = vunpack.c.l.b16 %v3682
    %v5177 = vunpack.c.h.b16 %v3682
    %v5178 = vunpack.c.l.b16 %v3683
    %v5179 = vunpack.c.h.b16 %v3683
    %v5180 = vunpack.c.l.b16 %v3684
    %v5181 = vunpack.c.h.b16 %v3684
    %v5182 = vunpack.c.l.b16 %v3685
    %v5183 = vunpack.c.h.b16 %v3685
    %v5184 = vunpack.c.l.b16 %v3686
    %v5185 = vunpack.c.h.b16 %v3686
    %v5186 = vunpack.c.l.b16 %v3687
    %v5187 = vunpack.c.h.b16 %v3687
    %v5188 = vunpack.c.l.b16 %v3688
    %v5189 = vunpack.c.h.b16 %v3688
    %v5190 = vunpack.c.l.b16 %v3689
    %v5191 = vunpack.c.h.b16 %v3689
    %v5192 = vunpack.c.l.b16 %v3690
    %v5193 = vunpack.c.h.b16 %v3690
    %v5194 = vunpack.c.l.b16 %v3691
    %v5195 = vunpack.c.h.b16 %v3691
    %v5196 = vunpack.c.l.b16 %v3692
    %v5197 = vunpack.c.h.b16 %v3692
    %v5198 = vunpack.c.l.b16 %v3693
    %v5199 = vunpack.c.h.b16 %v3693
    %v5200 = vunpack.c.l.b16 %v3694
    %v5201 = vunpack.c.h.b16 %v3694
    %v5202 = vunpack.c.l.b16 %v3695
    %v5203 = vunpack.c.h.b16 %v3695
    %v5204 = vunpack.c.l.b16 %v3696
    %v5205 = vunpack.c.h.b16 %v3696
    %v5206 = vunpack.c.l.b16 %v3697
    %v5207 = vunpack.c.h.b16 %v3697
    %v5208 = vunpack.c.l.b16 %v3698
    %v5209 = vunpack.c.h.b16 %v3698
    %v5210 = vunpack.c.l.b16 %v3699
    %v5211 = vunpack.c.h.b16 %v3699
    %v5212 = vunpack.c.l.b16 %v3700
    %v5213 = vunpack.c.h.b16 %v3700
    %v5214 = vunpack.c.l.b16 %v3701
    %v5215 = vunpack.c.h.b16 %v3701
    %v5216 = vunpack.c.l.b16 %v3702
    %v5217 = vunpack.c.h.b16 %v3702
    %v5218 = vunpack.c.l.b16 %v3703
    %v5219 = vunpack.c.h.b16 %v3703
    %v5220 = vunpack.c.l.b16 %v3704
    %v5221 = vunpack.c.h.b16 %v3704
    %v5222 = vunpack.c.l.b16 %v3705
    %v5223 = vunpack.c.h.b16 %v3705
    %v5224 = vunpack.c.l.b16 %v3706
    %v5225 = vunpack.c.h.b16 %v3706
    %v5226 = vunpack.c.l.b16 %v3707
    %v5227 = vunpack.c.h.b16 %v3707
    %v5228 = vunpack.c.l.b16 %v3708
    %v5229 = vunpack.c.h.b16 %v3708
    %v5230 = vunpack.c.l.b16 %v3709
    %v5231 = vunpack.c.h.b16 %v3709
    %v5232 = vunpack.c.l.b16 %v3710
    %v5233 = vunpack.c.h.b16 %v3710
    %v5234 = vunpack.c.l.b16 %v3711
    %v5235 = vunpack.c.h.b16 %v3711
    %v5236 = vunpack.c.l.b16 %v3712
    %v5237 = vunpack.c.h.b16 %v3712
    %v5238 = vunpack.c.l.b16 %v3713
    %v5239 = vunpack.c.h.b16 %v3713
    %v5240 = vunpack.c.l.b16 %v3714
    %v5241 = vunpack.c.h.b16 %v3714
    %v5242 = vunpack.c.l.b16 %v3715
    %v5243 = vunpack.c.h.b16 %v3715
    %v5244 = vunpack.c.l.b16 %v3716
    %v5245 = vunpack.c.h.b16 %v3716
    %v5246 = vunpack.c.l.b16 %v3717
    %v5247 = vunpack.c.h.b16 %v3717
    %v5248 = vunpack.c.l.b16 %v3718
    %v5249 = vunpack.c.h.b16 %v3718
    %v5250 = vunpack.c.l.b16 %v3719
    %v5251 = vunpack.c.h.b16 %v3719
    %v5252 = vunpack.c.l.b16 %v3720
    %v5253 = vunpack.c.h.b16 %v3720
    %v5254 = vunpack.c.l.b16 %v3721
    %v5255 = vunpack.c.h.b16 %v3721
    %v5256 = vunpack.c.l.b16 %v3722
    %v5257 = vunpack.c.h.b16 %v3722
    %v5258 = vunpack.c.l.b16 %v3723
    %v5259 = vunpack.c.h.b16 %v3723
    %v5260 = vunpack.c.l.b16 %v3724
    %v5261 = vunpack.c.h.b16 %v3724
    %v5262 = vunpack.c.l.b16 %v3725
    %v5263 = vunpack.c.h.b16 %v3725
    %v5264 = vunpack.c.l.b16 %v3726
    %v5265 = vunpack.c.h.b16 %v3726
    %v5266 = vunpack.c.l.b16 %v3727
    %v5267 = vunpack.c.h.b16 %v3727
    %v5268 = vunpack.c.l.b16 %v3728
    %v5269 = vunpack.c.h.b16 %v3728
    %v5270 = vunpack.c.l.b16 %v3729
    %v5271 = vunpack.c.h.b16 %v3729
    %v5272 = vunpack.c.l.b16 %v3730
    %v5273 = vunpack.c.h.b16 %v3730
    %v5274 = vunpack.c.l.b16 %v3731
    %v5275 = vunpack.c.h.b16 %v3731
    %v5276 = vunpack.c.l.b16 %v3732
    %v5277 = vunpack.c.h.b16 %v3732
    %v5278 = vunpack.c.l.b16 %v3733
    %v5279 = vunpack.c.h.b16 %v3733
    %v5280 = vunpack.c.l.b16 %v3734
    %v5281 = vunpack.c.h.b16 %v3734
    %v5282 = vunpack.c.l.b16 %v3735
    %v5283 = vunpack.c.h.b16 %v3735
    %v5284 = vunpack.c.l.b16 %v3736
    %v5285 = vunpack.c.h.b16 %v3736
    %v5286 = vunpack.c.l.b16 %v3737
    %v5287 = vunpack.c.h.b16 %v3737
    %v5288 = vunpack.c.l.b16 %v3738
    %v5289 = vunpack.c.h.b16 %v3738
    %v5290 = vunpack.c.l.b16 %v3739
    %v5291 = vunpack.c.h.b16 %v3739
    %v5292 = vunpack.c.l.b16 %v3740
    %v5293 = vunpack.c.h.b16 %v3740
    %v5294 = vunpack.c.l.b16 %v3741
    %v5295 = vunpack.c.h.b16 %v3741
    %v5296 = vunpack.c.l.b16 %v3742
    %v5297 = vunpack.c.h.b16 %v3742
    %v5298 = vunpack.c.l.b16 %v3743
    %v5299 = vunpack.c.h.b16 %v3743
    %v5300 = vunpack.c.l.b16 %v3744
    %v5301 = vunpack.c.h.b16 %v3744
    %v5302 = vunpack.c.l.b16 %v3745
    %v5303 = vunpack.c.h.b16 %v3745
    %v5304 = vunpack.c.l.b16 %v3746
    %v5305 = vunpack.c.h.b16 %v3746
    %v5306 = vunpack.c.l.b16 %v3747
    %v5307 = vunpack.c.h.b16 %v3747
    %v5308 = vunpack.c.l.b16 %v3748
    %v5309 = vunpack.c.h.b16 %v3748
    %v5310 = vunpack.c.l.b16 %v3749
    %v5311 = vunpack.c.h.b16 %v3749
    %v5312 = vunpack.c.l.b16 %v3750
    %v5313 = vunpack.c.h.b16 %v3750
    %v5314 = vunpack.c.l.b16 %v3751
    %v5315 = vunpack.c.h.b16 %v3751
    %v5316 = vunpack.c.l.b16 %v3752
    %v5317 = vunpack.c.h.b16 %v3752
    %v5318 = vpack.c.b16 %v4302, %v4294
    %v5319 = vpack.c.b16 %v4303, %v4295
    %v5320 = vpack.c.b16 %v4304, %v4296
    %v5321 = vpack.c.b16 %v4305, %v4297
    %v5322 = vpack.c.b16 %v4306, %v4298
    %v5323 = vpack.c.b16 %v4307, %v4299
    %v5324 = vpack.c.b16 %v4308, %v4300
    %v5325 = vpack.c.b16 %v4309, %v4301
    %v5326 = vpack.c.b16 %v4318, %v4310
    %v5327 = vpack.c.b16 %v4319, %v4311
    %v5328 = vpack.c.b16 %v4320, %v4312
    %v5329 = vpack.c.b16 %v4321, %v4313
    %v5330 = vpack.c.b16 %v4322, %v4314
    %v5331 = vpack.c.b16 %v4323, %v4315
    %v5332 = vpack.c.b16 %v4324, %v4316
    %v5333 = vpack.c.b16 %v4325, %v4317
    %v5334 = vpack.c.b16 %v4334, %v4326
    %v5335 = vpack.c.b16 %v4335, %v4327
    %v5336 = vpack.c.b16 %v4336, %v4328
    %v5337 = vpack.c.b16 %v4337, %v4329
    %v5338 = vpack.c.b16 %v4338, %v4330
    %v5339 = vpack.c.b16 %v4339, %v4331
    %v5340 = vpack.c.b16 %v4340, %v4332
    %v5341 = vpack.c.b16 %v4341, %v4333
    %v5342 = vpack.c.b16 %v4350, %v4342
    %v5343 = vpack.c.b16 %v4351, %v4343
    %v5344 = vpack.c.b16 %v4352, %v4344
    %v5345 = vpack.c.b16 %v4353, %v4345
    %v5346 = vpack.c.b16 %v4354, %v4346
    %v5347 = vpack.c.b16 %v4355, %v4347
    %v5348 = vpack.c.b16 %v4356, %v4348
    %v5349 = vpack.c.b16 %v4357, %v4349
    %v5350 = vpack.c.b16 %v4366, %v4358
    %v5351 = vpack.c.b16 %v4367, %v4359
    %v5352 = vpack.c.b16 %v4368, %v4360
    %v5353 = vpack.c.b16 %v4369, %v4361
    %v5354 = vpack.c.b16 %v4370, %v4362
    %v5355 = vpack.c.b16 %v4371, %v4363
    %v5356 = vpack.c.b16 %v4372, %v4364
    %v5357 = vpack.c.b16 %v4373, %v4365
    %v5358 = vpack.c.b16 %v4382, %v4374
    %v5359 = vpack.c.b16 %v4383, %v4375
    %v5360 = vpack.c.b16 %v4384, %v4376
    %v5361 = vpack.c.b16 %v4385, %v4377
    %v5362 = vpack.c.b16 %v4386, %v4378
    %v5363 = vpack.c.b16 %v4387, %v4379
    %v5364 = vpack.c.b16 %v4388, %v4380
    %v5365 = vpack.c.b16 %v4389, %v4381
    %v5366 = vpack.c.b16 %v4398, %v4390
    %v5367 = vpack.c.b16 %v4399, %v4391
    %v5368 = vpack.c.b16 %v4400, %v4392
    %v5369 = vpack.c.b16 %v4401, %v4393
    %v5370 = vpack.c.b16 %v4402, %v4394
    %v5371 = vpack.c.b16 %v4403, %v4395
    %v5372 = vpack.c.b16 %v4404, %v4396
    %v5373 = vpack.c.b16 %v4405, %v4397
    %v5374 = vpack.c.b16 %v4414, %v4406
    %v5375 = vpack.c.b16 %v4415, %v4407
    %v5376 = vpack.c.b16 %v4416, %v4408
    %v5377 = vpack.c.b16 %v4417, %v4409
    %v5378 = vpack.c.b16 %v4418, %v4410
    %v5379 = vpack.c.b16 %v4419, %v4411
    %v5380 = vpack.c.b16 %v4420, %v4412
    %v5381 = vpack.c.b16 %v4421, %v4413
    %v5382 = vpack.c.b16 %v4430, %v4422
    %v5383 = vpack.c.b16 %v4431, %v4423
    %v5384 = vpack.c.b16 %v4432, %v4424
    %v5385 = vpack.c.b16 %v4433, %v4425
    %v5386 = vpack.c.b16 %v4434, %v4426
    %v5387 = vpack.c.b16 %v4435, %v4427
    %v5388 = vpack.c.b16 %v4436, %v4428
    %v5389 = vpack.c.b16 %v4437, %v4429
    %v5390 = vpack.c.b16 %v4446, %v4438
    %v5391 = vpack.c.b16 %v4447, %v4439
    %v5392 = vpack.c.b16 %v4448, %v4440
    %v5393 = vpack.c.b16 %v4449, %v4441
    %v5394 = vpack.c.b16 %v4450, %v4442
    %v5395 = vpack.c.b16 %v4451, %v4443
    %v5396 = vpack.c.b16 %v4452, %v4444
    %v5397 = vpack.c.b16 %v4453, %v4445
    %v5398 = vpack.c.b16 %v4462, %v4454
    %v5399 = vpack.c.b16 %v4463, %v4455
    %v5400 = vpack.c.b16 %v4464, %v4456
    %v5401 = vpack.c.b16 %v4465, %v4457
    %v5402 = vpack.c.b16 %v4466, %v4458
    %v5403 = vpack.c.b16 %v4467, %v4459
    %v5404 = vpack.c.b16 %v4468, %v4460
    %v5405 = vpack.c.b16 %v4469, %v4461
    %v5406 = vpack.c.b16 %v4478, %v4470
    %v5407 = vpack.c.b16 %v4479, %v4471
    %v5408 = vpack.c.b16 %v4480, %v4472
    %v5409 = vpack.c.b16 %v4481, %v4473
    %v5410 = vpack.c.b16 %v4482, %v4474
    %v5411 = vpack.c.b16 %v4483, %v4475
    %v5412 = vpack.c.b16 %v4484, %v4476
    %v5413 = vpack.c.b16 %v4485, %v4477
    %v5414 = vpack.c.b16 %v4494, %v4486
    %v5415 = vpack.c.b16 %v4495, %v4487
    %v5416 = vpack.c.b16 %v4496, %v4488
    %v5417 = vpack.c.b16 %v4497, %v4489
    %v5418 = vpack.c.b16 %v4498, %v4490
    %v5419 = vpack.c.b16 %v4499, %v4491
    %v5420 = vpack.c.b16 %v4500, %v4492
    %v5421 = vpack.c.b16 %v4501, %v4493
    %v5422 = vpack.c.b16 %v4510, %v4502
    %v5423 = vpack.c.b16 %v4511, %v4503
    %v5424 = vpack.c.b16 %v4512, %v4504
    %v5425 = vpack.c.b16 %v4513, %v4505
    %v5426 = vpack.c.b16 %v4514, %v4506
    %v5427 = vpack.c.b16 %v4515, %v4507
    %v5428 = vpack.c.b16 %v4516, %v4508
    %v5429 = vpack.c.b16 %v4517, %v4509
    %v5430 = vpack.c.b16 %v4526, %v4518
    %v5431 = vpack.c.b16 %v4527, %v4519
    %v5432 = vpack.c.b16 %v4528, %v4520
    %v5433 = vpack.c.b16 %v4529, %v4521
    %v5434 = vpack.c.b16 %v4530, %v4522
    %v5435 = vpack.c.b16 %v4531, %v4523
    %v5436 = vpack.c.b16 %v4532, %v4524
    %v5437 = vpack.c.b16 %v4533, %v4525
    %v5438 = vpack.c.b16 %v4542, %v4534
    %v5439 = vpack.c.b16 %v4543, %v4535
    %v5440 = vpack.c.b16 %v4544, %v4536
    %v5441 = vpack.c.b16 %v4545, %v4537
    %v5442 = vpack.c.b16 %v4546, %v4538
    %v5443 = vpack.c.b16 %v4547, %v4539
    %v5444 = vpack.c.b16 %v4548, %v4540
    %v5445 = vpack.c.b16 %v4549, %v4541
    %v5446 = vpack.c.b16 %v4558, %v4550
    %v5447 = vpack.c.b16 %v4559, %v4551
    %v5448 = vpack.c.b16 %v4560, %v4552
    %v5449 = vpack.c.b16 %v4561, %v4553
    %v5450 = vpack.c.b16 %v4562, %v4554
    %v5451 = vpack.c.b16 %v4563, %v4555
    %v5452 = vpack.c.b16 %v4564, %v4556
    %v5453 = vpack.c.b16 %v4565, %v4557
    %v5454 = vpack.c.b16 %v4574, %v4566
    %v5455 = vpack.c.b16 %v4575, %v4567
    %v5456 = vpack.c.b16 %v4576, %v4568
    %v5457 = vpack.c.b16 %v4577, %v4569
    %v5458 = vpack.c.b16 %v4578, %v4570
    %v5459 = vpack.c.b16 %v4579, %v4571
    %v5460 = vpack.c.b16 %v4580, %v4572
    %v5461 = vpack.c.b16 %v4581, %v4573
    %v5462 = vpack.c.b16 %v4590, %v4582
    %v5463 = vpack.c.b16 %v4591, %v4583
    %v5464 = vpack.c.b16 %v4592, %v4584
    %v5465 = vpack.c.b16 %v4593, %v4585
    %v5466 = vpack.c.b16 %v4594, %v4586
    %v5467 = vpack.c.b16 %v4595, %v4587
    %v5468 = vpack.c.b16 %v4596, %v4588
    %v5469 = vpack.c.b16 %v4597, %v4589
    %v5470 = vpack.c.b16 %v4606, %v4598
    %v5471 = vpack.c.b16 %v4607, %v4599
    %v5472 = vpack.c.b16 %v4608, %v4600
    %v5473 = vpack.c.b16 %v4609, %v4601
    %v5474 = vpack.c.b16 %v4610, %v4602
    %v5475 = vpack.c.b16 %v4611, %v4603
    %v5476 = vpack.c.b16 %v4612, %v4604
    %v5477 = vpack.c.b16 %v4613, %v4605
    %v5478 = vpack.c.b16 %v4622, %v4614
    %v5479 = vpack.c.b16 %v4623, %v4615
    %v5480 = vpack.c.b16 %v4624, %v4616
    %v5481 = vpack.c.b16 %v4625, %v4617
    %v5482 = vpack.c.b16 %v4626, %v4618
    %v5483 = vpack.c.b16 %v4627, %v4619
    %v5484 = vpack.c.b16 %v4628, %v4620
    %v5485 = vpack.c.b16 %v4629, %v4621
    %v5486 = vpack.c.b16 %v4638, %v4630
    %v5487 = vpack.c.b16 %v4639, %v4631
    %v5488 = vpack.c.b16 %v4640, %v4632
    %v5489 = vpack.c.b16 %v4641, %v4633
    %v5490 = vpack.c.b16 %v4642, %v4634
    %v5491 = vpack.c.b16 %v4643, %v4635
    %v5492 = vpack.c.b16 %v4644, %v4636
    %v5493 = vpack.c.b16 %v4645, %v4637
    %v5494 = vpack.c.b16 %v4654, %v4646
    %v5495 = vpack.c.b16 %v4655, %v4647
    %v5496 = vpack.c.b16 %v4656, %v4648
    %v5497 = vpack.c.b16 %v4657, %v4649
    %v5498 = vpack.c.b16 %v4658, %v4650
    %v5499 = vpack.c.b16 %v4659, %v4651
    %v5500 = vpack.c.b16 %v4660, %v4652
    %v5501 = vpack.c.b16 %v4661, %v4653
    %v5502 = vpack.c.b16 %v4670, %v4662
    %v5503 = vpack.c.b16 %v4671, %v4663
    %v5504 = vpack.c.b16 %v4672, %v4664
    %v5505 = vpack.c.b16 %v4673, %v4665
    %v5506 = vpack.c.b16 %v4674, %v4666
    %v5507 = vpack.c.b16 %v4675, %v4667
    %v5508 = vpack.c.b16 %v4676, %v4668
    %v5509 = vpack.c.b16 %v4677, %v4669
    %v5510 = vpack.c.b16 %v4686, %v4678
    %v5511 = vpack.c.b16 %v4687, %v4679
    %v5512 = vpack.c.b16 %v4688, %v4680
    %v5513 = vpack.c.b16 %v4689, %v4681
    %v5514 = vpack.c.b16 %v4690, %v4682
    %v5515 = vpack.c.b16 %v4691, %v4683
    %v5516 = vpack.c.b16 %v4692, %v4684
    %v5517 = vpack.c.b16 %v4693, %v4685
    %v5518 = vpack.c.b16 %v4702, %v4694
    %v5519 = vpack.c.b16 %v4703, %v4695
    %v5520 = vpack.c.b16 %v4704, %v4696
    %v5521 = vpack.c.b16 %v4705, %v4697
    %v5522 = vpack.c.b16 %v4706, %v4698
    %v5523 = vpack.c.b16 %v4707, %v4699
    %v5524 = vpack.c.b16 %v4708, %v4700
    %v5525 = vpack.c.b16 %v4709, %v4701
    %v5526 = vpack.c.b16 %v4718, %v4710
    %v5527 = vpack.c.b16 %v4719, %v4711
    %v5528 = vpack.c.b16 %v4720, %v4712
    %v5529 = vpack.c.b16 %v4721, %v4713
    %v5530 = vpack.c.b16 %v4722, %v4714
    %v5531 = vpack.c.b16 %v4723, %v4715
    %v5532 = vpack.c.b16 %v4724, %v4716
    %v5533 = vpack.c.b16 %v4725, %v4717
    %v5534 = vpack.c.b16 %v4734, %v4726
    %v5535 = vpack.c.b16 %v4735, %v4727
    %v5536 = vpack.c.b16 %v4736, %v4728
    %v5537 = vpack.c.b16 %v4737, %v4729
    %v5538 = vpack.c.b16 %v4738, %v4730
    %v5539 = vpack.c.b16 %v4739, %v4731
    %v5540 = vpack.c.b16 %v4740, %v4732
    %v5541 = vpack.c.b16 %v4741, %v4733
    %v5542 = vpack.c.b16 %v4750, %v4742
    %v5543 = vpack.c.b16 %v4751, %v4743
    %v5544 = vpack.c.b16 %v4752, %v4744
    %v5545 = vpack.c.b16 %v4753, %v4745
    %v5546 = vpack.c.b16 %v4754, %v4746
    %v5547 = vpack.c.b16 %v4755, %v4747
    %v5548 = vpack.c.b16 %v4756, %v4748
    %v5549 = vpack.c.b16 %v4757, %v4749
    %v5550 = vpack.c.b16 %v4766, %v4758
    %v5551 = vpack.c.b16 %v4767, %v4759
    %v5552 = vpack.c.b16 %v4768, %v4760
    %v5553 = vpack.c.b16 %v4769, %v4761
    %v5554 = vpack.c.b16 %v4770, %v4762
    %v5555 = vpack.c.b16 %v4771, %v4763
    %v5556 = vpack.c.b16 %v4772, %v4764
    %v5557 = vpack.c.b16 %v4773, %v4765
    %v5558 = vpack.c.b16 %v4782, %v4774
    %v5559 = vpack.c.b16 %v4783, %v4775
    %v5560 = vpack.c.b16 %v4784, %v4776
    %v5561 = vpack.c.b16 %v4785, %v4777
    %v5562 = vpack.c.b16 %v4786, %v4778
    %v5563 = vpack.c.b16 %v4787, %v4779
    %v5564 = vpack.c.b16 %v4788, %v4780
    %v5565 = vpack.c.b16 %v4789, %v4781
    %v5566 = vpack.c.b16 %v4798, %v4790
    %v5567 = vpack.c.b16 %v4799, %v4791
    %v5568 = vpack.c.b16 %v4800, %v4792
    %v5569 = vpack.c.b16 %v4801, %v4793
    %v5570 = vpack.c.b16 %v4802, %v4794
    %v5571 = vpack.c.b16 %v4803, %v4795
    %v5572 = vpack.c.b16 %v4804, %v4796
    %v5573 = vpack.c.b16 %v4805, %v4797
    %v5574 = vpack.c.b16 %v4814, %v4806
    %v5575 = vpack.c.b16 %v4815, %v4807
    %v5576 = vpack.c.b16 %v4816, %v4808
    %v5577 = vpack.c.b16 %v4817, %v4809
    %v5578 = vpack.c.b16 %v4818, %v4810
    %v5579 = vpack.c.b16 %v4819, %v4811
    %v5580 = vpack.c.b16 %v4820, %v4812
    %v5581 = vpack.c.b16 %v4821, %v4813
    %v5582 = vpack.c.b16 %v4830, %v4822
    %v5583 = vpack.c.b16 %v4831, %v4823
    %v5584 = vpack.c.b16 %v4832, %v4824
    %v5585 = vpack.c.b16 %v4833, %v4825
    %v5586 = vpack.c.b16 %v4834, %v4826
    %v5587 = vpack.c.b16 %v4835, %v4827
    %v5588 = vpack.c.b16 %v4836, %v4828
    %v5589 = vpack.c.b16 %v4837, %v4829
    %v5590 = vpack.c.b16 %v4846, %v4838
    %v5591 = vpack.c.b16 %v4847, %v4839
    %v5592 = vpack.c.b16 %v4848, %v4840
    %v5593 = vpack.c.b16 %v4849, %v4841
    %v5594 = vpack.c.b16 %v4850, %v4842
    %v5595 = vpack.c.b16 %v4851, %v4843
    %v5596 = vpack.c.b16 %v4852, %v4844
    %v5597 = vpack.c.b16 %v4853, %v4845
    %v5598 = vpack.c.b16 %v4862, %v4854
    %v5599 = vpack.c.b16 %v4863, %v4855
    %v5600 = vpack.c.b16 %v4864, %v4856
    %v5601 = vpack.c.b16 %v4865, %v4857
    %v5602 = vpack.c.b16 %v4866, %v4858
    %v5603 = vpack.c.b16 %v4867, %v4859
    %v5604 = vpack.c.b16 %v4868, %v4860
    %v5605 = vpack.c.b16 %v4869, %v4861
    %v5606 = vpack.c.b16 %v4878, %v4870
    %v5607 = vpack.c.b16 %v4879, %v4871
    %v5608 = vpack.c.b16 %v4880, %v4872
    %v5609 = vpack.c.b16 %v4881, %v4873
    %v5610 = vpack.c.b16 %v4882, %v4874
    %v5611 = vpack.c.b16 %v4883, %v4875
    %v5612 = vpack.c.b16 %v4884, %v4876
    %v5613 = vpack.c.b16 %v4885, %v4877
    %v5614 = vpack.c.b16 %v4894, %v4886
    %v5615 = vpack.c.b16 %v4895, %v4887
    %v5616 = vpack.c.b16 %v4896, %v4888
    %v5617 = vpack.c.b16 %v4897, %v4889
    %v5618 = vpack.c.b16 %v4898, %v4890
    %v5619 = vpack.c.b16 %v4899, %v4891
    %v5620 = vpack.c.b16 %v4900, %v4892
    %v5621 = vpack.c.b16 %v4901, %v4893
    %v5622 = vpack.c.b16 %v4910, %v4902
    %v5623 = vpack.c.b16 %v4911, %v4903
    %v5624 = vpack.c.b16 %v4912, %v4904
    %v5625 = vpack.c.b16 %v4913, %v4905
    %v5626 = vpack.c.b16 %v4914, %v4906
    %v5627 = vpack.c.b16 %v4915, %v4907
    %v5628 = vpack.c.b16 %v4916, %v4908
    %v5629 = vpack.c.b16 %v4917, %v4909
    %v5630 = vpack.c.b16 %v4926, %v4918
    %v5631 = vpack.c.b16 %v4927, %v4919
    %v5632 = vpack.c.b16 %v4928, %v4920
    %v5633 = vpack.c.b16 %v4929, %v4921
    %v5634 = vpack.c.b16 %v4930, %v4922
    %v5635 = vpack.c.b16 %v4931, %v4923
    %v5636 = vpack.c.b16 %v4932, %v4924
    %v5637 = vpack.c.b16 %v4933, %v4925
    %v5638 = vpack.c.b16 %v4942, %v4934
    %v5639 = vpack.c.b16 %v4943, %v4935
    %v5640 = vpack.c.b16 %v4944, %v4936
    %v5641 = vpack.c.b16 %v4945, %v4937
    %v5642 = vpack.c.b16 %v4946, %v4938
    %v5643 = vpack.c.b16 %v4947, %v4939
    %v5644 = vpack.c.b16 %v4948, %v4940
    %v5645 = vpack.c.b16 %v4949, %v4941
    %v5646 = vpack.c.b16 %v4958, %v4950
    %v5647 = vpack.c.b16 %v4959, %v4951
    %v5648 = vpack.c.b16 %v4960, %v4952
    %v5649 = vpack.c.b16 %v4961, %v4953
    %v5650 = vpack.c.b16 %v4962, %v4954
    %v5651 = vpack.c.b16 %v4963, %v4955
    %v5652 = vpack.c.b16 %v4964, %v4956
    %v5653 = vpack.c.b16 %v4965, %v4957
    %v5654 = vpack.c.b16 %v4974, %v4966
    %v5655 = vpack.c.b16 %v4975, %v4967
    %v5656 = vpack.c.b16 %v4976, %v4968
    %v5657 = vpack.c.b16 %v4977, %v4969
    %v5658 = vpack.c.b16 %v4978, %v4970
    %v5659 = vpack.c.b16 %v4979, %v4971
    %v5660 = vpack.c.b16 %v4980, %v4972
    %v5661 = vpack.c.b16 %v4981, %v4973
    %v5662 = vpack.c.b16 %v4990, %v4982
    %v5663 = vpack.c.b16 %v4991, %v4983
    %v5664 = vpack.c.b16 %v4992, %v4984
    %v5665 = vpack.c.b16 %v4993, %v4985
    %v5666 = vpack.c.b16 %v4994, %v4986
    %v5667 = vpack.c.b16 %v4995, %v4987
    %v5668 = vpack.c.b16 %v4996, %v4988
    %v5669 = vpack.c.b16 %v4997, %v4989
    %v5670 = vpack.c.b16 %v5006, %v4998
    %v5671 = vpack.c.b16 %v5007, %v4999
    %v5672 = vpack.c.b16 %v5008, %v5000
    %v5673 = vpack.c.b16 %v5009, %v5001
    %v5674 = vpack.c.b16 %v5010, %v5002
    %v5675 = vpack.c.b16 %v5011, %v5003
    %v5676 = vpack.c.b16 %v5012, %v5004
    %v5677 = vpack.c.b16 %v5013, %v5005
    %v5678 = vpack.c.b16 %v5022, %v5014
    %v5679 = vpack.c.b16 %v5023, %v5015
    %v5680 = vpack.c.b16 %v5024, %v5016
    %v5681 = vpack.c.b16 %v5025, %v5017
    %v5682 = vpack.c.b16 %v5026, %v5018
    %v5683 = vpack.c.b16 %v5027, %v5019
    %v5684 = vpack.c.b16 %v5028, %v5020
    %v5685 = vpack.c.b16 %v5029, %v5021
    %v5686 = vpack.c.b16 %v5038, %v5030
    %v5687 = vpack.c.b16 %v5039, %v5031
    %v5688 = vpack.c.b16 %v5040, %v5032
    %v5689 = vpack.c.b16 %v5041, %v5033
    %v5690 = vpack.c.b16 %v5042, %v5034
    %v5691 = vpack.c.b16 %v5043, %v5035
    %v5692 = vpack.c.b16 %v5044, %v5036
    %v5693 = vpack.c.b16 %v5045, %v5037
    %v5694 = vpack.c.b16 %v5054, %v5046
    %v5695 = vpack.c.b16 %v5055, %v5047
    %v5696 = vpack.c.b16 %v5056, %v5048
    %v5697 = vpack.c.b16 %v5057, %v5049
    %v5698 = vpack.c.b16 %v5058, %v5050
    %v5699 = vpack.c.b16 %v5059, %v5051
    %v5700 = vpack.c.b16 %v5060, %v5052
    %v5701 = vpack.c.b16 %v5061, %v5053
    %v5702 = vpack.c.b16 %v5070, %v5062
    %v5703 = vpack.c.b16 %v5071, %v5063
    %v5704 = vpack.c.b16 %v5072, %v5064
    %v5705 = vpack.c.b16 %v5073, %v5065
    %v5706 = vpack.c.b16 %v5074, %v5066
    %v5707 = vpack.c.b16 %v5075, %v5067
    %v5708 = vpack.c.b16 %v5076, %v5068
    %v5709 = vpack.c.b16 %v5077, %v5069
    %v5710 = vpack.c.b16 %v5086, %v5078
    %v5711 = vpack.c.b16 %v5087, %v5079
    %v5712 = vpack.c.b16 %v5088, %v5080
    %v5713 = vpack.c.b16 %v5089, %v5081
    %v5714 = vpack.c.b16 %v5090, %v5082
    %v5715 = vpack.c.b16 %v5091, %v5083
    %v5716 = vpack.c.b16 %v5092, %v5084
    %v5717 = vpack.c.b16 %v5093, %v5085
    %v5718 = vpack.c.b16 %v5102, %v5094
    %v5719 = vpack.c.b16 %v5103, %v5095
    %v5720 = vpack.c.b16 %v5104, %v5096
    %v5721 = vpack.c.b16 %v5105, %v5097
    %v5722 = vpack.c.b16 %v5106, %v5098
    %v5723 = vpack.c.b16 %v5107, %v5099
    %v5724 = vpack.c.b16 %v5108, %v5100
    %v5725 = vpack.c.b16 %v5109, %v5101
    %v5726 = vpack.c.b16 %v5118, %v5110
    %v5727 = vpack.c.b16 %v5119, %v5111
    %v5728 = vpack.c.b16 %v5120, %v5112
    %v5729 = vpack.c.b16 %v5121, %v5113
    %v5730 = vpack.c.b16 %v5122, %v5114
    %v5731 = vpack.c.b16 %v5123, %v5115
    %v5732 = vpack.c.b16 %v5124, %v5116
    %v5733 = vpack.c.b16 %v5125, %v5117
    %v5734 = vpack.c.b16 %v5134, %v5126
    %v5735 = vpack.c.b16 %v5135, %v5127
    %v5736 = vpack.c.b16 %v5136, %v5128
    %v5737 = vpack.c.b16 %v5137, %v5129
    %v5738 = vpack.c.b16 %v5138, %v5130
    %v5739 = vpack.c.b16 %v5139, %v5131
    %v5740 = vpack.c.b16 %v5140, %v5132
    %v5741 = vpack.c.b16 %v5141, %v5133
    %v5742 = vpack.c.b16 %v5150, %v5142
    %v5743 = vpack.c.b16 %v5151, %v5143
    %v5744 = vpack.c.b16 %v5152, %v5144
    %v5745 = vpack.c.b16 %v5153, %v5145
    %v5746 = vpack.c.b16 %v5154, %v5146
    %v5747 = vpack.c.b16 %v5155, %v5147
    %v5748 = vpack.c.b16 %v5156, %v5148
    %v5749 = vpack.c.b16 %v5157, %v5149
    %v5750 = vpack.c.b16 %v5166, %v5158
    %v5751 = vpack.c.b16 %v5167, %v5159
    %v5752 = vpack.c.b16 %v5168, %v5160
    %v5753 = vpack.c.b16 %v5169, %v5161
    %v5754 = vpack.c.b16 %v5170, %v5162
    %v5755 = vpack.c.b16 %v5171, %v5163
    %v5756 = vpack.c.b16 %v5172, %v5164
    %v5757 = vpack.c.b16 %v5173, %v5165
    %v5758 = vpack.c.b16 %v5182, %v5174
    %v5759 = vpack.c.b16 %v5183, %v5175
    %v5760 = vpack.c.b16 %v5184, %v5176
    %v5761 = vpack.c.b16 %v5185, %v5177
    %v5762 = vpack.c.b16 %v5186, %v5178
    %v5763 = vpack.c.b16 %v5187, %v5179
    %v5764 = vpack.c.b16 %v5188, %v5180
    %v5765 = vpack.c.b16 %v5189, %v5181
    %v5766 = vpack.c.b16 %v5198, %v5190
    %v5767 = vpack.c.b16 %v5199, %v5191
    %v5768 = vpack.c.b16 %v5200, %v5192
    %v5769 = vpack.c.b16 %v5201, %v5193
    %v5770 = vpack.c.b16 %v5202, %v5194
    %v5771 = vpack.c.b16 %v5203, %v5195
    %v5772 = vpack.c.b16 %v5204, %v5196
    %v5773 = vpack.c.b16 %v5205, %v5197
    %v5774 = vpack.c.b16 %v5214, %v5206
    %v5775 = vpack.c.b16 %v5215, %v5207
    %v5776 = vpack.c.b16 %v5216, %v5208
    %v5777 = vpack.c.b16 %v5217, %v5209
    %v5778 = vpack.c.b16 %v5218, %v5210
    %v5779 = vpack.c.b16 %v5219, %v5211
    %v5780 = vpack.c.b16 %v5220, %v5212
    %v5781 = vpack.c.b16 %v5221, %v5213
    %v5782 = vpack.c.b16 %v5230, %v5222
    %v5783 = vpack.c.b16 %v5231, %v5223
    %v5784 = vpack.c.b16 %v5232, %v5224
    %v5785 = vpack.c.b16 %v5233, %v5225
    %v5786 = vpack.c.b16 %v5234, %v5226
    %v5787 = vpack.c.b16 %v5235, %v5227
    %v5788 = vpack.c.b16 %v5236, %v5228
    %v5789 = vpack.c.b16 %v5237, %v5229
    %v5790 = vpack.c.b16 %v5246, %v5238
    %v5791 = vpack.c.b16 %v5247, %v5239
    %v5792 = vpack.c.b16 %v5248, %v5240
    %v5793 = vpack.c.b16 %v5249, %v5241
    %v5794 = vpack.c.b16 %v5250, %v5242
    %v5795 = vpack.c.b16 %v5251, %v5243
    %v5796 = vpack.c.b16 %v5252, %v5244
    %v5797 = vpack.c.b16 %v5253, %v5245
    %v5798 = vpack.c.b16 %v5262, %v5254
    %v5799 = vpack.c.b16 %v5263, %v5255
    %v5800 = vpack.c.b16 %v5264, %v5256
    %v5801 = vpack.c.b16 %v5265, %v5257
    %v5802 = vpack.c.b16 %v5266, %v5258
    %v5803 = vpack.c.b16 %v5267, %v5259
    %v5804 = vpack.c.b16 %v5268, %v5260
    %v5805 = vpack.c.b16 %v5269, %v5261
    %v5806 = vpack.c.b16 %v5278, %v5270
    %v5807 = vpack.c.b16 %v5279, %v5271
    %v5808 = vpack.c.b16 %v5280, %v5272
    %v5809 = vpack.c.b16 %v5281, %v5273
    %v5810 = vpack.c.b16 %v5282, %v5274
    %v5811 = vpack.c.b16 %v5283, %v5275
    %v5812 = vpack.c.b16 %v5284, %v5276
    %v5813 = vpack.c.b16 %v5285, %v5277
    %v5814 = vpack.c.b16 %v5294, %v5286
    %v5815 = vpack.c.b16 %v5295, %v5287
    %v5816 = vpack.c.b16 %v5296, %v5288
    %v5817 = vpack.c.b16 %v5297, %v5289
    %v5818 = vpack.c.b16 %v5298, %v5290
    %v5819 = vpack.c.b16 %v5299, %v5291
    %v5820 = vpack.c.b16 %v5300, %v5292
    %v5821 = vpack.c.b16 %v5301, %v5293
    %v5822 = vpack.c.b16 %v5310, %v5302
    %v5823 = vpack.c.b16 %v5311, %v5303
    %v5824 = vpack.c.b16 %v5312, %v5304
    %v5825 = vpack.c.b16 %v5313, %v5305
    %v5826 = vpack.c.b16 %v5314, %v5306
    %v5827 = vpack.c.b16 %v5315, %v5307
    %v5828 = vpack.c.b16 %v5316, %v5308
    %v5829 = vpack.c.b16 %v5317, %v5309
    %6342 = vmatpush.bf16.msra.mxu0 %v5374
    %6343 = vmatpush.bf16.msra.mxu0 %v5366
    %6344 = vmatpush.bf16.msra.mxu0 %v5358
    %6345 = vmatpush.bf16.msra.mxu0 %v5350
    %6346 = vmatpush.bf16.msra.mxu0 %v5342
    %6347 = vmatpush.bf16.msra.mxu0 %v5334
    %6348 = vmatpush.bf16.msra.mxu0 %v5326
    %6349 = vmatpush.bf16.msra.mxu0 %v5318
    %6350 = vmatmul.bf16.gmra.mxu0 %v3233
    %v6351 = vpop.f32.mrf.mxu0
    %v6352 = vadd.f32 %v3774, %v6351
    %v6353 = vpop.f32.mrf.mxu0
    %6354 = vdwg.mxu0
    %6355 = vmatpush.bf16.msra.mxu0 %v5438
    %6356 = vmatpush.bf16.msra.mxu0 %v5430
    %6357 = vmatpush.bf16.msra.mxu0 %v5422
    %6358 = vmatpush.bf16.msra.mxu0 %v5414
    %6359 = vmatpush.bf16.msra.mxu0 %v5406
    %6360 = vmatpush.bf16.msra.mxu0 %v5398
    %6361 = vmatpush.bf16.msra.mxu0 %v5390
    %6362 = vmatpush.bf16.msra.mxu0 %v5382
    %6363 = vmatmul.bf16.gmra.mxu0 %v3234
    %v6364 = vpop.f32.mrf.mxu0
    %v6365 = vadd.f32 %v6352, %v6364
    %v6366 = vpop.f32.mrf.mxu0
    %6367 = vdwg.mxu0
    %6368 = vmatpush.bf16.msra.mxu0 %v5502
    %6369 = vmatpush.bf16.msra.mxu0 %v5494
    %6370 = vmatpush.bf16.msra.mxu0 %v5486
    %6371 = vmatpush.bf16.msra.mxu0 %v5478
    %6372 = vmatpush.bf16.msra.mxu0 %v5470
    %6373 = vmatpush.bf16.msra.mxu0 %v5462
    %6374 = vmatpush.bf16.msra.mxu0 %v5454
    %6375 = vmatpush.bf16.msra.mxu0 %v5446
    %6376 = vmatmul.bf16.gmra.mxu0 %v3235
    %v6377 = vpop.f32.mrf.mxu0
    %v6378 = vadd.f32 %v6365, %v6377
    %v6379 = vpop.f32.mrf.mxu0
    %6380 = vdwg.mxu0
    %6381 = vmatpush.bf16.msra.mxu0 %v5566
    %6382 = vmatpush.bf16.msra.mxu0 %v5558
    %6383 = vmatpush.bf16.msra.mxu0 %v5550
    %6384 = vmatpush.bf16.msra.mxu0 %v5542
    %6385 = vmatpush.bf16.msra.mxu0 %v5534
    %6386 = vmatpush.bf16.msra.mxu0 %v5526
    %6387 = vmatpush.bf16.msra.mxu0 %v5518
    %6388 = vmatpush.bf16.msra.mxu0 %v5510
    %6389 = vmatmul.bf16.gmra.mxu0 %v3236
    %v6390 = vpop.f32.mrf.mxu0
    %v6391 = vadd.f32 %v6378, %v6390
    %v6392 = vpop.f32.mrf.mxu0
    %6393 = vdwg.mxu0
    %6394 = vmatpush.bf16.msra.mxu0 %v5630
    %6395 = vmatpush.bf16.msra.mxu0 %v5622
    %6396 = vmatpush.bf16.msra.mxu0 %v5614
    %6397 = vmatpush.bf16.msra.mxu0 %v5606
    %6398 = vmatpush.bf16.msra.mxu0 %v5598
    %6399 = vmatpush.bf16.msra.mxu0 %v5590
    %6400 = vmatpush.bf16.msra.mxu0 %v5582
    %6401 = vmatpush.bf16.msra.mxu0 %v5574
    %6402 = vmatmul.bf16.gmra.mxu0 %v3237
    %v6403 = vpop.f32.mrf.mxu0
    %v6404 = vadd.f32 %v6391, %v6403
    %v6405 = vpop.f32.mrf.mxu0
    %6406 = vdwg.mxu0
    %6407 = vmatpush.bf16.msra.mxu0 %v5694
    %6408 = vmatpush.bf16.msra.mxu0 %v5686
    %6409 = vmatpush.bf16.msra.mxu0 %v5678
    %6410 = vmatpush.bf16.msra.mxu0 %v5670
    %6411 = vmatpush.bf16.msra.mxu0 %v5662
    %6412 = vmatpush.bf16.msra.mxu0 %v5654
    %6413 = vmatpush.bf16.msra.mxu0 %v5646
    %6414 = vmatpush.bf16.msra.mxu0 %v5638
    %6415 = vmatmul.bf16.gmra.mxu0 %v3238
    %v6416 = vpop.f32.mrf.mxu0
    %v6417 = vadd.f32 %v6404, %v6416
    %v6418 = vpop.f32.mrf.mxu0
    %6419 = vdwg.mxu0
    %6420 = vmatpush.bf16.msra.mxu0 %v5758
    %6421 = vmatpush.bf16.msra.mxu0 %v5750
    %6422 = vmatpush.bf16.msra.mxu0 %v5742
    %6423 = vmatpush.bf16.msra.mxu0 %v5734
    %6424 = vmatpush.bf16.msra.mxu0 %v5726
    %6425 = vmatpush.bf16.msra.mxu0 %v5718
    %6426 = vmatpush.bf16.msra.mxu0 %v5710
    %6427 = vmatpush.bf16.msra.mxu0 %v5702
    %6428 = vmatmul.bf16.gmra.mxu0 %v3239
    %v6429 = vpop.f32.mrf.mxu0
    %v6430 = vadd.f32 %v6417, %v6429
    %v6431 = vpop.f32.mrf.mxu0
    %6432 = vdwg.mxu0
    %6433 = vmatpush.bf16.msra.mxu0 %v5822
    %6434 = vmatpush.bf16.msra.mxu0 %v5814
    %6435 = vmatpush.bf16.msra.mxu0 %v5806
    %6436 = vmatpush.bf16.msra.mxu0 %v5798
    %6437 = vmatpush.bf16.msra.mxu0 %v5790
    %6438 = vmatpush.bf16.msra.mxu0 %v5782
    %6439 = vmatpush.bf16.msra.mxu0 %v5774
    %6440 = vmatpush.bf16.msra.mxu0 %v5766
    %6441 = vmatmul.bf16.gmra.mxu0 %v3240
    %v6442 = vpop.f32.mrf.mxu0
    %v6443 = vadd.f32 %v6430, %v6442
    %v6444 = vpop.f32.mrf.mxu0
    %6445 = vdwg.mxu0
    %6446 = vmatpush.bf16.msra.mxu0 %v5375
    %6447 = vmatpush.bf16.msra.mxu0 %v5367
    %6448 = vmatpush.bf16.msra.mxu0 %v5359
    %6449 = vmatpush.bf16.msra.mxu0 %v5351
    %6450 = vmatpush.bf16.msra.mxu0 %v5343
    %6451 = vmatpush.bf16.msra.mxu0 %v5335
    %6452 = vmatpush.bf16.msra.mxu0 %v5327
    %6453 = vmatpush.bf16.msra.mxu0 %v5319
    %6454 = vmatmul.bf16.gmra.mxu0 %v3233
    %v6455 = vpop.f32.mrf.mxu0
    %v6456 = vadd.f32 %v3775, %v6455
    %v6457 = vpop.f32.mrf.mxu0
    %6458 = vdwg.mxu0
    %6459 = vmatpush.bf16.msra.mxu0 %v5439
    %6460 = vmatpush.bf16.msra.mxu0 %v5431
    %6461 = vmatpush.bf16.msra.mxu0 %v5423
    %6462 = vmatpush.bf16.msra.mxu0 %v5415
    %6463 = vmatpush.bf16.msra.mxu0 %v5407
    %6464 = vmatpush.bf16.msra.mxu0 %v5399
    %6465 = vmatpush.bf16.msra.mxu0 %v5391
    %6466 = vmatpush.bf16.msra.mxu0 %v5383
    %6467 = vmatmul.bf16.gmra.mxu0 %v3234
    %v6468 = vpop.f32.mrf.mxu0
    %v6469 = vadd.f32 %v6456, %v6468
    %v6470 = vpop.f32.mrf.mxu0
    %6471 = vdwg.mxu0
    %6472 = vmatpush.bf16.msra.mxu0 %v5503
    %6473 = vmatpush.bf16.msra.mxu0 %v5495
    %6474 = vmatpush.bf16.msra.mxu0 %v5487
    %6475 = vmatpush.bf16.msra.mxu0 %v5479
    %6476 = vmatpush.bf16.msra.mxu0 %v5471
    %6477 = vmatpush.bf16.msra.mxu0 %v5463
    %6478 = vmatpush.bf16.msra.mxu0 %v5455
    %6479 = vmatpush.bf16.msra.mxu0 %v5447
    %6480 = vmatmul.bf16.gmra.mxu0 %v3235
    %v6481 = vpop.f32.mrf.mxu0
    %v6482 = vadd.f32 %v6469, %v6481
    %v6483 = vpop.f32.mrf.mxu0
    %6484 = vdwg.mxu0
    %6485 = vmatpush.bf16.msra.mxu0 %v5567
    %6486 = vmatpush.bf16.msra.mxu0 %v5559
    %6487 = vmatpush.bf16.msra.mxu0 %v5551
    %6488 = vmatpush.bf16.msra.mxu0 %v5543
    %6489 = vmatpush.bf16.msra.mxu0 %v5535
    %6490 = vmatpush.bf16.msra.mxu0 %v5527
    %6491 = vmatpush.bf16.msra.mxu0 %v5519
    %6492 = vmatpush.bf16.msra.mxu0 %v5511
    %6493 = vmatmul.bf16.gmra.mxu0 %v3236
    %v6494 = vpop.f32.mrf.mxu0
    %v6495 = vadd.f32 %v6482, %v6494
    %v6496 = vpop.f32.mrf.mxu0
    %6497 = vdwg.mxu0
    %6498 = vmatpush.bf16.msra.mxu0 %v5631
    %6499 = vmatpush.bf16.msra.mxu0 %v5623
    %6500 = vmatpush.bf16.msra.mxu0 %v5615
    %6501 = vmatpush.bf16.msra.mxu0 %v5607
    %6502 = vmatpush.bf16.msra.mxu0 %v5599
    %6503 = vmatpush.bf16.msra.mxu0 %v5591
    %6504 = vmatpush.bf16.msra.mxu0 %v5583
    %6505 = vmatpush.bf16.msra.mxu0 %v5575
    %6506 = vmatmul.bf16.gmra.mxu0 %v3237
    %v6507 = vpop.f32.mrf.mxu0
    %v6508 = vadd.f32 %v6495, %v6507
    %v6509 = vpop.f32.mrf.mxu0
    %6510 = vdwg.mxu0
    %6511 = vmatpush.bf16.msra.mxu0 %v5695
    %6512 = vmatpush.bf16.msra.mxu0 %v5687
    %6513 = vmatpush.bf16.msra.mxu0 %v5679
    %6514 = vmatpush.bf16.msra.mxu0 %v5671
    %6515 = vmatpush.bf16.msra.mxu0 %v5663
    %6516 = vmatpush.bf16.msra.mxu0 %v5655
    %6517 = vmatpush.bf16.msra.mxu0 %v5647
    %6518 = vmatpush.bf16.msra.mxu0 %v5639
    %6519 = vmatmul.bf16.gmra.mxu0 %v3238
    %v6520 = vpop.f32.mrf.mxu0
    %v6521 = vadd.f32 %v6508, %v6520
    %v6522 = vpop.f32.mrf.mxu0
    %6523 = vdwg.mxu0
    %6524 = vmatpush.bf16.msra.mxu0 %v5759
    %6525 = vmatpush.bf16.msra.mxu0 %v5751
    %6526 = vmatpush.bf16.msra.mxu0 %v5743
    %6527 = vmatpush.bf16.msra.mxu0 %v5735
    %6528 = vmatpush.bf16.msra.mxu0 %v5727
    %6529 = vmatpush.bf16.msra.mxu0 %v5719
    %6530 = vmatpush.bf16.msra.mxu0 %v5711
    %6531 = vmatpush.bf16.msra.mxu0 %v5703
    %6532 = vmatmul.bf16.gmra.mxu0 %v3239
    %v6533 = vpop.f32.mrf.mxu0
    %v6534 = vadd.f32 %v6521, %v6533
    %v6535 = vpop.f32.mrf.mxu0
    %6536 = vdwg.mxu0
    %6537 = vmatpush.bf16.msra.mxu0 %v5823
    %6538 = vmatpush.bf16.msra.mxu0 %v5815
    %6539 = vmatpush.bf16.msra.mxu0 %v5807
    %6540 = vmatpush.bf16.msra.mxu0 %v5799
    %6541 = vmatpush.bf16.msra.mxu0 %v5791
    %6542 = vmatpush.bf16.msra.mxu0 %v5783
    %6543 = vmatpush.bf16.msra.mxu0 %v5775
    %6544 = vmatpush.bf16.msra.mxu0 %v5767
    %6545 = vmatmul.bf16.gmra.mxu0 %v3240
    %v6546 = vpop.f32.mrf.mxu0
    %v6547 = vadd.f32 %v6534, %v6546
    %v6548 = vpop.f32.mrf.mxu0
    %6549 = vdwg.mxu0
    %6550 = vmatpush.bf16.msra.mxu0 %v5376
    %6551 = vmatpush.bf16.msra.mxu0 %v5368
    %6552 = vmatpush.bf16.msra.mxu0 %v5360
    %6553 = vmatpush.bf16.msra.mxu0 %v5352
    %6554 = vmatpush.bf16.msra.mxu0 %v5344
    %6555 = vmatpush.bf16.msra.mxu0 %v5336
    %6556 = vmatpush.bf16.msra.mxu0 %v5328
    %6557 = vmatpush.bf16.msra.mxu0 %v5320
    %6558 = vmatmul.bf16.gmra.mxu0 %v3233
    %v6559 = vpop.f32.mrf.mxu0
    %v6560 = vadd.f32 %v3776, %v6559
    %v6561 = vpop.f32.mrf.mxu0
    %6562 = vdwg.mxu0
    %6563 = vmatpush.bf16.msra.mxu0 %v5440
    %6564 = vmatpush.bf16.msra.mxu0 %v5432
    %6565 = vmatpush.bf16.msra.mxu0 %v5424
    %6566 = vmatpush.bf16.msra.mxu0 %v5416
    %6567 = vmatpush.bf16.msra.mxu0 %v5408
    %6568 = vmatpush.bf16.msra.mxu0 %v5400
    %6569 = vmatpush.bf16.msra.mxu0 %v5392
    %6570 = vmatpush.bf16.msra.mxu0 %v5384
    %6571 = vmatmul.bf16.gmra.mxu0 %v3234
    %v6572 = vpop.f32.mrf.mxu0
    %v6573 = vadd.f32 %v6560, %v6572
    %v6574 = vpop.f32.mrf.mxu0
    %6575 = vdwg.mxu0
    %6576 = vmatpush.bf16.msra.mxu0 %v5504
    %6577 = vmatpush.bf16.msra.mxu0 %v5496
    %6578 = vmatpush.bf16.msra.mxu0 %v5488
    %6579 = vmatpush.bf16.msra.mxu0 %v5480
    %6580 = vmatpush.bf16.msra.mxu0 %v5472
    %6581 = vmatpush.bf16.msra.mxu0 %v5464
    %6582 = vmatpush.bf16.msra.mxu0 %v5456
    %6583 = vmatpush.bf16.msra.mxu0 %v5448
    %6584 = vmatmul.bf16.gmra.mxu0 %v3235
    %v6585 = vpop.f32.mrf.mxu0
    %v6586 = vadd.f32 %v6573, %v6585
    %v6587 = vpop.f32.mrf.mxu0
    %6588 = vdwg.mxu0
    %6589 = vmatpush.bf16.msra.mxu0 %v5568
    %6590 = vmatpush.bf16.msra.mxu0 %v5560
    %6591 = vmatpush.bf16.msra.mxu0 %v5552
    %6592 = vmatpush.bf16.msra.mxu0 %v5544
    %6593 = vmatpush.bf16.msra.mxu0 %v5536
    %6594 = vmatpush.bf16.msra.mxu0 %v5528
    %6595 = vmatpush.bf16.msra.mxu0 %v5520
    %6596 = vmatpush.bf16.msra.mxu0 %v5512
    %6597 = vmatmul.bf16.gmra.mxu0 %v3236
    %v6598 = vpop.f32.mrf.mxu0
    %v6599 = vadd.f32 %v6586, %v6598
    %v6600 = vpop.f32.mrf.mxu0
    %6601 = vdwg.mxu0
    %6602 = vmatpush.bf16.msra.mxu0 %v5632
    %6603 = vmatpush.bf16.msra.mxu0 %v5624
    %6604 = vmatpush.bf16.msra.mxu0 %v5616
    %6605 = vmatpush.bf16.msra.mxu0 %v5608
    %6606 = vmatpush.bf16.msra.mxu0 %v5600
    %6607 = vmatpush.bf16.msra.mxu0 %v5592
    %6608 = vmatpush.bf16.msra.mxu0 %v5584
    %6609 = vmatpush.bf16.msra.mxu0 %v5576
    %6610 = vmatmul.bf16.gmra.mxu0 %v3237
    %v6611 = vpop.f32.mrf.mxu0
    %v6612 = vadd.f32 %v6599, %v6611
    %v6613 = vpop.f32.mrf.mxu0
    %6614 = vdwg.mxu0
    %6615 = vmatpush.bf16.msra.mxu0 %v5696
    %6616 = vmatpush.bf16.msra.mxu0 %v5688
    %6617 = vmatpush.bf16.msra.mxu0 %v5680
    %6618 = vmatpush.bf16.msra.mxu0 %v5672
    %6619 = vmatpush.bf16.msra.mxu0 %v5664
    %6620 = vmatpush.bf16.msra.mxu0 %v5656
    %6621 = vmatpush.bf16.msra.mxu0 %v5648
    %6622 = vmatpush.bf16.msra.mxu0 %v5640
    %6623 = vmatmul.bf16.gmra.mxu0 %v3238
    %v6624 = vpop.f32.mrf.mxu0
    %v6625 = vadd.f32 %v6612, %v6624
    %v6626 = vpop.f32.mrf.mxu0
    %6627 = vdwg.mxu0
    %6628 = vmatpush.bf16.msra.mxu0 %v5760
    %6629 = vmatpush.bf16.msra.mxu0 %v5752
    %6630 = vmatpush.bf16.msra.mxu0 %v5744
    %6631 = vmatpush.bf16.msra.mxu0 %v5736
    %6632 = vmatpush.bf16.msra.mxu0 %v5728
    %6633 = vmatpush.bf16.msra.mxu0 %v5720
    %6634 = vmatpush.bf16.msra.mxu0 %v5712
    %6635 = vmatpush.bf16.msra.mxu0 %v5704
    %6636 = vmatmul.bf16.gmra.mxu0 %v3239
    %v6637 = vpop.f32.mrf.mxu0
    %v6638 = vadd.f32 %v6625, %v6637
    %v6639 = vpop.f32.mrf.mxu0
    %6640 = vdwg.mxu0
    %6641 = vmatpush.bf16.msra.mxu0 %v5824
    %6642 = vmatpush.bf16.msra.mxu0 %v5816
    %6643 = vmatpush.bf16.msra.mxu0 %v5808
    %6644 = vmatpush.bf16.msra.mxu0 %v5800
    %6645 = vmatpush.bf16.msra.mxu0 %v5792
    %6646 = vmatpush.bf16.msra.mxu0 %v5784
    %6647 = vmatpush.bf16.msra.mxu0 %v5776
    %6648 = vmatpush.bf16.msra.mxu0 %v5768
    %6649 = vmatmul.bf16.gmra.mxu0 %v3240
    %v6650 = vpop.f32.mrf.mxu0
    %v6651 = vadd.f32 %v6638, %v6650
    %v6652 = vpop.f32.mrf.mxu0
    %6653 = vdwg.mxu0
    %6654 = vmatpush.bf16.msra.mxu0 %v5377
    %6655 = vmatpush.bf16.msra.mxu0 %v5369
    %6656 = vmatpush.bf16.msra.mxu0 %v5361
    %6657 = vmatpush.bf16.msra.mxu0 %v5353
    %6658 = vmatpush.bf16.msra.mxu0 %v5345
    %6659 = vmatpush.bf16.msra.mxu0 %v5337
    %6660 = vmatpush.bf16.msra.mxu0 %v5329
    %6661 = vmatpush.bf16.msra.mxu0 %v5321
    %6662 = vmatmul.bf16.gmra.mxu0 %v3233
    %v6663 = vpop.f32.mrf.mxu0
    %v6664 = vadd.f32 %v3777, %v6663
    %v6665 = vpop.f32.mrf.mxu0
    %6666 = vdwg.mxu0
    %6667 = vmatpush.bf16.msra.mxu0 %v5441
    %6668 = vmatpush.bf16.msra.mxu0 %v5433
    %6669 = vmatpush.bf16.msra.mxu0 %v5425
    %6670 = vmatpush.bf16.msra.mxu0 %v5417
    %6671 = vmatpush.bf16.msra.mxu0 %v5409
    %6672 = vmatpush.bf16.msra.mxu0 %v5401
    %6673 = vmatpush.bf16.msra.mxu0 %v5393
    %6674 = vmatpush.bf16.msra.mxu0 %v5385
    %6675 = vmatmul.bf16.gmra.mxu0 %v3234
    %v6676 = vpop.f32.mrf.mxu0
    %v6677 = vadd.f32 %v6664, %v6676
    %v6678 = vpop.f32.mrf.mxu0
    %6679 = vdwg.mxu0
    %6680 = vmatpush.bf16.msra.mxu0 %v5505
    %6681 = vmatpush.bf16.msra.mxu0 %v5497
    %6682 = vmatpush.bf16.msra.mxu0 %v5489
    %6683 = vmatpush.bf16.msra.mxu0 %v5481
    %6684 = vmatpush.bf16.msra.mxu0 %v5473
    %6685 = vmatpush.bf16.msra.mxu0 %v5465
    %6686 = vmatpush.bf16.msra.mxu0 %v5457
    %6687 = vmatpush.bf16.msra.mxu0 %v5449
    %6688 = vmatmul.bf16.gmra.mxu0 %v3235
    %v6689 = vpop.f32.mrf.mxu0
    %v6690 = vadd.f32 %v6677, %v6689
    %v6691 = vpop.f32.mrf.mxu0
    %6692 = vdwg.mxu0
    %6693 = vmatpush.bf16.msra.mxu0 %v5569
    %6694 = vmatpush.bf16.msra.mxu0 %v5561
    %6695 = vmatpush.bf16.msra.mxu0 %v5553
    %6696 = vmatpush.bf16.msra.mxu0 %v5545
    %6697 = vmatpush.bf16.msra.mxu0 %v5537
    %6698 = vmatpush.bf16.msra.mxu0 %v5529
    %6699 = vmatpush.bf16.msra.mxu0 %v5521
    %6700 = vmatpush.bf16.msra.mxu0 %v5513
    %6701 = vmatmul.bf16.gmra.mxu0 %v3236
    %v6702 = vpop.f32.mrf.mxu0
    %v6703 = vadd.f32 %v6690, %v6702
    %v6704 = vpop.f32.mrf.mxu0
    %6705 = vdwg.mxu0
    %6706 = vmatpush.bf16.msra.mxu0 %v5633
    %6707 = vmatpush.bf16.msra.mxu0 %v5625
    %6708 = vmatpush.bf16.msra.mxu0 %v5617
    %6709 = vmatpush.bf16.msra.mxu0 %v5609
    %6710 = vmatpush.bf16.msra.mxu0 %v5601
    %6711 = vmatpush.bf16.msra.mxu0 %v5593
    %6712 = vmatpush.bf16.msra.mxu0 %v5585
    %6713 = vmatpush.bf16.msra.mxu0 %v5577
    %6714 = vmatmul.bf16.gmra.mxu0 %v3237
    %v6715 = vpop.f32.mrf.mxu0
    %v6716 = vadd.f32 %v6703, %v6715
    %v6717 = vpop.f32.mrf.mxu0
    %6718 = vdwg.mxu0
    %6719 = vmatpush.bf16.msra.mxu0 %v5697
    %6720 = vmatpush.bf16.msra.mxu0 %v5689
    %6721 = vmatpush.bf16.msra.mxu0 %v5681
    %6722 = vmatpush.bf16.msra.mxu0 %v5673
    %6723 = vmatpush.bf16.msra.mxu0 %v5665
    %6724 = vmatpush.bf16.msra.mxu0 %v5657
    %6725 = vmatpush.bf16.msra.mxu0 %v5649
    %6726 = vmatpush.bf16.msra.mxu0 %v5641
    %6727 = vmatmul.bf16.gmra.mxu0 %v3238
    %v6728 = vpop.f32.mrf.mxu0
    %v6729 = vadd.f32 %v6716, %v6728
    %v6730 = vpop.f32.mrf.mxu0
    %6731 = vdwg.mxu0
    %6732 = vmatpush.bf16.msra.mxu0 %v5761
    %6733 = vmatpush.bf16.msra.mxu0 %v5753
    %6734 = vmatpush.bf16.msra.mxu0 %v5745
    %6735 = vmatpush.bf16.msra.mxu0 %v5737
    %6736 = vmatpush.bf16.msra.mxu0 %v5729
    %6737 = vmatpush.bf16.msra.mxu0 %v5721
    %6738 = vmatpush.bf16.msra.mxu0 %v5713
    %6739 = vmatpush.bf16.msra.mxu0 %v5705
    %6740 = vmatmul.bf16.gmra.mxu0 %v3239
    %v6741 = vpop.f32.mrf.mxu0
    %v6742 = vadd.f32 %v6729, %v6741
    %v6743 = vpop.f32.mrf.mxu0
    %6744 = vdwg.mxu0
    %6745 = vmatpush.bf16.msra.mxu0 %v5825
    %6746 = vmatpush.bf16.msra.mxu0 %v5817
    %6747 = vmatpush.bf16.msra.mxu0 %v5809
    %6748 = vmatpush.bf16.msra.mxu0 %v5801
    %6749 = vmatpush.bf16.msra.mxu0 %v5793
    %6750 = vmatpush.bf16.msra.mxu0 %v5785
    %6751 = vmatpush.bf16.msra.mxu0 %v5777
    %6752 = vmatpush.bf16.msra.mxu0 %v5769
    %6753 = vmatmul.bf16.gmra.mxu0 %v3240
    %v6754 = vpop.f32.mrf.mxu0
    %v6755 = vadd.f32 %v6742, %v6754
    %v6756 = vpop.f32.mrf.mxu0
    %6757 = vdwg.mxu0
    %6758 = vmatpush.bf16.msra.mxu0 %v5378
    %6759 = vmatpush.bf16.msra.mxu0 %v5370
    %6760 = vmatpush.bf16.msra.mxu0 %v5362
    %6761 = vmatpush.bf16.msra.mxu0 %v5354
    %6762 = vmatpush.bf16.msra.mxu0 %v5346
    %6763 = vmatpush.bf16.msra.mxu0 %v5338
    %6764 = vmatpush.bf16.msra.mxu0 %v5330
    %6765 = vmatpush.bf16.msra.mxu0 %v5322
    %6766 = vmatmul.bf16.gmra.mxu0 %v3233
    %v6767 = vpop.f32.mrf.mxu0
    %v6768 = vadd.f32 %v3778, %v6767
    %v6769 = vpop.f32.mrf.mxu0
    %6770 = vdwg.mxu0
    %6771 = vmatpush.bf16.msra.mxu0 %v5442
    %6772 = vmatpush.bf16.msra.mxu0 %v5434
    %6773 = vmatpush.bf16.msra.mxu0 %v5426
    %6774 = vmatpush.bf16.msra.mxu0 %v5418
    %6775 = vmatpush.bf16.msra.mxu0 %v5410
    %6776 = vmatpush.bf16.msra.mxu0 %v5402
    %6777 = vmatpush.bf16.msra.mxu0 %v5394
    %6778 = vmatpush.bf16.msra.mxu0 %v5386
    %6779 = vmatmul.bf16.gmra.mxu0 %v3234
    %v6780 = vpop.f32.mrf.mxu0
    %v6781 = vadd.f32 %v6768, %v6780
    %v6782 = vpop.f32.mrf.mxu0
    %6783 = vdwg.mxu0
    %6784 = vmatpush.bf16.msra.mxu0 %v5506
    %6785 = vmatpush.bf16.msra.mxu0 %v5498
    %6786 = vmatpush.bf16.msra.mxu0 %v5490
    %6787 = vmatpush.bf16.msra.mxu0 %v5482
    %6788 = vmatpush.bf16.msra.mxu0 %v5474
    %6789 = vmatpush.bf16.msra.mxu0 %v5466
    %6790 = vmatpush.bf16.msra.mxu0 %v5458
    %6791 = vmatpush.bf16.msra.mxu0 %v5450
    %6792 = vmatmul.bf16.gmra.mxu0 %v3235
    %v6793 = vpop.f32.mrf.mxu0
    %v6794 = vadd.f32 %v6781, %v6793
    %v6795 = vpop.f32.mrf.mxu0
    %6796 = vdwg.mxu0
    %6797 = vmatpush.bf16.msra.mxu0 %v5570
    %6798 = vmatpush.bf16.msra.mxu0 %v5562
    %6799 = vmatpush.bf16.msra.mxu0 %v5554
    %6800 = vmatpush.bf16.msra.mxu0 %v5546
    %6801 = vmatpush.bf16.msra.mxu0 %v5538
    %6802 = vmatpush.bf16.msra.mxu0 %v5530
    %6803 = vmatpush.bf16.msra.mxu0 %v5522
    %6804 = vmatpush.bf16.msra.mxu0 %v5514
    %6805 = vmatmul.bf16.gmra.mxu0 %v3236
    %v6806 = vpop.f32.mrf.mxu0
    %v6807 = vadd.f32 %v6794, %v6806
    %v6808 = vpop.f32.mrf.mxu0
    %6809 = vdwg.mxu0
    %6810 = vmatpush.bf16.msra.mxu0 %v5634
    %6811 = vmatpush.bf16.msra.mxu0 %v5626
    %6812 = vmatpush.bf16.msra.mxu0 %v5618
    %6813 = vmatpush.bf16.msra.mxu0 %v5610
    %6814 = vmatpush.bf16.msra.mxu0 %v5602
    %6815 = vmatpush.bf16.msra.mxu0 %v5594
    %6816 = vmatpush.bf16.msra.mxu0 %v5586
    %6817 = vmatpush.bf16.msra.mxu0 %v5578
    %6818 = vmatmul.bf16.gmra.mxu0 %v3237
    %v6819 = vpop.f32.mrf.mxu0
    %v6820 = vadd.f32 %v6807, %v6819
    %v6821 = vpop.f32.mrf.mxu0
    %6822 = vdwg.mxu0
    %6823 = vmatpush.bf16.msra.mxu0 %v5698
    %6824 = vmatpush.bf16.msra.mxu0 %v5690
    %6825 = vmatpush.bf16.msra.mxu0 %v5682
    %6826 = vmatpush.bf16.msra.mxu0 %v5674
    %6827 = vmatpush.bf16.msra.mxu0 %v5666
    %6828 = vmatpush.bf16.msra.mxu0 %v5658
    %6829 = vmatpush.bf16.msra.mxu0 %v5650
    %6830 = vmatpush.bf16.msra.mxu0 %v5642
    %6831 = vmatmul.bf16.gmra.mxu0 %v3238
    %v6832 = vpop.f32.mrf.mxu0
    %v6833 = vadd.f32 %v6820, %v6832
    %v6834 = vpop.f32.mrf.mxu0
    %6835 = vdwg.mxu0
    %6836 = vmatpush.bf16.msra.mxu0 %v5762
    %6837 = vmatpush.bf16.msra.mxu0 %v5754
    %6838 = vmatpush.bf16.msra.mxu0 %v5746
    %6839 = vmatpush.bf16.msra.mxu0 %v5738
    %6840 = vmatpush.bf16.msra.mxu0 %v5730
    %6841 = vmatpush.bf16.msra.mxu0 %v5722
    %6842 = vmatpush.bf16.msra.mxu0 %v5714
    %6843 = vmatpush.bf16.msra.mxu0 %v5706
    %6844 = vmatmul.bf16.gmra.mxu0 %v3239
    %v6845 = vpop.f32.mrf.mxu0
    %v6846 = vadd.f32 %v6833, %v6845
    %v6847 = vpop.f32.mrf.mxu0
    %6848 = vdwg.mxu0
    %6849 = vmatpush.bf16.msra.mxu0 %v5826
    %6850 = vmatpush.bf16.msra.mxu0 %v5818
    %6851 = vmatpush.bf16.msra.mxu0 %v5810
    %6852 = vmatpush.bf16.msra.mxu0 %v5802
    %6853 = vmatpush.bf16.msra.mxu0 %v5794
    %6854 = vmatpush.bf16.msra.mxu0 %v5786
    %6855 = vmatpush.bf16.msra.mxu0 %v5778
    %6856 = vmatpush.bf16.msra.mxu0 %v5770
    %6857 = vmatmul.bf16.gmra.mxu0 %v3240
    %v6858 = vpop.f32.mrf.mxu0
    %v6859 = vadd.f32 %v6846, %v6858
    %v6860 = vpop.f32.mrf.mxu0
    %6861 = vdwg.mxu0
    %6862 = vmatpush.bf16.msra.mxu0 %v5379
    %6863 = vmatpush.bf16.msra.mxu0 %v5371
    %6864 = vmatpush.bf16.msra.mxu0 %v5363
    %6865 = vmatpush.bf16.msra.mxu0 %v5355
    %6866 = vmatpush.bf16.msra.mxu0 %v5347
    %6867 = vmatpush.bf16.msra.mxu0 %v5339
    %6868 = vmatpush.bf16.msra.mxu0 %v5331
    %6869 = vmatpush.bf16.msra.mxu0 %v5323
    %6870 = vmatmul.bf16.gmra.mxu0 %v3233
    %v6871 = vpop.f32.mrf.mxu0
    %v6872 = vadd.f32 %v3779, %v6871
    %v6873 = vpop.f32.mrf.mxu0
    %6874 = vdwg.mxu0
    %6875 = vmatpush.bf16.msra.mxu0 %v5443
    %6876 = vmatpush.bf16.msra.mxu0 %v5435
    %6877 = vmatpush.bf16.msra.mxu0 %v5427
    %6878 = vmatpush.bf16.msra.mxu0 %v5419
    %6879 = vmatpush.bf16.msra.mxu0 %v5411
    %6880 = vmatpush.bf16.msra.mxu0 %v5403
    %6881 = vmatpush.bf16.msra.mxu0 %v5395
    %6882 = vmatpush.bf16.msra.mxu0 %v5387
    %6883 = vmatmul.bf16.gmra.mxu0 %v3234
    %v6884 = vpop.f32.mrf.mxu0
    %v6885 = vadd.f32 %v6872, %v6884
    %v6886 = vpop.f32.mrf.mxu0
    %6887 = vdwg.mxu0
    %6888 = vmatpush.bf16.msra.mxu0 %v5507
    %6889 = vmatpush.bf16.msra.mxu0 %v5499
    %6890 = vmatpush.bf16.msra.mxu0 %v5491
    %6891 = vmatpush.bf16.msra.mxu0 %v5483
    %6892 = vmatpush.bf16.msra.mxu0 %v5475
    %6893 = vmatpush.bf16.msra.mxu0 %v5467
    %6894 = vmatpush.bf16.msra.mxu0 %v5459
    %6895 = vmatpush.bf16.msra.mxu0 %v5451
    %6896 = vmatmul.bf16.gmra.mxu0 %v3235
    %v6897 = vpop.f32.mrf.mxu0
    %v6898 = vadd.f32 %v6885, %v6897
    %v6899 = vpop.f32.mrf.mxu0
    %6900 = vdwg.mxu0
    %6901 = vmatpush.bf16.msra.mxu0 %v5571
    %6902 = vmatpush.bf16.msra.mxu0 %v5563
    %6903 = vmatpush.bf16.msra.mxu0 %v5555
    %6904 = vmatpush.bf16.msra.mxu0 %v5547
    %6905 = vmatpush.bf16.msra.mxu0 %v5539
    %6906 = vmatpush.bf16.msra.mxu0 %v5531
    %6907 = vmatpush.bf16.msra.mxu0 %v5523
    %6908 = vmatpush.bf16.msra.mxu0 %v5515
    %6909 = vmatmul.bf16.gmra.mxu0 %v3236
    %v6910 = vpop.f32.mrf.mxu0
    %v6911 = vadd.f32 %v6898, %v6910
    %v6912 = vpop.f32.mrf.mxu0
    %6913 = vdwg.mxu0
    %6914 = vmatpush.bf16.msra.mxu0 %v5635
    %6915 = vmatpush.bf16.msra.mxu0 %v5627
    %6916 = vmatpush.bf16.msra.mxu0 %v5619
    %6917 = vmatpush.bf16.msra.mxu0 %v5611
    %6918 = vmatpush.bf16.msra.mxu0 %v5603
    %6919 = vmatpush.bf16.msra.mxu0 %v5595
    %6920 = vmatpush.bf16.msra.mxu0 %v5587
    %6921 = vmatpush.bf16.msra.mxu0 %v5579
    %6922 = vmatmul.bf16.gmra.mxu0 %v3237
    %v6923 = vpop.f32.mrf.mxu0
    %v6924 = vadd.f32 %v6911, %v6923
    %v6925 = vpop.f32.mrf.mxu0
    %6926 = vdwg.mxu0
    %6927 = vmatpush.bf16.msra.mxu0 %v5699
    %6928 = vmatpush.bf16.msra.mxu0 %v5691
    %6929 = vmatpush.bf16.msra.mxu0 %v5683
    %6930 = vmatpush.bf16.msra.mxu0 %v5675
    %6931 = vmatpush.bf16.msra.mxu0 %v5667
    %6932 = vmatpush.bf16.msra.mxu0 %v5659
    %6933 = vmatpush.bf16.msra.mxu0 %v5651
    %6934 = vmatpush.bf16.msra.mxu0 %v5643
    %6935 = vmatmul.bf16.gmra.mxu0 %v3238
    %v6936 = vpop.f32.mrf.mxu0
    %v6937 = vadd.f32 %v6924, %v6936
    %v6938 = vpop.f32.mrf.mxu0
    %6939 = vdwg.mxu0
    %6940 = vmatpush.bf16.msra.mxu0 %v5763
    %6941 = vmatpush.bf16.msra.mxu0 %v5755
    %6942 = vmatpush.bf16.msra.mxu0 %v5747
    %6943 = vmatpush.bf16.msra.mxu0 %v5739
    %6944 = vmatpush.bf16.msra.mxu0 %v5731
    %6945 = vmatpush.bf16.msra.mxu0 %v5723
    %6946 = vmatpush.bf16.msra.mxu0 %v5715
    %6947 = vmatpush.bf16.msra.mxu0 %v5707
    %6948 = vmatmul.bf16.gmra.mxu0 %v3239
    %v6949 = vpop.f32.mrf.mxu0
    %v6950 = vadd.f32 %v6937, %v6949
    %v6951 = vpop.f32.mrf.mxu0
    %6952 = vdwg.mxu0
    %6953 = vmatpush.bf16.msra.mxu0 %v5827
    %6954 = vmatpush.bf16.msra.mxu0 %v5819
    %6955 = vmatpush.bf16.msra.mxu0 %v5811
    %6956 = vmatpush.bf16.msra.mxu0 %v5803
    %6957 = vmatpush.bf16.msra.mxu0 %v5795
    %6958 = vmatpush.bf16.msra.mxu0 %v5787
    %6959 = vmatpush.bf16.msra.mxu0 %v5779
    %6960 = vmatpush.bf16.msra.mxu0 %v5771
    %6961 = vmatmul.bf16.gmra.mxu0 %v3240
    %v6962 = vpop.f32.mrf.mxu0
    %v6963 = vadd.f32 %v6950, %v6962
    %v6964 = vpop.f32.mrf.mxu0
    %6965 = vdwg.mxu0
    %6966 = vmatpush.bf16.msra.mxu0 %v5380
    %6967 = vmatpush.bf16.msra.mxu0 %v5372
    %6968 = vmatpush.bf16.msra.mxu0 %v5364
    %6969 = vmatpush.bf16.msra.mxu0 %v5356
    %6970 = vmatpush.bf16.msra.mxu0 %v5348
    %6971 = vmatpush.bf16.msra.mxu0 %v5340
    %6972 = vmatpush.bf16.msra.mxu0 %v5332
    %6973 = vmatpush.bf16.msra.mxu0 %v5324
    %6974 = vmatmul.bf16.gmra.mxu0 %v3233
    %v6975 = vpop.f32.mrf.mxu0
    %v6976 = vadd.f32 %v3780, %v6975
    %v6977 = vpop.f32.mrf.mxu0
    %6978 = vdwg.mxu0
    %6979 = vmatpush.bf16.msra.mxu0 %v5444
    %6980 = vmatpush.bf16.msra.mxu0 %v5436
    %6981 = vmatpush.bf16.msra.mxu0 %v5428
    %6982 = vmatpush.bf16.msra.mxu0 %v5420
    %6983 = vmatpush.bf16.msra.mxu0 %v5412
    %6984 = vmatpush.bf16.msra.mxu0 %v5404
    %6985 = vmatpush.bf16.msra.mxu0 %v5396
    %6986 = vmatpush.bf16.msra.mxu0 %v5388
    %6987 = vmatmul.bf16.gmra.mxu0 %v3234
    %v6988 = vpop.f32.mrf.mxu0
    %v6989 = vadd.f32 %v6976, %v6988
    %v6990 = vpop.f32.mrf.mxu0
    %6991 = vdwg.mxu0
    %6992 = vmatpush.bf16.msra.mxu0 %v5508
    %6993 = vmatpush.bf16.msra.mxu0 %v5500
    %6994 = vmatpush.bf16.msra.mxu0 %v5492
    %6995 = vmatpush.bf16.msra.mxu0 %v5484
    %6996 = vmatpush.bf16.msra.mxu0 %v5476
    %6997 = vmatpush.bf16.msra.mxu0 %v5468
    %6998 = vmatpush.bf16.msra.mxu0 %v5460
    %6999 = vmatpush.bf16.msra.mxu0 %v5452
    %7000 = vmatmul.bf16.gmra.mxu0 %v3235
    %v7001 = vpop.f32.mrf.mxu0
    %v7002 = vadd.f32 %v6989, %v7001
    %v7003 = vpop.f32.mrf.mxu0
    %7004 = vdwg.mxu0
    %7005 = vmatpush.bf16.msra.mxu0 %v5572
    %7006 = vmatpush.bf16.msra.mxu0 %v5564
    %7007 = vmatpush.bf16.msra.mxu0 %v5556
    %7008 = vmatpush.bf16.msra.mxu0 %v5548
    %7009 = vmatpush.bf16.msra.mxu0 %v5540
    %7010 = vmatpush.bf16.msra.mxu0 %v5532
    %7011 = vmatpush.bf16.msra.mxu0 %v5524
    %7012 = vmatpush.bf16.msra.mxu0 %v5516
    %7013 = vmatmul.bf16.gmra.mxu0 %v3236
    %v7014 = vpop.f32.mrf.mxu0
    %v7015 = vadd.f32 %v7002, %v7014
    %v7016 = vpop.f32.mrf.mxu0
    %7017 = vdwg.mxu0
    %7018 = vmatpush.bf16.msra.mxu0 %v5636
    %7019 = vmatpush.bf16.msra.mxu0 %v5628
    %7020 = vmatpush.bf16.msra.mxu0 %v5620
    %7021 = vmatpush.bf16.msra.mxu0 %v5612
    %7022 = vmatpush.bf16.msra.mxu0 %v5604
    %7023 = vmatpush.bf16.msra.mxu0 %v5596
    %7024 = vmatpush.bf16.msra.mxu0 %v5588
    %7025 = vmatpush.bf16.msra.mxu0 %v5580
    %7026 = vmatmul.bf16.gmra.mxu0 %v3237
    %v7027 = vpop.f32.mrf.mxu0
    %v7028 = vadd.f32 %v7015, %v7027
    %v7029 = vpop.f32.mrf.mxu0
    %7030 = vdwg.mxu0
    %7031 = vmatpush.bf16.msra.mxu0 %v5700
    %7032 = vmatpush.bf16.msra.mxu0 %v5692
    %7033 = vmatpush.bf16.msra.mxu0 %v5684
    %7034 = vmatpush.bf16.msra.mxu0 %v5676
    %7035 = vmatpush.bf16.msra.mxu0 %v5668
    %7036 = vmatpush.bf16.msra.mxu0 %v5660
    %7037 = vmatpush.bf16.msra.mxu0 %v5652
    %7038 = vmatpush.bf16.msra.mxu0 %v5644
    %7039 = vmatmul.bf16.gmra.mxu0 %v3238
    %v7040 = vpop.f32.mrf.mxu0
    %v7041 = vadd.f32 %v7028, %v7040
    %v7042 = vpop.f32.mrf.mxu0
    %7043 = vdwg.mxu0
    %7044 = vmatpush.bf16.msra.mxu0 %v5764
    %7045 = vmatpush.bf16.msra.mxu0 %v5756
    %7046 = vmatpush.bf16.msra.mxu0 %v5748
    %7047 = vmatpush.bf16.msra.mxu0 %v5740
    %7048 = vmatpush.bf16.msra.mxu0 %v5732
    %7049 = vmatpush.bf16.msra.mxu0 %v5724
    %7050 = vmatpush.bf16.msra.mxu0 %v5716
    %7051 = vmatpush.bf16.msra.mxu0 %v5708
    %7052 = vmatmul.bf16.gmra.mxu0 %v3239
    %v7053 = vpop.f32.mrf.mxu0
    %v7054 = vadd.f32 %v7041, %v7053
    %v7055 = vpop.f32.mrf.mxu0
    %7056 = vdwg.mxu0
    %7057 = vmatpush.bf16.msra.mxu0 %v5828
    %7058 = vmatpush.bf16.msra.mxu0 %v5820
    %7059 = vmatpush.bf16.msra.mxu0 %v5812
    %7060 = vmatpush.bf16.msra.mxu0 %v5804
    %7061 = vmatpush.bf16.msra.mxu0 %v5796
    %7062 = vmatpush.bf16.msra.mxu0 %v5788
    %7063 = vmatpush.bf16.msra.mxu0 %v5780
    %7064 = vmatpush.bf16.msra.mxu0 %v5772
    %7065 = vmatmul.bf16.gmra.mxu0 %v3240
    %v7066 = vpop.f32.mrf.mxu0
    %v7067 = vadd.f32 %v7054, %v7066
    %v7068 = vpop.f32.mrf.mxu0
    %7069 = vdwg.mxu0
    %7070 = vmatpush.bf16.msra.mxu0 %v5381
    %7071 = vmatpush.bf16.msra.mxu0 %v5373
    %7072 = vmatpush.bf16.msra.mxu0 %v5365
    %7073 = vmatpush.bf16.msra.mxu0 %v5357
    %7074 = vmatpush.bf16.msra.mxu0 %v5349
    %7075 = vmatpush.bf16.msra.mxu0 %v5341
    %7076 = vmatpush.bf16.msra.mxu0 %v5333
    %7077 = vmatpush.bf16.msra.mxu0 %v5325
    %7078 = vmatmul.bf16.gmra.mxu0 %v3233
    %v7079 = vpop.f32.mrf.mxu0
    %v7080 = vadd.f32 %v3781, %v7079
    %v7081 = vpop.f32.mrf.mxu0
    %7082 = vdwg.mxu0
    %7083 = vmatpush.bf16.msra.mxu0 %v5445
    %7084 = vmatpush.bf16.msra.mxu0 %v5437
    %7085 = vmatpush.bf16.msra.mxu0 %v5429
    %7086 = vmatpush.bf16.msra.mxu0 %v5421
    %7087 = vmatpush.bf16.msra.mxu0 %v5413
    %7088 = vmatpush.bf16.msra.mxu0 %v5405
    %7089 = vmatpush.bf16.msra.mxu0 %v5397
    %7090 = vmatpush.bf16.msra.mxu0 %v5389
    %7091 = vmatmul.bf16.gmra.mxu0 %v3234
    %v7092 = vpop.f32.mrf.mxu0
    %v7093 = vadd.f32 %v7080, %v7092
    %v7094 = vpop.f32.mrf.mxu0
    %7095 = vdwg.mxu0
    %7096 = vmatpush.bf16.msra.mxu0 %v5509
    %7097 = vmatpush.bf16.msra.mxu0 %v5501
    %7098 = vmatpush.bf16.msra.mxu0 %v5493
    %7099 = vmatpush.bf16.msra.mxu0 %v5485
    %7100 = vmatpush.bf16.msra.mxu0 %v5477
    %7101 = vmatpush.bf16.msra.mxu0 %v5469
    %7102 = vmatpush.bf16.msra.mxu0 %v5461
    %7103 = vmatpush.bf16.msra.mxu0 %v5453
    %7104 = vmatmul.bf16.gmra.mxu0 %v3235
    %v7105 = vpop.f32.mrf.mxu0
    %v7106 = vadd.f32 %v7093, %v7105
    %v7107 = vpop.f32.mrf.mxu0
    %7108 = vdwg.mxu0
    %7109 = vmatpush.bf16.msra.mxu0 %v5573
    %7110 = vmatpush.bf16.msra.mxu0 %v5565
    %7111 = vmatpush.bf16.msra.mxu0 %v5557
    %7112 = vmatpush.bf16.msra.mxu0 %v5549
    %7113 = vmatpush.bf16.msra.mxu0 %v5541
    %7114 = vmatpush.bf16.msra.mxu0 %v5533
    %7115 = vmatpush.bf16.msra.mxu0 %v5525
    %7116 = vmatpush.bf16.msra.mxu0 %v5517
    %7117 = vmatmul.bf16.gmra.mxu0 %v3236
    %v7118 = vpop.f32.mrf.mxu0
    %v7119 = vadd.f32 %v7106, %v7118
    %v7120 = vpop.f32.mrf.mxu0
    %7121 = vdwg.mxu0
    %7122 = vmatpush.bf16.msra.mxu0 %v5637
    %7123 = vmatpush.bf16.msra.mxu0 %v5629
    %7124 = vmatpush.bf16.msra.mxu0 %v5621
    %7125 = vmatpush.bf16.msra.mxu0 %v5613
    %7126 = vmatpush.bf16.msra.mxu0 %v5605
    %7127 = vmatpush.bf16.msra.mxu0 %v5597
    %7128 = vmatpush.bf16.msra.mxu0 %v5589
    %7129 = vmatpush.bf16.msra.mxu0 %v5581
    %7130 = vmatmul.bf16.gmra.mxu0 %v3237
    %v7131 = vpop.f32.mrf.mxu0
    %v7132 = vadd.f32 %v7119, %v7131
    %v7133 = vpop.f32.mrf.mxu0
    %7134 = vdwg.mxu0
    %7135 = vmatpush.bf16.msra.mxu0 %v5701
    %7136 = vmatpush.bf16.msra.mxu0 %v5693
    %7137 = vmatpush.bf16.msra.mxu0 %v5685
    %7138 = vmatpush.bf16.msra.mxu0 %v5677
    %7139 = vmatpush.bf16.msra.mxu0 %v5669
    %7140 = vmatpush.bf16.msra.mxu0 %v5661
    %7141 = vmatpush.bf16.msra.mxu0 %v5653
    %7142 = vmatpush.bf16.msra.mxu0 %v5645
    %7143 = vmatmul.bf16.gmra.mxu0 %v3238
    %v7144 = vpop.f32.mrf.mxu0
    %v7145 = vadd.f32 %v7132, %v7144
    %v7146 = vpop.f32.mrf.mxu0
    %7147 = vdwg.mxu0
    %7148 = vmatpush.bf16.msra.mxu0 %v5765
    %7149 = vmatpush.bf16.msra.mxu0 %v5757
    %7150 = vmatpush.bf16.msra.mxu0 %v5749
    %7151 = vmatpush.bf16.msra.mxu0 %v5741
    %7152 = vmatpush.bf16.msra.mxu0 %v5733
    %7153 = vmatpush.bf16.msra.mxu0 %v5725
    %7154 = vmatpush.bf16.msra.mxu0 %v5717
    %7155 = vmatpush.bf16.msra.mxu0 %v5709
    %7156 = vmatmul.bf16.gmra.mxu0 %v3239
    %v7157 = vpop.f32.mrf.mxu0
    %v7158 = vadd.f32 %v7145, %v7157
    %v7159 = vpop.f32.mrf.mxu0
    %7160 = vdwg.mxu0
    %7161 = vmatpush.bf16.msra.mxu0 %v5829
    %7162 = vmatpush.bf16.msra.mxu0 %v5821
    %7163 = vmatpush.bf16.msra.mxu0 %v5813
    %7164 = vmatpush.bf16.msra.mxu0 %v5805
    %7165 = vmatpush.bf16.msra.mxu0 %v5797
    %7166 = vmatpush.bf16.msra.mxu0 %v5789
    %7167 = vmatpush.bf16.msra.mxu0 %v5781
    %7168 = vmatpush.bf16.msra.mxu0 %v5773
    %7169 = vmatmul.bf16.gmra.mxu0 %v3240
    %v7170 = vpop.f32.mrf.mxu0
    %v7171 = vadd.f32 %v7158, %v7170
    %v7172 = vpop.f32.mrf.mxu0
    %7173 = vdwg.mxu0
    %v7174 = vmax.f32 %v6443, 0.0
    %v7175 = vmax.f32 %v6547, 0.0
    %v7176 = vmax.f32 %v6651, 0.0
    %v7177 = vmax.f32 %v6755, 0.0
    %v7178 = vmax.f32 %v6859, 0.0
    %v7179 = vmax.f32 %v6963, 0.0
    %v7180 = vmax.f32 %v7067, 0.0
    %v7181 = vmax.f32 %v7171, 0.0
    %v7182 = vpack.c.bf16 %v7174, %v7174
    %v7183 = vpack.c.bf16 %v7175, %v7175
    %v7184 = vpack.c.bf16 %v7176, %v7176
    %v7185 = vpack.c.bf16 %v7177, %v7177
    %v7186 = vpack.c.bf16 %v7178, %v7178
    %v7187 = vpack.c.bf16 %v7179, %v7179
    %v7188 = vpack.c.bf16 %v7180, %v7180
    %v7189 = vpack.c.bf16 %v7181, %v7181
    %v7190 = vld [vmem:[#allocation9] sm:$0xff]
    %v7191 = vld [vmem:[#allocation9 + $0x8] sm:$0xf]
    %v7192 = vld [vmem:[#allocation9 + $0xc] sm:$0xff]
    %v7193 = vld [vmem:[#allocation9 + $0x14] sm:$0xf]
    %v7194 = vld [vmem:[#allocation9 + $0x18] sm:$0xff]
    %v7195 = vld [vmem:[#allocation9 + $0x20] sm:$0xf]
    %v7196 = vld [vmem:[#allocation9 + $0x24] sm:$0xff]
    %v7197 = vld [vmem:[#allocation9 + $0x2c] sm:$0xf]
    %v7198 = vld [vmem:[#allocation9 + $0x30] sm:$0xff]
    %v7199 = vld [vmem:[#allocation9 + $0x38] sm:$0xf]
    %v7200 = vld [vmem:[#allocation9 + $0x3c] sm:$0xff]
    %v7201 = vld [vmem:[#allocation9 + $0x44] sm:$0xf]
    %v7202 = vld [vmem:[#allocation9 + $0x48] sm:$0xff]
    %v7203 = vld [vmem:[#allocation9 + $0x50] sm:$0xf]
    %v7204 = vld [vmem:[#allocation9 + $0x54] sm:$0xff]
    %v7205 = vld [vmem:[#allocation9 + $0x5c] sm:$0xf]
    %v7206 = vld [vmem:[#allocation9 + $0x60] sm:$0xff]
    %v7207 = vld [vmem:[#allocation9 + $0x68] sm:$0xf]
    %v7208 = vld [vmem:[#allocation9 + $0x6c] sm:$0xff]
    %v7209 = vld [vmem:[#allocation9 + $0x74] sm:$0xf]
    %v7210 = vld [vmem:[#allocation9 + $0x78] sm:$0xff]
    %v7211 = vld [vmem:[#allocation9 + $0x80] sm:$0xf]
    %v7212 = vld [vmem:[#allocation9 + $0x84] sm:$0xff]
    %v7213 = vld [vmem:[#allocation9 + $0x8c] sm:$0xf]
    %v7214 = vld [vmem:[#allocation9 + $0x90] sm:$0xff]
    %v7215 = vld [vmem:[#allocation9 + $0x98] sm:$0xf]
    %v7216 = vld [vmem:[#allocation9 + $0x9c] sm:$0xff]
    %v7217 = vld [vmem:[#allocation9 + $0xa4] sm:$0xf]
    %v7218 = vld [vmem:[#allocation9 + $0xa8] sm:$0xff]
    %v7219 = vld [vmem:[#allocation9 + $0xb0] sm:$0xf]
    %v7220 = vld [vmem:[#allocation9 + $0xb4] sm:$0xff]
    %v7221 = vld [vmem:[#allocation9 + $0xbc] sm:$0xf]
    %v7222 = vld [vmem:[#allocation9 + $0xc0] sm:$0xff]
    %v7223 = vld [vmem:[#allocation9 + $0xc8] sm:$0xf]
    %v7224 = vld [vmem:[#allocation9 + $0xcc] sm:$0xff]
    %v7225 = vld [vmem:[#allocation9 + $0xd4] sm:$0xf]
    %v7226 = vld [vmem:[#allocation9 + $0xd8] sm:$0xff]
    %v7227 = vld [vmem:[#allocation9 + $0xe0] sm:$0xf]
    %v7228 = vld [vmem:[#allocation9 + $0xe4] sm:$0xff]
    %v7229 = vld [vmem:[#allocation9 + $0xec] sm:$0xf]
    %v7230 = vld [vmem:[#allocation9 + $0xf0] sm:$0xff]
    %v7231 = vld [vmem:[#allocation9 + $0xf8] sm:$0xf]
    %v7232 = vld [vmem:[#allocation9 + $0xfc] sm:$0xff]
    %v7233 = vld [vmem:[#allocation9 + $0x104] sm:$0xf]
    %v7234 = vld [vmem:[#allocation9 + $0x108] sm:$0xff]
    %v7235 = vld [vmem:[#allocation9 + $0x110] sm:$0xf]
    %v7236 = vld [vmem:[#allocation9 + $0x114] sm:$0xff]
    %v7237 = vld [vmem:[#allocation9 + $0x11c] sm:$0xf]
    %v7238 = vld [vmem:[#allocation9 + $0x120] sm:$0xff]
    %v7239 = vld [vmem:[#allocation9 + $0x128] sm:$0xf]
    %v7240 = vld [vmem:[#allocation9 + $0x12c] sm:$0xff]
    %v7241 = vld [vmem:[#allocation9 + $0x134] sm:$0xf]
    %v7242 = vld [vmem:[#allocation9 + $0x138] sm:$0xff]
    %v7243 = vld [vmem:[#allocation9 + $0x140] sm:$0xf]
    %v7244 = vld [vmem:[#allocation9 + $0x144] sm:$0xff]
    %v7245 = vld [vmem:[#allocation9 + $0x14c] sm:$0xf]
    %v7246 = vld [vmem:[#allocation9 + $0x150] sm:$0xff]
    %v7247 = vld [vmem:[#allocation9 + $0x158] sm:$0xf]
    %v7248 = vld [vmem:[#allocation9 + $0x15c] sm:$0xff]
    %v7249 = vld [vmem:[#allocation9 + $0x164] sm:$0xf]
    %v7250 = vld [vmem:[#allocation9 + $0x168] sm:$0xff]
    %v7251 = vld [vmem:[#allocation9 + $0x170] sm:$0xf]
    %v7252 = vld [vmem:[#allocation9 + $0x174] sm:$0xff]
    %v7253 = vld [vmem:[#allocation9 + $0x17c] sm:$0xf]
    %v7254 = vld [vmem:[#allocation9 + $0x180] sm:$0xff]
    %v7255 = vld [vmem:[#allocation9 + $0x188] sm:$0xf]
    %v7256 = vld [vmem:[#allocation9 + $0x18c] sm:$0xff]
    %v7257 = vld [vmem:[#allocation9 + $0x194] sm:$0xf]
    %v7258 = vld [vmem:[#allocation9 + $0x198] sm:$0xff]
    %v7259 = vld [vmem:[#allocation9 + $0x1a0] sm:$0xf]
    %v7260 = vld [vmem:[#allocation9 + $0x1a4] sm:$0xff]
    %v7261 = vld [vmem:[#allocation9 + $0x1ac] sm:$0xf]
    %v7262 = vld [vmem:[#allocation9 + $0x1b0] sm:$0xff]
    %v7263 = vld [vmem:[#allocation9 + $0x1b8] sm:$0xf]
    %v7264 = vld [vmem:[#allocation9 + $0x1bc] sm:$0xff]
    %v7265 = vld [vmem:[#allocation9 + $0x1c4] sm:$0xf]
    %v7266 = vld [vmem:[#allocation9 + $0x1c8] sm:$0xff]
    %v7267 = vld [vmem:[#allocation9 + $0x1d0] sm:$0xf]
    %v7268 = vld [vmem:[#allocation9 + $0x1d4] sm:$0xff]
    %v7269 = vld [vmem:[#allocation9 + $0x1dc] sm:$0xf]
    %v7270 = vld [vmem:[#allocation9 + $0x1e0] sm:$0xff]
    %v7271 = vld [vmem:[#allocation9 + $0x1e8] sm:$0xf]
    %v7272 = vld [vmem:[#allocation9 + $0x1ec] sm:$0xff]
    %v7273 = vld [vmem:[#allocation9 + $0x1f4] sm:$0xf]
    %v7274 = vld [vmem:[#allocation9 + $0x1f8] sm:$0xff]
    %v7275 = vld [vmem:[#allocation9 + $0x200] sm:$0xf]
    %v7276 = vld [vmem:[#allocation9 + $0x204] sm:$0xff]
    %v7277 = vld [vmem:[#allocation9 + $0x20c] sm:$0xf]
    %v7278 = vld [vmem:[#allocation9 + $0x210] sm:$0xff]
    %v7279 = vld [vmem:[#allocation9 + $0x218] sm:$0xf]
    %v7280 = vld [vmem:[#allocation9 + $0x21c] sm:$0xff]
    %v7281 = vld [vmem:[#allocation9 + $0x224] sm:$0xf]
    %v7282 = vld [vmem:[#allocation9 + $0x228] sm:$0xff]
    %v7283 = vld [vmem:[#allocation9 + $0x230] sm:$0xf]
    %v7284 = vld [vmem:[#allocation9 + $0x234] sm:$0xff]
    %v7285 = vld [vmem:[#allocation9 + $0x23c] sm:$0xf]
    %v7286 = vld [vmem:[#allocation9 + $0x240] sm:$0xff]
    %v7287 = vld [vmem:[#allocation9 + $0x248] sm:$0xf]
    %v7288 = vld [vmem:[#allocation9 + $0x24c] sm:$0xff]
    %v7289 = vld [vmem:[#allocation9 + $0x254] sm:$0xf]
    %v7290 = vld [vmem:[#allocation9 + $0x258] sm:$0xff]
    %v7291 = vld [vmem:[#allocation9 + $0x260] sm:$0xf]
    %v7292 = vld [vmem:[#allocation9 + $0x264] sm:$0xff]
    %v7293 = vld [vmem:[#allocation9 + $0x26c] sm:$0xf]
    %v7294 = vld [vmem:[#allocation9 + $0x270] sm:$0xff]
    %v7295 = vld [vmem:[#allocation9 + $0x278] sm:$0xf]
    %v7296 = vld [vmem:[#allocation9 + $0x27c] sm:$0xff]
    %v7297 = vld [vmem:[#allocation9 + $0x284] sm:$0xf]
    %v7298 = vld [vmem:[#allocation9 + $0x288] sm:$0xff]
    %v7299 = vld [vmem:[#allocation9 + $0x290] sm:$0xf]
    %v7300 = vld [vmem:[#allocation9 + $0x294] sm:$0xff]
    %v7301 = vld [vmem:[#allocation9 + $0x29c] sm:$0xf]
    %v7302 = vld [vmem:[#allocation9 + $0x2a0] sm:$0xff]
    %v7303 = vld [vmem:[#allocation9 + $0x2a8] sm:$0xf]
    %v7304 = vld [vmem:[#allocation9 + $0x2ac] sm:$0xff]
    %v7305 = vld [vmem:[#allocation9 + $0x2b4] sm:$0xf]
    %v7306 = vld [vmem:[#allocation9 + $0x2b8] sm:$0xff]
    %v7307 = vld [vmem:[#allocation9 + $0x2c0] sm:$0xf]
    %v7308 = vld [vmem:[#allocation9 + $0x2c4] sm:$0xff]
    %v7309 = vld [vmem:[#allocation9 + $0x2cc] sm:$0xf]
    %v7310 = vld [vmem:[#allocation9 + $0x2d0] sm:$0xff]
    %v7311 = vld [vmem:[#allocation9 + $0x2d8] sm:$0xf]
    %v7312 = vld [vmem:[#allocation9 + $0x2dc] sm:$0xff]
    %v7313 = vld [vmem:[#allocation9 + $0x2e4] sm:$0xf]
    %v7314 = vld [vmem:[#allocation9 + $0x2e8] sm:$0xff]
    %v7315 = vld [vmem:[#allocation9 + $0x2f0] sm:$0xf]
    %v7316 = vld [vmem:[#allocation9 + $0x2f4] sm:$0xff]
    %v7317 = vld [vmem:[#allocation9 + $0x2fc] sm:$0xf]
    %v7318 = vld [vmem:[#allocation9 + $0x300] sm:$0xff]
    %v7319 = vld [vmem:[#allocation9 + $0x308] sm:$0xf]
    %v7320 = vld [vmem:[#allocation9 + $0x30c] sm:$0xff]
    %v7321 = vld [vmem:[#allocation9 + $0x314] sm:$0xf]
    %v7322 = vld [vmem:[#allocation9 + $0x318] sm:$0xff]
    %v7323 = vld [vmem:[#allocation9 + $0x320] sm:$0xf]
    %v7324 = vld [vmem:[#allocation9 + $0x324] sm:$0xff]
    %v7325 = vld [vmem:[#allocation9 + $0x32c] sm:$0xf]
    %v7326 = vld [vmem:[#allocation9 + $0x330] sm:$0xff]
    %v7327 = vld [vmem:[#allocation9 + $0x338] sm:$0xf]
    %v7328 = vld [vmem:[#allocation9 + $0x33c] sm:$0xff]
    %v7329 = vld [vmem:[#allocation9 + $0x344] sm:$0xf]
    %v7330 = vld [vmem:[#allocation9 + $0x348] sm:$0xff]
    %v7331 = vld [vmem:[#allocation9 + $0x350] sm:$0xf]
    %v7332 = vld [vmem:[#allocation9 + $0x354] sm:$0xff]
    %v7333 = vld [vmem:[#allocation9 + $0x35c] sm:$0xf]
    %v7334 = vld [vmem:[#allocation9 + $0x360] sm:$0xff]
    %v7335 = vld [vmem:[#allocation9 + $0x368] sm:$0xf]
    %v7336 = vld [vmem:[#allocation9 + $0x36c] sm:$0xff]
    %v7337 = vld [vmem:[#allocation9 + $0x374] sm:$0xf]
    %v7338 = vld [vmem:[#allocation9 + $0x378] sm:$0xff]
    %v7339 = vld [vmem:[#allocation9 + $0x380] sm:$0xf]
    %v7340 = vld [vmem:[#allocation9 + $0x384] sm:$0xff]
    %v7341 = vld [vmem:[#allocation9 + $0x38c] sm:$0xf]
    %v7342 = vld [vmem:[#allocation9 + $0x390] sm:$0xff]
    %v7343 = vld [vmem:[#allocation9 + $0x398] sm:$0xf]
    %v7344 = vld [vmem:[#allocation9 + $0x39c] sm:$0xff]
    %v7345 = vld [vmem:[#allocation9 + $0x3a4] sm:$0xf]
    %v7346 = vld [vmem:[#allocation9 + $0x3a8] sm:$0xff]
    %v7347 = vld [vmem:[#allocation9 + $0x3b0] sm:$0xf]
    %v7348 = vld [vmem:[#allocation9 + $0x3b4] sm:$0xff]
    %v7349 = vld [vmem:[#allocation9 + $0x3bc] sm:$0xf]
    %v7350 = vld [vmem:[#allocation9 + $0x3c0] sm:$0xff]
    %v7351 = vld [vmem:[#allocation9 + $0x3c8] sm:$0xf]
    %v7352 = vld [vmem:[#allocation9 + $0x3cc] sm:$0xff]
    %v7353 = vld [vmem:[#allocation9 + $0x3d4] sm:$0xf]
    %v7354 = vld [vmem:[#allocation9 + $0x3d8] sm:$0xff]
    %v7355 = vld [vmem:[#allocation9 + $0x3e0] sm:$0xf]
    %v7356 = vld [vmem:[#allocation9 + $0x3e4] sm:$0xff]
    %v7357 = vld [vmem:[#allocation9 + $0x3ec] sm:$0xf]
    %v7358 = vld [vmem:[#allocation9 + $0x3f0] sm:$0xff]
    %v7359 = vld [vmem:[#allocation9 + $0x3f8] sm:$0xf]
    %v7360 = vld [vmem:[#allocation9 + $0x3fc] sm:$0xff]
    %v7361 = vld [vmem:[#allocation9 + $0x404] sm:$0xf]
    %v7362 = vld [vmem:[#allocation9 + $0x408] sm:$0xff]
    %v7363 = vld [vmem:[#allocation9 + $0x410] sm:$0xf]
    %v7364 = vld [vmem:[#allocation9 + $0x414] sm:$0xff]
    %v7365 = vld [vmem:[#allocation9 + $0x41c] sm:$0xf]
    %v7366 = vld [vmem:[#allocation9 + $0x420] sm:$0xff]
    %v7367 = vld [vmem:[#allocation9 + $0x428] sm:$0xf]
    %v7368 = vld [vmem:[#allocation9 + $0x42c] sm:$0xff]
    %v7369 = vld [vmem:[#allocation9 + $0x434] sm:$0xf]
    %v7370 = vld [vmem:[#allocation9 + $0x438] sm:$0xff]
    %v7371 = vld [vmem:[#allocation9 + $0x440] sm:$0xf]
    %v7372 = vld [vmem:[#allocation9 + $0x444] sm:$0xff]
    %v7373 = vld [vmem:[#allocation9 + $0x44c] sm:$0xf]
    %v7374 = vld [vmem:[#allocation9 + $0x450] sm:$0xff]
    %v7375 = vld [vmem:[#allocation9 + $0x458] sm:$0xf]
    %v7376 = vld [vmem:[#allocation9 + $0x45c] sm:$0xff]
    %v7377 = vld [vmem:[#allocation9 + $0x464] sm:$0xf]
    %v7378 = vld [vmem:[#allocation9 + $0x468] sm:$0xff]
    %v7379 = vld [vmem:[#allocation9 + $0x470] sm:$0xf]
    %v7380 = vld [vmem:[#allocation9 + $0x474] sm:$0xff]
    %v7381 = vld [vmem:[#allocation9 + $0x47c] sm:$0xf]
    %v7382 = vld [vmem:[#allocation9 + $0x480] sm:$0xff]
    %v7383 = vld [vmem:[#allocation9 + $0x488] sm:$0xf]
    %v7384 = vld [vmem:[#allocation9 + $0x48c] sm:$0xff]
    %v7385 = vld [vmem:[#allocation9 + $0x494] sm:$0xf]
    %v7386 = vld [vmem:[#allocation9 + $0x498] sm:$0xff]
    %v7387 = vld [vmem:[#allocation9 + $0x4a0] sm:$0xf]
    %v7388 = vld [vmem:[#allocation9 + $0x4a4] sm:$0xff]
    %v7389 = vld [vmem:[#allocation9 + $0x4ac] sm:$0xf]
    %v7390 = vld [vmem:[#allocation9 + $0x4b0] sm:$0xff]
    %v7391 = vld [vmem:[#allocation9 + $0x4b8] sm:$0xf]
    %v7392 = vld [vmem:[#allocation9 + $0x4bc] sm:$0xff]
    %v7393 = vld [vmem:[#allocation9 + $0x4c4] sm:$0xf]
    %v7394 = vld [vmem:[#allocation9 + $0x4c8] sm:$0xff]
    %v7395 = vld [vmem:[#allocation9 + $0x4d0] sm:$0xf]
    %v7396 = vld [vmem:[#allocation9 + $0x4d4] sm:$0xff]
    %v7397 = vld [vmem:[#allocation9 + $0x4dc] sm:$0xf]
    %v7398 = vld [vmem:[#allocation9 + $0x4e0] sm:$0xff]
    %v7399 = vld [vmem:[#allocation9 + $0x4e8] sm:$0xf]
    %v7400 = vld [vmem:[#allocation9 + $0x4ec] sm:$0xff]
    %v7401 = vld [vmem:[#allocation9 + $0x4f4] sm:$0xf]
    %v7402 = vld [vmem:[#allocation9 + $0x4f8] sm:$0xff]
    %v7403 = vld [vmem:[#allocation9 + $0x500] sm:$0xf]
    %v7404 = vld [vmem:[#allocation9 + $0x504] sm:$0xff]
    %v7405 = vld [vmem:[#allocation9 + $0x50c] sm:$0xf]
    %v7406 = vld [vmem:[#allocation9 + $0x510] sm:$0xff]
    %v7407 = vld [vmem:[#allocation9 + $0x518] sm:$0xf]
    %v7408 = vld [vmem:[#allocation9 + $0x51c] sm:$0xff]
    %v7409 = vld [vmem:[#allocation9 + $0x524] sm:$0xf]
    %v7410 = vld [vmem:[#allocation9 + $0x528] sm:$0xff]
    %v7411 = vld [vmem:[#allocation9 + $0x530] sm:$0xf]
    %v7412 = vld [vmem:[#allocation9 + $0x534] sm:$0xff]
    %v7413 = vld [vmem:[#allocation9 + $0x53c] sm:$0xf]
    %v7414 = vld [vmem:[#allocation9 + $0x540] sm:$0xff]
    %v7415 = vld [vmem:[#allocation9 + $0x548] sm:$0xf]
    %v7416 = vld [vmem:[#allocation9 + $0x54c] sm:$0xff]
    %v7417 = vld [vmem:[#allocation9 + $0x554] sm:$0xf]
    %v7418 = vld [vmem:[#allocation9 + $0x558] sm:$0xff]
    %v7419 = vld [vmem:[#allocation9 + $0x560] sm:$0xf]
    %v7420 = vld [vmem:[#allocation9 + $0x564] sm:$0xff]
    %v7421 = vld [vmem:[#allocation9 + $0x56c] sm:$0xf]
    %v7422 = vld [vmem:[#allocation9 + $0x570] sm:$0xff]
    %v7423 = vld [vmem:[#allocation9 + $0x578] sm:$0xf]
    %v7424 = vld [vmem:[#allocation9 + $0x57c] sm:$0xff]
    %v7425 = vld [vmem:[#allocation9 + $0x584] sm:$0xf]
    %v7426 = vld [vmem:[#allocation9 + $0x588] sm:$0xff]
    %v7427 = vld [vmem:[#allocation9 + $0x590] sm:$0xf]
    %v7428 = vld [vmem:[#allocation9 + $0x594] sm:$0xff]
    %v7429 = vld [vmem:[#allocation9 + $0x59c] sm:$0xf]
    %v7430 = vld [vmem:[#allocation9 + $0x5a0] sm:$0xff]
    %v7431 = vld [vmem:[#allocation9 + $0x5a8] sm:$0xf]
    %v7432 = vld [vmem:[#allocation9 + $0x5ac] sm:$0xff]
    %v7433 = vld [vmem:[#allocation9 + $0x5b4] sm:$0xf]
    %v7434 = vld [vmem:[#allocation9 + $0x5b8] sm:$0xff]
    %v7435 = vld [vmem:[#allocation9 + $0x5c0] sm:$0xf]
    %v7436 = vld [vmem:[#allocation9 + $0x5c4] sm:$0xff]
    %v7437 = vld [vmem:[#allocation9 + $0x5cc] sm:$0xf]
    %v7438 = vld [vmem:[#allocation9 + $0x5d0] sm:$0xff]
    %v7439 = vld [vmem:[#allocation9 + $0x5d8] sm:$0xf]
    %v7440 = vld [vmem:[#allocation9 + $0x5dc] sm:$0xff]
    %v7441 = vld [vmem:[#allocation9 + $0x5e4] sm:$0xf]
    %v7442 = vld [vmem:[#allocation9 + $0x5e8] sm:$0xff]
    %v7443 = vld [vmem:[#allocation9 + $0x5f0] sm:$0xf]
    %v7444 = vld [vmem:[#allocation9 + $0x5f4] sm:$0xff]
    %v7445 = vld [vmem:[#allocation9 + $0x5fc] sm:$0xf]
    %v7446 = vld [vmem:[%s10] sm:$0x7]
    %v7447 = vunpack.c.l.bf16 %v7446
    %v7449 = vperm.slane %v7447, 0
    %v7450 = vperm.slane %v7447, 2
    %v7451 = vperm.slane %v7447, 4
    %v7455 = vperm.slane %v7449, 0
    %v7456 = vperm.slane %v7450, 0
    %v7457 = vperm.slane %v7451, 0
    %v7714 = vunpack.c.l.b16 %v7190
    %v7715 = vunpack.c.h.b16 %v7190
    %v7716 = vunpack.c.l.b16 %v7191
    %v7717 = vunpack.c.l.b16 %v7192
    %v7718 = vunpack.c.h.b16 %v7192
    %v7719 = vunpack.c.l.b16 %v7193
    %v7720 = vunpack.c.l.b16 %v7194
    %v7721 = vunpack.c.h.b16 %v7194
    %v7722 = vunpack.c.l.b16 %v7195
    %v7723 = vunpack.c.l.b16 %v7196
    %v7724 = vunpack.c.h.b16 %v7196
    %v7725 = vunpack.c.l.b16 %v7197
    %v7726 = vunpack.c.l.b16 %v7198
    %v7727 = vunpack.c.h.b16 %v7198
    %v7728 = vunpack.c.l.b16 %v7199
    %v7729 = vunpack.c.l.b16 %v7200
    %v7730 = vunpack.c.h.b16 %v7200
    %v7731 = vunpack.c.l.b16 %v7201
    %v7732 = vunpack.c.l.b16 %v7202
    %v7733 = vunpack.c.h.b16 %v7202
    %v7734 = vunpack.c.l.b16 %v7203
    %v7735 = vunpack.c.l.b16 %v7204
    %v7736 = vunpack.c.h.b16 %v7204
    %v7737 = vunpack.c.l.b16 %v7205
    %v7738 = vunpack.c.l.b16 %v7206
    %v7739 = vunpack.c.h.b16 %v7206
    %v7740 = vunpack.c.l.b16 %v7207
    %v7741 = vunpack.c.l.b16 %v7208
    %v7742 = vunpack.c.h.b16 %v7208
    %v7743 = vunpack.c.l.b16 %v7209
    %v7744 = vunpack.c.l.b16 %v7210
    %v7745 = vunpack.c.h.b16 %v7210
    %v7746 = vunpack.c.l.b16 %v7211
    %v7747 = vunpack.c.l.b16 %v7212
    %v7748 = vunpack.c.h.b16 %v7212
    %v7749 = vunpack.c.l.b16 %v7213
    %v7750 = vunpack.c.l.b16 %v7214
    %v7751 = vunpack.c.h.b16 %v7214
    %v7752 = vunpack.c.l.b16 %v7215
    %v7753 = vunpack.c.l.b16 %v7216
    %v7754 = vunpack.c.h.b16 %v7216
    %v7755 = vunpack.c.l.b16 %v7217
    %v7756 = vunpack.c.l.b16 %v7218
    %v7757 = vunpack.c.h.b16 %v7218
    %v7758 = vunpack.c.l.b16 %v7219
    %v7759 = vunpack.c.l.b16 %v7220
    %v7760 = vunpack.c.h.b16 %v7220
    %v7761 = vunpack.c.l.b16 %v7221
    %v7762 = vunpack.c.l.b16 %v7222
    %v7763 = vunpack.c.h.b16 %v7222
    %v7764 = vunpack.c.l.b16 %v7223
    %v7765 = vunpack.c.l.b16 %v7224
    %v7766 = vunpack.c.h.b16 %v7224
    %v7767 = vunpack.c.l.b16 %v7225
    %v7768 = vunpack.c.l.b16 %v7226
    %v7769 = vunpack.c.h.b16 %v7226
    %v7770 = vunpack.c.l.b16 %v7227
    %v7771 = vunpack.c.l.b16 %v7228
    %v7772 = vunpack.c.h.b16 %v7228
    %v7773 = vunpack.c.l.b16 %v7229
    %v7774 = vunpack.c.l.b16 %v7230
    %v7775 = vunpack.c.h.b16 %v7230
    %v7776 = vunpack.c.l.b16 %v7231
    %v7777 = vunpack.c.l.b16 %v7232
    %v7778 = vunpack.c.h.b16 %v7232
    %v7779 = vunpack.c.l.b16 %v7233
    %v7780 = vunpack.c.l.b16 %v7234
    %v7781 = vunpack.c.h.b16 %v7234
    %v7782 = vunpack.c.l.b16 %v7235
    %v7783 = vunpack.c.l.b16 %v7236
    %v7784 = vunpack.c.h.b16 %v7236
    %v7785 = vunpack.c.l.b16 %v7237
    %v7786 = vunpack.c.l.b16 %v7238
    %v7787 = vunpack.c.h.b16 %v7238
    %v7788 = vunpack.c.l.b16 %v7239
    %v7789 = vunpack.c.l.b16 %v7240
    %v7790 = vunpack.c.h.b16 %v7240
    %v7791 = vunpack.c.l.b16 %v7241
    %v7792 = vunpack.c.l.b16 %v7242
    %v7793 = vunpack.c.h.b16 %v7242
    %v7794 = vunpack.c.l.b16 %v7243
    %v7795 = vunpack.c.l.b16 %v7244
    %v7796 = vunpack.c.h.b16 %v7244
    %v7797 = vunpack.c.l.b16 %v7245
    %v7798 = vunpack.c.l.b16 %v7246
    %v7799 = vunpack.c.h.b16 %v7246
    %v7800 = vunpack.c.l.b16 %v7247
    %v7801 = vunpack.c.l.b16 %v7248
    %v7802 = vunpack.c.h.b16 %v7248
    %v7803 = vunpack.c.l.b16 %v7249
    %v7804 = vunpack.c.l.b16 %v7250
    %v7805 = vunpack.c.h.b16 %v7250
    %v7806 = vunpack.c.l.b16 %v7251
    %v7807 = vunpack.c.l.b16 %v7252
    %v7808 = vunpack.c.h.b16 %v7252
    %v7809 = vunpack.c.l.b16 %v7253
    %v7810 = vunpack.c.l.b16 %v7254
    %v7811 = vunpack.c.h.b16 %v7254
    %v7812 = vunpack.c.l.b16 %v7255
    %v7813 = vunpack.c.l.b16 %v7256
    %v7814 = vunpack.c.h.b16 %v7256
    %v7815 = vunpack.c.l.b16 %v7257
    %v7816 = vunpack.c.l.b16 %v7258
    %v7817 = vunpack.c.h.b16 %v7258
    %v7818 = vunpack.c.l.b16 %v7259
    %v7819 = vunpack.c.l.b16 %v7260
    %v7820 = vunpack.c.h.b16 %v7260
    %v7821 = vunpack.c.l.b16 %v7261
    %v7822 = vunpack.c.l.b16 %v7262
    %v7823 = vunpack.c.h.b16 %v7262
    %v7824 = vunpack.c.l.b16 %v7263
    %v7825 = vunpack.c.l.b16 %v7264
    %v7826 = vunpack.c.h.b16 %v7264
    %v7827 = vunpack.c.l.b16 %v7265
    %v7828 = vunpack.c.l.b16 %v7266
    %v7829 = vunpack.c.h.b16 %v7266
    %v7830 = vunpack.c.l.b16 %v7267
    %v7831 = vunpack.c.l.b16 %v7268
    %v7832 = vunpack.c.h.b16 %v7268
    %v7833 = vunpack.c.l.b16 %v7269
    %v7834 = vunpack.c.l.b16 %v7270
    %v7835 = vunpack.c.h.b16 %v7270
    %v7836 = vunpack.c.l.b16 %v7271
    %v7837 = vunpack.c.l.b16 %v7272
    %v7838 = vunpack.c.h.b16 %v7272
    %v7839 = vunpack.c.l.b16 %v7273
    %v7840 = vunpack.c.l.b16 %v7274
    %v7841 = vunpack.c.h.b16 %v7274
    %v7842 = vunpack.c.l.b16 %v7275
    %v7843 = vunpack.c.l.b16 %v7276
    %v7844 = vunpack.c.h.b16 %v7276
    %v7845 = vunpack.c.l.b16 %v7277
    %v7846 = vunpack.c.l.b16 %v7278
    %v7847 = vunpack.c.h.b16 %v7278
    %v7848 = vunpack.c.l.b16 %v7279
    %v7849 = vunpack.c.l.b16 %v7280
    %v7850 = vunpack.c.h.b16 %v7280
    %v7851 = vunpack.c.l.b16 %v7281
    %v7852 = vunpack.c.l.b16 %v7282
    %v7853 = vunpack.c.h.b16 %v7282
    %v7854 = vunpack.c.l.b16 %v7283
    %v7855 = vunpack.c.l.b16 %v7284
    %v7856 = vunpack.c.h.b16 %v7284
    %v7857 = vunpack.c.l.b16 %v7285
    %v7858 = vunpack.c.l.b16 %v7286
    %v7859 = vunpack.c.h.b16 %v7286
    %v7860 = vunpack.c.l.b16 %v7287
    %v7861 = vunpack.c.l.b16 %v7288
    %v7862 = vunpack.c.h.b16 %v7288
    %v7863 = vunpack.c.l.b16 %v7289
    %v7864 = vunpack.c.l.b16 %v7290
    %v7865 = vunpack.c.h.b16 %v7290
    %v7866 = vunpack.c.l.b16 %v7291
    %v7867 = vunpack.c.l.b16 %v7292
    %v7868 = vunpack.c.h.b16 %v7292
    %v7869 = vunpack.c.l.b16 %v7293
    %v7870 = vunpack.c.l.b16 %v7294
    %v7871 = vunpack.c.h.b16 %v7294
    %v7872 = vunpack.c.l.b16 %v7295
    %v7873 = vunpack.c.l.b16 %v7296
    %v7874 = vunpack.c.h.b16 %v7296
    %v7875 = vunpack.c.l.b16 %v7297
    %v7876 = vunpack.c.l.b16 %v7298
    %v7877 = vunpack.c.h.b16 %v7298
    %v7878 = vunpack.c.l.b16 %v7299
    %v7879 = vunpack.c.l.b16 %v7300
    %v7880 = vunpack.c.h.b16 %v7300
    %v7881 = vunpack.c.l.b16 %v7301
    %v7882 = vunpack.c.l.b16 %v7302
    %v7883 = vunpack.c.h.b16 %v7302
    %v7884 = vunpack.c.l.b16 %v7303
    %v7885 = vunpack.c.l.b16 %v7304
    %v7886 = vunpack.c.h.b16 %v7304
    %v7887 = vunpack.c.l.b16 %v7305
    %v7888 = vunpack.c.l.b16 %v7306
    %v7889 = vunpack.c.h.b16 %v7306
    %v7890 = vunpack.c.l.b16 %v7307
    %v7891 = vunpack.c.l.b16 %v7308
    %v7892 = vunpack.c.h.b16 %v7308
    %v7893 = vunpack.c.l.b16 %v7309
    %v7894 = vunpack.c.l.b16 %v7310
    %v7895 = vunpack.c.h.b16 %v7310
    %v7896 = vunpack.c.l.b16 %v7311
    %v7897 = vunpack.c.l.b16 %v7312
    %v7898 = vunpack.c.h.b16 %v7312
    %v7899 = vunpack.c.l.b16 %v7313
    %v7900 = vunpack.c.l.b16 %v7314
    %v7901 = vunpack.c.h.b16 %v7314
    %v7902 = vunpack.c.l.b16 %v7315
    %v7903 = vunpack.c.l.b16 %v7316
    %v7904 = vunpack.c.h.b16 %v7316
    %v7905 = vunpack.c.l.b16 %v7317
    %v7906 = vunpack.c.l.b16 %v7318
    %v7907 = vunpack.c.h.b16 %v7318
    %v7908 = vunpack.c.l.b16 %v7319
    %v7909 = vunpack.c.l.b16 %v7320
    %v7910 = vunpack.c.h.b16 %v7320
    %v7911 = vunpack.c.l.b16 %v7321
    %v7912 = vunpack.c.l.b16 %v7322
    %v7913 = vunpack.c.h.b16 %v7322
    %v7914 = vunpack.c.l.b16 %v7323
    %v7915 = vunpack.c.l.b16 %v7324
    %v7916 = vunpack.c.h.b16 %v7324
    %v7917 = vunpack.c.l.b16 %v7325
    %v7918 = vunpack.c.l.b16 %v7326
    %v7919 = vunpack.c.h.b16 %v7326
    %v7920 = vunpack.c.l.b16 %v7327
    %v7921 = vunpack.c.l.b16 %v7328
    %v7922 = vunpack.c.h.b16 %v7328
    %v7923 = vunpack.c.l.b16 %v7329
    %v7924 = vunpack.c.l.b16 %v7330
    %v7925 = vunpack.c.h.b16 %v7330
    %v7926 = vunpack.c.l.b16 %v7331
    %v7927 = vunpack.c.l.b16 %v7332
    %v7928 = vunpack.c.h.b16 %v7332
    %v7929 = vunpack.c.l.b16 %v7333
    %v7930 = vunpack.c.l.b16 %v7334
    %v7931 = vunpack.c.h.b16 %v7334
    %v7932 = vunpack.c.l.b16 %v7335
    %v7933 = vunpack.c.l.b16 %v7336
    %v7934 = vunpack.c.h.b16 %v7336
    %v7935 = vunpack.c.l.b16 %v7337
    %v7936 = vunpack.c.l.b16 %v7338
    %v7937 = vunpack.c.h.b16 %v7338
    %v7938 = vunpack.c.l.b16 %v7339
    %v7939 = vunpack.c.l.b16 %v7340
    %v7940 = vunpack.c.h.b16 %v7340
    %v7941 = vunpack.c.l.b16 %v7341
    %v7942 = vunpack.c.l.b16 %v7342
    %v7943 = vunpack.c.h.b16 %v7342
    %v7944 = vunpack.c.l.b16 %v7343
    %v7945 = vunpack.c.l.b16 %v7344
    %v7946 = vunpack.c.h.b16 %v7344
    %v7947 = vunpack.c.l.b16 %v7345
    %v7948 = vunpack.c.l.b16 %v7346
    %v7949 = vunpack.c.h.b16 %v7346
    %v7950 = vunpack.c.l.b16 %v7347
    %v7951 = vunpack.c.l.b16 %v7348
    %v7952 = vunpack.c.h.b16 %v7348
    %v7953 = vunpack.c.l.b16 %v7349
    %v7954 = vunpack.c.l.b16 %v7350
    %v7955 = vunpack.c.h.b16 %v7350
    %v7956 = vunpack.c.l.b16 %v7351
    %v7957 = vunpack.c.l.b16 %v7352
    %v7958 = vunpack.c.h.b16 %v7352
    %v7959 = vunpack.c.l.b16 %v7353
    %v7960 = vunpack.c.l.b16 %v7354
    %v7961 = vunpack.c.h.b16 %v7354
    %v7962 = vunpack.c.l.b16 %v7355
    %v7963 = vunpack.c.l.b16 %v7356
    %v7964 = vunpack.c.h.b16 %v7356
    %v7965 = vunpack.c.l.b16 %v7357
    %v7966 = vunpack.c.l.b16 %v7358
    %v7967 = vunpack.c.h.b16 %v7358
    %v7968 = vunpack.c.l.b16 %v7359
    %v7969 = vunpack.c.l.b16 %v7360
    %v7970 = vunpack.c.h.b16 %v7360
    %v7971 = vunpack.c.l.b16 %v7361
    %v7972 = vunpack.c.l.b16 %v7362
    %v7973 = vunpack.c.h.b16 %v7362
    %v7974 = vunpack.c.l.b16 %v7363
    %v7975 = vunpack.c.l.b16 %v7364
    %v7976 = vunpack.c.h.b16 %v7364
    %v7977 = vunpack.c.l.b16 %v7365
    %v7978 = vunpack.c.l.b16 %v7366
    %v7979 = vunpack.c.h.b16 %v7366
    %v7980 = vunpack.c.l.b16 %v7367
    %v7981 = vunpack.c.l.b16 %v7368
    %v7982 = vunpack.c.h.b16 %v7368
    %v7983 = vunpack.c.l.b16 %v7369
    %v7984 = vunpack.c.l.b16 %v7370
    %v7985 = vunpack.c.h.b16 %v7370
    %v7986 = vunpack.c.l.b16 %v7371
    %v7987 = vunpack.c.l.b16 %v7372
    %v7988 = vunpack.c.h.b16 %v7372
    %v7989 = vunpack.c.l.b16 %v7373
    %v7990 = vunpack.c.l.b16 %v7374
    %v7991 = vunpack.c.h.b16 %v7374
    %v7992 = vunpack.c.l.b16 %v7375
    %v7993 = vunpack.c.l.b16 %v7376
    %v7994 = vunpack.c.h.b16 %v7376
    %v7995 = vunpack.c.l.b16 %v7377
    %v7996 = vunpack.c.l.b16 %v7378
    %v7997 = vunpack.c.h.b16 %v7378
    %v7998 = vunpack.c.l.b16 %v7379
    %v7999 = vunpack.c.l.b16 %v7380
    %v8000 = vunpack.c.h.b16 %v7380
    %v8001 = vunpack.c.l.b16 %v7381
    %v8002 = vunpack.c.l.b16 %v7382
    %v8003 = vunpack.c.h.b16 %v7382
    %v8004 = vunpack.c.l.b16 %v7383
    %v8005 = vunpack.c.l.b16 %v7384
    %v8006 = vunpack.c.h.b16 %v7384
    %v8007 = vunpack.c.l.b16 %v7385
    %v8008 = vunpack.c.l.b16 %v7386
    %v8009 = vunpack.c.h.b16 %v7386
    %v8010 = vunpack.c.l.b16 %v7387
    %v8011 = vunpack.c.l.b16 %v7388
    %v8012 = vunpack.c.h.b16 %v7388
    %v8013 = vunpack.c.l.b16 %v7389
    %v8014 = vunpack.c.l.b16 %v7390
    %v8015 = vunpack.c.h.b16 %v7390
    %v8016 = vunpack.c.l.b16 %v7391
    %v8017 = vunpack.c.l.b16 %v7392
    %v8018 = vunpack.c.h.b16 %v7392
    %v8019 = vunpack.c.l.b16 %v7393
    %v8020 = vunpack.c.l.b16 %v7394
    %v8021 = vunpack.c.h.b16 %v7394
    %v8022 = vunpack.c.l.b16 %v7395
    %v8023 = vunpack.c.l.b16 %v7396
    %v8024 = vunpack.c.h.b16 %v7396
    %v8025 = vunpack.c.l.b16 %v7397
    %v8026 = vunpack.c.l.b16 %v7398
    %v8027 = vunpack.c.h.b16 %v7398
    %v8028 = vunpack.c.l.b16 %v7399
    %v8029 = vunpack.c.l.b16 %v7400
    %v8030 = vunpack.c.h.b16 %v7400
    %v8031 = vunpack.c.l.b16 %v7401
    %v8032 = vunpack.c.l.b16 %v7402
    %v8033 = vunpack.c.h.b16 %v7402
    %v8034 = vunpack.c.l.b16 %v7403
    %v8035 = vunpack.c.l.b16 %v7404
    %v8036 = vunpack.c.h.b16 %v7404
    %v8037 = vunpack.c.l.b16 %v7405
    %v8038 = vunpack.c.l.b16 %v7406
    %v8039 = vunpack.c.h.b16 %v7406
    %v8040 = vunpack.c.l.b16 %v7407
    %v8041 = vunpack.c.l.b16 %v7408
    %v8042 = vunpack.c.h.b16 %v7408
    %v8043 = vunpack.c.l.b16 %v7409
    %v8044 = vunpack.c.l.b16 %v7410
    %v8045 = vunpack.c.h.b16 %v7410
    %v8046 = vunpack.c.l.b16 %v7411
    %v8047 = vunpack.c.l.b16 %v7412
    %v8048 = vunpack.c.h.b16 %v7412
    %v8049 = vunpack.c.l.b16 %v7413
    %v8050 = vunpack.c.l.b16 %v7414
    %v8051 = vunpack.c.h.b16 %v7414
    %v8052 = vunpack.c.l.b16 %v7415
    %v8053 = vunpack.c.l.b16 %v7416
    %v8054 = vunpack.c.h.b16 %v7416
    %v8055 = vunpack.c.l.b16 %v7417
    %v8056 = vunpack.c.l.b16 %v7418
    %v8057 = vunpack.c.h.b16 %v7418
    %v8058 = vunpack.c.l.b16 %v7419
    %v8059 = vunpack.c.l.b16 %v7420
    %v8060 = vunpack.c.h.b16 %v7420
    %v8061 = vunpack.c.l.b16 %v7421
    %v8062 = vunpack.c.l.b16 %v7422
    %v8063 = vunpack.c.h.b16 %v7422
    %v8064 = vunpack.c.l.b16 %v7423
    %v8065 = vunpack.c.l.b16 %v7424
    %v8066 = vunpack.c.h.b16 %v7424
    %v8067 = vunpack.c.l.b16 %v7425
    %v8068 = vunpack.c.l.b16 %v7426
    %v8069 = vunpack.c.h.b16 %v7426
    %v8070 = vunpack.c.l.b16 %v7427
    %v8071 = vunpack.c.l.b16 %v7428
    %v8072 = vunpack.c.h.b16 %v7428
    %v8073 = vunpack.c.l.b16 %v7429
    %v8074 = vunpack.c.l.b16 %v7430
    %v8075 = vunpack.c.h.b16 %v7430
    %v8076 = vunpack.c.l.b16 %v7431
    %v8077 = vunpack.c.l.b16 %v7432
    %v8078 = vunpack.c.h.b16 %v7432
    %v8079 = vunpack.c.l.b16 %v7433
    %v8080 = vunpack.c.l.b16 %v7434
    %v8081 = vunpack.c.h.b16 %v7434
    %v8082 = vunpack.c.l.b16 %v7435
    %v8083 = vunpack.c.l.b16 %v7436
    %v8084 = vunpack.c.h.b16 %v7436
    %v8085 = vunpack.c.l.b16 %v7437
    %v8086 = vunpack.c.l.b16 %v7438
    %v8087 = vunpack.c.h.b16 %v7438
    %v8088 = vunpack.c.l.b16 %v7439
    %v8089 = vunpack.c.l.b16 %v7440
    %v8090 = vunpack.c.h.b16 %v7440
    %v8091 = vunpack.c.l.b16 %v7441
    %v8092 = vunpack.c.l.b16 %v7442
    %v8093 = vunpack.c.h.b16 %v7442
    %v8094 = vunpack.c.l.b16 %v7443
    %v8095 = vunpack.c.l.b16 %v7444
    %v8096 = vunpack.c.h.b16 %v7444
    %v8097 = vunpack.c.l.b16 %v7445
    %v8098 = vpack.c.b16 %v7717, %v7714
    %v8099 = vpack.c.b16 %v7718, %v7715
    %v8100 = vpack.c.b16 %v7719, %v7716
    %v8101 = vpack.c.b16 %v7723, %v7720
    %v8102 = vpack.c.b16 %v7724, %v7721
    %v8103 = vpack.c.b16 %v7725, %v7722
    %v8104 = vpack.c.b16 %v7729, %v7726
    %v8105 = vpack.c.b16 %v7730, %v7727
    %v8106 = vpack.c.b16 %v7731, %v7728
    %v8107 = vpack.c.b16 %v7735, %v7732
    %v8108 = vpack.c.b16 %v7736, %v7733
    %v8109 = vpack.c.b16 %v7737, %v7734
    %v8110 = vpack.c.b16 %v7741, %v7738
    %v8111 = vpack.c.b16 %v7742, %v7739
    %v8112 = vpack.c.b16 %v7743, %v7740
    %v8113 = vpack.c.b16 %v7747, %v7744
    %v8114 = vpack.c.b16 %v7748, %v7745
    %v8115 = vpack.c.b16 %v7749, %v7746
    %v8116 = vpack.c.b16 %v7753, %v7750
    %v8117 = vpack.c.b16 %v7754, %v7751
    %v8118 = vpack.c.b16 %v7755, %v7752
    %v8119 = vpack.c.b16 %v7759, %v7756
    %v8120 = vpack.c.b16 %v7760, %v7757
    %v8121 = vpack.c.b16 %v7761, %v7758
    %v8122 = vpack.c.b16 %v7765, %v7762
    %v8123 = vpack.c.b16 %v7766, %v7763
    %v8124 = vpack.c.b16 %v7767, %v7764
    %v8125 = vpack.c.b16 %v7771, %v7768
    %v8126 = vpack.c.b16 %v7772, %v7769
    %v8127 = vpack.c.b16 %v7773, %v7770
    %v8128 = vpack.c.b16 %v7777, %v7774
    %v8129 = vpack.c.b16 %v7778, %v7775
    %v8130 = vpack.c.b16 %v7779, %v7776
    %v8131 = vpack.c.b16 %v7783, %v7780
    %v8132 = vpack.c.b16 %v7784, %v7781
    %v8133 = vpack.c.b16 %v7785, %v7782
    %v8134 = vpack.c.b16 %v7789, %v7786
    %v8135 = vpack.c.b16 %v7790, %v7787
    %v8136 = vpack.c.b16 %v7791, %v7788
    %v8137 = vpack.c.b16 %v7795, %v7792
    %v8138 = vpack.c.b16 %v7796, %v7793
    %v8139 = vpack.c.b16 %v7797, %v7794
    %v8140 = vpack.c.b16 %v7801, %v7798
    %v8141 = vpack.c.b16 %v7802, %v7799
    %v8142 = vpack.c.b16 %v7803, %v7800
    %v8143 = vpack.c.b16 %v7807, %v7804
    %v8144 = vpack.c.b16 %v7808, %v7805
    %v8145 = vpack.c.b16 %v7809, %v7806
    %v8146 = vpack.c.b16 %v7813, %v7810
    %v8147 = vpack.c.b16 %v7814, %v7811
    %v8148 = vpack.c.b16 %v7815, %v7812
    %v8149 = vpack.c.b16 %v7819, %v7816
    %v8150 = vpack.c.b16 %v7820, %v7817
    %v8151 = vpack.c.b16 %v7821, %v7818
    %v8152 = vpack.c.b16 %v7825, %v7822
    %v8153 = vpack.c.b16 %v7826, %v7823
    %v8154 = vpack.c.b16 %v7827, %v7824
    %v8155 = vpack.c.b16 %v7831, %v7828
    %v8156 = vpack.c.b16 %v7832, %v7829
    %v8157 = vpack.c.b16 %v7833, %v7830
    %v8158 = vpack.c.b16 %v7837, %v7834
    %v8159 = vpack.c.b16 %v7838, %v7835
    %v8160 = vpack.c.b16 %v7839, %v7836
    %v8161 = vpack.c.b16 %v7843, %v7840
    %v8162 = vpack.c.b16 %v7844, %v7841
    %v8163 = vpack.c.b16 %v7845, %v7842
    %v8164 = vpack.c.b16 %v7849, %v7846
    %v8165 = vpack.c.b16 %v7850, %v7847
    %v8166 = vpack.c.b16 %v7851, %v7848
    %v8167 = vpack.c.b16 %v7855, %v7852
    %v8168 = vpack.c.b16 %v7856, %v7853
    %v8169 = vpack.c.b16 %v7857, %v7854
    %v8170 = vpack.c.b16 %v7861, %v7858
    %v8171 = vpack.c.b16 %v7862, %v7859
    %v8172 = vpack.c.b16 %v7863, %v7860
    %v8173 = vpack.c.b16 %v7867, %v7864
    %v8174 = vpack.c.b16 %v7868, %v7865
    %v8175 = vpack.c.b16 %v7869, %v7866
    %v8176 = vpack.c.b16 %v7873, %v7870
    %v8177 = vpack.c.b16 %v7874, %v7871
    %v8178 = vpack.c.b16 %v7875, %v7872
    %v8179 = vpack.c.b16 %v7879, %v7876
    %v8180 = vpack.c.b16 %v7880, %v7877
    %v8181 = vpack.c.b16 %v7881, %v7878
    %v8182 = vpack.c.b16 %v7885, %v7882
    %v8183 = vpack.c.b16 %v7886, %v7883
    %v8184 = vpack.c.b16 %v7887, %v7884
    %v8185 = vpack.c.b16 %v7891, %v7888
    %v8186 = vpack.c.b16 %v7892, %v7889
    %v8187 = vpack.c.b16 %v7893, %v7890
    %v8188 = vpack.c.b16 %v7897, %v7894
    %v8189 = vpack.c.b16 %v7898, %v7895
    %v8190 = vpack.c.b16 %v7899, %v7896
    %v8191 = vpack.c.b16 %v7903, %v7900
    %v8192 = vpack.c.b16 %v7904, %v7901
    %v8193 = vpack.c.b16 %v7905, %v7902
    %v8194 = vpack.c.b16 %v7909, %v7906
    %v8195 = vpack.c.b16 %v7910, %v7907
    %v8196 = vpack.c.b16 %v7911, %v7908
    %v8197 = vpack.c.b16 %v7915, %v7912
    %v8198 = vpack.c.b16 %v7916, %v7913
    %v8199 = vpack.c.b16 %v7917, %v7914
    %v8200 = vpack.c.b16 %v7921, %v7918
    %v8201 = vpack.c.b16 %v7922, %v7919
    %v8202 = vpack.c.b16 %v7923, %v7920
    %v8203 = vpack.c.b16 %v7927, %v7924
    %v8204 = vpack.c.b16 %v7928, %v7925
    %v8205 = vpack.c.b16 %v7929, %v7926
    %v8206 = vpack.c.b16 %v7933, %v7930
    %v8207 = vpack.c.b16 %v7934, %v7931
    %v8208 = vpack.c.b16 %v7935, %v7932
    %v8209 = vpack.c.b16 %v7939, %v7936
    %v8210 = vpack.c.b16 %v7940, %v7937
    %v8211 = vpack.c.b16 %v7941, %v7938
    %v8212 = vpack.c.b16 %v7945, %v7942
    %v8213 = vpack.c.b16 %v7946, %v7943
    %v8214 = vpack.c.b16 %v7947, %v7944
    %v8215 = vpack.c.b16 %v7951, %v7948
    %v8216 = vpack.c.b16 %v7952, %v7949
    %v8217 = vpack.c.b16 %v7953, %v7950
    %v8218 = vpack.c.b16 %v7957, %v7954
    %v8219 = vpack.c.b16 %v7958, %v7955
    %v8220 = vpack.c.b16 %v7959, %v7956
    %v8221 = vpack.c.b16 %v7963, %v7960
    %v8222 = vpack.c.b16 %v7964, %v7961
    %v8223 = vpack.c.b16 %v7965, %v7962
    %v8224 = vpack.c.b16 %v7969, %v7966
    %v8225 = vpack.c.b16 %v7970, %v7967
    %v8226 = vpack.c.b16 %v7971, %v7968
    %v8227 = vpack.c.b16 %v7975, %v7972
    %v8228 = vpack.c.b16 %v7976, %v7973
    %v8229 = vpack.c.b16 %v7977, %v7974
    %v8230 = vpack.c.b16 %v7981, %v7978
    %v8231 = vpack.c.b16 %v7982, %v7979
    %v8232 = vpack.c.b16 %v7983, %v7980
    %v8233 = vpack.c.b16 %v7987, %v7984
    %v8234 = vpack.c.b16 %v7988, %v7985
    %v8235 = vpack.c.b16 %v7989, %v7986
    %v8236 = vpack.c.b16 %v7993, %v7990
    %v8237 = vpack.c.b16 %v7994, %v7991
    %v8238 = vpack.c.b16 %v7995, %v7992
    %v8239 = vpack.c.b16 %v7999, %v7996
    %v8240 = vpack.c.b16 %v8000, %v7997
    %v8241 = vpack.c.b16 %v8001, %v7998
    %v8242 = vpack.c.b16 %v8005, %v8002
    %v8243 = vpack.c.b16 %v8006, %v8003
    %v8244 = vpack.c.b16 %v8007, %v8004
    %v8245 = vpack.c.b16 %v8011, %v8008
    %v8246 = vpack.c.b16 %v8012, %v8009
    %v8247 = vpack.c.b16 %v8013, %v8010
    %v8248 = vpack.c.b16 %v8017, %v8014
    %v8249 = vpack.c.b16 %v8018, %v8015
    %v8250 = vpack.c.b16 %v8019, %v8016
    %v8251 = vpack.c.b16 %v8023, %v8020
    %v8252 = vpack.c.b16 %v8024, %v8021
    %v8253 = vpack.c.b16 %v8025, %v8022
    %v8254 = vpack.c.b16 %v8029, %v8026
    %v8255 = vpack.c.b16 %v8030, %v8027
    %v8256 = vpack.c.b16 %v8031, %v8028
    %v8257 = vpack.c.b16 %v8035, %v8032
    %v8258 = vpack.c.b16 %v8036, %v8033
    %v8259 = vpack.c.b16 %v8037, %v8034
    %v8260 = vpack.c.b16 %v8041, %v8038
    %v8261 = vpack.c.b16 %v8042, %v8039
    %v8262 = vpack.c.b16 %v8043, %v8040
    %v8263 = vpack.c.b16 %v8047, %v8044
    %v8264 = vpack.c.b16 %v8048, %v8045
    %v8265 = vpack.c.b16 %v8049, %v8046
    %v8266 = vpack.c.b16 %v8053, %v8050
    %v8267 = vpack.c.b16 %v8054, %v8051
    %v8268 = vpack.c.b16 %v8055, %v8052
    %v8269 = vpack.c.b16 %v8059, %v8056
    %v8270 = vpack.c.b16 %v8060, %v8057
    %v8271 = vpack.c.b16 %v8061, %v8058
    %v8272 = vpack.c.b16 %v8065, %v8062
    %v8273 = vpack.c.b16 %v8066, %v8063
    %v8274 = vpack.c.b16 %v8067, %v8064
    %v8275 = vpack.c.b16 %v8071, %v8068
    %v8276 = vpack.c.b16 %v8072, %v8069
    %v8277 = vpack.c.b16 %v8073, %v8070
    %v8278 = vpack.c.b16 %v8077, %v8074
    %v8279 = vpack.c.b16 %v8078, %v8075
    %v8280 = vpack.c.b16 %v8079, %v8076
    %v8281 = vpack.c.b16 %v8083, %v8080
    %v8282 = vpack.c.b16 %v8084, %v8081
    %v8283 = vpack.c.b16 %v8085, %v8082
    %v8284 = vpack.c.b16 %v8089, %v8086
    %v8285 = vpack.c.b16 %v8090, %v8087
    %v8286 = vpack.c.b16 %v8091, %v8088
    %v8287 = vpack.c.b16 %v8095, %v8092
    %v8288 = vpack.c.b16 %v8096, %v8093
    %v8289 = vpack.c.b16 %v8097, %v8094
    %8482 = vmatpush.bf16.msra.mxu0 %v8119
    %8483 = vmatpush.bf16.msra.mxu0 %v8116
    %8484 = vmatpush.bf16.msra.mxu0 %v8113
    %8485 = vmatpush.bf16.msra.mxu0 %v8110
    %8486 = vmatpush.bf16.msra.mxu0 %v8107
    %8487 = vmatpush.bf16.msra.mxu0 %v8104
    %8488 = vmatpush.bf16.msra.mxu0 %v8101
    %8489 = vmatpush.bf16.msra.mxu0 %v8098
    %8490 = vmatmul.bf16.gmra.mxu0 %v7182
    %v8491 = vpop.f32.mrf.mxu0
    %v8492 = vadd.f32 %v7455, %v8491
    %v8493 = vpop.f32.mrf.mxu0
    %8494 = vdwg.mxu0
    %8495 = vmatpush.bf16.msra.mxu0 %v8143
    %8496 = vmatpush.bf16.msra.mxu0 %v8140
    %8497 = vmatpush.bf16.msra.mxu0 %v8137
    %8498 = vmatpush.bf16.msra.mxu0 %v8134
    %8499 = vmatpush.bf16.msra.mxu0 %v8131
    %8500 = vmatpush.bf16.msra.mxu0 %v8128
    %8501 = vmatpush.bf16.msra.mxu0 %v8125
    %8502 = vmatpush.bf16.msra.mxu0 %v8122
    %8503 = vmatmul.bf16.gmra.mxu0 %v7183
    %v8504 = vpop.f32.mrf.mxu0
    %v8505 = vadd.f32 %v8492, %v8504
    %v8506 = vpop.f32.mrf.mxu0
    %8507 = vdwg.mxu0
    %8508 = vmatpush.bf16.msra.mxu0 %v8167
    %8509 = vmatpush.bf16.msra.mxu0 %v8164
    %8510 = vmatpush.bf16.msra.mxu0 %v8161
    %8511 = vmatpush.bf16.msra.mxu0 %v8158
    %8512 = vmatpush.bf16.msra.mxu0 %v8155
    %8513 = vmatpush.bf16.msra.mxu0 %v8152
    %8514 = vmatpush.bf16.msra.mxu0 %v8149
    %8515 = vmatpush.bf16.msra.mxu0 %v8146
    %8516 = vmatmul.bf16.gmra.mxu0 %v7184
    %v8517 = vpop.f32.mrf.mxu0
    %v8518 = vadd.f32 %v8505, %v8517
    %v8519 = vpop.f32.mrf.mxu0
    %8520 = vdwg.mxu0
    %8521 = vmatpush.bf16.msra.mxu0 %v8191
    %8522 = vmatpush.bf16.msra.mxu0 %v8188
    %8523 = vmatpush.bf16.msra.mxu0 %v8185
    %8524 = vmatpush.bf16.msra.mxu0 %v8182
    %8525 = vmatpush.bf16.msra.mxu0 %v8179
    %8526 = vmatpush.bf16.msra.mxu0 %v8176
    %8527 = vmatpush.bf16.msra.mxu0 %v8173
    %8528 = vmatpush.bf16.msra.mxu0 %v8170
    %8529 = vmatmul.bf16.gmra.mxu0 %v7185
    %v8530 = vpop.f32.mrf.mxu0
    %v8531 = vadd.f32 %v8518, %v8530
    %v8532 = vpop.f32.mrf.mxu0
    %8533 = vdwg.mxu0
    %8534 = vmatpush.bf16.msra.mxu0 %v8215
    %8535 = vmatpush.bf16.msra.mxu0 %v8212
    %8536 = vmatpush.bf16.msra.mxu0 %v8209
    %8537 = vmatpush.bf16.msra.mxu0 %v8206
    %8538 = vmatpush.bf16.msra.mxu0 %v8203
    %8539 = vmatpush.bf16.msra.mxu0 %v8200
    %8540 = vmatpush.bf16.msra.mxu0 %v8197
    %8541 = vmatpush.bf16.msra.mxu0 %v8194
    %8542 = vmatmul.bf16.gmra.mxu0 %v7186
    %v8543 = vpop.f32.mrf.mxu0
    %v8544 = vadd.f32 %v8531, %v8543
    %v8545 = vpop.f32.mrf.mxu0
    %8546 = vdwg.mxu0
    %8547 = vmatpush.bf16.msra.mxu0 %v8239
    %8548 = vmatpush.bf16.msra.mxu0 %v8236
    %8549 = vmatpush.bf16.msra.mxu0 %v8233
    %8550 = vmatpush.bf16.msra.mxu0 %v8230
    %8551 = vmatpush.bf16.msra.mxu0 %v8227
    %8552 = vmatpush.bf16.msra.mxu0 %v8224
    %8553 = vmatpush.bf16.msra.mxu0 %v8221
    %8554 = vmatpush.bf16.msra.mxu0 %v8218
    %8555 = vmatmul.bf16.gmra.mxu0 %v7187
    %v8556 = vpop.f32.mrf.mxu0
    %v8557 = vadd.f32 %v8544, %v8556
    %v8558 = vpop.f32.mrf.mxu0
    %8559 = vdwg.mxu0
    %8560 = vmatpush.bf16.msra.mxu0 %v8263
    %8561 = vmatpush.bf16.msra.mxu0 %v8260
    %8562 = vmatpush.bf16.msra.mxu0 %v8257
    %8563 = vmatpush.bf16.msra.mxu0 %v8254
    %8564 = vmatpush.bf16.msra.mxu0 %v8251
    %8565 = vmatpush.bf16.msra.mxu0 %v8248
    %8566 = vmatpush.bf16.msra.mxu0 %v8245
    %8567 = vmatpush.bf16.msra.mxu0 %v8242
    %8568 = vmatmul.bf16.gmra.mxu0 %v7188
    %v8569 = vpop.f32.mrf.mxu0
    %v8570 = vadd.f32 %v8557, %v8569
    %v8571 = vpop.f32.mrf.mxu0
    %8572 = vdwg.mxu0
    %8573 = vmatpush.bf16.msra.mxu0 %v8287
    %8574 = vmatpush.bf16.msra.mxu0 %v8284
    %8575 = vmatpush.bf16.msra.mxu0 %v8281
    %8576 = vmatpush.bf16.msra.mxu0 %v8278
    %8577 = vmatpush.bf16.msra.mxu0 %v8275
    %8578 = vmatpush.bf16.msra.mxu0 %v8272
    %8579 = vmatpush.bf16.msra.mxu0 %v8269
    %8580 = vmatpush.bf16.msra.mxu0 %v8266
    %8581 = vmatmul.bf16.gmra.mxu0 %v7189
    %v8582 = vpop.f32.mrf.mxu0
    %v8583 = vadd.f32 %v8570, %v8582
    %v8584 = vpop.f32.mrf.mxu0
    %8585 = vdwg.mxu0
    %8586 = vmatpush.bf16.msra.mxu0 %v8120
    %8587 = vmatpush.bf16.msra.mxu0 %v8117
    %8588 = vmatpush.bf16.msra.mxu0 %v8114
    %8589 = vmatpush.bf16.msra.mxu0 %v8111
    %8590 = vmatpush.bf16.msra.mxu0 %v8108
    %8591 = vmatpush.bf16.msra.mxu0 %v8105
    %8592 = vmatpush.bf16.msra.mxu0 %v8102
    %8593 = vmatpush.bf16.msra.mxu0 %v8099
    %8594 = vmatmul.bf16.gmra.mxu0 %v7182
    %v8595 = vpop.f32.mrf.mxu0
    %v8596 = vadd.f32 %v7456, %v8595
    %v8597 = vpop.f32.mrf.mxu0
    %8598 = vdwg.mxu0
    %8599 = vmatpush.bf16.msra.mxu0 %v8144
    %8600 = vmatpush.bf16.msra.mxu0 %v8141
    %8601 = vmatpush.bf16.msra.mxu0 %v8138
    %8602 = vmatpush.bf16.msra.mxu0 %v8135
    %8603 = vmatpush.bf16.msra.mxu0 %v8132
    %8604 = vmatpush.bf16.msra.mxu0 %v8129
    %8605 = vmatpush.bf16.msra.mxu0 %v8126
    %8606 = vmatpush.bf16.msra.mxu0 %v8123
    %8607 = vmatmul.bf16.gmra.mxu0 %v7183
    %v8608 = vpop.f32.mrf.mxu0
    %v8609 = vadd.f32 %v8596, %v8608
    %v8610 = vpop.f32.mrf.mxu0
    %8611 = vdwg.mxu0
    %8612 = vmatpush.bf16.msra.mxu0 %v8168
    %8613 = vmatpush.bf16.msra.mxu0 %v8165
    %8614 = vmatpush.bf16.msra.mxu0 %v8162
    %8615 = vmatpush.bf16.msra.mxu0 %v8159
    %8616 = vmatpush.bf16.msra.mxu0 %v8156
    %8617 = vmatpush.bf16.msra.mxu0 %v8153
    %8618 = vmatpush.bf16.msra.mxu0 %v8150
    %8619 = vmatpush.bf16.msra.mxu0 %v8147
    %8620 = vmatmul.bf16.gmra.mxu0 %v7184
    %v8621 = vpop.f32.mrf.mxu0
    %v8622 = vadd.f32 %v8609, %v8621
    %v8623 = vpop.f32.mrf.mxu0
    %8624 = vdwg.mxu0
    %8625 = vmatpush.bf16.msra.mxu0 %v8192
    %8626 = vmatpush.bf16.msra.mxu0 %v8189
    %8627 = vmatpush.bf16.msra.mxu0 %v8186
    %8628 = vmatpush.bf16.msra.mxu0 %v8183
    %8629 = vmatpush.bf16.msra.mxu0 %v8180
    %8630 = vmatpush.bf16.msra.mxu0 %v8177
    %8631 = vmatpush.bf16.msra.mxu0 %v8174
    %8632 = vmatpush.bf16.msra.mxu0 %v8171
    %8633 = vmatmul.bf16.gmra.mxu0 %v7185
    %v8634 = vpop.f32.mrf.mxu0
    %v8635 = vadd.f32 %v8622, %v8634
    %v8636 = vpop.f32.mrf.mxu0
    %8637 = vdwg.mxu0
    %8638 = vmatpush.bf16.msra.mxu0 %v8216
    %8639 = vmatpush.bf16.msra.mxu0 %v8213
    %8640 = vmatpush.bf16.msra.mxu0 %v8210
    %8641 = vmatpush.bf16.msra.mxu0 %v8207
    %8642 = vmatpush.bf16.msra.mxu0 %v8204
    %8643 = vmatpush.bf16.msra.mxu0 %v8201
    %8644 = vmatpush.bf16.msra.mxu0 %v8198
    %8645 = vmatpush.bf16.msra.mxu0 %v8195
    %8646 = vmatmul.bf16.gmra.mxu0 %v7186
    %v8647 = vpop.f32.mrf.mxu0
    %v8648 = vadd.f32 %v8635, %v8647
    %v8649 = vpop.f32.mrf.mxu0
    %8650 = vdwg.mxu0
    %8651 = vmatpush.bf16.msra.mxu0 %v8240
    %8652 = vmatpush.bf16.msra.mxu0 %v8237
    %8653 = vmatpush.bf16.msra.mxu0 %v8234
    %8654 = vmatpush.bf16.msra.mxu0 %v8231
    %8655 = vmatpush.bf16.msra.mxu0 %v8228
    %8656 = vmatpush.bf16.msra.mxu0 %v8225
    %8657 = vmatpush.bf16.msra.mxu0 %v8222
    %8658 = vmatpush.bf16.msra.mxu0 %v8219
    %8659 = vmatmul.bf16.gmra.mxu0 %v7187
    %v8660 = vpop.f32.mrf.mxu0
    %v8661 = vadd.f32 %v8648, %v8660
    %v8662 = vpop.f32.mrf.mxu0
    %8663 = vdwg.mxu0
    %8664 = vmatpush.bf16.msra.mxu0 %v8264
    %8665 = vmatpush.bf16.msra.mxu0 %v8261
    %8666 = vmatpush.bf16.msra.mxu0 %v8258
    %8667 = vmatpush.bf16.msra.mxu0 %v8255
    %8668 = vmatpush.bf16.msra.mxu0 %v8252
    %8669 = vmatpush.bf16.msra.mxu0 %v8249
    %8670 = vmatpush.bf16.msra.mxu0 %v8246
    %8671 = vmatpush.bf16.msra.mxu0 %v8243
    %8672 = vmatmul.bf16.gmra.mxu0 %v7188
    %v8673 = vpop.f32.mrf.mxu0
    %v8674 = vadd.f32 %v8661, %v8673
    %v8675 = vpop.f32.mrf.mxu0
    %8676 = vdwg.mxu0
    %8677 = vmatpush.bf16.msra.mxu0 %v8288
    %8678 = vmatpush.bf16.msra.mxu0 %v8285
    %8679 = vmatpush.bf16.msra.mxu0 %v8282
    %8680 = vmatpush.bf16.msra.mxu0 %v8279
    %8681 = vmatpush.bf16.msra.mxu0 %v8276
    %8682 = vmatpush.bf16.msra.mxu0 %v8273
    %8683 = vmatpush.bf16.msra.mxu0 %v8270
    %8684 = vmatpush.bf16.msra.mxu0 %v8267
    %8685 = vmatmul.bf16.gmra.mxu0 %v7189
    %v8686 = vpop.f32.mrf.mxu0
    %v8687 = vadd.f32 %v8674, %v8686
    %v8688 = vpop.f32.mrf.mxu0
    %8689 = vdwg.mxu0
    %8690 = vmatpush.bf16.msra.mxu0 %v8121
    %8691 = vmatpush.bf16.msra.mxu0 %v8118
    %8692 = vmatpush.bf16.msra.mxu0 %v8115
    %8693 = vmatpush.bf16.msra.mxu0 %v8112
    %8694 = vmatpush.bf16.msra.mxu0 %v8109
    %8695 = vmatpush.bf16.msra.mxu0 %v8106
    %8696 = vmatpush.bf16.msra.mxu0 %v8103
    %8697 = vmatpush.bf16.msra.mxu0 %v8100
    %8698 = vmatmul.bf16.gmra.mxu0 %v7182
    %v8699 = vpop.f32.mrf.mxu0
    %v8700 = vadd.f32 %v7457, %v8699
    %v8701 = vpop.f32.mrf.mxu0
    %8702 = vdwg.mxu0
    %8703 = vmatpush.bf16.msra.mxu0 %v8145
    %8704 = vmatpush.bf16.msra.mxu0 %v8142
    %8705 = vmatpush.bf16.msra.mxu0 %v8139
    %8706 = vmatpush.bf16.msra.mxu0 %v8136
    %8707 = vmatpush.bf16.msra.mxu0 %v8133
    %8708 = vmatpush.bf16.msra.mxu0 %v8130
    %8709 = vmatpush.bf16.msra.mxu0 %v8127
    %8710 = vmatpush.bf16.msra.mxu0 %v8124
    %8711 = vmatmul.bf16.gmra.mxu0 %v7183
    %v8712 = vpop.f32.mrf.mxu0
    %v8713 = vadd.f32 %v8700, %v8712
    %v8714 = vpop.f32.mrf.mxu0
    %8715 = vdwg.mxu0
    %8716 = vmatpush.bf16.msra.mxu0 %v8169
    %8717 = vmatpush.bf16.msra.mxu0 %v8166
    %8718 = vmatpush.bf16.msra.mxu0 %v8163
    %8719 = vmatpush.bf16.msra.mxu0 %v8160
    %8720 = vmatpush.bf16.msra.mxu0 %v8157
    %8721 = vmatpush.bf16.msra.mxu0 %v8154
    %8722 = vmatpush.bf16.msra.mxu0 %v8151
    %8723 = vmatpush.bf16.msra.mxu0 %v8148
    %8724 = vmatmul.bf16.gmra.mxu0 %v7184
    %v8725 = vpop.f32.mrf.mxu0
    %v8726 = vadd.f32 %v8713, %v8725
    %v8727 = vpop.f32.mrf.mxu0
    %8728 = vdwg.mxu0
    %8729 = vmatpush.bf16.msra.mxu0 %v8193
    %8730 = vmatpush.bf16.msra.mxu0 %v8190
    %8731 = vmatpush.bf16.msra.mxu0 %v8187
    %8732 = vmatpush.bf16.msra.mxu0 %v8184
    %8733 = vmatpush.bf16.msra.mxu0 %v8181
    %8734 = vmatpush.bf16.msra.mxu0 %v8178
    %8735 = vmatpush.bf16.msra.mxu0 %v8175
    %8736 = vmatpush.bf16.msra.mxu0 %v8172
    %8737 = vmatmul.bf16.gmra.mxu0 %v7185
    %v8738 = vpop.f32.mrf.mxu0
    %v8739 = vadd.f32 %v8726, %v8738
    %v8740 = vpop.f32.mrf.mxu0
    %8741 = vdwg.mxu0
    %8742 = vmatpush.bf16.msra.mxu0 %v8217
    %8743 = vmatpush.bf16.msra.mxu0 %v8214
    %8744 = vmatpush.bf16.msra.mxu0 %v8211
    %8745 = vmatpush.bf16.msra.mxu0 %v8208
    %8746 = vmatpush.bf16.msra.mxu0 %v8205
    %8747 = vmatpush.bf16.msra.mxu0 %v8202
    %8748 = vmatpush.bf16.msra.mxu0 %v8199
    %8749 = vmatpush.bf16.msra.mxu0 %v8196
    %8750 = vmatmul.bf16.gmra.mxu0 %v7186
    %v8751 = vpop.f32.mrf.mxu0
    %v8752 = vadd.f32 %v8739, %v8751
    %v8753 = vpop.f32.mrf.mxu0
    %8754 = vdwg.mxu0
    %8755 = vmatpush.bf16.msra.mxu0 %v8241
    %8756 = vmatpush.bf16.msra.mxu0 %v8238
    %8757 = vmatpush.bf16.msra.mxu0 %v8235
    %8758 = vmatpush.bf16.msra.mxu0 %v8232
    %8759 = vmatpush.bf16.msra.mxu0 %v8229
    %8760 = vmatpush.bf16.msra.mxu0 %v8226
    %8761 = vmatpush.bf16.msra.mxu0 %v8223
    %8762 = vmatpush.bf16.msra.mxu0 %v8220
    %8763 = vmatmul.bf16.gmra.mxu0 %v7187
    %v8764 = vpop.f32.mrf.mxu0
    %v8765 = vadd.f32 %v8752, %v8764
    %v8766 = vpop.f32.mrf.mxu0
    %8767 = vdwg.mxu0
    %8768 = vmatpush.bf16.msra.mxu0 %v8265
    %8769 = vmatpush.bf16.msra.mxu0 %v8262
    %8770 = vmatpush.bf16.msra.mxu0 %v8259
    %8771 = vmatpush.bf16.msra.mxu0 %v8256
    %8772 = vmatpush.bf16.msra.mxu0 %v8253
    %8773 = vmatpush.bf16.msra.mxu0 %v8250
    %8774 = vmatpush.bf16.msra.mxu0 %v8247
    %8775 = vmatpush.bf16.msra.mxu0 %v8244
    %8776 = vmatmul.bf16.gmra.mxu0 %v7188
    %v8777 = vpop.f32.mrf.mxu0
    %v8778 = vadd.f32 %v8765, %v8777
    %v8779 = vpop.f32.mrf.mxu0
    %8780 = vdwg.mxu0
    %8781 = vmatpush.bf16.msra.mxu0 %v8289
    %8782 = vmatpush.bf16.msra.mxu0 %v8286
    %8783 = vmatpush.bf16.msra.mxu0 %v8283
    %8784 = vmatpush.bf16.msra.mxu0 %v8280
    %8785 = vmatpush.bf16.msra.mxu0 %v8277
    %8786 = vmatpush.bf16.msra.mxu0 %v8274
    %8787 = vmatpush.bf16.msra.mxu0 %v8271
    %8788 = vmatpush.bf16.msra.mxu0 %v8268
    %8789 = vmatmul.bf16.gmra.mxu0 %v7189
    %v8790 = vpop.f32.mrf.mxu0
    %v8791 = vadd.f32 %v8778, %v8790
    %v8792 = vpop.f32.mrf.mxu0
    %8793 = vdwg.mxu0
    %v8794 = vtanh.pop %v8583
    %v8795 = vtanh.pop %v8687
    %v8796 = vtanh.pop %v8791
    %8797 = vst [vmem:[%s11] sm:$0xff] %v8794
    %8798 = vst [vmem:[%s11 + $0x8] sm:$0xff] %v8795
    %8799 = vst [vmem:[%s11 + $0x10] sm:$0xff] %v8796
    // Predicated region
    $region66: #{decoder_forward.1} parent=1 // pred_check
      _
    $region67: #{decoder_forward.1} parent=1 // pred_check_branch
      %8801 = sbr.rel (0) target = $region69
    $region68: #{decoder_forward.1} parent=1 // pred_region
      _
    $region69: #{decoder_forward.1} parent=1 // pred_fallthru
      _
    // Predicated region
    $region70: #{decoder_forward.1} parent=1 // pred_check
      _
    $region71: #{decoder_forward.1} parent=1 // pred_check_branch
      %8803 = sbr.rel (0) target = $region73
    $region72: #{decoder_forward.1} parent=1 // pred_region
      _
    $region73: #{decoder_forward.1} parent=1 // pred_fallthru
      _
    %8804 = vsyncpa [#allocation3], 1
    %8805 = vsyncpa [#allocation5], 1
    %8806 = vsyncpa [#allocation8], 1

</llo_original>
